<compile_context>
chip_gen: v7x
topology: tpu7x:2x2x1
jax: 0.10.0
libtpu: 0.0.40
codegen_flags: <defaults>
</compile_context>

<pallas_src>
import math

import jax
import jax.numpy as jnp
from jax.experimental import pallas as pl
from jax.experimental.pallas import tpu as pltpu

# ---- module hyper-parameters (match the nn.Module usage) ----
H = 4                    # number of attention heads
D_MODEL = 32             # model width
D_K = D_MODEL // H       # per-head width
N_ATOMS = 8              # atoms per molecule (sequence length)
LAMBDA_ATT = 0.5         # lambda_attention
LAMBDA_ADJ = 1.0 - LAMBDA_ATT
ADJ_EPS = 1e-6           # eps in graph_attention adjacency normalization
MXU_ROWS = 128           # rows per attention chunk (one MXU tile)

# bf16 MXU operands are fine on v5e/v6e/v7x (the MXU is natively bf16; all
# elementwise work below stays f32 via preferred_element_type).  Kept f32 here
# for the tight numerical-parity check in __main__; when enabled the cast is
# applied uniformly to every matmul operand (including Wo).
MATMUL_DTYPE = jnp.float32


def mha_kernel(q_ref, k_ref, v_ref, mask_ref, adj_ref, w_ref, b_ref, out_ref):
    # q/k/v_ref, out_ref: (G*N, D) flat atom rows for this grid step
    # mask_ref, adj_ref:  (C, R, R) block-diagonal chunk slabs (R = CG*N = 128)
    # w_ref: (4, D, D) packed [Wq, Wk, Wv, Wo]; b_ref: (4, 1, D)
    C, R, _ = mask_ref.shape
    D = q_ref.shape[-1]
    d_k = D // H
    scale = 1.0 / math.sqrt(d_k)

    wq = w_ref[0].astype(MATMUL_DTYPE)
    wk = w_ref[1].astype(MATMUL_DTYPE)
    wv = w_ref[2].astype(MATMUL_DTYPE)
    wo = w_ref[3].astype(MATMUL_DTYPE)
    bq, bk, bv, bo = b_ref[0], b_ref[1], b_ref[2], b_ref[3]

    # Static unroll over chunks (C is 1-2 here); each chunk body is
    # self-contained and ends in a store, keeping vreg live ranges bounded.
    # TODO(synk): switch to lax.fori_loop over chunks if C is ever pushed high.
    for c in range(C):
        rows = slice(c * R, (c + 1) * R)

        xq = q_ref[rows, :].astype(MATMUL_DTYPE)
        xk = k_ref[rows, :].astype(MATMUL_DTYPE)
        xv = v_ref[rows, :].astype(MATMUL_DTYPE)

        # Row-batched projections: (R, D) @ (D, D); 1/sqrt(d_k) folded into q.
        q = (jnp.dot(xq, wq, preferred_element_type=jnp.float32) + bq) * scale
        k = jnp.dot(xk, wk, preferred_element_type=jnp.float32) + bk
        v = jnp.dot(xv, wv, preferred_element_type=jnp.float32) + bv

        mask_c = mask_ref[c]     # (R, R) additive, -1e9 on cross-graph entries
        adj_c = adj_ref[c]       # (R, R) lambda_adj * adj/(deg+eps), 0 off-block

        ctx = jnp.zeros((R, D), jnp.float32)
        for h in range(H):                         # static unroll over heads
            sl = slice(h * d_k, (h + 1) * d_k)
            q_h = q[:, sl].astype(MATMUL_DTYPE)    # (R, d_k)
            k_h = k[:, sl].astype(MATMUL_DTYPE)
            v_h = v[:, sl].astype(MATMUL_DTYPE)

            # One lane-dense scores matmul per head: (R, d_k) x (d_k, R).
            s = jax.lax.dot_general(q_h, k_h, (((1,), (1,)), ((), ())),
                                    preferred_element_type=jnp.float32)
            s = s + mask_c
            m = jnp.max(s, axis=-1, keepdims=True)
            e = jnp.exp(s - m)                     # cross-graph entries -> exactly 0
            inv_den = pl.reciprocal(jnp.sum(e, axis=-1, keepdims=True),
                                    approx=True)
            p_mix = e * (LAMBDA_ATT * inv_den) + adj_c

            # One PV matmul per head: (R, R) x (R, d_k).
            o_h = jnp.dot(p_mix.astype(MATMUL_DTYPE), v_h,
                          preferred_element_type=jnp.float32)
            # Fold head re-assembly into the output projection (no concatenate).
            ctx = ctx + jnp.dot(o_h.astype(MATMUL_DTYPE), wo[sl, :],
                                preferred_element_type=jnp.float32)

        # TODO(synk): a lane-dense (last dim multiple of 128) output view would
        # avoid masked vst on this 32-wide store; it would need an in-kernel
        # (R, D) -> (*, N*D) relayout whose cost is comparable to the ~64 KiB
        # of partial-store traffic it saves at these shapes, so it is skipped.
        out_ref[rows, :] = (ctx + bo).astype(out_ref.dtype)


def multi_headed_attention(query, key, value, mask, adjacency, w, b,
                           *, num_grid_steps=None):
    """query/key/value: (B, N, D); mask/adjacency: (B, N, N) per graph
    (mask is the additive attention mask, shared across heads);
    w: (4, D, D) packed [Wq, Wk, Wv, Wo] stored (in, out); b: (4, 1, D)."""
    B, N, D = query.shape
    assert D % H == 0

    # Chunking: CG graphs -> CG*N = 128 rows = one MXU tile per attention matmul.
    CG = max(1, min(MXU_ROWS // N, B))
    assert B % CG == 0, "batch must be divisible by graphs-per-chunk"
    R = CG * N
    num_chunks = B // CG

    # 1-2 grid steps total: 2 (default, when possible) so both v7x TensorCores
    # get work; on v5e/v6e a single step is marginally better (pass 1).
    if num_grid_steps is None:
        num_grid_steps = 2 if num_chunks % 2 == 0 else 1
    assert num_chunks % num_grid_steps == 0
    C = num_chunks // num_grid_steps              # chunks per grid step
    G = C * CG                                    # graphs per grid step

    # Flat activation views: free reshapes, three separate streams (no stack).
    qf = query.reshape(B * N, D)
    kf = key.reshape(B * N, D)
    vf = value.reshape(B * N, D)

    # Block-diagonal (R, R) chunk slabs (cheap wrapper-side prep, ~KBs of DMA):
    #   mask: per-graph additive mask on the diagonal blocks, -1e9 cross-graph.
    #   adj : lambda_adj * adj/(deg+eps) on the diagonal blocks, 0 cross-graph
    #         (exact division -> deletes the in-kernel sum+reciprocal).
    eye = jnp.eye(CG, dtype=bool)[None, :, :, None, None]       # (1,CG,CG,1,1)

    m4 = mask.astype(jnp.float32).reshape(num_chunks, CG, N, N)
    mask_bd = jnp.where(eye, m4[:, :, None, :, :], jnp.float32(-1e9))
    mask_bd = mask_bd.transpose(0, 1, 3, 2, 4).reshape(num_chunks, R, R)

    adj_f = adjacency.astype(jnp.float32)
    adj_n = LAMBDA_ADJ * adj_f / (adj_f.sum(axis=-1, keepdims=True) + ADJ_EPS)
    a4 = adj_n.reshape(num_chunks, CG, N, N)
    adj_bd = jnp.where(eye, a4[:, :, None, :, :], jnp.float32(0.0))
    adj_bd = adj_bd.transpose(0, 1, 3, 2, 4).reshape(num_chunks, R, R)

    d_k = D // H
    flops = (4 * 2 * B * N * D * D                       # q/k/v/out projections
             + H * num_chunks * 2 * (2 * R * R * d_k))   # scores + PV
    bytes_accessed = 4 * (3 * B * N * D + 2 * num_chunks * R * R
                          + w.size + b.size + B * N * D)
    cost = pl.CostEstimate(flops=int(flops),
                           transcendentals=int(H * num_chunks * R * R),
                           bytes_accessed=int(bytes_accessed))

    out = pl.pallas_call(
        mha_kernel,
        out_shape=jax.ShapeDtypeStruct((B * N, D), query.dtype),
        grid_spec=pltpu.PrefetchScalarGridSpec(
            num_scalar_prefetch=0,
            grid=(num_grid_steps,),
            in_specs=[
                pl.BlockSpec((G * N, D), lambda i: (i, 0)),    # q rows
                pl.BlockSpec((G * N, D), lambda i: (i, 0)),    # k rows
                pl.BlockSpec((G * N, D), lambda i: (i, 0)),    # v rows
                pl.BlockSpec((C, R, R), lambda i: (i, 0, 0)),  # block-diag mask
                pl.BlockSpec((C, R, R), lambda i: (i, 0, 0)),  # block-diag adj
                # Parameter slabs: constant index_map -> fetched once, resident.
                pl.BlockSpec((4, D, D), lambda i: (0, 0, 0)),
                pl.BlockSpec((4, 1, D), lambda i: (0, 0, 0)),
            ],
            out_specs=pl.BlockSpec((G * N, D), lambda i: (i, 0)),
        ),
        compiler_params=pltpu.CompilerParams(
            # One step per TensorCore on v7x; 1-2 cheap steps elsewhere.
            # VMEM footprint is ~2 MiB/step, far under the default scoped limit
            # on v5e/v6e/v7x, so no vmem_limit_bytes override is needed; deeper
            # pl.Buffered(...) is pointless with only 1-2 grid steps.
            dimension_semantics=("parallel",),
        ),
        cost_estimate=cost,
    )(qf, kf, vf, mask_bd, adj_bd, w, b)
    return out.reshape(B, N, D)                           # free reshape


def mha_reference(query, key, value, mask, adjacency, w, b):
    """Pure-JAX reference of the PyTorch forward (dropout = identity)."""
    B, N, D = query.shape
    d_k = D // H
    q = jnp.einsum('bnd,de->bne', query, w[0]) + b[0]
    k = jnp.einsum('bnd,de->bne', key, w[1]) + b[1]
    v = jnp.einsum('bnd,de->bne', value, w[2]) + b[2]

    def split(t):
        return t.reshape(B, N, H, d_k).transpose(0, 2, 1, 3)   # (B, H, N, d_k)

    qh, kh, vh = split(q), split(k), split(v)
    scores = jnp.einsum('bhid,bhjd->bhij', qh, kh) / math.sqrt(d_k)
    scores = scores + mask[:, None]
    p_attn = jax.nn.softmax(scores, axis=-1)
    adj_n = adjacency / (adjacency.sum(axis=-1, keepdims=True) + ADJ_EPS)
    p_w = LAMBDA_ATT * p_attn + LAMBDA_ADJ * adj_n[:, None]
    x = jnp.einsum('bhij,bhjd->bhid', p_w, vh)
    x = x.transpose(0, 2, 1, 3).reshape(B, N, D)
    return jnp.einsum('bnd,de->bne', x, w[3]) + b[3]


if __name__ == "__main__":
    key = jax.random.PRNGKey(0)
    kq, kk, kv, km, ka, kw, kb = jax.random.split(key, 7)

    B = 64   # molecules per call: 4 chunks of 16 graphs, 2 grid steps of 2 chunks
    q_in = jax.random.normal(kq, (B, N_ATOMS, D_MODEL), jnp.float32)
    k_in = jax.random.normal(kk, (B, N_ATOMS, D_MODEL), jnp.float32)
    v_in = jax.random.normal(kv, (B, N_ATOMS, D_MODEL), jnp.float32)

    # Additive mask per graph (0 = attend, -1e9 = masked); diagonal always kept.
    keep = jax.random.uniform(km, (B, N_ATOMS, N_ATOMS)) > 0.3
    keep = keep | jnp.eye(N_ATOMS, dtype=bool)[None]
    mask = jnp.where(keep, 0.0, -1e9).astype(jnp.float32)

    # Non-negative adjacency with self-loops.
    adj = (jax.random.uniform(ka, (B, N_ATOMS, N_ATOMS)) > 0.5).astype(jnp.float32)
    adj = adj + jnp.eye(N_ATOMS, dtype=jnp.float32)[None]

    # Packed parameters: [Wq, Wk, Wv, Wo] stored (in, out) and their biases.
    w = 0.1 * jax.random.normal(kw, (4, D_MODEL, D_MODEL), jnp.float32)
    b = 0.01 * jax.random.normal(kb, (4, 1, D_MODEL), jnp.float32)

    out = multi_headed_attention(q_in, k_in, v_in, mask, adj, w, b)
    out = jax.block_until_ready(out)

    ref = mha_reference(q_in, k_in, v_in, mask, adj, w, b)
    assert out.shape == (B, N_ATOMS, D_MODEL)
    max_err = float(jnp.max(jnp.abs(out - ref)))
    assert bool(jnp.allclose(out, ref, atol=2e-2, rtol=2e-2)), max_err
    print("KERNEL_OK")
</pallas_src>

<mosaic_0001>
module attributes {stable_mosaic.version = 11 : i64} {
  func.func @mha_kernel(%arg0: i32, %arg1: memref<256x32xf32, #tpu.memory_space<vmem>>, %arg2: memref<256x32xf32, #tpu.memory_space<vmem>>, %arg3: memref<256x32xf32, #tpu.memory_space<vmem>>, %arg4: memref<2x128x128xf32, #tpu.memory_space<vmem>>, %arg5: memref<2x128x128xf32, #tpu.memory_space<vmem>>, %arg6: memref<4x32x32xf32, #tpu.memory_space<vmem>>, %arg7: memref<4x1x32xf32, #tpu.memory_space<vmem>>, %arg8: memref<256x32xf32, #tpu.memory_space<vmem>>) attributes {dimension_semantics = [#tpu.dimension_semantics<parallel>], iteration_bounds = array<i64: 2>, scalar_prefetch = 0 : i64, scratch_operands = 0 : i64, tpu.core_type = #tpu.core_type<tc>, window_params = [{transform_indices = @transform_0, window_bounds = array<i64: 256, 32>}, {transform_indices = @transform_1, window_bounds = array<i64: 256, 32>}, {transform_indices = @transform_2, window_bounds = array<i64: 256, 32>}, {transform_indices = @transform_3, window_bounds = array<i64: 2, 128, 128>}, {transform_indices = @transform_4, window_bounds = array<i64: 2, 128, 128>}, {pipeline_mode = #tpu.pipeline_mode<synchronous>, transform_indices = @transform_5, window_bounds = array<i64: 4, 32, 32>}, {pipeline_mode = #tpu.pipeline_mode<synchronous>, transform_indices = @transform_6, window_bounds = array<i64: 4, 1, 32>}, {transform_indices = @transform_7, window_bounds = array<i64: 256, 32>}]} {
    %c0 = arith.constant 0 : index
    %c0_0 = arith.constant 0 : index
    %c0_1 = arith.constant 0 : index
    %0 = vector.load %arg6[%c0, %c0_0, %c0_1] : memref<4x32x32xf32, #tpu.memory_space<vmem>>, vector<1x32x32xf32>
    %1 = vector.shape_cast %0 : vector<1x32x32xf32> to vector<32x32xf32>
    %c1 = arith.constant 1 : index
    %c0_2 = arith.constant 0 : index
    %c0_3 = arith.constant 0 : index
    %2 = vector.load %arg6[%c1, %c0_2, %c0_3] : memref<4x32x32xf32, #tpu.memory_space<vmem>>, vector<1x32x32xf32>
    %3 = vector.shape_cast %2 : vector<1x32x32xf32> to vector<32x32xf32>
    %c2 = arith.constant 2 : index
    %c0_4 = arith.constant 0 : index
    %c0_5 = arith.constant 0 : index
    %4 = vector.load %arg6[%c2, %c0_4, %c0_5] : memref<4x32x32xf32, #tpu.memory_space<vmem>>, vector<1x32x32xf32>
    %5 = vector.shape_cast %4 : vector<1x32x32xf32> to vector<32x32xf32>
    %c3 = arith.constant 3 : index
    %c0_6 = arith.constant 0 : index
    %c0_7 = arith.constant 0 : index
    %6 = vector.load %arg6[%c3, %c0_6, %c0_7] : memref<4x32x32xf32, #tpu.memory_space<vmem>>, vector<1x32x32xf32>
    %7 = vector.shape_cast %6 : vector<1x32x32xf32> to vector<32x32xf32>
    %c0_8 = arith.constant 0 : index
    %c0_9 = arith.constant 0 : index
    %c0_10 = arith.constant 0 : index
    %8 = vector.load %arg7[%c0_8, %c0_9, %c0_10] : memref<4x1x32xf32, #tpu.memory_space<vmem>>, vector<1x1x32xf32>
    %9 = vector.shape_cast %8 : vector<1x1x32xf32> to vector<1x32xf32>
    %c1_11 = arith.constant 1 : index
    %c0_12 = arith.constant 0 : index
    %c0_13 = arith.constant 0 : index
    %10 = vector.load %arg7[%c1_11, %c0_12, %c0_13] : memref<4x1x32xf32, #tpu.memory_space<vmem>>, vector<1x1x32xf32>
    %11 = vector.shape_cast %10 : vector<1x1x32xf32> to vector<1x32xf32>
    %c2_14 = arith.constant 2 : index
    %c0_15 = arith.constant 0 : index
    %c0_16 = arith.constant 0 : index
    %12 = vector.load %arg7[%c2_14, %c0_15, %c0_16] : memref<4x1x32xf32, #tpu.memory_space<vmem>>, vector<1x1x32xf32>
    %13 = vector.shape_cast %12 : vector<1x1x32xf32> to vector<1x32xf32>
    %c3_17 = arith.constant 3 : index
    %c0_18 = arith.constant 0 : index
    %c0_19 = arith.constant 0 : index
    %14 = vector.load %arg7[%c3_17, %c0_18, %c0_19] : memref<4x1x32xf32, #tpu.memory_space<vmem>>, vector<1x1x32xf32>
    %15 = vector.shape_cast %14 : vector<1x1x32xf32> to vector<1x32xf32>
    %c0_20 = arith.constant 0 : index
    %c0_21 = arith.constant 0 : index
    %16 = vector.load %arg1[%c0_20, %c0_21] : memref<256x32xf32, #tpu.memory_space<vmem>>, vector<128x32xf32>
    %c0_22 = arith.constant 0 : index
    %c0_23 = arith.constant 0 : index
    %17 = vector.load %arg2[%c0_22, %c0_23] : memref<256x32xf32, #tpu.memory_space<vmem>>, vector<128x32xf32>
    %c0_24 = arith.constant 0 : index
    %c0_25 = arith.constant 0 : index
    %18 = vector.load %arg3[%c0_24, %c0_25] : memref<256x32xf32, #tpu.memory_space<vmem>>, vector<128x32xf32>
    %cst = arith.constant dense<0.000000e+00> : vector<128x32xf32>
    %19 = tpu.matmul %16, %1, %cst {dimension_numbers = #tpu.dot_dimension_numbers<[1], [0], [0], [1], [0, 0, 1, 1], [], []>} : vector<128x32xf32>, vector<32x32xf32>, vector<128x32xf32> -> vector<128x32xf32>
    %20 = vector.broadcast %9 : vector<1x32xf32> to vector<128x32xf32>
    %21 = arith.addf %19, %20 : vector<128x32xf32>
    %cst_26 = arith.constant 0.353553385 : f32
    %22 = vector.broadcast %cst_26 : f32 to vector<128x32xf32>
    %23 = arith.mulf %21, %22 : vector<128x32xf32>
    %cst_27 = arith.constant dense<0.000000e+00> : vector<128x32xf32>
    %24 = tpu.matmul %17, %3, %cst_27 {dimension_numbers = #tpu.dot_dimension_numbers<[1], [0], [0], [1], [0, 0, 1, 1], [], []>} : vector<128x32xf32>, vector<32x32xf32>, vector<128x32xf32> -> vector<128x32xf32>
    %25 = vector.broadcast %11 : vector<1x32xf32> to vector<128x32xf32>
    %26 = arith.addf %24, %25 : vector<128x32xf32>
    %cst_28 = arith.constant dense<0.000000e+00> : vector<128x32xf32>
    %27 = tpu.matmul %18, %5, %cst_28 {dimension_numbers = #tpu.dot_dimension_numbers<[1], [0], [0], [1], [0, 0, 1, 1], [], []>} : vector<128x32xf32>, vector<32x32xf32>, vector<128x32xf32> -> vector<128x32xf32>
    %28 = vector.broadcast %13 : vector<1x32xf32> to vector<128x32xf32>
    %29 = arith.addf %27, %28 : vector<128x32xf32>
    %c0_29 = arith.constant 0 : index
    %c0_30 = arith.constant 0 : index
    %c0_31 = arith.constant 0 : index
    %30 = vector.load %arg4[%c0_29, %c0_30, %c0_31] : memref<2x128x128xf32, #tpu.memory_space<vmem>>, vector<1x128x128xf32>
    %31 = vector.shape_cast %30 : vector<1x128x128xf32> to vector<128x128xf32>
    %c0_32 = arith.constant 0 : index
    %c0_33 = arith.constant 0 : index
    %c0_34 = arith.constant 0 : index
    %32 = vector.load %arg5[%c0_32, %c0_33, %c0_34] : memref<2x128x128xf32, #tpu.memory_space<vmem>>, vector<1x128x128xf32>
    %33 = vector.shape_cast %32 : vector<1x128x128xf32> to vector<128x128xf32>
    %cst_35 = arith.constant 0.000000e+00 : f32
    %34 = vector.broadcast %cst_35 : f32 to vector<128x32xf32>
    %35 = vector.extract_strided_slice %23 {offsets = [0, 0], sizes = [128, 8], strides = [1, 1]} : vector<128x32xf32> to vector<128x8xf32>
    %36 = vector.extract_strided_slice %26 {offsets = [0, 0], sizes = [128, 8], strides = [1, 1]} : vector<128x32xf32> to vector<128x8xf32>
    %37 = vector.extract_strided_slice %29 {offsets = [0, 0], sizes = [128, 8], strides = [1, 1]} : vector<128x32xf32> to vector<128x8xf32>
    %cst_36 = arith.constant dense<0.000000e+00> : vector<128x128xf32>
    %38 = tpu.matmul %35, %36, %cst_36 {dimension_numbers = #tpu.dot_dimension_numbers<[1], [1], [0], [0], [0, 0, 1, 0], [], []>} : vector<128x8xf32>, vector<128x8xf32>, vector<128x128xf32> -> vector<128x128xf32>
    %39 = arith.addf %38, %31 : vector<128x128xf32>
    %cst_37 = arith.constant dense<0xFF800000> : vector<128xf32>
    %40 = vector.multi_reduction <maximumf>, %39, %cst_37 [1] : vector<128x128xf32> to vector<128xf32>
    %41 = vector.shape_cast %40 : vector<128xf32> to vector<128x1xf32>
    %42 = vector.broadcast %41 : vector<128x1xf32> to vector<128x128xf32>
    %43 = arith.subf %39, %42 : vector<128x128xf32>
    %44 = math.exp %43 : vector<128x128xf32>
    %cst_38 = arith.constant dense<0.000000e+00> : vector<128xf32>
    %45 = vector.multi_reduction <add>, %44, %cst_38 [1] : vector<128x128xf32> to vector<128xf32>
    %46 = vector.shape_cast %45 : vector<128xf32> to vector<128x1xf32>
    %47 = tpu.reciprocal %46 {approx = true} : vector<128x1xf32> -> vector<128x1xf32>
    %cst_39 = arith.constant 5.000000e-01 : f32
    %48 = vector.broadcast %cst_39 : f32 to vector<128x1xf32>
    %49 = arith.mulf %48, %47 : vector<128x1xf32>
    %50 = vector.broadcast %49 : vector<128x1xf32> to vector<128x128xf32>
    %51 = arith.mulf %44, %50 : vector<128x128xf32>
    %52 = arith.addf %51, %33 : vector<128x128xf32>
    %cst_40 = arith.constant dense<0.000000e+00> : vector<128x8xf32>
    %53 = tpu.matmul %52, %37, %cst_40 {dimension_numbers = #tpu.dot_dimension_numbers<[1], [0], [0], [1], [0, 0, 1, 1], [], []>} : vector<128x128xf32>, vector<128x8xf32>, vector<128x8xf32> -> vector<128x8xf32>
    %54 = vector.extract_strided_slice %7 {offsets = [0, 0], sizes = [8, 32], strides = [1, 1]} : vector<32x32xf32> to vector<8x32xf32>
    %cst_41 = arith.constant dense<0.000000e+00> : vector<128x32xf32>
    %55 = tpu.matmul %53, %54, %cst_41 {dimension_numbers = #tpu.dot_dimension_numbers<[1], [0], [0], [1], [0, 0, 1, 1], [], []>} : vector<128x8xf32>, vector<8x32xf32>, vector<128x32xf32> -> vector<128x32xf32>
    %56 = arith.addf %34, %55 : vector<128x32xf32>
    %57 = vector.extract_strided_slice %23 {offsets = [0, 8], sizes = [128, 8], strides = [1, 1]} : vector<128x32xf32> to vector<128x8xf32>
    %58 = vector.extract_strided_slice %26 {offsets = [0, 8], sizes = [128, 8], strides = [1, 1]} : vector<128x32xf32> to vector<128x8xf32>
    %59 = vector.extract_strided_slice %29 {offsets = [0, 8], sizes = [128, 8], strides = [1, 1]} : vector<128x32xf32> to vector<128x8xf32>
    %cst_42 = arith.constant dense<0.000000e+00> : vector<128x128xf32>
    %60 = tpu.matmul %57, %58, %cst_42 {dimension_numbers = #tpu.dot_dimension_numbers<[1], [1], [0], [0], [0, 0, 1, 0], [], []>} : vector<128x8xf32>, vector<128x8xf32>, vector<128x128xf32> -> vector<128x128xf32>
    %61 = arith.addf %60, %31 : vector<128x128xf32>
    %cst_43 = arith.constant dense<0xFF800000> : vector<128xf32>
    %62 = vector.multi_reduction <maximumf>, %61, %cst_43 [1] : vector<128x128xf32> to vector<128xf32>
    %63 = vector.shape_cast %62 : vector<128xf32> to vector<128x1xf32>
    %64 = vector.broadcast %63 : vector<128x1xf32> to vector<128x128xf32>
    %65 = arith.subf %61, %64 : vector<128x128xf32>
    %66 = math.exp %65 : vector<128x128xf32>
    %cst_44 = arith.constant dense<0.000000e+00> : vector<128xf32>
    %67 = vector.multi_reduction <add>, %66, %cst_44 [1] : vector<128x128xf32> to vector<128xf32>
    %68 = vector.shape_cast %67 : vector<128xf32> to vector<128x1xf32>
    %69 = tpu.reciprocal %68 {approx = true} : vector<128x1xf32> -> vector<128x1xf32>
    %cst_45 = arith.constant 5.000000e-01 : f32
    %70 = vector.broadcast %cst_45 : f32 to vector<128x1xf32>
    %71 = arith.mulf %70, %69 : vector<128x1xf32>
    %72 = vector.broadcast %71 : vector<128x1xf32> to vector<128x128xf32>
    %73 = arith.mulf %66, %72 : vector<128x128xf32>
    %74 = arith.addf %73, %33 : vector<128x128xf32>
    %cst_46 = arith.constant dense<0.000000e+00> : vector<128x8xf32>
    %75 = tpu.matmul %74, %59, %cst_46 {dimension_numbers = #tpu.dot_dimension_numbers<[1], [0], [0], [1], [0, 0, 1, 1], [], []>} : vector<128x128xf32>, vector<128x8xf32>, vector<128x8xf32> -> vector<128x8xf32>
    %76 = vector.extract_strided_slice %7 {offsets = [8, 0], sizes = [8, 32], strides = [1, 1]} : vector<32x32xf32> to vector<8x32xf32>
    %cst_47 = arith.constant dense<0.000000e+00> : vector<128x32xf32>
    %77 = tpu.matmul %75, %76, %cst_47 {dimension_numbers = #tpu.dot_dimension_numbers<[1], [0], [0], [1], [0, 0, 1, 1], [], []>} : vector<128x8xf32>, vector<8x32xf32>, vector<128x32xf32> -> vector<128x32xf32>
    %78 = arith.addf %56, %77 : vector<128x32xf32>
    %79 = vector.extract_strided_slice %23 {offsets = [0, 16], sizes = [128, 8], strides = [1, 1]} : vector<128x32xf32> to vector<128x8xf32>
    %80 = vector.extract_strided_slice %26 {offsets = [0, 16], sizes = [128, 8], strides = [1, 1]} : vector<128x32xf32> to vector<128x8xf32>
    %81 = vector.extract_strided_slice %29 {offsets = [0, 16], sizes = [128, 8], strides = [1, 1]} : vector<128x32xf32> to vector<128x8xf32>
    %cst_48 = arith.constant dense<0.000000e+00> : vector<128x128xf32>
    %82 = tpu.matmul %79, %80, %cst_48 {dimension_numbers = #tpu.dot_dimension_numbers<[1], [1], [0], [0], [0, 0, 1, 0], [], []>} : vector<128x8xf32>, vector<128x8xf32>, vector<128x128xf32> -> vector<128x128xf32>
    %83 = arith.addf %82, %31 : vector<128x128xf32>
    %cst_49 = arith.constant dense<0xFF800000> : vector<128xf32>
    %84 = vector.multi_reduction <maximumf>, %83, %cst_49 [1] : vector<128x128xf32> to vector<128xf32>
    %85 = vector.shape_cast %84 : vector<128xf32> to vector<128x1xf32>
    %86 = vector.broadcast %85 : vector<128x1xf32> to vector<128x128xf32>
    %87 = arith.subf %83, %86 : vector<128x128xf32>
    %88 = math.exp %87 : vector<128x128xf32>
    %cst_50 = arith.constant dense<0.000000e+00> : vector<128xf32>
    %89 = vector.multi_reduction <add>, %88, %cst_50 [1] : vector<128x128xf32> to vector<128xf32>
    %90 = vector.shape_cast %89 : vector<128xf32> to vector<128x1xf32>
    %91 = tpu.reciprocal %90 {approx = true} : vector<128x1xf32> -> vector<128x1xf32>
    %cst_51 = arith.constant 5.000000e-01 : f32
    %92 = vector.broadcast %cst_51 : f32 to vector<128x1xf32>
    %93 = arith.mulf %92, %91 : vector<128x1xf32>
    %94 = vector.broadcast %93 : vector<128x1xf32> to vector<128x128xf32>
    %95 = arith.mulf %88, %94 : vector<128x128xf32>
    %96 = arith.addf %95, %33 : vector<128x128xf32>
    %cst_52 = arith.constant dense<0.000000e+00> : vector<128x8xf32>
    %97 = tpu.matmul %96, %81, %cst_52 {dimension_numbers = #tpu.dot_dimension_numbers<[1], [0], [0], [1], [0, 0, 1, 1], [], []>} : vector<128x128xf32>, vector<128x8xf32>, vector<128x8xf32> -> vector<128x8xf32>
    %98 = vector.extract_strided_slice %7 {offsets = [16, 0], sizes = [8, 32], strides = [1, 1]} : vector<32x32xf32> to vector<8x32xf32>
    %cst_53 = arith.constant dense<0.000000e+00> : vector<128x32xf32>
    %99 = tpu.matmul %97, %98, %cst_53 {dimension_numbers = #tpu.dot_dimension_numbers<[1], [0], [0], [1], [0, 0, 1, 1], [], []>} : vector<128x8xf32>, vector<8x32xf32>, vector<128x32xf32> -> vector<128x32xf32>
    %100 = arith.addf %78, %99 : vector<128x32xf32>
    %101 = vector.extract_strided_slice %23 {offsets = [0, 24], sizes = [128, 8], strides = [1, 1]} : vector<128x32xf32> to vector<128x8xf32>
    %102 = vector.extract_strided_slice %26 {offsets = [0, 24], sizes = [128, 8], strides = [1, 1]} : vector<128x32xf32> to vector<128x8xf32>
    %103 = vector.extract_strided_slice %29 {offsets = [0, 24], sizes = [128, 8], strides = [1, 1]} : vector<128x32xf32> to vector<128x8xf32>
    %cst_54 = arith.constant dense<0.000000e+00> : vector<128x128xf32>
    %104 = tpu.matmul %101, %102, %cst_54 {dimension_numbers = #tpu.dot_dimension_numbers<[1], [1], [0], [0], [0, 0, 1, 0], [], []>} : vector<128x8xf32>, vector<128x8xf32>, vector<128x128xf32> -> vector<128x128xf32>
    %105 = arith.addf %104, %31 : vector<128x128xf32>
    %cst_55 = arith.constant dense<0xFF800000> : vector<128xf32>
    %106 = vector.multi_reduction <maximumf>, %105, %cst_55 [1] : vector<128x128xf32> to vector<128xf32>
    %107 = vector.shape_cast %106 : vector<128xf32> to vector<128x1xf32>
    %108 = vector.broadcast %107 : vector<128x1xf32> to vector<128x128xf32>
    %109 = arith.subf %105, %108 : vector<128x128xf32>
    %110 = math.exp %109 : vector<128x128xf32>
    %cst_56 = arith.constant dense<0.000000e+00> : vector<128xf32>
    %111 = vector.multi_reduction <add>, %110, %cst_56 [1] : vector<128x128xf32> to vector<128xf32>
    %112 = vector.shape_cast %111 : vector<128xf32> to vector<128x1xf32>
    %113 = tpu.reciprocal %112 {approx = true} : vector<128x1xf32> -> vector<128x1xf32>
    %cst_57 = arith.constant 5.000000e-01 : f32
    %114 = vector.broadcast %cst_57 : f32 to vector<128x1xf32>
    %115 = arith.mulf %114, %113 : vector<128x1xf32>
    %116 = vector.broadcast %115 : vector<128x1xf32> to vector<128x128xf32>
    %117 = arith.mulf %110, %116 : vector<128x128xf32>
    %118 = arith.addf %117, %33 : vector<128x128xf32>
    %cst_58 = arith.constant dense<0.000000e+00> : vector<128x8xf32>
    %119 = tpu.matmul %118, %103, %cst_58 {dimension_numbers = #tpu.dot_dimension_numbers<[1], [0], [0], [1], [0, 0, 1, 1], [], []>} : vector<128x128xf32>, vector<128x8xf32>, vector<128x8xf32> -> vector<128x8xf32>
    %120 = vector.extract_strided_slice %7 {offsets = [24, 0], sizes = [8, 32], strides = [1, 1]} : vector<32x32xf32> to vector<8x32xf32>
    %cst_59 = arith.constant dense<0.000000e+00> : vector<128x32xf32>
    %121 = tpu.matmul %119, %120, %cst_59 {dimension_numbers = #tpu.dot_dimension_numbers<[1], [0], [0], [1], [0, 0, 1, 1], [], []>} : vector<128x8xf32>, vector<8x32xf32>, vector<128x32xf32> -> vector<128x32xf32>
    %122 = arith.addf %100, %121 : vector<128x32xf32>
    %123 = vector.broadcast %15 : vector<1x32xf32> to vector<128x32xf32>
    %124 = arith.addf %122, %123 : vector<128x32xf32>
    %c0_60 = arith.constant 0 : index
    %c0_61 = arith.constant 0 : index
    %125 = vector.load %arg8[%c0_60, %c0_61] : memref<256x32xf32, #tpu.memory_space<vmem>>, vector<128x32xf32>
    tpu.vector_store %arg8[%c0_60, %c0_61], %124 {strides = array<i32>} : memref<256x32xf32, #tpu.memory_space<vmem>>, vector<128x32xf32>,
    %c128 = arith.constant 128 : index
    %c0_62 = arith.constant 0 : index
    %126 = vector.load %arg1[%c128, %c0_62] : memref<256x32xf32, #tpu.memory_space<vmem>>, vector<128x32xf32>
    %c128_63 = arith.constant 128 : index
    %c0_64 = arith.constant 0 : index
    %127 = vector.load %arg2[%c128_63, %c0_64] : memref<256x32xf32, #tpu.memory_space<vmem>>, vector<128x32xf32>
    %c128_65 = arith.constant 128 : index
    %c0_66 = arith.constant 0 : index
    %128 = vector.load %arg3[%c128_65, %c0_66] : memref<256x32xf32, #tpu.memory_space<vmem>>, vector<128x32xf32>
    %cst_67 = arith.constant dense<0.000000e+00> : vector<128x32xf32>
    %129 = tpu.matmul %126, %1, %cst_67 {dimension_numbers = #tpu.dot_dimension_numbers<[1], [0], [0], [1], [0, 0, 1, 1], [], []>} : vector<128x32xf32>, vector<32x32xf32>, vector<128x32xf32> -> vector<128x32xf32>
    %130 = vector.broadcast %9 : vector<1x32xf32> to vector<128x32xf32>
    %131 = arith.addf %129, %130 : vector<128x32xf32>
    %cst_68 = arith.constant 0.353553385 : f32
    %132 = vector.broadcast %cst_68 : f32 to vector<128x32xf32>
    %133 = arith.mulf %131, %132 : vector<128x32xf32>
    %cst_69 = arith.constant dense<0.000000e+00> : vector<128x32xf32>
    %134 = tpu.matmul %127, %3, %cst_69 {dimension_numbers = #tpu.dot_dimension_numbers<[1], [0], [0], [1], [0, 0, 1, 1], [], []>} : vector<128x32xf32>, vector<32x32xf32>, vector<128x32xf32> -> vector<128x32xf32>
    %135 = vector.broadcast %11 : vector<1x32xf32> to vector<128x32xf32>
    %136 = arith.addf %134, %135 : vector<128x32xf32>
    %cst_70 = arith.constant dense<0.000000e+00> : vector<128x32xf32>
    %137 = tpu.matmul %128, %5, %cst_70 {dimension_numbers = #tpu.dot_dimension_numbers<[1], [0], [0], [1], [0, 0, 1, 1], [], []>} : vector<128x32xf32>, vector<32x32xf32>, vector<128x32xf32> -> vector<128x32xf32>
    %138 = vector.broadcast %13 : vector<1x32xf32> to vector<128x32xf32>
    %139 = arith.addf %137, %138 : vector<128x32xf32>
    %c1_71 = arith.constant 1 : index
    %c0_72 = arith.constant 0 : index
    %c0_73 = arith.constant 0 : index
    %140 = vector.load %arg4[%c1_71, %c0_72, %c0_73] : memref<2x128x128xf32, #tpu.memory_space<vmem>>, vector<1x128x128xf32>
    %141 = vector.shape_cast %140 : vector<1x128x128xf32> to vector<128x128xf32>
    %c1_74 = arith.constant 1 : index
    %c0_75 = arith.constant 0 : index
    %c0_76 = arith.constant 0 : index
    %142 = vector.load %arg5[%c1_74, %c0_75, %c0_76] : memref<2x128x128xf32, #tpu.memory_space<vmem>>, vector<1x128x128xf32>
    %143 = vector.shape_cast %142 : vector<1x128x128xf32> to vector<128x128xf32>
    %cst_77 = arith.constant 0.000000e+00 : f32
    %144 = vector.broadcast %cst_77 : f32 to vector<128x32xf32>
    %145 = vector.extract_strided_slice %133 {offsets = [0, 0], sizes = [128, 8], strides = [1, 1]} : vector<128x32xf32> to vector<128x8xf32>
    %146 = vector.extract_strided_slice %136 {offsets = [0, 0], sizes = [128, 8], strides = [1, 1]} : vector<128x32xf32> to vector<128x8xf32>
    %147 = vector.extract_strided_slice %139 {offsets = [0, 0], sizes = [128, 8], strides = [1, 1]} : vector<128x32xf32> to vector<128x8xf32>
    %cst_78 = arith.constant dense<0.000000e+00> : vector<128x128xf32>
    %148 = tpu.matmul %145, %146, %cst_78 {dimension_numbers = #tpu.dot_dimension_numbers<[1], [1], [0], [0], [0, 0, 1, 0], [], []>} : vector<128x8xf32>, vector<128x8xf32>, vector<128x128xf32> -> vector<128x128xf32>
    %149 = arith.addf %148, %141 : vector<128x128xf32>
    %cst_79 = arith.constant dense<0xFF800000> : vector<128xf32>
    %150 = vector.multi_reduction <maximumf>, %149, %cst_79 [1] : vector<128x128xf32> to vector<128xf32>
    %151 = vector.shape_cast %150 : vector<128xf32> to vector<128x1xf32>
    %152 = vector.broadcast %151 : vector<128x1xf32> to vector<128x128xf32>
    %153 = arith.subf %149, %152 : vector<128x128xf32>
    %154 = math.exp %153 : vector<128x128xf32>
    %cst_80 = arith.constant dense<0.000000e+00> : vector<128xf32>
    %155 = vector.multi_reduction <add>, %154, %cst_80 [1] : vector<128x128xf32> to vector<128xf32>
    %156 = vector.shape_cast %155 : vector<128xf32> to vector<128x1xf32>
    %157 = tpu.reciprocal %156 {approx = true} : vector<128x1xf32> -> vector<128x1xf32>
    %cst_81 = arith.constant 5.000000e-01 : f32
    %158 = vector.broadcast %cst_81 : f32 to vector<128x1xf32>
    %159 = arith.mulf %158, %157 : vector<128x1xf32>
    %160 = vector.broadcast %159 : vector<128x1xf32> to vector<128x128xf32>
    %161 = arith.mulf %154, %160 : vector<128x128xf32>
    %162 = arith.addf %161, %143 : vector<128x128xf32>
    %cst_82 = arith.constant dense<0.000000e+00> : vector<128x8xf32>
    %163 = tpu.matmul %162, %147, %cst_82 {dimension_numbers = #tpu.dot_dimension_numbers<[1], [0], [0], [1], [0, 0, 1, 1], [], []>} : vector<128x128xf32>, vector<128x8xf32>, vector<128x8xf32> -> vector<128x8xf32>
    %164 = vector.extract_strided_slice %7 {offsets = [0, 0], sizes = [8, 32], strides = [1, 1]} : vector<32x32xf32> to vector<8x32xf32>
    %cst_83 = arith.constant dense<0.000000e+00> : vector<128x32xf32>
    %165 = tpu.matmul %163, %164, %cst_83 {dimension_numbers = #tpu.dot_dimension_numbers<[1], [0], [0], [1], [0, 0, 1, 1], [], []>} : vector<128x8xf32>, vector<8x32xf32>, vector<128x32xf32> -> vector<128x32xf32>
    %166 = arith.addf %144, %165 : vector<128x32xf32>
    %167 = vector.extract_strided_slice %133 {offsets = [0, 8], sizes = [128, 8], strides = [1, 1]} : vector<128x32xf32> to vector<128x8xf32>
    %168 = vector.extract_strided_slice %136 {offsets = [0, 8], sizes = [128, 8], strides = [1, 1]} : vector<128x32xf32> to vector<128x8xf32>
    %169 = vector.extract_strided_slice %139 {offsets = [0, 8], sizes = [128, 8], strides = [1, 1]} : vector<128x32xf32> to vector<128x8xf32>
    %cst_84 = arith.constant dense<0.000000e+00> : vector<128x128xf32>
    %170 = tpu.matmul %167, %168, %cst_84 {dimension_numbers = #tpu.dot_dimension_numbers<[1], [1], [0], [0], [0, 0, 1, 0], [], []>} : vector<128x8xf32>, vector<128x8xf32>, vector<128x128xf32> -> vector<128x128xf32>
    %171 = arith.addf %170, %141 : vector<128x128xf32>
    %cst_85 = arith.constant dense<0xFF800000> : vector<128xf32>
    %172 = vector.multi_reduction <maximumf>, %171, %cst_85 [1] : vector<128x128xf32> to vector<128xf32>
    %173 = vector.shape_cast %172 : vector<128xf32> to vector<128x1xf32>
    %174 = vector.broadcast %173 : vector<128x1xf32> to vector<128x128xf32>
    %175 = arith.subf %171, %174 : vector<128x128xf32>
    %176 = math.exp %175 : vector<128x128xf32>
    %cst_86 = arith.constant dense<0.000000e+00> : vector<128xf32>
    %177 = vector.multi_reduction <add>, %176, %cst_86 [1] : vector<128x128xf32> to vector<128xf32>
    %178 = vector.shape_cast %177 : vector<128xf32> to vector<128x1xf32>
    %179 = tpu.reciprocal %178 {approx = true} : vector<128x1xf32> -> vector<128x1xf32>
    %cst_87 = arith.constant 5.000000e-01 : f32
    %180 = vector.broadcast %cst_87 : f32 to vector<128x1xf32>
    %181 = arith.mulf %180, %179 : vector<128x1xf32>
    %182 = vector.broadcast %181 : vector<128x1xf32> to vector<128x128xf32>
    %183 = arith.mulf %176, %182 : vector<128x128xf32>
    %184 = arith.addf %183, %143 : vector<128x128xf32>
    %cst_88 = arith.constant dense<0.000000e+00> : vector<128x8xf32>
    %185 = tpu.matmul %184, %169, %cst_88 {dimension_numbers = #tpu.dot_dimension_numbers<[1], [0], [0], [1], [0, 0, 1, 1], [], []>} : vector<128x128xf32>, vector<128x8xf32>, vector<128x8xf32> -> vector<128x8xf32>
    %186 = vector.extract_strided_slice %7 {offsets = [8, 0], sizes = [8, 32], strides = [1, 1]} : vector<32x32xf32> to vector<8x32xf32>
    %cst_89 = arith.constant dense<0.000000e+00> : vector<128x32xf32>
    %187 = tpu.matmul %185, %186, %cst_89 {dimension_numbers = #tpu.dot_dimension_numbers<[1], [0], [0], [1], [0, 0, 1, 1], [], []>} : vector<128x8xf32>, vector<8x32xf32>, vector<128x32xf32> -> vector<128x32xf32>
    %188 = arith.addf %166, %187 : vector<128x32xf32>
    %189 = vector.extract_strided_slice %133 {offsets = [0, 16], sizes = [128, 8], strides = [1, 1]} : vector<128x32xf32> to vector<128x8xf32>
    %190 = vector.extract_strided_slice %136 {offsets = [0, 16], sizes = [128, 8], strides = [1, 1]} : vector<128x32xf32> to vector<128x8xf32>
    %191 = vector.extract_strided_slice %139 {offsets = [0, 16], sizes = [128, 8], strides = [1, 1]} : vector<128x32xf32> to vector<128x8xf32>
    %cst_90 = arith.constant dense<0.000000e+00> : vector<128x128xf32>
    %192 = tpu.matmul %189, %190, %cst_90 {dimension_numbers = #tpu.dot_dimension_numbers<[1], [1], [0], [0], [0, 0, 1, 0], [], []>} : vector<128x8xf32>, vector<128x8xf32>, vector<128x128xf32> -> vector<128x128xf32>
    %193 = arith.addf %192, %141 : vector<128x128xf32>
    %cst_91 = arith.constant dense<0xFF800000> : vector<128xf32>
    %194 = vector.multi_reduction <maximumf>, %193, %cst_91 [1] : vector<128x128xf32> to vector<128xf32>
    %195 = vector.shape_cast %194 : vector<128xf32> to vector<128x1xf32>
    %196 = vector.broadcast %195 : vector<128x1xf32> to vector<128x128xf32>
    %197 = arith.subf %193, %196 : vector<128x128xf32>
    %198 = math.exp %197 : vector<128x128xf32>
    %cst_92 = arith.constant dense<0.000000e+00> : vector<128xf32>
    %199 = vector.multi_reduction <add>, %198, %cst_92 [1] : vector<128x128xf32> to vector<128xf32>
    %200 = vector.shape_cast %199 : vector<128xf32> to vector<128x1xf32>
    %201 = tpu.reciprocal %200 {approx = true} : vector<128x1xf32> -> vector<128x1xf32>
    %cst_93 = arith.constant 5.000000e-01 : f32
    %202 = vector.broadcast %cst_93 : f32 to vector<128x1xf32>
    %203 = arith.mulf %202, %201 : vector<128x1xf32>
    %204 = vector.broadcast %203 : vector<128x1xf32> to vector<128x128xf32>
    %205 = arith.mulf %198, %204 : vector<128x128xf32>
    %206 = arith.addf %205, %143 : vector<128x128xf32>
    %cst_94 = arith.constant dense<0.000000e+00> : vector<128x8xf32>
    %207 = tpu.matmul %206, %191, %cst_94 {dimension_numbers = #tpu.dot_dimension_numbers<[1], [0], [0], [1], [0, 0, 1, 1], [], []>} : vector<128x128xf32>, vector<128x8xf32>, vector<128x8xf32> -> vector<128x8xf32>
    %208 = vector.extract_strided_slice %7 {offsets = [16, 0], sizes = [8, 32], strides = [1, 1]} : vector<32x32xf32> to vector<8x32xf32>
    %cst_95 = arith.constant dense<0.000000e+00> : vector<128x32xf32>
    %209 = tpu.matmul %207, %208, %cst_95 {dimension_numbers = #tpu.dot_dimension_numbers<[1], [0], [0], [1], [0, 0, 1, 1], [], []>} : vector<128x8xf32>, vector<8x32xf32>, vector<128x32xf32> -> vector<128x32xf32>
    %210 = arith.addf %188, %209 : vector<128x32xf32>
    %211 = vector.extract_strided_slice %133 {offsets = [0, 24], sizes = [128, 8], strides = [1, 1]} : vector<128x32xf32> to vector<128x8xf32>
    %212 = vector.extract_strided_slice %136 {offsets = [0, 24], sizes = [128, 8], strides = [1, 1]} : vector<128x32xf32> to vector<128x8xf32>
    %213 = vector.extract_strided_slice %139 {offsets = [0, 24], sizes = [128, 8], strides = [1, 1]} : vector<128x32xf32> to vector<128x8xf32>
    %cst_96 = arith.constant dense<0.000000e+00> : vector<128x128xf32>
    %214 = tpu.matmul %211, %212, %cst_96 {dimension_numbers = #tpu.dot_dimension_numbers<[1], [1], [0], [0], [0, 0, 1, 0], [], []>} : vector<128x8xf32>, vector<128x8xf32>, vector<128x128xf32> -> vector<128x128xf32>
    %215 = arith.addf %214, %141 : vector<128x128xf32>
    %cst_97 = arith.constant dense<0xFF800000> : vector<128xf32>
    %216 = vector.multi_reduction <maximumf>, %215, %cst_97 [1] : vector<128x128xf32> to vector<128xf32>
    %217 = vector.shape_cast %216 : vector<128xf32> to vector<128x1xf32>
    %218 = vector.broadcast %217 : vector<128x1xf32> to vector<128x128xf32>
    %219 = arith.subf %215, %218 : vector<128x128xf32>
    %220 = math.exp %219 : vector<128x128xf32>
    %cst_98 = arith.constant dense<0.000000e+00> : vector<128xf32>
    %221 = vector.multi_reduction <add>, %220, %cst_98 [1] : vector<128x128xf32> to vector<128xf32>
    %222 = vector.shape_cast %221 : vector<128xf32> to vector<128x1xf32>
    %223 = tpu.reciprocal %222 {approx = true} : vector<128x1xf32> -> vector<128x1xf32>
    %cst_99 = arith.constant 5.000000e-01 : f32
    %224 = vector.broadcast %cst_99 : f32 to vector<128x1xf32>
    %225 = arith.mulf %224, %223 : vector<128x1xf32>
    %226 = vector.broadcast %225 : vector<128x1xf32> to vector<128x128xf32>
    %227 = arith.mulf %220, %226 : vector<128x128xf32>
    %228 = arith.addf %227, %143 : vector<128x128xf32>
    %cst_100 = arith.constant dense<0.000000e+00> : vector<128x8xf32>
    %229 = tpu.matmul %228, %213, %cst_100 {dimension_numbers = #tpu.dot_dimension_numbers<[1], [0], [0], [1], [0, 0, 1, 1], [], []>} : vector<128x128xf32>, vector<128x8xf32>, vector<128x8xf32> -> vector<128x8xf32>
    %230 = vector.extract_strided_slice %7 {offsets = [24, 0], sizes = [8, 32], strides = [1, 1]} : vector<32x32xf32> to vector<8x32xf32>
    %cst_101 = arith.constant dense<0.000000e+00> : vector<128x32xf32>
    %231 = tpu.matmul %229, %230, %cst_101 {dimension_numbers = #tpu.dot_dimension_numbers<[1], [0], [0], [1], [0, 0, 1, 1], [], []>} : vector<128x8xf32>, vector<8x32xf32>, vector<128x32xf32> -> vector<128x32xf32>
    %232 = arith.addf %210, %231 : vector<128x32xf32>
    %233 = vector.broadcast %15 : vector<1x32xf32> to vector<128x32xf32>
    %234 = arith.addf %232, %233 : vector<128x32xf32>
    %c128_102 = arith.constant 128 : index
    %c0_103 = arith.constant 0 : index
    %235 = vector.load %arg8[%c128_102, %c0_103] : memref<256x32xf32, #tpu.memory_space<vmem>>, vector<128x32xf32>
    tpu.vector_store %arg8[%c128_102, %c0_103], %234 {strides = array<i32>} : memref<256x32xf32, #tpu.memory_space<vmem>>, vector<128x32xf32>,
    return
  }
  func.func @transform_0(%arg0: i32) -> (i32, i32) {
    %c0_i32 = arith.constant 0 : i32
    %c0_i32_0 = arith.constant 0 : i32
    return %arg0, %c0_i32 : i32, i32
  }
  func.func @transform_1(%arg0: i32) -> (i32, i32) {
    %c0_i32 = arith.constant 0 : i32
    %c0_i32_0 = arith.constant 0 : i32
    return %arg0, %c0_i32 : i32, i32
  }
  func.func @transform_2(%arg0: i32) -> (i32, i32) {
    %c0_i32 = arith.constant 0 : i32
    %c0_i32_0 = arith.constant 0 : i32
    return %arg0, %c0_i32 : i32, i32
  }
  func.func @transform_3(%arg0: i32) -> (i32, i32, i32) {
    %c0_i32 = arith.constant 0 : i32
    %c0_i32_0 = arith.constant 0 : i32
    %c0_i32_1 = arith.constant 0 : i32
    return %arg0, %c0_i32, %c0_i32_0 : i32, i32, i32
  }
  func.func @transform_4(%arg0: i32) -> (i32, i32, i32) {
    %c0_i32 = arith.constant 0 : i32
    %c0_i32_0 = arith.constant 0 : i32
    %c0_i32_1 = arith.constant 0 : i32
    return %arg0, %c0_i32, %c0_i32_0 : i32, i32, i32
  }
  func.func @transform_5(%arg0: i32) -> (i32, i32, i32) {
    %c0_i32 = arith.constant 0 : i32
    %c0_i32_0 = arith.constant 0 : i32
    %c0_i32_1 = arith.constant 0 : i32
    %c0_i32_2 = arith.constant 0 : i32
    return %c0_i32, %c0_i32_0, %c0_i32_1 : i32, i32, i32
  }
  func.func @transform_6(%arg0: i32) -> (i32, i32, i32) {
    %c0_i32 = arith.constant 0 : i32
    %c0_i32_0 = arith.constant 0 : i32
    %c0_i32_1 = arith.constant 0 : i32
    %c0_i32_2 = arith.constant 0 : i32
    return %c0_i32, %c0_i32_0, %c0_i32_1 : i32, i32, i32
  }
  func.func @transform_7(%arg0: i32) -> (i32, i32) {
    %c0_i32 = arith.constant 0 : i32
    %c0_i32_0 = arith.constant 0 : i32
    return %arg0, %c0_i32 : i32, i32
  }
}

</mosaic_0001>

<llo_original>
// kernel: tpu_custom_call.1
$region0: #{tpu_custom_call.1}
  #allocation0 [shape = 'u32[]', space=smem, size = 0x4, offset = 0x4, fixed_abs, tag = 'smem constant byte address 0x4 - core index']
  #allocation1 [shape = 'u32[144,128]{1,0:T(1,128)}', space=vmem, size = 0x12000, scoped, tag = 'internal scratch']
  %s0 = inlined_call_operand.vmem [shape: f32[512,32], index: 0, kind: input, shape index: {}]
  %s1 = inlined_call_operand.vmem [shape: f32[512,32], index: 1, kind: input, shape index: {}]
  %s2 = inlined_call_operand.vmem [shape: f32[512,32], index: 2, kind: input, shape index: {}]
  %s3 = inlined_call_operand.vmem [shape: f32[4,128,128], index: 3, kind: input, shape index: {}]
  %s4 = inlined_call_operand.vmem [shape: f32[4,128,128], index: 4, kind: input, shape index: {}]
  %s5 = inlined_call_operand.vmem [shape: f32[4,32,32], index: 5, kind: input, shape index: {}]
  %s6 = inlined_call_operand.vmem [shape: f32[4,1,32], index: 6, kind: input, shape index: {}]
  %s7 = inlined_call_operand.vmem [shape: f32[512,32], index: 7, kind: output, shape index: {}]
  %s8 = sld [smem:[#allocation0]]
  $region61: #{tpu_custom_call.1} parent=0
    _
  %s10 = ssub.s32 1, %s8
  %s11 = scalar_select 0, %s10, %s8
  loop: start=0, step=1, limit=4
  $region2: #{tpu_custom_call.1} parent=0 // loop_pre_header
    _
  $region3: #{tpu_custom_call.1} parent=0 // loop_header
    %s13 = sphi 0, %s17
    %p14 = scmp.ge.s32.totalorder %s13, 4
    %s23 = sphi 0, %s25
    %s26 = sphi 0, %s23
    %s27 = sphi 0, %s26
    %s43 = sphi 0, %s27
    %s49 = sphi 0, %s51
    %s52 = sphi 0, %s49
    %s53 = sphi 0, %s52
    %s69 = sphi 0, %s53
    %s75 = sphi 0, %s77
    %s78 = sphi 0, %s75
    %s79 = sphi 0, %s78
    %s95 = sphi 0, %s79
    %s101 = sphi 0, %s103
    %s104 = sphi 0, %s101
    %s105 = sphi 0, %s104
    %s121 = sphi 0, %s105
    %s127 = sphi 0, %s129
    %s130 = sphi 0, %s127
    %s131 = sphi 0, %s130
    %s147 = sphi 0, %s131
    %s151 = sphi 0, %s151
    %s153 = sphi 0, %s151
    %s154 = sphi 0, %s153
    %s168 = sphi 0, %s154
    %s172 = sphi 0, %s172
    %s174 = sphi 0, %s172
    %s175 = sphi 0, %s174
    %s189 = sphi 0, %s175
    %s195 = sphi 0, %s197
    %s198 = sphi 0, %s195
    %s199 = sphi 0, %s198
    %s215 = sphi 0, %s199
  $region4: #{tpu_custom_call.1} parent=0 // loop_header_branch
    %16 = sbr.rel (%p14) target = $region8
  $region5: #{tpu_custom_call.1} parent=0 // loop_body
    %s18 = ssub.s32 %s13, 1
    %s19 = ssub.s32 %s13, 2
    %s20 = sadd.s32 %s13, 1
    %s21 = ssub.s32 %s13, %s20
    %p22 = scmp.eq.s32.totalorder %s21, 0
    %s24 = sadd.s32 %s23, 1
    %s25 = scalar_select %p22, %s23, %s24
    %p28 = pneg %p22
    %p29 = scmp.eq.s32.totalorder %s13, 1
    %p30 = por %p28, %p29
    %p31 = scmp.ne.s32.totalorder %s23, %s26
    %p32 = scmp.eq.s32.totalorder %s13, 0
    %p33 = por %p31, %p32
    %p34 = scmp.ne.s32.totalorder %s23, %s26
    %p35 = scmp.eq.s32.totalorder %s18, 1
    %p36 = por %p34, %p35
    %p37 = scmp.ne.s32.totalorder %s26, %s27
    %p38 = scmp.eq.s32.totalorder %s18, 0
    %p39 = por %p37, %p38
    %p40 = scmp.ne.s32.totalorder %s26, %s27
    %p41 = scmp.eq.s32.totalorder %s19, 1
    %p42 = por %p40, %p41
    %p44 = scmp.ne.s32.totalorder %s27, %s43
    %p45 = scmp.eq.s32.totalorder %s19, 0
    %p46 = por %p44, %p45
    %s47 = ssub.s32 %s13, %s20
    %p48 = scmp.eq.s32.totalorder %s47, 0
    %s50 = sadd.s32 %s49, 1
    %s51 = scalar_select %p48, %s49, %s50
    %p54 = pneg %p48
    %p55 = scmp.eq.s32.totalorder %s13, 1
    %p56 = por %p54, %p55
    %p57 = scmp.ne.s32.totalorder %s49, %s52
    %p58 = scmp.eq.s32.totalorder %s13, 0
    %p59 = por %p57, %p58
    %p60 = scmp.ne.s32.totalorder %s49, %s52
    %p61 = scmp.eq.s32.totalorder %s18, 1
    %p62 = por %p60, %p61
    %p63 = scmp.ne.s32.totalorder %s52, %s53
    %p64 = scmp.eq.s32.totalorder %s18, 0
    %p65 = por %p63, %p64
    %p66 = scmp.ne.s32.totalorder %s52, %s53
    %p67 = scmp.eq.s32.totalorder %s19, 1
    %p68 = por %p66, %p67
    %p70 = scmp.ne.s32.totalorder %s53, %s69
    %p71 = scmp.eq.s32.totalorder %s19, 0
    %p72 = por %p70, %p71
    %s73 = ssub.s32 %s13, %s20
    %p74 = scmp.eq.s32.totalorder %s73, 0
    %s76 = sadd.s32 %s75, 1
    %s77 = scalar_select %p74, %s75, %s76
    %p80 = pneg %p74
    %p81 = scmp.eq.s32.totalorder %s13, 1
    %p82 = por %p80, %p81
    %p83 = scmp.ne.s32.totalorder %s75, %s78
    %p84 = scmp.eq.s32.totalorder %s13, 0
    %p85 = por %p83, %p84
    %p86 = scmp.ne.s32.totalorder %s75, %s78
    %p87 = scmp.eq.s32.totalorder %s18, 1
    %p88 = por %p86, %p87
    %p89 = scmp.ne.s32.totalorder %s78, %s79
    %p90 = scmp.eq.s32.totalorder %s18, 0
    %p91 = por %p89, %p90
    %p92 = scmp.ne.s32.totalorder %s78, %s79
    %p93 = scmp.eq.s32.totalorder %s19, 1
    %p94 = por %p92, %p93
    %p96 = scmp.ne.s32.totalorder %s79, %s95
    %p97 = scmp.eq.s32.totalorder %s19, 0
    %p98 = por %p96, %p97
    %s99 = ssub.s32 %s13, %s20
    %p100 = scmp.eq.s32.totalorder %s99, 0
    %s102 = sadd.s32 %s101, 1
    %s103 = scalar_select %p100, %s101, %s102
    %p106 = pneg %p100
    %p107 = scmp.eq.s32.totalorder %s13, 1
    %p108 = por %p106, %p107
    %p109 = scmp.ne.s32.totalorder %s101, %s104
    %p110 = scmp.eq.s32.totalorder %s13, 0
    %p111 = por %p109, %p110
    %p112 = scmp.ne.s32.totalorder %s101, %s104
    %p113 = scmp.eq.s32.totalorder %s18, 1
    %p114 = por %p112, %p113
    %p115 = scmp.ne.s32.totalorder %s104, %s105
    %p116 = scmp.eq.s32.totalorder %s18, 0
    %p117 = por %p115, %p116
    %p118 = scmp.ne.s32.totalorder %s104, %s105
    %p119 = scmp.eq.s32.totalorder %s19, 1
    %p120 = por %p118, %p119
    %p122 = scmp.ne.s32.totalorder %s105, %s121
    %p123 = scmp.eq.s32.totalorder %s19, 0
    %p124 = por %p122, %p123
    %s125 = ssub.s32 %s13, %s20
    %p126 = scmp.eq.s32.totalorder %s125, 0
    %s128 = sadd.s32 %s127, 1
    %s129 = scalar_select %p126, %s127, %s128
    %p132 = pneg %p126
    %p133 = scmp.eq.s32.totalorder %s13, 1
    %p134 = por %p132, %p133
    %p135 = scmp.ne.s32.totalorder %s127, %s130
    %p136 = scmp.eq.s32.totalorder %s13, 0
    %p137 = por %p135, %p136
    %p138 = scmp.ne.s32.totalorder %s127, %s130
    %p139 = scmp.eq.s32.totalorder %s18, 1
    %p140 = por %p138, %p139
    %p141 = scmp.ne.s32.totalorder %s130, %s131
    %p142 = scmp.eq.s32.totalorder %s18, 0
    %p143 = por %p141, %p142
    %p144 = scmp.ne.s32.totalorder %s130, %s131
    %p145 = scmp.eq.s32.totalorder %s19, 1
    %p146 = por %p144, %p145
    %p148 = scmp.ne.s32.totalorder %s131, %s147
    %p149 = scmp.eq.s32.totalorder %s19, 0
    %p150 = por %p148, %p149
    %s152 = sadd.s32 %s151, 1
    %p155 = scmp.eq.s32.totalorder %s13, 1
    %p156 = scmp.ne.s32.totalorder %s151, %s153
    %p157 = scmp.eq.s32.totalorder %s13, 0
    %p158 = por %p156, %p157
    %p159 = scmp.ne.s32.totalorder %s151, %s153
    %p160 = scmp.eq.s32.totalorder %s18, 1
    %p161 = por %p159, %p160
    %p162 = scmp.ne.s32.totalorder %s153, %s154
    %p163 = scmp.eq.s32.totalorder %s18, 0
    %p164 = por %p162, %p163
    %p165 = scmp.ne.s32.totalorder %s153, %s154
    %p166 = scmp.eq.s32.totalorder %s19, 1
    %p167 = por %p165, %p166
    %p169 = scmp.ne.s32.totalorder %s154, %s168
    %p170 = scmp.eq.s32.totalorder %s19, 0
    %p171 = por %p169, %p170
    %s173 = sadd.s32 %s172, 1
    %p176 = scmp.eq.s32.totalorder %s13, 1
    %p177 = scmp.ne.s32.totalorder %s172, %s174
    %p178 = scmp.eq.s32.totalorder %s13, 0
    %p179 = por %p177, %p178
    %p180 = scmp.ne.s32.totalorder %s172, %s174
    %p181 = scmp.eq.s32.totalorder %s18, 1
    %p182 = por %p180, %p181
    %p183 = scmp.ne.s32.totalorder %s174, %s175
    %p184 = scmp.eq.s32.totalorder %s18, 0
    %p185 = por %p183, %p184
    %p186 = scmp.ne.s32.totalorder %s174, %s175
    %p187 = scmp.eq.s32.totalorder %s19, 1
    %p188 = por %p186, %p187
    %p190 = scmp.ne.s32.totalorder %s175, %s189
    %p191 = scmp.eq.s32.totalorder %s19, 0
    %p192 = por %p190, %p191
    %s193 = ssub.s32 %s13, %s20
    %p194 = scmp.eq.s32.totalorder %s193, 0
    %s196 = sadd.s32 %s195, 1
    %s197 = scalar_select %p194, %s195, %s196
    %p200 = pneg %p194
    %p201 = scmp.eq.s32.totalorder %s13, 1
    %p202 = por %p200, %p201
    %p203 = scmp.ne.s32.totalorder %s195, %s198
    %p204 = scmp.eq.s32.totalorder %s13, 0
    %p205 = por %p203, %p204
    %p206 = scmp.ne.s32.totalorder %s195, %s198
    %p207 = scmp.eq.s32.totalorder %s18, 1
    %p208 = por %p206, %p207
    %p209 = scmp.ne.s32.totalorder %s198, %s199
    %p210 = scmp.eq.s32.totalorder %s18, 0
    %p211 = por %p209, %p210
    %p212 = scmp.ne.s32.totalorder %s198, %s199
    %p213 = scmp.eq.s32.totalorder %s19, 1
    %p214 = por %p212, %p213
    %p216 = scmp.ne.s32.totalorder %s199, %s215
    %p217 = scmp.eq.s32.totalorder %s19, 0
    %p218 = por %p216, %p217
    %p219 = scmp.le.s32.totalorder 1, %s13
    %p220 = scmp.lt.s32.totalorder %s13, 3
    %p221 = pnand %p219, %p220
    %p222 = pneg %p221
    // Predicated region
    $region9: #{tpu_custom_call.1} parent=5 // pred_check
      _
    $region10: #{tpu_custom_call.1} parent=5 // pred_check_branch
      %224 = sbr.rel (%p221) target = $region12
    $region11: #{tpu_custom_call.1} parent=5 // pred_region
      %s225 = ssub.s32 %s13, 1
      // Predicated region
      $region13: #{tpu_custom_call.1} parent=11 // pred_check
        %p226 = pneg %p164
      $region14: #{tpu_custom_call.1} parent=11 // pred_check_branch
        %228 = sbr.rel (%p226) target = $region16
      $region15: #{tpu_custom_call.1} parent=11 // pred_region
        _
      $region16: #{tpu_custom_call.1} parent=11 // pred_fallthru
        _
      // Predicated region
      $region17: #{tpu_custom_call.1} parent=11 // pred_check
        %p229 = pneg %p185
      $region18: #{tpu_custom_call.1} parent=11 // pred_check_branch
        %231 = sbr.rel (%p229) target = $region20
      $region19: #{tpu_custom_call.1} parent=11 // pred_region
        _
      $region20: #{tpu_custom_call.1} parent=11 // pred_fallthru
        _
    $region12: #{tpu_custom_call.1} parent=5 // pred_fallthru
      _
    %p232 = scmp.lt.s32.totalorder %s13, 2
    // Predicated region
    $region21: #{tpu_custom_call.1} parent=5 // pred_check
      %p233 = pneg %p232
    $region22: #{tpu_custom_call.1} parent=5 // pred_check_branch
      %235 = sbr.rel (%p233) target = $region24
    $region23: #{tpu_custom_call.1} parent=5 // pred_region
      // Predicated region
      $region25: #{tpu_custom_call.1} parent=23 // pred_check
        %p236 = pneg %p33
      $region26: #{tpu_custom_call.1} parent=23 // pred_check_branch
        %238 = sbr.rel (%p236) target = $region28
      $region27: #{tpu_custom_call.1} parent=23 // pred_region
        %s239 = smul.u32 32, %s13
        %p240 = scmp.lt.s32.totalorder %s239, 63
        %s241 = scalar_select %p240, %s239, 63
        %s242 = smul.addr %s241, 8
        %s243 = scalar_lea.vmem %s0, %s242
        %s244 = smul.u32 32, %s13
      $region28: #{tpu_custom_call.1} parent=23 // pred_fallthru
        _
      // Predicated region
      $region29: #{tpu_custom_call.1} parent=23 // pred_check
        %p245 = pneg %p59
      $region30: #{tpu_custom_call.1} parent=23 // pred_check_branch
        %247 = sbr.rel (%p245) target = $region32
      $region31: #{tpu_custom_call.1} parent=23 // pred_region
        %s248 = smul.u32 32, %s13
        %p249 = scmp.lt.s32.totalorder %s248, 63
        %s250 = scalar_select %p249, %s248, 63
        %s251 = smul.addr %s250, 8
        %s252 = scalar_lea.vmem %s1, %s251
        %s253 = smul.u32 32, %s13
      $region32: #{tpu_custom_call.1} parent=23 // pred_fallthru
        _
      // Predicated region
      $region33: #{tpu_custom_call.1} parent=23 // pred_check
        %p254 = pneg %p85
      $region34: #{tpu_custom_call.1} parent=23 // pred_check_branch
        %256 = sbr.rel (%p254) target = $region36
      $region35: #{tpu_custom_call.1} parent=23 // pred_region
        %s257 = smul.u32 32, %s13
        %p258 = scmp.lt.s32.totalorder %s257, 63
        %s259 = scalar_select %p258, %s257, 63
        %s260 = smul.addr %s259, 8
        %s261 = scalar_lea.vmem %s2, %s260
        %s262 = smul.u32 32, %s13
      $region36: #{tpu_custom_call.1} parent=23 // pred_fallthru
        _
      // Predicated region
      $region37: #{tpu_custom_call.1} parent=23 // pred_check
        %p263 = pneg %p111
      $region38: #{tpu_custom_call.1} parent=23 // pred_check_branch
        %265 = sbr.rel (%p263) target = $region40
      $region39: #{tpu_custom_call.1} parent=23 // pred_region
        %s266 = smul.u32 2, %s13
        %p267 = scmp.lt.s32.totalorder %s266, 3
        %s268 = scalar_select %p267, %s266, 3
        %s269 = smul.addr %s268, 16
        %s270 = smul.addr %s269, 8
        %s271 = scalar_lea.vmem %s3, %s270
        %s272 = smul.u32 2, %s13
      $region40: #{tpu_custom_call.1} parent=23 // pred_fallthru
        _
      // Predicated region
      $region41: #{tpu_custom_call.1} parent=23 // pred_check
        %p273 = pneg %p137
      $region42: #{tpu_custom_call.1} parent=23 // pred_check_branch
        %275 = sbr.rel (%p273) target = $region44
      $region43: #{tpu_custom_call.1} parent=23 // pred_region
        %s276 = smul.u32 2, %s13
        %p277 = scmp.lt.s32.totalorder %s276, 3
        %s278 = scalar_select %p277, %s276, 3
        %s279 = smul.addr %s278, 16
        %s280 = smul.addr %s279, 8
        %s281 = scalar_lea.vmem %s4, %s280
        %s282 = smul.u32 2, %s13
      $region44: #{tpu_custom_call.1} parent=23 // pred_fallthru
        _
    $region24: #{tpu_custom_call.1} parent=5 // pred_fallthru
      _
    %p283 = scmp.le.s32.totalorder 1, %s13
    %p284 = scmp.lt.s32.totalorder %s13, 3
    %p285 = pnand %p283, %p284
    %p286 = pneg %p285
    // Predicated region
    $region45: #{tpu_custom_call.1} parent=5 // pred_check
      _
    $region46: #{tpu_custom_call.1} parent=5 // pred_check_branch
      %288 = sbr.rel (%p285) target = $region48
    $region47: #{tpu_custom_call.1} parent=5 // pred_region
      %s289 = ssub.s32 %s13, 1
      %s290 = smul.u32 32, %s18
      %p291 = scmp.lt.s32.totalorder %s290, 63
      %s292 = scalar_select %p291, %s290, 63
      %s293 = smul.addr %s292, 8
      %s294 = scalar_lea.vmem %s0, %s293
      %p295 = pneg %p39
      %p296 = pneg %p36
      %s297 = smul.u32 32, %s18
      %p298 = scmp.lt.s32.totalorder %s297, 63
      %s299 = scalar_select %p298, %s297, 63
      %s300 = smul.addr %s299, 8
      %s301 = scalar_lea.vmem %s1, %s300
      %p302 = pneg %p65
      %p303 = pneg %p62
      %s304 = smul.u32 32, %s18
      %p305 = scmp.lt.s32.totalorder %s304, 63
      %s306 = scalar_select %p305, %s304, 63
      %s307 = smul.addr %s306, 8
      %s308 = scalar_lea.vmem %s2, %s307
      %p309 = pneg %p91
      %p310 = pneg %p88
      %s311 = smul.u32 2, %s18
      %p312 = scmp.lt.s32.totalorder %s311, 3
      %s313 = scalar_select %p312, %s311, 3
      %s314 = smul.addr %s313, 16
      %s315 = smul.addr %s314, 8
      %s316 = scalar_lea.vmem %s3, %s315
      %p317 = pneg %p117
      %p318 = pneg %p114
      %s319 = smul.u32 2, %s18
      %p320 = scmp.lt.s32.totalorder %s319, 3
      %s321 = scalar_select %p320, %s319, 3
      %s322 = smul.addr %s321, 16
      %s323 = smul.addr %s322, 8
      %s324 = scalar_lea.vmem %s4, %s323
      %p325 = pneg %p143
      %p326 = pneg %p140
      %p327 = pneg %p164
      %p328 = pneg %p161
      %p329 = pneg %p185
      %p330 = pneg %p182
      %p331 = pneg %p211
      %p332 = pneg %p208
      %s333 = smul.u32 32, %s18
      %p334 = scmp.lt.s32.totalorder %s333, 63
      %s335 = scalar_select %p334, %s333, 63
      %s336 = smul.addr %s335, 8
      %s337 = scalar_lea.vmem %s7, %s336
      %s338 = smul.u32 32, %s18
      %p339 = scmp.lt.s32.totalorder %s338, 63
      %s340 = scalar_select %p339, %s338, 63
      %s341 = smul.addr %s340, 8
      %s342 = scalar_lea.vmem %s0, %s341
      %s343 = smul.u32 32, %s18
      %s344 = smul.u32 32, %s18
      %p345 = scmp.lt.s32.totalorder %s344, 63
      %s346 = scalar_select %p345, %s344, 63
      %s347 = smul.addr %s346, 8
      %s348 = scalar_lea.vmem %s1, %s347
      %s349 = smul.u32 32, %s18
      %s350 = smul.u32 32, %s18
      %p351 = scmp.lt.s32.totalorder %s350, 63
      %s352 = scalar_select %p351, %s350, 63
      %s353 = smul.addr %s352, 8
      %s354 = scalar_lea.vmem %s2, %s353
      %s355 = smul.u32 32, %s18
      %s356 = smul.u32 2, %s18
      %p357 = scmp.lt.s32.totalorder %s356, 3
      %s358 = scalar_select %p357, %s356, 3
      %s359 = smul.addr %s358, 16
      %s360 = smul.addr %s359, 8
      %s361 = scalar_lea.vmem %s3, %s360
      %s362 = smul.u32 2, %s18
      %s363 = smul.u32 2, %s18
      %p364 = scmp.lt.s32.totalorder %s363, 3
      %s365 = scalar_select %p364, %s363, 3
      %s366 = smul.addr %s365, 16
      %s367 = smul.addr %s366, 8
      %s368 = scalar_lea.vmem %s4, %s367
      %s369 = smul.u32 2, %s18
      %s370 = smul.u32 32, %s18
      %p371 = scmp.lt.s32.totalorder %s370, 63
      %s372 = scalar_select %p371, %s370, 63
      %s373 = smul.addr %s372, 8
      %s374 = scalar_lea.vmem %s7, %s373
      %s375 = smul.u32 32, %s18
      %v376 = vld [vmem:[%s5] sm:$0xff]
      %v377 = vld [vmem:[%s5 + $0x8] sm:$0xff]
      %v378 = vld [vmem:[%s5 + $0x10] sm:$0xff]
      %v379 = vld [vmem:[%s5 + $0x18] sm:$0xff]
      %s380 = scalar_lea.vmem %s5, 32
      %v381 = vld [vmem:[%s380] sm:$0xff]
      %v382 = vld [vmem:[%s380 + $0x8] sm:$0xff]
      %v383 = vld [vmem:[%s380 + $0x10] sm:$0xff]
      %v384 = vld [vmem:[%s380 + $0x18] sm:$0xff]
      %s385 = scalar_lea.vmem %s5, 64
      %v386 = vld [vmem:[%s385] sm:$0xff]
      %v387 = vld [vmem:[%s385 + $0x8] sm:$0xff]
      %v388 = vld [vmem:[%s385 + $0x10] sm:$0xff]
      %v389 = vld [vmem:[%s385 + $0x18] sm:$0xff]
      %s390 = scalar_lea.vmem %s5, 96
      %v391 = vld [vmem:[%s390] sm:$0xff]
      %v392 = vld [vmem:[%s390 + $0x8] sm:$0xff]
      %v393 = vld [vmem:[%s390 + $0x10] sm:$0xff]
      %v394 = vld [vmem:[%s390 + $0x18] sm:$0xff]
      %v395 = vld [vmem:[%s6] sm:$0x1]
      %s396 = scalar_lea.vmem %s6, 1
      %v397 = vld [vmem:[%s396] sm:$0x1]
      %s398 = scalar_lea.vmem %s6, 2
      %v399 = vld [vmem:[%s398] sm:$0x1]
      %s400 = scalar_lea.vmem %s6, 3
      %v401 = vld [vmem:[%s400] sm:$0x1]
      %v402 = vld [vmem:[%s342] sm:$0xff]
      %v403 = vld [vmem:[%s342 + $0x8] sm:$0xff]
      %v404 = vld [vmem:[%s342 + $0x10] sm:$0xff]
      %v405 = vld [vmem:[%s342 + $0x18] sm:$0xff]
      %v406 = vld [vmem:[%s342 + $0x20] sm:$0xff]
      %v407 = vld [vmem:[%s342 + $0x28] sm:$0xff]
      %v408 = vld [vmem:[%s342 + $0x30] sm:$0xff]
      %v409 = vld [vmem:[%s342 + $0x38] sm:$0xff]
      %v410 = vld [vmem:[%s342 + $0x40] sm:$0xff]
      %v411 = vld [vmem:[%s342 + $0x48] sm:$0xff]
      %v412 = vld [vmem:[%s342 + $0x50] sm:$0xff]
      %v413 = vld [vmem:[%s342 + $0x58] sm:$0xff]
      %v414 = vld [vmem:[%s342 + $0x60] sm:$0xff]
      %v415 = vld [vmem:[%s342 + $0x68] sm:$0xff]
      %v416 = vld [vmem:[%s342 + $0x70] sm:$0xff]
      %v417 = vld [vmem:[%s342 + $0x78] sm:$0xff]
      %v418 = vld [vmem:[%s348] sm:$0xff]
      %v419 = vld [vmem:[%s348 + $0x8] sm:$0xff]
      %v420 = vld [vmem:[%s348 + $0x10] sm:$0xff]
      %v421 = vld [vmem:[%s348 + $0x18] sm:$0xff]
      %v422 = vld [vmem:[%s348 + $0x20] sm:$0xff]
      %v423 = vld [vmem:[%s348 + $0x28] sm:$0xff]
      %v424 = vld [vmem:[%s348 + $0x30] sm:$0xff]
      %v425 = vld [vmem:[%s348 + $0x38] sm:$0xff]
      %v426 = vld [vmem:[%s348 + $0x40] sm:$0xff]
      %v427 = vld [vmem:[%s348 + $0x48] sm:$0xff]
      %v428 = vld [vmem:[%s348 + $0x50] sm:$0xff]
      %v429 = vld [vmem:[%s348 + $0x58] sm:$0xff]
      %v430 = vld [vmem:[%s348 + $0x60] sm:$0xff]
      %v431 = vld [vmem:[%s348 + $0x68] sm:$0xff]
      %v432 = vld [vmem:[%s348 + $0x70] sm:$0xff]
      %v433 = vld [vmem:[%s348 + $0x78] sm:$0xff]
      %v434 = vld [vmem:[%s354] sm:$0xff]
      %v435 = vld [vmem:[%s354 + $0x8] sm:$0xff]
      %v436 = vld [vmem:[%s354 + $0x10] sm:$0xff]
      %v437 = vld [vmem:[%s354 + $0x18] sm:$0xff]
      %v438 = vld [vmem:[%s354 + $0x20] sm:$0xff]
      %v439 = vld [vmem:[%s354 + $0x28] sm:$0xff]
      %v440 = vld [vmem:[%s354 + $0x30] sm:$0xff]
      %v441 = vld [vmem:[%s354 + $0x38] sm:$0xff]
      %v442 = vld [vmem:[%s354 + $0x40] sm:$0xff]
      %v443 = vld [vmem:[%s354 + $0x48] sm:$0xff]
      %v444 = vld [vmem:[%s354 + $0x50] sm:$0xff]
      %v445 = vld [vmem:[%s354 + $0x58] sm:$0xff]
      %v446 = vld [vmem:[%s354 + $0x60] sm:$0xff]
      %v447 = vld [vmem:[%s354 + $0x68] sm:$0xff]
      %v448 = vld [vmem:[%s354 + $0x70] sm:$0xff]
      %v449 = vld [vmem:[%s354 + $0x78] sm:$0xff]
      %v451 = vlaneseq
      %v452 = vshrl.u32 %v451, 7
      %v453 = vsub.s32 0, %v452
      %v454 = vrot.slane %v395, %v453
      %vm456 = vcmask 261120
      %v458 = vsel %vm456, %v402, 0
      %v461 = vsel %vm456, %v403, 0
      %v464 = vsel %vm456, %v404, 0
      %v467 = vsel %vm456, %v405, 0
      %v470 = vsel %vm456, %v406, 0
      %v473 = vsel %vm456, %v407, 0
      %v476 = vsel %vm456, %v408, 0
      %v479 = vsel %vm456, %v409, 0
      %v482 = vsel %vm456, %v410, 0
      %v485 = vsel %vm456, %v411, 0
      %v488 = vsel %vm456, %v412, 0
      %v491 = vsel %vm456, %v413, 0
      %v494 = vsel %vm456, %v414, 0
      %v497 = vsel %vm456, %v415, 0
      %v500 = vsel %vm456, %v416, 0
      %v503 = vsel %vm456, %v417, 0
      %505 = vmatprep.subr.mxu0 0.0
      %506 = vmatpush1.msra.mxu0 %v376
      %507 = vmatprep.subr.mxu0 0.0
      %508 = vmatpush1.msra.mxu0 %v377
      %509 = vmatprep.subr.mxu0 0.0
      %510 = vmatpush1.msra.mxu0 %v378
      %511 = vmatprep.subr.mxu0 0.0
      %512 = vmatpush1.msra.mxu0 %v379
      %513 = vmatprep.subr.mxu0 0.0
      %514 = vmatpush1.msra.mxu0 0.0
      %515 = vmatprep.subr.mxu0 0.0
      %516 = vmatpush1.msra.mxu0 0.0
      %517 = vmatprep.subr.mxu0 0.0
      %518 = vmatpush1.msra.mxu0 0.0
      %519 = vmatprep.subr.mxu0 0.0
      %520 = vmatpush1.msra.mxu0 0.0
      %521 = vmatprep.subr.mxu0 0.0
      %522 = vmatpush1.msra.mxu0 0.0
      %523 = vmatprep.subr.mxu0 0.0
      %524 = vmatpush1.msra.mxu0 0.0
      %525 = vmatprep.subr.mxu0 0.0
      %526 = vmatpush1.msra.mxu0 0.0
      %527 = vmatprep.subr.mxu0 0.0
      %528 = vmatpush1.msra.mxu0 0.0
      %529 = vmatprep.subr.mxu0 0.0
      %530 = vmatpush1.msra.mxu0 0.0
      %531 = vmatprep.subr.mxu0 0.0
      %532 = vmatpush1.msra.mxu0 0.0
      %533 = vmatprep.subr.mxu0 0.0
      %534 = vmatpush1.msra.mxu0 0.0
      %535 = vmatprep.subr.mxu0 0.0
      %536 = vmatpush1.msra.mxu0 0.0
      %537 = vmatprep.subr.mxu0 0.0
      %538 = vmatpush1.msra.mxu0 0.0
      %539 = vmatprep.subr.mxu0 0.0
      %540 = vmatpush1.msra.mxu0 0.0
      %541 = vmatprep.subr.mxu0 0.0
      %542 = vmatpush1.msra.mxu0 0.0
      %543 = vmatprep.subr.mxu0 0.0
      %544 = vmatpush1.msra.mxu0 0.0
      %545 = vmatprep.subr.mxu0 0.0
      %546 = vmatpush1.msra.mxu0 0.0
      %547 = vmatprep.subr.mxu0 0.0
      %548 = vmatpush1.msra.mxu0 0.0
      %549 = vmatprep.subr.mxu0 0.0
      %550 = vmatpush1.msra.mxu0 0.0
      %551 = vmatprep.subr.mxu0 0.0
      %552 = vmatpush1.msra.mxu0 0.0
      %553 = vmatprep.subr.mxu0 0.0
      %554 = vmatpush1.msra.mxu0 0.0
      %555 = vmatprep.subr.mxu0 0.0
      %556 = vmatpush1.msra.mxu0 0.0
      %557 = vmatprep.subr.mxu0 0.0
      %558 = vmatpush1.msra.mxu0 0.0
      %559 = vmatprep.subr.mxu0 0.0
      %560 = vmatpush1.msra.mxu0 0.0
      %561 = vmatprep.subr.mxu0 0.0
      %562 = vmatpush1.msra.mxu0 0.0
      %563 = vmatprep.subr.mxu0 0.0
      %564 = vmatpush1.msra.mxu0 0.0
      %565 = vmatprep.subr.mxu0 0.0
      %566 = vmatpush1.msra.mxu0 0.0
      %567 = vmatprep.subr.mxu0 0.0
      %568 = vmatpush1.msra.mxu0 0.0
      %569 = vmatprep.mubr.f32.mxu0 0.0
      %570 = vmatmul.mubr.f32.gmra.mrb[0].mxu0 %v458
      %v571 = vpop.f32.mrb[0].mxu0
      %v572 = vadd.f32 %v454, %v571
      %v573 = vpop.f32.mrb[0].mxu0
      %574 = vmatprep.mubr.f32.mxu0 0.0
      %575 = vmatmul.mubr.f32.gmra.mrb[0].mxu0 %v461
      %v576 = vpop.f32.mrb[0].mxu0
      %v577 = vadd.f32 %v454, %v576
      %v578 = vpop.f32.mrb[0].mxu0
      %579 = vmatprep.mubr.f32.mxu0 0.0
      %580 = vmatmul.mubr.f32.gmra.mrb[0].mxu0 %v464
      %v581 = vpop.f32.mrb[0].mxu0
      %v582 = vadd.f32 %v454, %v581
      %v583 = vpop.f32.mrb[0].mxu0
      %584 = vmatprep.mubr.f32.mxu0 0.0
      %585 = vmatmul.mubr.f32.gmra.mrb[0].mxu0 %v467
      %v586 = vpop.f32.mrb[0].mxu0
      %v587 = vadd.f32 %v454, %v586
      %v588 = vpop.f32.mrb[0].mxu0
      %589 = vmatprep.mubr.f32.mxu0 0.0
      %590 = vmatmul.mubr.f32.gmra.mrb[0].mxu0 %v470
      %v591 = vpop.f32.mrb[0].mxu0
      %v592 = vadd.f32 %v454, %v591
      %v593 = vpop.f32.mrb[0].mxu0
      %594 = vmatprep.mubr.f32.mxu0 0.0
      %595 = vmatmul.mubr.f32.gmra.mrb[0].mxu0 %v473
      %v596 = vpop.f32.mrb[0].mxu0
      %v597 = vadd.f32 %v454, %v596
      %v598 = vpop.f32.mrb[0].mxu0
      %599 = vmatprep.mubr.f32.mxu0 0.0
      %600 = vmatmul.mubr.f32.gmra.mrb[0].mxu0 %v476
      %v601 = vpop.f32.mrb[0].mxu0
      %v602 = vadd.f32 %v454, %v601
      %v603 = vpop.f32.mrb[0].mxu0
      %604 = vmatprep.mubr.f32.mxu0 0.0
      %605 = vmatmul.mubr.f32.gmra.mrb[0].mxu0 %v479
      %v606 = vpop.f32.mrb[0].mxu0
      %v607 = vadd.f32 %v454, %v606
      %v608 = vpop.f32.mrb[0].mxu0
      %609 = vmatprep.mubr.f32.mxu0 0.0
      %610 = vmatmul.mubr.f32.gmra.mrb[0].mxu0 %v482
      %v611 = vpop.f32.mrb[0].mxu0
      %v612 = vadd.f32 %v454, %v611
      %v613 = vpop.f32.mrb[0].mxu0
      %614 = vmatprep.mubr.f32.mxu0 0.0
      %615 = vmatmul.mubr.f32.gmra.mrb[0].mxu0 %v485
      %v616 = vpop.f32.mrb[0].mxu0
      %v617 = vadd.f32 %v454, %v616
      %v618 = vpop.f32.mrb[0].mxu0
      %619 = vmatprep.mubr.f32.mxu0 0.0
      %620 = vmatmul.mubr.f32.gmra.mrb[0].mxu0 %v488
      %v621 = vpop.f32.mrb[0].mxu0
      %v622 = vadd.f32 %v454, %v621
      %v623 = vpop.f32.mrb[0].mxu0
      %624 = vmatprep.mubr.f32.mxu0 0.0
      %625 = vmatmul.mubr.f32.gmra.mrb[0].mxu0 %v491
      %v626 = vpop.f32.mrb[0].mxu0
      %v627 = vadd.f32 %v454, %v626
      %v628 = vpop.f32.mrb[0].mxu0
      %629 = vmatprep.mubr.f32.mxu0 0.0
      %630 = vmatmul.mubr.f32.gmra.mrb[0].mxu0 %v494
      %v631 = vpop.f32.mrb[0].mxu0
      %v632 = vadd.f32 %v454, %v631
      %v633 = vpop.f32.mrb[0].mxu0
      %634 = vmatprep.mubr.f32.mxu0 0.0
      %635 = vmatmul.mubr.f32.gmra.mrb[0].mxu0 %v497
      %v636 = vpop.f32.mrb[0].mxu0
      %v637 = vadd.f32 %v454, %v636
      %v638 = vpop.f32.mrb[0].mxu0
      %639 = vmatprep.mubr.f32.mxu0 0.0
      %640 = vmatmul.mubr.f32.gmra.mrb[0].mxu0 %v500
      %v641 = vpop.f32.mrb[0].mxu0
      %v642 = vadd.f32 %v454, %v641
      %v643 = vpop.f32.mrb[0].mxu0
      %644 = vmatprep.mubr.f32.mxu0 0.0
      %645 = vmatmul.mubr.f32.gmra.mrb[0].mxu0 %v503
      %v646 = vpop.f32.mrb[0].mxu0
      %v647 = vadd.f32 %v454, %v646
      %v648 = vpop.f32.mrb[0].mxu0
      %649 = vdwg.mxu0
      %v650 = vmul.f32 %v572, 0.35355338
      %v651 = vmul.f32 %v577, 0.35355338
      %v652 = vmul.f32 %v582, 0.35355338
      %v653 = vmul.f32 %v587, 0.35355338
      %v654 = vmul.f32 %v592, 0.35355338
      %v655 = vmul.f32 %v597, 0.35355338
      %v656 = vmul.f32 %v602, 0.35355338
      %v657 = vmul.f32 %v607, 0.35355338
      %v658 = vmul.f32 %v612, 0.35355338
      %v659 = vmul.f32 %v617, 0.35355338
      %v660 = vmul.f32 %v622, 0.35355338
      %v661 = vmul.f32 %v627, 0.35355338
      %v662 = vmul.f32 %v632, 0.35355338
      %v663 = vmul.f32 %v637, 0.35355338
      %v664 = vmul.f32 %v642, 0.35355338
      %v665 = vmul.f32 %v647, 0.35355338
      %v667 = vlaneseq
      %v668 = vshrl.u32 %v667, 7
      %v669 = vsub.s32 0, %v668
      %v670 = vrot.slane %v397, %v669
      %v673 = vsel %vm456, %v418, 0
      %v676 = vsel %vm456, %v419, 0
      %v679 = vsel %vm456, %v420, 0
      %v682 = vsel %vm456, %v421, 0
      %v685 = vsel %vm456, %v422, 0
      %v688 = vsel %vm456, %v423, 0
      %v691 = vsel %vm456, %v424, 0
      %v694 = vsel %vm456, %v425, 0
      %v697 = vsel %vm456, %v426, 0
      %v700 = vsel %vm456, %v427, 0
      %v703 = vsel %vm456, %v428, 0
      %v706 = vsel %vm456, %v429, 0
      %v709 = vsel %vm456, %v430, 0
      %v712 = vsel %vm456, %v431, 0
      %v715 = vsel %vm456, %v432, 0
      %v718 = vsel %vm456, %v433, 0
      %720 = vmatprep.subr.mxu0 0.0
      %721 = vmatpush1.msra.mxu0 %v381
      %722 = vmatprep.subr.mxu0 0.0
      %723 = vmatpush1.msra.mxu0 %v382
      %724 = vmatprep.subr.mxu0 0.0
      %725 = vmatpush1.msra.mxu0 %v383
      %726 = vmatprep.subr.mxu0 0.0
      %727 = vmatpush1.msra.mxu0 %v384
      %728 = vmatprep.subr.mxu0 0.0
      %729 = vmatpush1.msra.mxu0 0.0
      %730 = vmatprep.subr.mxu0 0.0
      %731 = vmatpush1.msra.mxu0 0.0
      %732 = vmatprep.subr.mxu0 0.0
      %733 = vmatpush1.msra.mxu0 0.0
      %734 = vmatprep.subr.mxu0 0.0
      %735 = vmatpush1.msra.mxu0 0.0
      %736 = vmatprep.subr.mxu0 0.0
      %737 = vmatpush1.msra.mxu0 0.0
      %738 = vmatprep.subr.mxu0 0.0
      %739 = vmatpush1.msra.mxu0 0.0
      %740 = vmatprep.subr.mxu0 0.0
      %741 = vmatpush1.msra.mxu0 0.0
      %742 = vmatprep.subr.mxu0 0.0
      %743 = vmatpush1.msra.mxu0 0.0
      %744 = vmatprep.subr.mxu0 0.0
      %745 = vmatpush1.msra.mxu0 0.0
      %746 = vmatprep.subr.mxu0 0.0
      %747 = vmatpush1.msra.mxu0 0.0
      %748 = vmatprep.subr.mxu0 0.0
      %749 = vmatpush1.msra.mxu0 0.0
      %750 = vmatprep.subr.mxu0 0.0
      %751 = vmatpush1.msra.mxu0 0.0
      %752 = vmatprep.subr.mxu0 0.0
      %753 = vmatpush1.msra.mxu0 0.0
      %754 = vmatprep.subr.mxu0 0.0
      %755 = vmatpush1.msra.mxu0 0.0
      %756 = vmatprep.subr.mxu0 0.0
      %757 = vmatpush1.msra.mxu0 0.0
      %758 = vmatprep.subr.mxu0 0.0
      %759 = vmatpush1.msra.mxu0 0.0
      %760 = vmatprep.subr.mxu0 0.0
      %761 = vmatpush1.msra.mxu0 0.0
      %762 = vmatprep.subr.mxu0 0.0
      %763 = vmatpush1.msra.mxu0 0.0
      %764 = vmatprep.subr.mxu0 0.0
      %765 = vmatpush1.msra.mxu0 0.0
      %766 = vmatprep.subr.mxu0 0.0
      %767 = vmatpush1.msra.mxu0 0.0
      %768 = vmatprep.subr.mxu0 0.0
      %769 = vmatpush1.msra.mxu0 0.0
      %770 = vmatprep.subr.mxu0 0.0
      %771 = vmatpush1.msra.mxu0 0.0
      %772 = vmatprep.subr.mxu0 0.0
      %773 = vmatpush1.msra.mxu0 0.0
      %774 = vmatprep.subr.mxu0 0.0
      %775 = vmatpush1.msra.mxu0 0.0
      %776 = vmatprep.subr.mxu0 0.0
      %777 = vmatpush1.msra.mxu0 0.0
      %778 = vmatprep.subr.mxu0 0.0
      %779 = vmatpush1.msra.mxu0 0.0
      %780 = vmatprep.subr.mxu0 0.0
      %781 = vmatpush1.msra.mxu0 0.0
      %782 = vmatprep.subr.mxu0 0.0
      %783 = vmatpush1.msra.mxu0 0.0
      %784 = vmatprep.mubr.f32.mxu0 0.0
      %785 = vmatmul.mubr.f32.gmra.mrb[0].mxu0 %v673
      %v786 = vpop.f32.mrb[0].mxu0
      %v787 = vadd.f32 %v670, %v786
      %v788 = vpop.f32.mrb[0].mxu0
      %789 = vmatprep.mubr.f32.mxu0 0.0
      %790 = vmatmul.mubr.f32.gmra.mrb[0].mxu0 %v676
      %v791 = vpop.f32.mrb[0].mxu0
      %v792 = vadd.f32 %v670, %v791
      %v793 = vpop.f32.mrb[0].mxu0
      %794 = vmatprep.mubr.f32.mxu0 0.0
      %795 = vmatmul.mubr.f32.gmra.mrb[0].mxu0 %v679
      %v796 = vpop.f32.mrb[0].mxu0
      %v797 = vadd.f32 %v670, %v796
      %v798 = vpop.f32.mrb[0].mxu0
      %799 = vmatprep.mubr.f32.mxu0 0.0
      %800 = vmatmul.mubr.f32.gmra.mrb[0].mxu0 %v682
      %v801 = vpop.f32.mrb[0].mxu0
      %v802 = vadd.f32 %v670, %v801
      %v803 = vpop.f32.mrb[0].mxu0
      %804 = vmatprep.mubr.f32.mxu0 0.0
      %805 = vmatmul.mubr.f32.gmra.mrb[0].mxu0 %v685
      %v806 = vpop.f32.mrb[0].mxu0
      %v807 = vadd.f32 %v670, %v806
      %v808 = vpop.f32.mrb[0].mxu0
      %809 = vmatprep.mubr.f32.mxu0 0.0
      %810 = vmatmul.mubr.f32.gmra.mrb[0].mxu0 %v688
      %v811 = vpop.f32.mrb[0].mxu0
      %v812 = vadd.f32 %v670, %v811
      %v813 = vpop.f32.mrb[0].mxu0
      %814 = vmatprep.mubr.f32.mxu0 0.0
      %815 = vmatmul.mubr.f32.gmra.mrb[0].mxu0 %v691
      %v816 = vpop.f32.mrb[0].mxu0
      %v817 = vadd.f32 %v670, %v816
      %v818 = vpop.f32.mrb[0].mxu0
      %819 = vmatprep.mubr.f32.mxu0 0.0
      %820 = vmatmul.mubr.f32.gmra.mrb[0].mxu0 %v694
      %v821 = vpop.f32.mrb[0].mxu0
      %v822 = vadd.f32 %v670, %v821
      %v823 = vpop.f32.mrb[0].mxu0
      %824 = vmatprep.mubr.f32.mxu0 0.0
      %825 = vmatmul.mubr.f32.gmra.mrb[0].mxu0 %v697
      %v826 = vpop.f32.mrb[0].mxu0
      %v827 = vadd.f32 %v670, %v826
      %v828 = vpop.f32.mrb[0].mxu0
      %829 = vmatprep.mubr.f32.mxu0 0.0
      %830 = vmatmul.mubr.f32.gmra.mrb[0].mxu0 %v700
      %v831 = vpop.f32.mrb[0].mxu0
      %v832 = vadd.f32 %v670, %v831
      %v833 = vpop.f32.mrb[0].mxu0
      %834 = vmatprep.mubr.f32.mxu0 0.0
      %835 = vmatmul.mubr.f32.gmra.mrb[0].mxu0 %v703
      %v836 = vpop.f32.mrb[0].mxu0
      %v837 = vadd.f32 %v670, %v836
      %v838 = vpop.f32.mrb[0].mxu0
      %839 = vmatprep.mubr.f32.mxu0 0.0
      %840 = vmatmul.mubr.f32.gmra.mrb[0].mxu0 %v706
      %v841 = vpop.f32.mrb[0].mxu0
      %v842 = vadd.f32 %v670, %v841
      %v843 = vpop.f32.mrb[0].mxu0
      %844 = vmatprep.mubr.f32.mxu0 0.0
      %845 = vmatmul.mubr.f32.gmra.mrb[0].mxu0 %v709
      %v846 = vpop.f32.mrb[0].mxu0
      %v847 = vadd.f32 %v670, %v846
      %v848 = vpop.f32.mrb[0].mxu0
      %849 = vmatprep.mubr.f32.mxu0 0.0
      %850 = vmatmul.mubr.f32.gmra.mrb[0].mxu0 %v712
      %v851 = vpop.f32.mrb[0].mxu0
      %v852 = vadd.f32 %v670, %v851
      %v853 = vpop.f32.mrb[0].mxu0
      %854 = vmatprep.mubr.f32.mxu0 0.0
      %855 = vmatmul.mubr.f32.gmra.mrb[0].mxu0 %v715
      %v856 = vpop.f32.mrb[0].mxu0
      %v857 = vadd.f32 %v670, %v856
      %v858 = vpop.f32.mrb[0].mxu0
      %859 = vmatprep.mubr.f32.mxu0 0.0
      %860 = vmatmul.mubr.f32.gmra.mrb[0].mxu0 %v718
      %v861 = vpop.f32.mrb[0].mxu0
      %v862 = vadd.f32 %v670, %v861
      %v863 = vpop.f32.mrb[0].mxu0
      %864 = vdwg.mxu0
      %v866 = vlaneseq
      %v867 = vshrl.u32 %v866, 7
      %v868 = vsub.s32 0, %v867
      %v869 = vrot.slane %v399, %v868
      %v872 = vsel %vm456, %v434, 0
      %v875 = vsel %vm456, %v435, 0
      %v878 = vsel %vm456, %v436, 0
      %v881 = vsel %vm456, %v437, 0
      %v884 = vsel %vm456, %v438, 0
      %v887 = vsel %vm456, %v439, 0
      %v890 = vsel %vm456, %v440, 0
      %v893 = vsel %vm456, %v441, 0
      %v896 = vsel %vm456, %v442, 0
      %v899 = vsel %vm456, %v443, 0
      %v902 = vsel %vm456, %v444, 0
      %v905 = vsel %vm456, %v445, 0
      %v908 = vsel %vm456, %v446, 0
      %v911 = vsel %vm456, %v447, 0
      %v914 = vsel %vm456, %v448, 0
      %v917 = vsel %vm456, %v449, 0
      %919 = vmatprep.subr.mxu0 0.0
      %920 = vmatpush1.msra.mxu0 %v386
      %921 = vmatprep.subr.mxu0 0.0
      %922 = vmatpush1.msra.mxu0 %v387
      %923 = vmatprep.subr.mxu0 0.0
      %924 = vmatpush1.msra.mxu0 %v388
      %925 = vmatprep.subr.mxu0 0.0
      %926 = vmatpush1.msra.mxu0 %v389
      %927 = vmatprep.subr.mxu0 0.0
      %928 = vmatpush1.msra.mxu0 0.0
      %929 = vmatprep.subr.mxu0 0.0
      %930 = vmatpush1.msra.mxu0 0.0
      %931 = vmatprep.subr.mxu0 0.0
      %932 = vmatpush1.msra.mxu0 0.0
      %933 = vmatprep.subr.mxu0 0.0
      %934 = vmatpush1.msra.mxu0 0.0
      %935 = vmatprep.subr.mxu0 0.0
      %936 = vmatpush1.msra.mxu0 0.0
      %937 = vmatprep.subr.mxu0 0.0
      %938 = vmatpush1.msra.mxu0 0.0
      %939 = vmatprep.subr.mxu0 0.0
      %940 = vmatpush1.msra.mxu0 0.0
      %941 = vmatprep.subr.mxu0 0.0
      %942 = vmatpush1.msra.mxu0 0.0
      %943 = vmatprep.subr.mxu0 0.0
      %944 = vmatpush1.msra.mxu0 0.0
      %945 = vmatprep.subr.mxu0 0.0
      %946 = vmatpush1.msra.mxu0 0.0
      %947 = vmatprep.subr.mxu0 0.0
      %948 = vmatpush1.msra.mxu0 0.0
      %949 = vmatprep.subr.mxu0 0.0
      %950 = vmatpush1.msra.mxu0 0.0
      %951 = vmatprep.subr.mxu0 0.0
      %952 = vmatpush1.msra.mxu0 0.0
      %953 = vmatprep.subr.mxu0 0.0
      %954 = vmatpush1.msra.mxu0 0.0
      %955 = vmatprep.subr.mxu0 0.0
      %956 = vmatpush1.msra.mxu0 0.0
      %957 = vmatprep.subr.mxu0 0.0
      %958 = vmatpush1.msra.mxu0 0.0
      %959 = vmatprep.subr.mxu0 0.0
      %960 = vmatpush1.msra.mxu0 0.0
      %961 = vmatprep.subr.mxu0 0.0
      %962 = vmatpush1.msra.mxu0 0.0
      %963 = vmatprep.subr.mxu0 0.0
      %964 = vmatpush1.msra.mxu0 0.0
      %965 = vmatprep.subr.mxu0 0.0
      %966 = vmatpush1.msra.mxu0 0.0
      %967 = vmatprep.subr.mxu0 0.0
      %968 = vmatpush1.msra.mxu0 0.0
      %969 = vmatprep.subr.mxu0 0.0
      %970 = vmatpush1.msra.mxu0 0.0
      %971 = vmatprep.subr.mxu0 0.0
      %972 = vmatpush1.msra.mxu0 0.0
      %973 = vmatprep.subr.mxu0 0.0
      %974 = vmatpush1.msra.mxu0 0.0
      %975 = vmatprep.subr.mxu0 0.0
      %976 = vmatpush1.msra.mxu0 0.0
      %977 = vmatprep.subr.mxu0 0.0
      %978 = vmatpush1.msra.mxu0 0.0
      %979 = vmatprep.subr.mxu0 0.0
      %980 = vmatpush1.msra.mxu0 0.0
      %981 = vmatprep.subr.mxu0 0.0
      %982 = vmatpush1.msra.mxu0 0.0
      %983 = vmatprep.mubr.f32.mxu0 0.0
      %984 = vmatmul.mubr.f32.gmra.mrb[0].mxu0 %v872
      %v985 = vpop.f32.mrb[0].mxu0
      %v986 = vadd.f32 %v869, %v985
      %v987 = vpop.f32.mrb[0].mxu0
      %988 = vmatprep.mubr.f32.mxu0 0.0
      %989 = vmatmul.mubr.f32.gmra.mrb[0].mxu0 %v875
      %v990 = vpop.f32.mrb[0].mxu0
      %v991 = vadd.f32 %v869, %v990
      %v992 = vpop.f32.mrb[0].mxu0
      %993 = vmatprep.mubr.f32.mxu0 0.0
      %994 = vmatmul.mubr.f32.gmra.mrb[0].mxu0 %v878
      %v995 = vpop.f32.mrb[0].mxu0
      %v996 = vadd.f32 %v869, %v995
      %v997 = vpop.f32.mrb[0].mxu0
      %998 = vmatprep.mubr.f32.mxu0 0.0
      %999 = vmatmul.mubr.f32.gmra.mrb[0].mxu0 %v881
      %v1000 = vpop.f32.mrb[0].mxu0
      %v1001 = vadd.f32 %v869, %v1000
      %v1002 = vpop.f32.mrb[0].mxu0
      %1003 = vmatprep.mubr.f32.mxu0 0.0
      %1004 = vmatmul.mubr.f32.gmra.mrb[0].mxu0 %v884
      %v1005 = vpop.f32.mrb[0].mxu0
      %v1006 = vadd.f32 %v869, %v1005
      %v1007 = vpop.f32.mrb[0].mxu0
      %1008 = vmatprep.mubr.f32.mxu0 0.0
      %1009 = vmatmul.mubr.f32.gmra.mrb[0].mxu0 %v887
      %v1010 = vpop.f32.mrb[0].mxu0
      %v1011 = vadd.f32 %v869, %v1010
      %v1012 = vpop.f32.mrb[0].mxu0
      %1013 = vmatprep.mubr.f32.mxu0 0.0
      %1014 = vmatmul.mubr.f32.gmra.mrb[0].mxu0 %v890
      %v1015 = vpop.f32.mrb[0].mxu0
      %v1016 = vadd.f32 %v869, %v1015
      %v1017 = vpop.f32.mrb[0].mxu0
      %1018 = vmatprep.mubr.f32.mxu0 0.0
      %1019 = vmatmul.mubr.f32.gmra.mrb[0].mxu0 %v893
      %v1020 = vpop.f32.mrb[0].mxu0
      %v1021 = vadd.f32 %v869, %v1020
      %v1022 = vpop.f32.mrb[0].mxu0
      %1023 = vmatprep.mubr.f32.mxu0 0.0
      %1024 = vmatmul.mubr.f32.gmra.mrb[0].mxu0 %v896
      %v1025 = vpop.f32.mrb[0].mxu0
      %v1026 = vadd.f32 %v869, %v1025
      %v1027 = vpop.f32.mrb[0].mxu0
      %1028 = vmatprep.mubr.f32.mxu0 0.0
      %1029 = vmatmul.mubr.f32.gmra.mrb[0].mxu0 %v899
      %v1030 = vpop.f32.mrb[0].mxu0
      %v1031 = vadd.f32 %v869, %v1030
      %v1032 = vpop.f32.mrb[0].mxu0
      %1033 = vmatprep.mubr.f32.mxu0 0.0
      %1034 = vmatmul.mubr.f32.gmra.mrb[0].mxu0 %v902
      %v1035 = vpop.f32.mrb[0].mxu0
      %v1036 = vadd.f32 %v869, %v1035
      %v1037 = vpop.f32.mrb[0].mxu0
      %1038 = vmatprep.mubr.f32.mxu0 0.0
      %1039 = vmatmul.mubr.f32.gmra.mrb[0].mxu0 %v905
      %v1040 = vpop.f32.mrb[0].mxu0
      %v1041 = vadd.f32 %v869, %v1040
      %v1042 = vpop.f32.mrb[0].mxu0
      %1043 = vmatprep.mubr.f32.mxu0 0.0
      %1044 = vmatmul.mubr.f32.gmra.mrb[0].mxu0 %v908
      %v1045 = vpop.f32.mrb[0].mxu0
      %v1046 = vadd.f32 %v869, %v1045
      %v1047 = vpop.f32.mrb[0].mxu0
      %1048 = vmatprep.mubr.f32.mxu0 0.0
      %1049 = vmatmul.mubr.f32.gmra.mrb[0].mxu0 %v911
      %v1050 = vpop.f32.mrb[0].mxu0
      %v1051 = vadd.f32 %v869, %v1050
      %v1052 = vpop.f32.mrb[0].mxu0
      %1053 = vmatprep.mubr.f32.mxu0 0.0
      %1054 = vmatmul.mubr.f32.gmra.mrb[0].mxu0 %v914
      %v1055 = vpop.f32.mrb[0].mxu0
      %v1056 = vadd.f32 %v869, %v1055
      %v1057 = vpop.f32.mrb[0].mxu0
      %1058 = vmatprep.mubr.f32.mxu0 0.0
      %1059 = vmatmul.mubr.f32.gmra.mrb[0].mxu0 %v917
      %v1060 = vpop.f32.mrb[0].mxu0
      %v1061 = vadd.f32 %v869, %v1060
      %v1062 = vpop.f32.mrb[0].mxu0
      %1063 = vdwg.mxu0
      %v1064 = vld [vmem:[%s361] sm:$0xff]
      %v1065 = vld [vmem:[%s361 + $0x8] sm:$0xff]
      %v1066 = vld [vmem:[%s361 + $0x10] sm:$0xff]
      %v1067 = vld [vmem:[%s361 + $0x18] sm:$0xff]
      %v1068 = vld [vmem:[%s361 + $0x20] sm:$0xff]
      %v1069 = vld [vmem:[%s361 + $0x28] sm:$0xff]
      %v1070 = vld [vmem:[%s361 + $0x30] sm:$0xff]
      %v1071 = vld [vmem:[%s361 + $0x38] sm:$0xff]
      %v1072 = vld [vmem:[%s361 + $0x40] sm:$0xff]
      %v1073 = vld [vmem:[%s361 + $0x48] sm:$0xff]
      %v1074 = vld [vmem:[%s361 + $0x50] sm:$0xff]
      %v1075 = vld [vmem:[%s361 + $0x58] sm:$0xff]
      %v1076 = vld [vmem:[%s361 + $0x60] sm:$0xff]
      %v1077 = vld [vmem:[%s361 + $0x68] sm:$0xff]
      %v1078 = vld [vmem:[%s361 + $0x70] sm:$0xff]
      %v1079 = vld [vmem:[%s361 + $0x78] sm:$0xff]
      %v1080 = vld [vmem:[%s368] sm:$0xff]
      %v1081 = vld [vmem:[%s368 + $0x8] sm:$0xff]
      %v1082 = vld [vmem:[%s368 + $0x10] sm:$0xff]
      %v1083 = vld [vmem:[%s368 + $0x18] sm:$0xff]
      %v1084 = vld [vmem:[%s368 + $0x20] sm:$0xff]
      %v1085 = vld [vmem:[%s368 + $0x28] sm:$0xff]
      %v1086 = vld [vmem:[%s368 + $0x30] sm:$0xff]
      %v1087 = vld [vmem:[%s368 + $0x38] sm:$0xff]
      %v1088 = vld [vmem:[%s368 + $0x40] sm:$0xff]
      %v1089 = vld [vmem:[%s368 + $0x48] sm:$0xff]
      %v1090 = vld [vmem:[%s368 + $0x50] sm:$0xff]
      %v1091 = vld [vmem:[%s368 + $0x58] sm:$0xff]
      %v1092 = vld [vmem:[%s368 + $0x60] sm:$0xff]
      %v1093 = vld [vmem:[%s368 + $0x68] sm:$0xff]
      %v1094 = vld [vmem:[%s368 + $0x70] sm:$0xff]
      %v1095 = vld [vmem:[%s368 + $0x78] sm:$0xff]
      %vm1096 = vcmask 64512
      %v1098 = vsel %vm1096, %v650, 0
      %v1101 = vsel %vm1096, %v651, 0
      %v1104 = vsel %vm1096, %v652, 0
      %v1107 = vsel %vm1096, %v653, 0
      %v1110 = vsel %vm1096, %v654, 0
      %v1113 = vsel %vm1096, %v655, 0
      %v1116 = vsel %vm1096, %v656, 0
      %v1119 = vsel %vm1096, %v657, 0
      %v1122 = vsel %vm1096, %v658, 0
      %v1125 = vsel %vm1096, %v659, 0
      %v1128 = vsel %vm1096, %v660, 0
      %v1131 = vsel %vm1096, %v661, 0
      %v1134 = vsel %vm1096, %v662, 0
      %v1137 = vsel %vm1096, %v663, 0
      %v1140 = vsel %vm1096, %v664, 0
      %v1143 = vsel %vm1096, %v665, 0
      %v1146 = vsel %vm1096, %v787, 0
      %v1149 = vsel %vm1096, %v792, 0
      %v1152 = vsel %vm1096, %v797, 0
      %v1155 = vsel %vm1096, %v802, 0
      %v1158 = vsel %vm1096, %v807, 0
      %v1161 = vsel %vm1096, %v812, 0
      %v1164 = vsel %vm1096, %v817, 0
      %v1167 = vsel %vm1096, %v822, 0
      %v1170 = vsel %vm1096, %v827, 0
      %v1173 = vsel %vm1096, %v832, 0
      %v1176 = vsel %vm1096, %v837, 0
      %v1179 = vsel %vm1096, %v842, 0
      %v1182 = vsel %vm1096, %v847, 0
      %v1185 = vsel %vm1096, %v852, 0
      %v1188 = vsel %vm1096, %v857, 0
      %v1191 = vsel %vm1096, %v862, 0
      %1193 = vmatprep.subr.mxu0 0.0
      %1194 = vmatpush1.xpose.msra.mxu0 %v1146
      %1195 = vmatprep.subr.mxu0 0.0
      %1196 = vmatpush1.xpose.msra.mxu0 %v1149
      %1197 = vmatprep.subr.mxu0 0.0
      %1198 = vmatpush1.xpose.msra.mxu0 %v1152
      %1199 = vmatprep.subr.mxu0 0.0
      %1200 = vmatpush1.xpose.msra.mxu0 %v1155
      %1201 = vmatprep.subr.mxu0 0.0
      %1202 = vmatpush1.xpose.msra.mxu0 %v1158
      %1203 = vmatprep.subr.mxu0 0.0
      %1204 = vmatpush1.xpose.msra.mxu0 %v1161
      %1205 = vmatprep.subr.mxu0 0.0
      %1206 = vmatpush1.xpose.msra.mxu0 %v1164
      %1207 = vmatprep.subr.mxu0 0.0
      %1208 = vmatpush1.xpose.msra.mxu0 %v1167
      %1209 = vmatprep.subr.mxu0 0.0
      %1210 = vmatpush1.xpose.msra.mxu0 %v1170
      %1211 = vmatprep.subr.mxu0 0.0
      %1212 = vmatpush1.xpose.msra.mxu0 %v1173
      %1213 = vmatprep.subr.mxu0 0.0
      %1214 = vmatpush1.xpose.msra.mxu0 %v1176
      %1215 = vmatprep.subr.mxu0 0.0
      %1216 = vmatpush1.xpose.msra.mxu0 %v1179
      %1217 = vmatprep.subr.mxu0 0.0
      %1218 = vmatpush1.xpose.msra.mxu0 %v1182
      %1219 = vmatprep.subr.mxu0 0.0
      %1220 = vmatpush1.xpose.msra.mxu0 %v1185
      %1221 = vmatprep.subr.mxu0 0.0
      %1222 = vmatpush1.xpose.msra.mxu0 %v1188
      %1223 = vmatprep.subr.mxu0 0.0
      %1224 = vmatpush1.xpose.msra.mxu0 %v1191
      %1225 = vmatprep.subr.mxu0 0.0
      %1226 = vmatpush1.xpose.msra.mxu0 0.0
      %1227 = vmatprep.subr.mxu0 0.0
      %1228 = vmatpush1.xpose.msra.mxu0 0.0
      %1229 = vmatprep.subr.mxu0 0.0
      %1230 = vmatpush1.xpose.msra.mxu0 0.0
      %1231 = vmatprep.subr.mxu0 0.0
      %1232 = vmatpush1.xpose.msra.mxu0 0.0
      %1233 = vmatprep.subr.mxu0 0.0
      %1234 = vmatpush1.xpose.msra.mxu0 0.0
      %1235 = vmatprep.subr.mxu0 0.0
      %1236 = vmatpush1.xpose.msra.mxu0 0.0
      %1237 = vmatprep.subr.mxu0 0.0
      %1238 = vmatpush1.xpose.msra.mxu0 0.0
      %1239 = vmatprep.subr.mxu0 0.0
      %1240 = vmatpush1.xpose.msra.mxu0 0.0
      %1241 = vmatprep.subr.mxu0 0.0
      %1242 = vmatpush1.xpose.msra.mxu0 0.0
      %1243 = vmatprep.subr.mxu0 0.0
      %1244 = vmatpush1.xpose.msra.mxu0 0.0
      %1245 = vmatprep.subr.mxu0 0.0
      %1246 = vmatpush1.xpose.msra.mxu0 0.0
      %1247 = vmatprep.subr.mxu0 0.0
      %1248 = vmatpush1.xpose.msra.mxu0 0.0
      %1249 = vmatprep.subr.mxu0 0.0
      %1250 = vmatpush1.xpose.msra.mxu0 0.0
      %1251 = vmatprep.subr.mxu0 0.0
      %1252 = vmatpush1.xpose.msra.mxu0 0.0
      %1253 = vmatprep.subr.mxu0 0.0
      %1254 = vmatpush1.xpose.msra.mxu0 0.0
      %1255 = vmatprep.subr.mxu0 0.0
      %1256 = vmatpush1.xpose.msra.mxu0 0.0
      %1257 = vmatprep.mubr.f32.mxu0 0.0
      %1258 = vmatmul.mubr.f32.gmra.mrb[0].mxu0 %v1098
      %v1259 = vpop.f32.mrb[0].mxu0
      %v1260 = vadd.f32 %v1064, %v1259
      %v1261 = vpop.f32.mrb[0].mxu0
      %1262 = vmatprep.mubr.f32.mxu0 0.0
      %1263 = vmatmul.mubr.f32.gmra.mrb[0].mxu0 %v1101
      %v1264 = vpop.f32.mrb[0].mxu0
      %v1265 = vadd.f32 %v1065, %v1264
      %v1266 = vpop.f32.mrb[0].mxu0
      %1267 = vmatprep.mubr.f32.mxu0 0.0
      %1268 = vmatmul.mubr.f32.gmra.mrb[0].mxu0 %v1104
      %v1269 = vpop.f32.mrb[0].mxu0
      %v1270 = vadd.f32 %v1066, %v1269
      %v1271 = vpop.f32.mrb[0].mxu0
      %1272 = vmatprep.mubr.f32.mxu0 0.0
      %1273 = vmatmul.mubr.f32.gmra.mrb[0].mxu0 %v1107
      %v1274 = vpop.f32.mrb[0].mxu0
      %v1275 = vadd.f32 %v1067, %v1274
      %v1276 = vpop.f32.mrb[0].mxu0
      %1277 = vmatprep.mubr.f32.mxu0 0.0
      %1278 = vmatmul.mubr.f32.gmra.mrb[0].mxu0 %v1110
      %v1279 = vpop.f32.mrb[0].mxu0
      %v1280 = vadd.f32 %v1068, %v1279
      %v1281 = vpop.f32.mrb[0].mxu0
      %1282 = vmatprep.mubr.f32.mxu0 0.0
      %1283 = vmatmul.mubr.f32.gmra.mrb[0].mxu0 %v1113
      %v1284 = vpop.f32.mrb[0].mxu0
      %v1285 = vadd.f32 %v1069, %v1284
      %v1286 = vpop.f32.mrb[0].mxu0
      %1287 = vmatprep.mubr.f32.mxu0 0.0
      %1288 = vmatmul.mubr.f32.gmra.mrb[0].mxu0 %v1116
      %v1289 = vpop.f32.mrb[0].mxu0
      %v1290 = vadd.f32 %v1070, %v1289
      %v1291 = vpop.f32.mrb[0].mxu0
      %1292 = vmatprep.mubr.f32.mxu0 0.0
      %1293 = vmatmul.mubr.f32.gmra.mrb[0].mxu0 %v1119
      %v1294 = vpop.f32.mrb[0].mxu0
      %v1295 = vadd.f32 %v1071, %v1294
      %v1296 = vpop.f32.mrb[0].mxu0
      %1297 = vmatprep.mubr.f32.mxu0 0.0
      %1298 = vmatmul.mubr.f32.gmra.mrb[0].mxu0 %v1122
      %v1299 = vpop.f32.mrb[0].mxu0
      %v1300 = vadd.f32 %v1072, %v1299
      %v1301 = vpop.f32.mrb[0].mxu0
      %1302 = vmatprep.mubr.f32.mxu0 0.0
      %1303 = vmatmul.mubr.f32.gmra.mrb[0].mxu0 %v1125
      %v1304 = vpop.f32.mrb[0].mxu0
      %v1305 = vadd.f32 %v1073, %v1304
      %v1306 = vpop.f32.mrb[0].mxu0
      %1307 = vmatprep.mubr.f32.mxu0 0.0
      %1308 = vmatmul.mubr.f32.gmra.mrb[0].mxu0 %v1128
      %v1309 = vpop.f32.mrb[0].mxu0
      %v1310 = vadd.f32 %v1074, %v1309
      %v1311 = vpop.f32.mrb[0].mxu0
      %1312 = vmatprep.mubr.f32.mxu0 0.0
      %1313 = vmatmul.mubr.f32.gmra.mrb[0].mxu0 %v1131
      %v1314 = vpop.f32.mrb[0].mxu0
      %v1315 = vadd.f32 %v1075, %v1314
      %v1316 = vpop.f32.mrb[0].mxu0
      %1317 = vmatprep.mubr.f32.mxu0 0.0
      %1318 = vmatmul.mubr.f32.gmra.mrb[0].mxu0 %v1134
      %v1319 = vpop.f32.mrb[0].mxu0
      %v1320 = vadd.f32 %v1076, %v1319
      %v1321 = vpop.f32.mrb[0].mxu0
      %1322 = vmatprep.mubr.f32.mxu0 0.0
      %1323 = vmatmul.mubr.f32.gmra.mrb[0].mxu0 %v1137
      %v1324 = vpop.f32.mrb[0].mxu0
      %v1325 = vadd.f32 %v1077, %v1324
      %v1326 = vpop.f32.mrb[0].mxu0
      %1327 = vmatprep.mubr.f32.mxu0 0.0
      %1328 = vmatmul.mubr.f32.gmra.mrb[0].mxu0 %v1140
      %v1329 = vpop.f32.mrb[0].mxu0
      %v1330 = vadd.f32 %v1078, %v1329
      %v1331 = vpop.f32.mrb[0].mxu0
      %1332 = vmatprep.mubr.f32.mxu0 0.0
      %1333 = vmatmul.mubr.f32.gmra.mrb[0].mxu0 %v1143
      %v1334 = vpop.f32.mrb[0].mxu0
      %v1335 = vadd.f32 %v1079, %v1334
      %v1336 = vpop.f32.mrb[0].mxu0
      %1337 = vdwg.mxu0
      %1338 = vmax.xlane.f32.xlu0 %v1260
      %v1339 = vpop.xlane.xlu0 %1338
      %1340 = vmax.xlane.f32.xlu0 %v1265
      %v1341 = vpop.xlane.xlu0 %1340
      %1342 = vmax.xlane.f32.xlu0 %v1270
      %v1343 = vpop.xlane.xlu0 %1342
      %1344 = vmax.xlane.f32.xlu0 %v1275
      %v1345 = vpop.xlane.xlu0 %1344
      %1346 = vmax.xlane.f32.xlu0 %v1280
      %v1347 = vpop.xlane.xlu0 %1346
      %1348 = vmax.xlane.f32.xlu0 %v1285
      %v1349 = vpop.xlane.xlu0 %1348
      %1350 = vmax.xlane.f32.xlu0 %v1290
      %v1351 = vpop.xlane.xlu0 %1350
      %1352 = vmax.xlane.f32.xlu0 %v1295
      %v1353 = vpop.xlane.xlu0 %1352
      %1354 = vmax.xlane.f32.xlu0 %v1300
      %v1355 = vpop.xlane.xlu0 %1354
      %1356 = vmax.xlane.f32.xlu0 %v1305
      %v1357 = vpop.xlane.xlu0 %1356
      %1358 = vmax.xlane.f32.xlu0 %v1310
      %v1359 = vpop.xlane.xlu0 %1358
      %1360 = vmax.xlane.f32.xlu0 %v1315
      %v1361 = vpop.xlane.xlu0 %1360
      %1362 = vmax.xlane.f32.xlu0 %v1320
      %v1363 = vpop.xlane.xlu0 %1362
      %1364 = vmax.xlane.f32.xlu0 %v1325
      %v1365 = vpop.xlane.xlu0 %1364
      %1366 = vmax.xlane.f32.xlu0 %v1330
      %v1367 = vpop.xlane.xlu0 %1366
      %1368 = vmax.xlane.f32.xlu0 %v1335
      %v1369 = vpop.xlane.xlu0 %1368
      %v1370 = vsub.f32 %v1260, %v1339
      %v1371 = vsub.f32 %v1265, %v1341
      %v1372 = vsub.f32 %v1270, %v1343
      %v1373 = vsub.f32 %v1275, %v1345
      %v1374 = vsub.f32 %v1280, %v1347
      %v1375 = vsub.f32 %v1285, %v1349
      %v1376 = vsub.f32 %v1290, %v1351
      %v1377 = vsub.f32 %v1295, %v1353
      %v1378 = vsub.f32 %v1300, %v1355
      %v1379 = vsub.f32 %v1305, %v1357
      %v1380 = vsub.f32 %v1310, %v1359
      %v1381 = vsub.f32 %v1315, %v1361
      %v1382 = vsub.f32 %v1320, %v1363
      %v1383 = vsub.f32 %v1325, %v1365
      %v1384 = vsub.f32 %v1330, %v1367
      %v1385 = vsub.f32 %v1335, %v1369
      %v1386 = vmul.f32 %v1370, 1.442695
      %v1387 = vpow.pop %v1386
      %v1388 = vmul.f32 %v1371, 1.442695
      %v1389 = vpow.pop %v1388
      %v1390 = vmul.f32 %v1372, 1.442695
      %v1391 = vpow.pop %v1390
      %v1392 = vmul.f32 %v1373, 1.442695
      %v1393 = vpow.pop %v1392
      %v1394 = vmul.f32 %v1374, 1.442695
      %v1395 = vpow.pop %v1394
      %v1396 = vmul.f32 %v1375, 1.442695
      %v1397 = vpow.pop %v1396
      %v1398 = vmul.f32 %v1376, 1.442695
      %v1399 = vpow.pop %v1398
      %v1400 = vmul.f32 %v1377, 1.442695
      %v1401 = vpow.pop %v1400
      %v1402 = vmul.f32 %v1378, 1.442695
      %v1403 = vpow.pop %v1402
      %v1404 = vmul.f32 %v1379, 1.442695
      %v1405 = vpow.pop %v1404
      %v1406 = vmul.f32 %v1380, 1.442695
      %v1407 = vpow.pop %v1406
      %v1408 = vmul.f32 %v1381, 1.442695
      %v1409 = vpow.pop %v1408
      %v1410 = vmul.f32 %v1382, 1.442695
      %v1411 = vpow.pop %v1410
      %v1412 = vmul.f32 %v1383, 1.442695
      %v1413 = vpow.pop %v1412
      %v1414 = vmul.f32 %v1384, 1.442695
      %v1415 = vpow.pop %v1414
      %v1416 = vmul.f32 %v1385, 1.442695
      %v1417 = vpow.pop %v1416
      %1418 = vadd.xlane.f32.xlu0 %v1387
      %v1419 = vpop.xlane.xlu0 %1418
      %1420 = vadd.xlane.f32.xlu0 %v1389
      %v1421 = vpop.xlane.xlu0 %1420
      %1422 = vadd.xlane.f32.xlu0 %v1391
      %v1423 = vpop.xlane.xlu0 %1422
      %1424 = vadd.xlane.f32.xlu0 %v1393
      %v1425 = vpop.xlane.xlu0 %1424
      %1426 = vadd.xlane.f32.xlu0 %v1395
      %v1427 = vpop.xlane.xlu0 %1426
      %1428 = vadd.xlane.f32.xlu0 %v1397
      %v1429 = vpop.xlane.xlu0 %1428
      %1430 = vadd.xlane.f32.xlu0 %v1399
      %v1431 = vpop.xlane.xlu0 %1430
      %1432 = vadd.xlane.f32.xlu0 %v1401
      %v1433 = vpop.xlane.xlu0 %1432
      %1434 = vadd.xlane.f32.xlu0 %v1403
      %v1435 = vpop.xlane.xlu0 %1434
      %1436 = vadd.xlane.f32.xlu0 %v1405
      %v1437 = vpop.xlane.xlu0 %1436
      %1438 = vadd.xlane.f32.xlu0 %v1407
      %v1439 = vpop.xlane.xlu0 %1438
      %1440 = vadd.xlane.f32.xlu0 %v1409
      %v1441 = vpop.xlane.xlu0 %1440
      %1442 = vadd.xlane.f32.xlu0 %v1411
      %v1443 = vpop.xlane.xlu0 %1442
      %1444 = vadd.xlane.f32.xlu0 %v1413
      %v1445 = vpop.xlane.xlu0 %1444
      %1446 = vadd.xlane.f32.xlu0 %v1415
      %v1447 = vpop.xlane.xlu0 %1446
      %1448 = vadd.xlane.f32.xlu0 %v1417
      %v1449 = vpop.xlane.xlu0 %1448
      %v1450 = vrcp.pop %v1419
      %v1451 = vrcp.pop %v1421
      %v1452 = vrcp.pop %v1423
      %v1453 = vrcp.pop %v1425
      %v1454 = vrcp.pop %v1427
      %v1455 = vrcp.pop %v1429
      %v1456 = vrcp.pop %v1431
      %v1457 = vrcp.pop %v1433
      %v1458 = vrcp.pop %v1435
      %v1459 = vrcp.pop %v1437
      %v1460 = vrcp.pop %v1439
      %v1461 = vrcp.pop %v1441
      %v1462 = vrcp.pop %v1443
      %v1463 = vrcp.pop %v1445
      %v1464 = vrcp.pop %v1447
      %v1465 = vrcp.pop %v1449
      %v1466 = vmul.f32 %v1450, 0.5
      %v1467 = vmul.f32 %v1451, 0.5
      %v1468 = vmul.f32 %v1452, 0.5
      %v1469 = vmul.f32 %v1453, 0.5
      %v1470 = vmul.f32 %v1454, 0.5
      %v1471 = vmul.f32 %v1455, 0.5
      %v1472 = vmul.f32 %v1456, 0.5
      %v1473 = vmul.f32 %v1457, 0.5
      %v1474 = vmul.f32 %v1458, 0.5
      %v1475 = vmul.f32 %v1459, 0.5
      %v1476 = vmul.f32 %v1460, 0.5
      %v1477 = vmul.f32 %v1461, 0.5
      %v1478 = vmul.f32 %v1462, 0.5
      %v1479 = vmul.f32 %v1463, 0.5
      %v1480 = vmul.f32 %v1464, 0.5
      %v1481 = vmul.f32 %v1465, 0.5
      %v1482 = vmul.f32 %v1387, %v1466
      %v1483 = vmul.f32 %v1389, %v1467
      %v1484 = vmul.f32 %v1391, %v1468
      %v1485 = vmul.f32 %v1393, %v1469
      %v1486 = vmul.f32 %v1395, %v1470
      %v1487 = vmul.f32 %v1397, %v1471
      %v1488 = vmul.f32 %v1399, %v1472
      %v1489 = vmul.f32 %v1401, %v1473
      %v1490 = vmul.f32 %v1403, %v1474
      %v1491 = vmul.f32 %v1405, %v1475
      %v1492 = vmul.f32 %v1407, %v1476
      %v1493 = vmul.f32 %v1409, %v1477
      %v1494 = vmul.f32 %v1411, %v1478
      %v1495 = vmul.f32 %v1413, %v1479
      %v1496 = vmul.f32 %v1415, %v1480
      %v1497 = vmul.f32 %v1417, %v1481
      %v1498 = vadd.f32 %v1482, %v1080
      %v1499 = vadd.f32 %v1483, %v1081
      %v1500 = vadd.f32 %v1484, %v1082
      %v1501 = vadd.f32 %v1485, %v1083
      %v1502 = vadd.f32 %v1486, %v1084
      %v1503 = vadd.f32 %v1487, %v1085
      %v1504 = vadd.f32 %v1488, %v1086
      %v1505 = vadd.f32 %v1489, %v1087
      %v1506 = vadd.f32 %v1490, %v1088
      %v1507 = vadd.f32 %v1491, %v1089
      %v1508 = vadd.f32 %v1492, %v1090
      %v1509 = vadd.f32 %v1493, %v1091
      %v1510 = vadd.f32 %v1494, %v1092
      %v1511 = vadd.f32 %v1495, %v1093
      %v1512 = vadd.f32 %v1496, %v1094
      %v1513 = vadd.f32 %v1497, %v1095
      %1514 = vmatprep.subr.mxu0 0.0
      %1515 = vmatpush1.msra.mxu0 %v986
      %1516 = vmatprep.subr.mxu0 0.0
      %1517 = vmatpush1.msra.mxu0 %v991
      %1518 = vmatprep.subr.mxu0 0.0
      %1519 = vmatpush1.msra.mxu0 %v996
      %1520 = vmatprep.subr.mxu0 0.0
      %1521 = vmatpush1.msra.mxu0 %v1001
      %1522 = vmatprep.subr.mxu0 0.0
      %1523 = vmatpush1.msra.mxu0 %v1006
      %1524 = vmatprep.subr.mxu0 0.0
      %1525 = vmatpush1.msra.mxu0 %v1011
      %1526 = vmatprep.subr.mxu0 0.0
      %1527 = vmatpush1.msra.mxu0 %v1016
      %1528 = vmatprep.subr.mxu0 0.0
      %1529 = vmatpush1.msra.mxu0 %v1021
      %1530 = vmatprep.subr.mxu0 0.0
      %1531 = vmatpush1.msra.mxu0 %v1026
      %1532 = vmatprep.subr.mxu0 0.0
      %1533 = vmatpush1.msra.mxu0 %v1031
      %1534 = vmatprep.subr.mxu0 0.0
      %1535 = vmatpush1.msra.mxu0 %v1036
      %1536 = vmatprep.subr.mxu0 0.0
      %1537 = vmatpush1.msra.mxu0 %v1041
      %1538 = vmatprep.subr.mxu0 0.0
      %1539 = vmatpush1.msra.mxu0 %v1046
      %1540 = vmatprep.subr.mxu0 0.0
      %1541 = vmatpush1.msra.mxu0 %v1051
      %1542 = vmatprep.subr.mxu0 0.0
      %1543 = vmatpush1.msra.mxu0 %v1056
      %1544 = vmatprep.subr.mxu0 0.0
      %1545 = vmatpush1.msra.mxu0 %v1061
      %1546 = vmatprep.subr.mxu0 0.0
      %1547 = vmatpush1.msra.mxu0 0.0
      %1548 = vmatprep.subr.mxu0 0.0
      %1549 = vmatpush1.msra.mxu0 0.0
      %1550 = vmatprep.subr.mxu0 0.0
      %1551 = vmatpush1.msra.mxu0 0.0
      %1552 = vmatprep.subr.mxu0 0.0
      %1553 = vmatpush1.msra.mxu0 0.0
      %1554 = vmatprep.subr.mxu0 0.0
      %1555 = vmatpush1.msra.mxu0 0.0
      %1556 = vmatprep.subr.mxu0 0.0
      %1557 = vmatpush1.msra.mxu0 0.0
      %1558 = vmatprep.subr.mxu0 0.0
      %1559 = vmatpush1.msra.mxu0 0.0
      %1560 = vmatprep.subr.mxu0 0.0
      %1561 = vmatpush1.msra.mxu0 0.0
      %1562 = vmatprep.subr.mxu0 0.0
      %1563 = vmatpush1.msra.mxu0 0.0
      %1564 = vmatprep.subr.mxu0 0.0
      %1565 = vmatpush1.msra.mxu0 0.0
      %1566 = vmatprep.subr.mxu0 0.0
      %1567 = vmatpush1.msra.mxu0 0.0
      %1568 = vmatprep.subr.mxu0 0.0
      %1569 = vmatpush1.msra.mxu0 0.0
      %1570 = vmatprep.subr.mxu0 0.0
      %1571 = vmatpush1.msra.mxu0 0.0
      %1572 = vmatprep.subr.mxu0 0.0
      %1573 = vmatpush1.msra.mxu0 0.0
      %1574 = vmatprep.subr.mxu0 0.0
      %1575 = vmatpush1.msra.mxu0 0.0
      %1576 = vmatprep.subr.mxu0 0.0
      %1577 = vmatpush1.msra.mxu0 0.0
      %1578 = vmatprep.mubr.f32.mxu0 0.0
      %1579 = vmatmul.mubr.f32.gmra.mrb[0].mxu0 %v1498
      %v1580 = vpop.f32.mrb[0].mxu0
      %v1581 = vadd.f32 0.0, %v1580
      %v1582 = vpop.f32.mrb[0].mxu0
      %1583 = vmatprep.mubr.f32.mxu0 0.0
      %1584 = vmatmul.mubr.f32.gmra.mrb[0].mxu0 %v1499
      %v1585 = vpop.f32.mrb[0].mxu0
      %v1586 = vadd.f32 0.0, %v1585
      %v1587 = vpop.f32.mrb[0].mxu0
      %1588 = vmatprep.mubr.f32.mxu0 0.0
      %1589 = vmatmul.mubr.f32.gmra.mrb[0].mxu0 %v1500
      %v1590 = vpop.f32.mrb[0].mxu0
      %v1591 = vadd.f32 0.0, %v1590
      %v1592 = vpop.f32.mrb[0].mxu0
      %1593 = vmatprep.mubr.f32.mxu0 0.0
      %1594 = vmatmul.mubr.f32.gmra.mrb[0].mxu0 %v1501
      %v1595 = vpop.f32.mrb[0].mxu0
      %v1596 = vadd.f32 0.0, %v1595
      %v1597 = vpop.f32.mrb[0].mxu0
      %1598 = vmatprep.mubr.f32.mxu0 0.0
      %1599 = vmatmul.mubr.f32.gmra.mrb[0].mxu0 %v1502
      %v1600 = vpop.f32.mrb[0].mxu0
      %v1601 = vadd.f32 0.0, %v1600
      %v1602 = vpop.f32.mrb[0].mxu0
      %1603 = vmatprep.mubr.f32.mxu0 0.0
      %1604 = vmatmul.mubr.f32.gmra.mrb[0].mxu0 %v1503
      %v1605 = vpop.f32.mrb[0].mxu0
      %v1606 = vadd.f32 0.0, %v1605
      %v1607 = vpop.f32.mrb[0].mxu0
      %1608 = vmatprep.mubr.f32.mxu0 0.0
      %1609 = vmatmul.mubr.f32.gmra.mrb[0].mxu0 %v1504
      %v1610 = vpop.f32.mrb[0].mxu0
      %v1611 = vadd.f32 0.0, %v1610
      %v1612 = vpop.f32.mrb[0].mxu0
      %1613 = vmatprep.mubr.f32.mxu0 0.0
      %1614 = vmatmul.mubr.f32.gmra.mrb[0].mxu0 %v1505
      %v1615 = vpop.f32.mrb[0].mxu0
      %v1616 = vadd.f32 0.0, %v1615
      %v1617 = vpop.f32.mrb[0].mxu0
      %1618 = vmatprep.mubr.f32.mxu0 0.0
      %1619 = vmatmul.mubr.f32.gmra.mrb[0].mxu0 %v1506
      %v1620 = vpop.f32.mrb[0].mxu0
      %v1621 = vadd.f32 0.0, %v1620
      %v1622 = vpop.f32.mrb[0].mxu0
      %1623 = vmatprep.mubr.f32.mxu0 0.0
      %1624 = vmatmul.mubr.f32.gmra.mrb[0].mxu0 %v1507
      %v1625 = vpop.f32.mrb[0].mxu0
      %v1626 = vadd.f32 0.0, %v1625
      %v1627 = vpop.f32.mrb[0].mxu0
      %1628 = vmatprep.mubr.f32.mxu0 0.0
      %1629 = vmatmul.mubr.f32.gmra.mrb[0].mxu0 %v1508
      %v1630 = vpop.f32.mrb[0].mxu0
      %v1631 = vadd.f32 0.0, %v1630
      %v1632 = vpop.f32.mrb[0].mxu0
      %1633 = vmatprep.mubr.f32.mxu0 0.0
      %1634 = vmatmul.mubr.f32.gmra.mrb[0].mxu0 %v1509
      %v1635 = vpop.f32.mrb[0].mxu0
      %v1636 = vadd.f32 0.0, %v1635
      %v1637 = vpop.f32.mrb[0].mxu0
      %1638 = vmatprep.mubr.f32.mxu0 0.0
      %1639 = vmatmul.mubr.f32.gmra.mrb[0].mxu0 %v1510
      %v1640 = vpop.f32.mrb[0].mxu0
      %v1641 = vadd.f32 0.0, %v1640
      %v1642 = vpop.f32.mrb[0].mxu0
      %1643 = vmatprep.mubr.f32.mxu0 0.0
      %1644 = vmatmul.mubr.f32.gmra.mrb[0].mxu0 %v1511
      %v1645 = vpop.f32.mrb[0].mxu0
      %v1646 = vadd.f32 0.0, %v1645
      %v1647 = vpop.f32.mrb[0].mxu0
      %1648 = vmatprep.mubr.f32.mxu0 0.0
      %1649 = vmatmul.mubr.f32.gmra.mrb[0].mxu0 %v1512
      %v1650 = vpop.f32.mrb[0].mxu0
      %v1651 = vadd.f32 0.0, %v1650
      %v1652 = vpop.f32.mrb[0].mxu0
      %1653 = vmatprep.mubr.f32.mxu0 0.0
      %1654 = vmatmul.mubr.f32.gmra.mrb[0].mxu0 %v1513
      %v1655 = vpop.f32.mrb[0].mxu0
      %v1656 = vadd.f32 0.0, %v1655
      %v1657 = vpop.f32.mrb[0].mxu0
      %1658 = vdwg.mxu0
      %1659 = vrot.lane.b32.xlu0 %v650, 120
      %v1660 = vpop.permute.xlu0 %1659
      %1661 = vrot.lane.b32.xlu0 %v651, 120
      %v1662 = vpop.permute.xlu0 %1661
      %1663 = vrot.lane.b32.xlu0 %v652, 120
      %v1664 = vpop.permute.xlu0 %1663
      %1665 = vrot.lane.b32.xlu0 %v653, 120
      %v1666 = vpop.permute.xlu0 %1665
      %1667 = vrot.lane.b32.xlu0 %v654, 120
      %v1668 = vpop.permute.xlu0 %1667
      %1669 = vrot.lane.b32.xlu0 %v655, 120
      %v1670 = vpop.permute.xlu0 %1669
      %1671 = vrot.lane.b32.xlu0 %v656, 120
      %v1672 = vpop.permute.xlu0 %1671
      %1673 = vrot.lane.b32.xlu0 %v657, 120
      %v1674 = vpop.permute.xlu0 %1673
      %1675 = vrot.lane.b32.xlu0 %v658, 120
      %v1676 = vpop.permute.xlu0 %1675
      %1677 = vrot.lane.b32.xlu0 %v659, 120
      %v1678 = vpop.permute.xlu0 %1677
      %1679 = vrot.lane.b32.xlu0 %v660, 120
      %v1680 = vpop.permute.xlu0 %1679
      %1681 = vrot.lane.b32.xlu0 %v661, 120
      %v1682 = vpop.permute.xlu0 %1681
      %1683 = vrot.lane.b32.xlu0 %v662, 120
      %v1684 = vpop.permute.xlu0 %1683
      %1685 = vrot.lane.b32.xlu0 %v663, 120
      %v1686 = vpop.permute.xlu0 %1685
      %1687 = vrot.lane.b32.xlu0 %v664, 120
      %v1688 = vpop.permute.xlu0 %1687
      %1689 = vrot.lane.b32.xlu0 %v665, 120
      %v1690 = vpop.permute.xlu0 %1689
      %1691 = vrot.lane.b32.xlu0 %v787, 120
      %v1692 = vpop.permute.xlu0 %1691
      %1693 = vrot.lane.b32.xlu0 %v792, 120
      %v1694 = vpop.permute.xlu0 %1693
      %1695 = vrot.lane.b32.xlu0 %v797, 120
      %v1696 = vpop.permute.xlu0 %1695
      %1697 = vrot.lane.b32.xlu0 %v802, 120
      %v1698 = vpop.permute.xlu0 %1697
      %1699 = vrot.lane.b32.xlu0 %v807, 120
      %v1700 = vpop.permute.xlu0 %1699
      %1701 = vrot.lane.b32.xlu0 %v812, 120
      %v1702 = vpop.permute.xlu0 %1701
      %1703 = vrot.lane.b32.xlu0 %v817, 120
      %v1704 = vpop.permute.xlu0 %1703
      %1705 = vrot.lane.b32.xlu0 %v822, 120
      %v1706 = vpop.permute.xlu0 %1705
      %1707 = vrot.lane.b32.xlu0 %v827, 120
      %v1708 = vpop.permute.xlu0 %1707
      %1709 = vrot.lane.b32.xlu0 %v832, 120
      %v1710 = vpop.permute.xlu0 %1709
      %1711 = vrot.lane.b32.xlu0 %v837, 120
      %v1712 = vpop.permute.xlu0 %1711
      %1713 = vrot.lane.b32.xlu0 %v842, 120
      %v1714 = vpop.permute.xlu0 %1713
      %1715 = vrot.lane.b32.xlu0 %v847, 120
      %v1716 = vpop.permute.xlu0 %1715
      %1717 = vrot.lane.b32.xlu0 %v852, 120
      %v1718 = vpop.permute.xlu0 %1717
      %1719 = vrot.lane.b32.xlu0 %v857, 120
      %v1720 = vpop.permute.xlu0 %1719
      %1721 = vrot.lane.b32.xlu0 %v862, 120
      %v1722 = vpop.permute.xlu0 %1721
      %v1723 = vsel %vm1096, %v1660, 0
      %v1725 = vsel %vm1096, %v1662, 0
      %v1727 = vsel %vm1096, %v1664, 0
      %v1729 = vsel %vm1096, %v1666, 0
      %v1731 = vsel %vm1096, %v1668, 0
      %v1733 = vsel %vm1096, %v1670, 0
      %v1735 = vsel %vm1096, %v1672, 0
      %v1737 = vsel %vm1096, %v1674, 0
      %v1739 = vsel %vm1096, %v1676, 0
      %v1741 = vsel %vm1096, %v1678, 0
      %v1743 = vsel %vm1096, %v1680, 0
      %v1745 = vsel %vm1096, %v1682, 0
      %v1747 = vsel %vm1096, %v1684, 0
      %v1749 = vsel %vm1096, %v1686, 0
      %v1751 = vsel %vm1096, %v1688, 0
      %v1753 = vsel %vm1096, %v1690, 0
      %v1755 = vsel %vm1096, %v1692, 0
      %v1757 = vsel %vm1096, %v1694, 0
      %v1759 = vsel %vm1096, %v1696, 0
      %v1761 = vsel %vm1096, %v1698, 0
      %v1763 = vsel %vm1096, %v1700, 0
      %v1765 = vsel %vm1096, %v1702, 0
      %v1767 = vsel %vm1096, %v1704, 0
      %v1769 = vsel %vm1096, %v1706, 0
      %v1771 = vsel %vm1096, %v1708, 0
      %v1773 = vsel %vm1096, %v1710, 0
      %v1775 = vsel %vm1096, %v1712, 0
      %v1777 = vsel %vm1096, %v1714, 0
      %v1779 = vsel %vm1096, %v1716, 0
      %v1781 = vsel %vm1096, %v1718, 0
      %v1783 = vsel %vm1096, %v1720, 0
      %v1785 = vsel %vm1096, %v1722, 0
      %1787 = vmatprep.subr.mxu0 0.0
      %1788 = vmatpush1.xpose.msra.mxu0 %v1755
      %1789 = vmatprep.subr.mxu0 0.0
      %1790 = vmatpush1.xpose.msra.mxu0 %v1757
      %1791 = vmatprep.subr.mxu0 0.0
      %1792 = vmatpush1.xpose.msra.mxu0 %v1759
      %1793 = vmatprep.subr.mxu0 0.0
      %1794 = vmatpush1.xpose.msra.mxu0 %v1761
      %1795 = vmatprep.subr.mxu0 0.0
      %1796 = vmatpush1.xpose.msra.mxu0 %v1763
      %1797 = vmatprep.subr.mxu0 0.0
      %1798 = vmatpush1.xpose.msra.mxu0 %v1765
      %1799 = vmatprep.subr.mxu0 0.0
      %1800 = vmatpush1.xpose.msra.mxu0 %v1767
      %1801 = vmatprep.subr.mxu0 0.0
      %1802 = vmatpush1.xpose.msra.mxu0 %v1769
      %1803 = vmatprep.subr.mxu0 0.0
      %1804 = vmatpush1.xpose.msra.mxu0 %v1771
      %1805 = vmatprep.subr.mxu0 0.0
      %1806 = vmatpush1.xpose.msra.mxu0 %v1773
      %1807 = vmatprep.subr.mxu0 0.0
      %1808 = vmatpush1.xpose.msra.mxu0 %v1775
      %1809 = vmatprep.subr.mxu0 0.0
      %1810 = vmatpush1.xpose.msra.mxu0 %v1777
      %1811 = vmatprep.subr.mxu0 0.0
      %1812 = vmatpush1.xpose.msra.mxu0 %v1779
      %1813 = vmatprep.subr.mxu0 0.0
      %1814 = vmatpush1.xpose.msra.mxu0 %v1781
      %1815 = vmatprep.subr.mxu0 0.0
      %1816 = vmatpush1.xpose.msra.mxu0 %v1783
      %1817 = vmatprep.subr.mxu0 0.0
      %1818 = vmatpush1.xpose.msra.mxu0 %v1785
      %1819 = vmatprep.subr.mxu0 0.0
      %1820 = vmatpush1.xpose.msra.mxu0 0.0
      %1821 = vmatprep.subr.mxu0 0.0
      %1822 = vmatpush1.xpose.msra.mxu0 0.0
      %1823 = vmatprep.subr.mxu0 0.0
      %1824 = vmatpush1.xpose.msra.mxu0 0.0
      %1825 = vmatprep.subr.mxu0 0.0
      %1826 = vmatpush1.xpose.msra.mxu0 0.0
      %1827 = vmatprep.subr.mxu0 0.0
      %1828 = vmatpush1.xpose.msra.mxu0 0.0
      %1829 = vmatprep.subr.mxu0 0.0
      %1830 = vmatpush1.xpose.msra.mxu0 0.0
      %1831 = vmatprep.subr.mxu0 0.0
      %1832 = vmatpush1.xpose.msra.mxu0 0.0
      %1833 = vmatprep.subr.mxu0 0.0
      %1834 = vmatpush1.xpose.msra.mxu0 0.0
      %1835 = vmatprep.subr.mxu0 0.0
      %1836 = vmatpush1.xpose.msra.mxu0 0.0
      %1837 = vmatprep.subr.mxu0 0.0
      %1838 = vmatpush1.xpose.msra.mxu0 0.0
      %1839 = vmatprep.subr.mxu0 0.0
      %1840 = vmatpush1.xpose.msra.mxu0 0.0
      %1841 = vmatprep.subr.mxu0 0.0
      %1842 = vmatpush1.xpose.msra.mxu0 0.0
      %1843 = vmatprep.subr.mxu0 0.0
      %1844 = vmatpush1.xpose.msra.mxu0 0.0
      %1845 = vmatprep.subr.mxu0 0.0
      %1846 = vmatpush1.xpose.msra.mxu0 0.0
      %1847 = vmatprep.subr.mxu0 0.0
      %1848 = vmatpush1.xpose.msra.mxu0 0.0
      %1849 = vmatprep.subr.mxu0 0.0
      %1850 = vmatpush1.xpose.msra.mxu0 0.0
      %1851 = vmatprep.mubr.f32.mxu0 0.0
      %1852 = vmatmul.mubr.f32.gmra.mrb[0].mxu0 %v1723
      %v1853 = vpop.f32.mrb[0].mxu0
      %v1854 = vadd.f32 %v1064, %v1853
      %v1855 = vpop.f32.mrb[0].mxu0
      %1856 = vmatprep.mubr.f32.mxu0 0.0
      %1857 = vmatmul.mubr.f32.gmra.mrb[0].mxu0 %v1725
      %v1858 = vpop.f32.mrb[0].mxu0
      %v1859 = vadd.f32 %v1065, %v1858
      %v1860 = vpop.f32.mrb[0].mxu0
      %1861 = vmatprep.mubr.f32.mxu0 0.0
      %1862 = vmatmul.mubr.f32.gmra.mrb[0].mxu0 %v1727
      %v1863 = vpop.f32.mrb[0].mxu0
      %v1864 = vadd.f32 %v1066, %v1863
      %v1865 = vpop.f32.mrb[0].mxu0
      %1866 = vmatprep.mubr.f32.mxu0 0.0
      %1867 = vmatmul.mubr.f32.gmra.mrb[0].mxu0 %v1729
      %v1868 = vpop.f32.mrb[0].mxu0
      %v1869 = vadd.f32 %v1067, %v1868
      %v1870 = vpop.f32.mrb[0].mxu0
      %1871 = vmatprep.mubr.f32.mxu0 0.0
      %1872 = vmatmul.mubr.f32.gmra.mrb[0].mxu0 %v1731
      %v1873 = vpop.f32.mrb[0].mxu0
      %v1874 = vadd.f32 %v1068, %v1873
      %v1875 = vpop.f32.mrb[0].mxu0
      %1876 = vmatprep.mubr.f32.mxu0 0.0
      %1877 = vmatmul.mubr.f32.gmra.mrb[0].mxu0 %v1733
      %v1878 = vpop.f32.mrb[0].mxu0
      %v1879 = vadd.f32 %v1069, %v1878
      %v1880 = vpop.f32.mrb[0].mxu0
      %1881 = vmatprep.mubr.f32.mxu0 0.0
      %1882 = vmatmul.mubr.f32.gmra.mrb[0].mxu0 %v1735
      %v1883 = vpop.f32.mrb[0].mxu0
      %v1884 = vadd.f32 %v1070, %v1883
      %v1885 = vpop.f32.mrb[0].mxu0
      %1886 = vmatprep.mubr.f32.mxu0 0.0
      %1887 = vmatmul.mubr.f32.gmra.mrb[0].mxu0 %v1737
      %v1888 = vpop.f32.mrb[0].mxu0
      %v1889 = vadd.f32 %v1071, %v1888
      %v1890 = vpop.f32.mrb[0].mxu0
      %1891 = vmatprep.mubr.f32.mxu0 0.0
      %1892 = vmatmul.mubr.f32.gmra.mrb[0].mxu0 %v1739
      %v1893 = vpop.f32.mrb[0].mxu0
      %v1894 = vadd.f32 %v1072, %v1893
      %v1895 = vpop.f32.mrb[0].mxu0
      %1896 = vmatprep.mubr.f32.mxu0 0.0
      %1897 = vmatmul.mubr.f32.gmra.mrb[0].mxu0 %v1741
      %v1898 = vpop.f32.mrb[0].mxu0
      %v1899 = vadd.f32 %v1073, %v1898
      %v1900 = vpop.f32.mrb[0].mxu0
      %1901 = vmatprep.mubr.f32.mxu0 0.0
      %1902 = vmatmul.mubr.f32.gmra.mrb[0].mxu0 %v1743
      %v1903 = vpop.f32.mrb[0].mxu0
      %v1904 = vadd.f32 %v1074, %v1903
      %v1905 = vpop.f32.mrb[0].mxu0
      %1906 = vmatprep.mubr.f32.mxu0 0.0
      %1907 = vmatmul.mubr.f32.gmra.mrb[0].mxu0 %v1745
      %v1908 = vpop.f32.mrb[0].mxu0
      %v1909 = vadd.f32 %v1075, %v1908
      %v1910 = vpop.f32.mrb[0].mxu0
      %1911 = vmatprep.mubr.f32.mxu0 0.0
      %1912 = vmatmul.mubr.f32.gmra.mrb[0].mxu0 %v1747
      %v1913 = vpop.f32.mrb[0].mxu0
      %v1914 = vadd.f32 %v1076, %v1913
      %v1915 = vpop.f32.mrb[0].mxu0
      %1916 = vmatprep.mubr.f32.mxu0 0.0
      %1917 = vmatmul.mubr.f32.gmra.mrb[0].mxu0 %v1749
      %v1918 = vpop.f32.mrb[0].mxu0
      %v1919 = vadd.f32 %v1077, %v1918
      %v1920 = vpop.f32.mrb[0].mxu0
      %1921 = vmatprep.mubr.f32.mxu0 0.0
      %1922 = vmatmul.mubr.f32.gmra.mrb[0].mxu0 %v1751
      %v1923 = vpop.f32.mrb[0].mxu0
      %v1924 = vadd.f32 %v1078, %v1923
      %v1925 = vpop.f32.mrb[0].mxu0
      %1926 = vmatprep.mubr.f32.mxu0 0.0
      %1927 = vmatmul.mubr.f32.gmra.mrb[0].mxu0 %v1753
      %v1928 = vpop.f32.mrb[0].mxu0
      %v1929 = vadd.f32 %v1079, %v1928
      %v1930 = vpop.f32.mrb[0].mxu0
      %1931 = vdwg.mxu0
      %1932 = vmax.xlane.f32.xlu0 %v1854
      %v1933 = vpop.xlane.xlu0 %1932
      %1934 = vmax.xlane.f32.xlu0 %v1859
      %v1935 = vpop.xlane.xlu0 %1934
      %1936 = vmax.xlane.f32.xlu0 %v1864
      %v1937 = vpop.xlane.xlu0 %1936
      %1938 = vmax.xlane.f32.xlu0 %v1869
      %v1939 = vpop.xlane.xlu0 %1938
      %1940 = vmax.xlane.f32.xlu0 %v1874
      %v1941 = vpop.xlane.xlu0 %1940
      %1942 = vmax.xlane.f32.xlu0 %v1879
      %v1943 = vpop.xlane.xlu0 %1942
      %1944 = vmax.xlane.f32.xlu0 %v1884
      %v1945 = vpop.xlane.xlu0 %1944
      %1946 = vmax.xlane.f32.xlu0 %v1889
      %v1947 = vpop.xlane.xlu0 %1946
      %1948 = vmax.xlane.f32.xlu0 %v1894
      %v1949 = vpop.xlane.xlu0 %1948
      %1950 = vmax.xlane.f32.xlu0 %v1899
      %v1951 = vpop.xlane.xlu0 %1950
      %1952 = vmax.xlane.f32.xlu0 %v1904
      %v1953 = vpop.xlane.xlu0 %1952
      %1954 = vmax.xlane.f32.xlu0 %v1909
      %v1955 = vpop.xlane.xlu0 %1954
      %1956 = vmax.xlane.f32.xlu0 %v1914
      %v1957 = vpop.xlane.xlu0 %1956
      %1958 = vmax.xlane.f32.xlu0 %v1919
      %v1959 = vpop.xlane.xlu0 %1958
      %1960 = vmax.xlane.f32.xlu0 %v1924
      %v1961 = vpop.xlane.xlu0 %1960
      %1962 = vmax.xlane.f32.xlu0 %v1929
      %v1963 = vpop.xlane.xlu0 %1962
      %v1964 = vsub.f32 %v1854, %v1933
      %v1965 = vsub.f32 %v1859, %v1935
      %v1966 = vsub.f32 %v1864, %v1937
      %v1967 = vsub.f32 %v1869, %v1939
      %v1968 = vsub.f32 %v1874, %v1941
      %v1969 = vsub.f32 %v1879, %v1943
      %v1970 = vsub.f32 %v1884, %v1945
      %v1971 = vsub.f32 %v1889, %v1947
      %v1972 = vsub.f32 %v1894, %v1949
      %v1973 = vsub.f32 %v1899, %v1951
      %v1974 = vsub.f32 %v1904, %v1953
      %v1975 = vsub.f32 %v1909, %v1955
      %v1976 = vsub.f32 %v1914, %v1957
      %v1977 = vsub.f32 %v1919, %v1959
      %v1978 = vsub.f32 %v1924, %v1961
      %v1979 = vsub.f32 %v1929, %v1963
      %v1980 = vmul.f32 %v1964, 1.442695
      %v1981 = vpow.pop %v1980
      %v1982 = vmul.f32 %v1965, 1.442695
      %v1983 = vpow.pop %v1982
      %v1984 = vmul.f32 %v1966, 1.442695
      %v1985 = vpow.pop %v1984
      %v1986 = vmul.f32 %v1967, 1.442695
      %v1987 = vpow.pop %v1986
      %v1988 = vmul.f32 %v1968, 1.442695
      %v1989 = vpow.pop %v1988
      %v1990 = vmul.f32 %v1969, 1.442695
      %v1991 = vpow.pop %v1990
      %v1992 = vmul.f32 %v1970, 1.442695
      %v1993 = vpow.pop %v1992
      %v1994 = vmul.f32 %v1971, 1.442695
      %v1995 = vpow.pop %v1994
      %v1996 = vmul.f32 %v1972, 1.442695
      %v1997 = vpow.pop %v1996
      %v1998 = vmul.f32 %v1973, 1.442695
      %v1999 = vpow.pop %v1998
      %v2000 = vmul.f32 %v1974, 1.442695
      %v2001 = vpow.pop %v2000
      %v2002 = vmul.f32 %v1975, 1.442695
      %v2003 = vpow.pop %v2002
      %v2004 = vmul.f32 %v1976, 1.442695
      %v2005 = vpow.pop %v2004
      %v2006 = vmul.f32 %v1977, 1.442695
      %v2007 = vpow.pop %v2006
      %v2008 = vmul.f32 %v1978, 1.442695
      %v2009 = vpow.pop %v2008
      %v2010 = vmul.f32 %v1979, 1.442695
      %v2011 = vpow.pop %v2010
      %2012 = vadd.xlane.f32.xlu0 %v1981
      %v2013 = vpop.xlane.xlu0 %2012
      %2014 = vadd.xlane.f32.xlu0 %v1983
      %v2015 = vpop.xlane.xlu0 %2014
      %2016 = vadd.xlane.f32.xlu0 %v1985
      %v2017 = vpop.xlane.xlu0 %2016
      %2018 = vadd.xlane.f32.xlu0 %v1987
      %v2019 = vpop.xlane.xlu0 %2018
      %2020 = vadd.xlane.f32.xlu0 %v1989
      %v2021 = vpop.xlane.xlu0 %2020
      %2022 = vadd.xlane.f32.xlu0 %v1991
      %v2023 = vpop.xlane.xlu0 %2022
      %2024 = vadd.xlane.f32.xlu0 %v1993
      %v2025 = vpop.xlane.xlu0 %2024
      %2026 = vadd.xlane.f32.xlu0 %v1995
      %v2027 = vpop.xlane.xlu0 %2026
      %2028 = vadd.xlane.f32.xlu0 %v1997
      %v2029 = vpop.xlane.xlu0 %2028
      %2030 = vadd.xlane.f32.xlu0 %v1999
      %v2031 = vpop.xlane.xlu0 %2030
      %2032 = vadd.xlane.f32.xlu0 %v2001
      %v2033 = vpop.xlane.xlu0 %2032
      %2034 = vadd.xlane.f32.xlu0 %v2003
      %v2035 = vpop.xlane.xlu0 %2034
      %2036 = vadd.xlane.f32.xlu0 %v2005
      %v2037 = vpop.xlane.xlu0 %2036
      %2038 = vadd.xlane.f32.xlu0 %v2007
      %v2039 = vpop.xlane.xlu0 %2038
      %2040 = vadd.xlane.f32.xlu0 %v2009
      %v2041 = vpop.xlane.xlu0 %2040
      %2042 = vadd.xlane.f32.xlu0 %v2011
      %v2043 = vpop.xlane.xlu0 %2042
      %v2044 = vrcp.pop %v2013
      %v2045 = vrcp.pop %v2015
      %v2046 = vrcp.pop %v2017
      %v2047 = vrcp.pop %v2019
      %v2048 = vrcp.pop %v2021
      %v2049 = vrcp.pop %v2023
      %v2050 = vrcp.pop %v2025
      %v2051 = vrcp.pop %v2027
      %v2052 = vrcp.pop %v2029
      %v2053 = vrcp.pop %v2031
      %v2054 = vrcp.pop %v2033
      %v2055 = vrcp.pop %v2035
      %v2056 = vrcp.pop %v2037
      %v2057 = vrcp.pop %v2039
      %v2058 = vrcp.pop %v2041
      %v2059 = vrcp.pop %v2043
      %v2060 = vmul.f32 %v2044, 0.5
      %v2061 = vmul.f32 %v2045, 0.5
      %v2062 = vmul.f32 %v2046, 0.5
      %v2063 = vmul.f32 %v2047, 0.5
      %v2064 = vmul.f32 %v2048, 0.5
      %v2065 = vmul.f32 %v2049, 0.5
      %v2066 = vmul.f32 %v2050, 0.5
      %v2067 = vmul.f32 %v2051, 0.5
      %v2068 = vmul.f32 %v2052, 0.5
      %v2069 = vmul.f32 %v2053, 0.5
      %v2070 = vmul.f32 %v2054, 0.5
      %v2071 = vmul.f32 %v2055, 0.5
      %v2072 = vmul.f32 %v2056, 0.5
      %v2073 = vmul.f32 %v2057, 0.5
      %v2074 = vmul.f32 %v2058, 0.5
      %v2075 = vmul.f32 %v2059, 0.5
      %v2076 = vmul.f32 %v1981, %v2060
      %v2077 = vmul.f32 %v1983, %v2061
      %v2078 = vmul.f32 %v1985, %v2062
      %v2079 = vmul.f32 %v1987, %v2063
      %v2080 = vmul.f32 %v1989, %v2064
      %v2081 = vmul.f32 %v1991, %v2065
      %v2082 = vmul.f32 %v1993, %v2066
      %v2083 = vmul.f32 %v1995, %v2067
      %v2084 = vmul.f32 %v1997, %v2068
      %v2085 = vmul.f32 %v1999, %v2069
      %v2086 = vmul.f32 %v2001, %v2070
      %v2087 = vmul.f32 %v2003, %v2071
      %v2088 = vmul.f32 %v2005, %v2072
      %v2089 = vmul.f32 %v2007, %v2073
      %v2090 = vmul.f32 %v2009, %v2074
      %v2091 = vmul.f32 %v2011, %v2075
      %v2092 = vadd.f32 %v2076, %v1080
      %v2093 = vadd.f32 %v2077, %v1081
      %v2094 = vadd.f32 %v2078, %v1082
      %v2095 = vadd.f32 %v2079, %v1083
      %v2096 = vadd.f32 %v2080, %v1084
      %v2097 = vadd.f32 %v2081, %v1085
      %v2098 = vadd.f32 %v2082, %v1086
      %v2099 = vadd.f32 %v2083, %v1087
      %v2100 = vadd.f32 %v2084, %v1088
      %v2101 = vadd.f32 %v2085, %v1089
      %v2102 = vadd.f32 %v2086, %v1090
      %v2103 = vadd.f32 %v2087, %v1091
      %v2104 = vadd.f32 %v2088, %v1092
      %v2105 = vadd.f32 %v2089, %v1093
      %v2106 = vadd.f32 %v2090, %v1094
      %v2107 = vadd.f32 %v2091, %v1095
      %2124 = vrot.lane.b32.xlu0 %v986, 120
      %v2125 = vpop.permute.xlu0 %2124
      %2126 = vrot.lane.b32.xlu0 %v991, 120
      %v2127 = vpop.permute.xlu0 %2126
      %2128 = vrot.lane.b32.xlu0 %v996, 120
      %v2129 = vpop.permute.xlu0 %2128
      %2130 = vrot.lane.b32.xlu0 %v1001, 120
      %v2131 = vpop.permute.xlu0 %2130
      %2132 = vrot.lane.b32.xlu0 %v1006, 120
      %v2133 = vpop.permute.xlu0 %2132
      %2134 = vrot.lane.b32.xlu0 %v1011, 120
      %v2135 = vpop.permute.xlu0 %2134
      %2136 = vrot.lane.b32.xlu0 %v1016, 120
      %v2137 = vpop.permute.xlu0 %2136
      %2138 = vrot.lane.b32.xlu0 %v1021, 120
      %v2139 = vpop.permute.xlu0 %2138
      %2140 = vrot.lane.b32.xlu0 %v1026, 120
      %v2141 = vpop.permute.xlu0 %2140
      %2142 = vrot.lane.b32.xlu0 %v1031, 120
      %v2143 = vpop.permute.xlu0 %2142
      %2144 = vrot.lane.b32.xlu0 %v1036, 120
      %v2145 = vpop.permute.xlu0 %2144
      %2146 = vrot.lane.b32.xlu0 %v1041, 120
      %v2147 = vpop.permute.xlu0 %2146
      %2148 = vrot.lane.b32.xlu0 %v1046, 120
      %v2149 = vpop.permute.xlu0 %2148
      %2150 = vrot.lane.b32.xlu0 %v1051, 120
      %v2151 = vpop.permute.xlu0 %2150
      %2152 = vrot.lane.b32.xlu0 %v1056, 120
      %v2153 = vpop.permute.xlu0 %2152
      %2154 = vrot.lane.b32.xlu0 %v1061, 120
      %v2155 = vpop.permute.xlu0 %2154
      %2172 = vmatprep.subr.mxu0 0.0
      %2173 = vmatpush1.msra.mxu0 %v2125
      %2174 = vmatprep.subr.mxu0 0.0
      %2175 = vmatpush1.msra.mxu0 %v2127
      %2176 = vmatprep.subr.mxu0 0.0
      %2177 = vmatpush1.msra.mxu0 %v2129
      %2178 = vmatprep.subr.mxu0 0.0
      %2179 = vmatpush1.msra.mxu0 %v2131
      %2180 = vmatprep.subr.mxu0 0.0
      %2181 = vmatpush1.msra.mxu0 %v2133
      %2182 = vmatprep.subr.mxu0 0.0
      %2183 = vmatpush1.msra.mxu0 %v2135
      %2184 = vmatprep.subr.mxu0 0.0
      %2185 = vmatpush1.msra.mxu0 %v2137
      %2186 = vmatprep.subr.mxu0 0.0
      %2187 = vmatpush1.msra.mxu0 %v2139
      %2188 = vmatprep.subr.mxu0 0.0
      %2189 = vmatpush1.msra.mxu0 %v2141
      %2190 = vmatprep.subr.mxu0 0.0
      %2191 = vmatpush1.msra.mxu0 %v2143
      %2192 = vmatprep.subr.mxu0 0.0
      %2193 = vmatpush1.msra.mxu0 %v2145
      %2194 = vmatprep.subr.mxu0 0.0
      %2195 = vmatpush1.msra.mxu0 %v2147
      %2196 = vmatprep.subr.mxu0 0.0
      %2197 = vmatpush1.msra.mxu0 %v2149
      %2198 = vmatprep.subr.mxu0 0.0
      %2199 = vmatpush1.msra.mxu0 %v2151
      %2200 = vmatprep.subr.mxu0 0.0
      %2201 = vmatpush1.msra.mxu0 %v2153
      %2202 = vmatprep.subr.mxu0 0.0
      %2203 = vmatpush1.msra.mxu0 %v2155
      %2204 = vmatprep.subr.mxu0 0.0
      %2205 = vmatpush1.msra.mxu0 0.0
      %2206 = vmatprep.subr.mxu0 0.0
      %2207 = vmatpush1.msra.mxu0 0.0
      %2208 = vmatprep.subr.mxu0 0.0
      %2209 = vmatpush1.msra.mxu0 0.0
      %2210 = vmatprep.subr.mxu0 0.0
      %2211 = vmatpush1.msra.mxu0 0.0
      %2212 = vmatprep.subr.mxu0 0.0
      %2213 = vmatpush1.msra.mxu0 0.0
      %2214 = vmatprep.subr.mxu0 0.0
      %2215 = vmatpush1.msra.mxu0 0.0
      %2216 = vmatprep.subr.mxu0 0.0
      %2217 = vmatpush1.msra.mxu0 0.0
      %2218 = vmatprep.subr.mxu0 0.0
      %2219 = vmatpush1.msra.mxu0 0.0
      %2220 = vmatprep.subr.mxu0 0.0
      %2221 = vmatpush1.msra.mxu0 0.0
      %2222 = vmatprep.subr.mxu0 0.0
      %2223 = vmatpush1.msra.mxu0 0.0
      %2224 = vmatprep.subr.mxu0 0.0
      %2225 = vmatpush1.msra.mxu0 0.0
      %2226 = vmatprep.subr.mxu0 0.0
      %2227 = vmatpush1.msra.mxu0 0.0
      %2228 = vmatprep.subr.mxu0 0.0
      %2229 = vmatpush1.msra.mxu0 0.0
      %2230 = vmatprep.subr.mxu0 0.0
      %2231 = vmatpush1.msra.mxu0 0.0
      %2232 = vmatprep.subr.mxu0 0.0
      %2233 = vmatpush1.msra.mxu0 0.0
      %2234 = vmatprep.subr.mxu0 0.0
      %2235 = vmatpush1.msra.mxu0 0.0
      %2236 = vmatprep.mubr.f32.mxu0 0.0
      %2237 = vmatmul.mubr.f32.gmra.mrb[0].mxu0 %v2092
      %v2238 = vpop.f32.mrb[0].mxu0
      %v2239 = vadd.f32 0.0, %v2238
      %v2240 = vpop.f32.mrb[0].mxu0
      %2241 = vmatprep.mubr.f32.mxu0 0.0
      %2242 = vmatmul.mubr.f32.gmra.mrb[0].mxu0 %v2093
      %v2243 = vpop.f32.mrb[0].mxu0
      %v2244 = vadd.f32 0.0, %v2243
      %v2245 = vpop.f32.mrb[0].mxu0
      %2246 = vmatprep.mubr.f32.mxu0 0.0
      %2247 = vmatmul.mubr.f32.gmra.mrb[0].mxu0 %v2094
      %v2248 = vpop.f32.mrb[0].mxu0
      %v2249 = vadd.f32 0.0, %v2248
      %v2250 = vpop.f32.mrb[0].mxu0
      %2251 = vmatprep.mubr.f32.mxu0 0.0
      %2252 = vmatmul.mubr.f32.gmra.mrb[0].mxu0 %v2095
      %v2253 = vpop.f32.mrb[0].mxu0
      %v2254 = vadd.f32 0.0, %v2253
      %v2255 = vpop.f32.mrb[0].mxu0
      %2256 = vmatprep.mubr.f32.mxu0 0.0
      %2257 = vmatmul.mubr.f32.gmra.mrb[0].mxu0 %v2096
      %v2258 = vpop.f32.mrb[0].mxu0
      %v2259 = vadd.f32 0.0, %v2258
      %v2260 = vpop.f32.mrb[0].mxu0
      %2261 = vmatprep.mubr.f32.mxu0 0.0
      %2262 = vmatmul.mubr.f32.gmra.mrb[0].mxu0 %v2097
      %v2263 = vpop.f32.mrb[0].mxu0
      %v2264 = vadd.f32 0.0, %v2263
      %v2265 = vpop.f32.mrb[0].mxu0
      %2266 = vmatprep.mubr.f32.mxu0 0.0
      %2267 = vmatmul.mubr.f32.gmra.mrb[0].mxu0 %v2098
      %v2268 = vpop.f32.mrb[0].mxu0
      %v2269 = vadd.f32 0.0, %v2268
      %v2270 = vpop.f32.mrb[0].mxu0
      %2271 = vmatprep.mubr.f32.mxu0 0.0
      %2272 = vmatmul.mubr.f32.gmra.mrb[0].mxu0 %v2099
      %v2273 = vpop.f32.mrb[0].mxu0
      %v2274 = vadd.f32 0.0, %v2273
      %v2275 = vpop.f32.mrb[0].mxu0
      %2276 = vmatprep.mubr.f32.mxu0 0.0
      %2277 = vmatmul.mubr.f32.gmra.mrb[0].mxu0 %v2100
      %v2278 = vpop.f32.mrb[0].mxu0
      %v2279 = vadd.f32 0.0, %v2278
      %v2280 = vpop.f32.mrb[0].mxu0
      %2281 = vmatprep.mubr.f32.mxu0 0.0
      %2282 = vmatmul.mubr.f32.gmra.mrb[0].mxu0 %v2101
      %v2283 = vpop.f32.mrb[0].mxu0
      %v2284 = vadd.f32 0.0, %v2283
      %v2285 = vpop.f32.mrb[0].mxu0
      %2286 = vmatprep.mubr.f32.mxu0 0.0
      %2287 = vmatmul.mubr.f32.gmra.mrb[0].mxu0 %v2102
      %v2288 = vpop.f32.mrb[0].mxu0
      %v2289 = vadd.f32 0.0, %v2288
      %v2290 = vpop.f32.mrb[0].mxu0
      %2291 = vmatprep.mubr.f32.mxu0 0.0
      %2292 = vmatmul.mubr.f32.gmra.mrb[0].mxu0 %v2103
      %v2293 = vpop.f32.mrb[0].mxu0
      %v2294 = vadd.f32 0.0, %v2293
      %v2295 = vpop.f32.mrb[0].mxu0
      %2296 = vmatprep.mubr.f32.mxu0 0.0
      %2297 = vmatmul.mubr.f32.gmra.mrb[0].mxu0 %v2104
      %v2298 = vpop.f32.mrb[0].mxu0
      %v2299 = vadd.f32 0.0, %v2298
      %v2300 = vpop.f32.mrb[0].mxu0
      %2301 = vmatprep.mubr.f32.mxu0 0.0
      %2302 = vmatmul.mubr.f32.gmra.mrb[0].mxu0 %v2105
      %v2303 = vpop.f32.mrb[0].mxu0
      %v2304 = vadd.f32 0.0, %v2303
      %v2305 = vpop.f32.mrb[0].mxu0
      %2306 = vmatprep.mubr.f32.mxu0 0.0
      %2307 = vmatmul.mubr.f32.gmra.mrb[0].mxu0 %v2106
      %v2308 = vpop.f32.mrb[0].mxu0
      %v2309 = vadd.f32 0.0, %v2308
      %v2310 = vpop.f32.mrb[0].mxu0
      %2311 = vmatprep.mubr.f32.mxu0 0.0
      %2312 = vmatmul.mubr.f32.gmra.mrb[0].mxu0 %v2107
      %v2313 = vpop.f32.mrb[0].mxu0
      %v2314 = vadd.f32 0.0, %v2313
      %v2315 = vpop.f32.mrb[0].mxu0
      %2316 = vdwg.mxu0
      %v2318 = vsel %vm1096, %v2239, 0
      %v2321 = vsel %vm1096, %v2244, 0
      %v2324 = vsel %vm1096, %v2249, 0
      %v2327 = vsel %vm1096, %v2254, 0
      %v2330 = vsel %vm1096, %v2259, 0
      %v2333 = vsel %vm1096, %v2264, 0
      %v2336 = vsel %vm1096, %v2269, 0
      %v2339 = vsel %vm1096, %v2274, 0
      %v2342 = vsel %vm1096, %v2279, 0
      %v2345 = vsel %vm1096, %v2284, 0
      %v2348 = vsel %vm1096, %v2289, 0
      %v2351 = vsel %vm1096, %v2294, 0
      %v2354 = vsel %vm1096, %v2299, 0
      %v2357 = vsel %vm1096, %v2304, 0
      %v2360 = vsel %vm1096, %v2309, 0
      %v2363 = vsel %vm1096, %v2314, 0
      %2365 = vmatprep.subr.mxu0 0.0
      %2366 = vmatpush1.msra.mxu0 %v392
      %2367 = vmatprep.subr.mxu0 0.0
      %2368 = vmatpush1.msra.mxu0 0.0
      %2369 = vmatprep.subr.mxu0 0.0
      %2370 = vmatpush1.msra.mxu0 0.0
      %2371 = vmatprep.subr.mxu0 0.0
      %2372 = vmatpush1.msra.mxu0 0.0
      %2373 = vmatprep.subr.mxu0 0.0
      %2374 = vmatpush1.msra.mxu0 0.0
      %2375 = vmatprep.subr.mxu0 0.0
      %2376 = vmatpush1.msra.mxu0 0.0
      %2377 = vmatprep.subr.mxu0 0.0
      %2378 = vmatpush1.msra.mxu0 0.0
      %2379 = vmatprep.subr.mxu0 0.0
      %2380 = vmatpush1.msra.mxu0 0.0
      %2381 = vmatprep.subr.mxu0 0.0
      %2382 = vmatpush1.msra.mxu0 0.0
      %2383 = vmatprep.subr.mxu0 0.0
      %2384 = vmatpush1.msra.mxu0 0.0
      %2385 = vmatprep.subr.mxu0 0.0
      %2386 = vmatpush1.msra.mxu0 0.0
      %2387 = vmatprep.subr.mxu0 0.0
      %2388 = vmatpush1.msra.mxu0 0.0
      %2389 = vmatprep.subr.mxu0 0.0
      %2390 = vmatpush1.msra.mxu0 0.0
      %2391 = vmatprep.subr.mxu0 0.0
      %2392 = vmatpush1.msra.mxu0 0.0
      %2393 = vmatprep.subr.mxu0 0.0
      %2394 = vmatpush1.msra.mxu0 0.0
      %2395 = vmatprep.subr.mxu0 0.0
      %2396 = vmatpush1.msra.mxu0 0.0
      %2397 = vmatprep.subr.mxu0 0.0
      %2398 = vmatpush1.msra.mxu0 0.0
      %2399 = vmatprep.subr.mxu0 0.0
      %2400 = vmatpush1.msra.mxu0 0.0
      %2401 = vmatprep.subr.mxu0 0.0
      %2402 = vmatpush1.msra.mxu0 0.0
      %2403 = vmatprep.subr.mxu0 0.0
      %2404 = vmatpush1.msra.mxu0 0.0
      %2405 = vmatprep.subr.mxu0 0.0
      %2406 = vmatpush1.msra.mxu0 0.0
      %2407 = vmatprep.subr.mxu0 0.0
      %2408 = vmatpush1.msra.mxu0 0.0
      %2409 = vmatprep.subr.mxu0 0.0
      %2410 = vmatpush1.msra.mxu0 0.0
      %2411 = vmatprep.subr.mxu0 0.0
      %2412 = vmatpush1.msra.mxu0 0.0
      %2413 = vmatprep.subr.mxu0 0.0
      %2414 = vmatpush1.msra.mxu0 0.0
      %2415 = vmatprep.subr.mxu0 0.0
      %2416 = vmatpush1.msra.mxu0 0.0
      %2417 = vmatprep.subr.mxu0 0.0
      %2418 = vmatpush1.msra.mxu0 0.0
      %2419 = vmatprep.subr.mxu0 0.0
      %2420 = vmatpush1.msra.mxu0 0.0
      %2421 = vmatprep.subr.mxu0 0.0
      %2422 = vmatpush1.msra.mxu0 0.0
      %2423 = vmatprep.subr.mxu0 0.0
      %2424 = vmatpush1.msra.mxu0 0.0
      %2425 = vmatprep.subr.mxu0 0.0
      %2426 = vmatpush1.msra.mxu0 0.0
      %2427 = vmatprep.subr.mxu0 0.0
      %2428 = vmatpush1.msra.mxu0 0.0
      %2429 = vmatprep.mubr.f32.mxu0 0.0
      %2430 = vmatmul.mubr.f32.gmra.mrb[0].mxu0 %v2318
      %v2431 = vpop.f32.mrb[0].mxu0
      %v2432 = vadd.f32 0.0, %v2431
      %v2433 = vpop.f32.mrb[0].mxu0
      %2434 = vmatprep.mubr.f32.mxu0 0.0
      %2435 = vmatmul.mubr.f32.gmra.mrb[0].mxu0 %v2321
      %v2436 = vpop.f32.mrb[0].mxu0
      %v2437 = vadd.f32 0.0, %v2436
      %v2438 = vpop.f32.mrb[0].mxu0
      %2439 = vmatprep.mubr.f32.mxu0 0.0
      %2440 = vmatmul.mubr.f32.gmra.mrb[0].mxu0 %v2324
      %v2441 = vpop.f32.mrb[0].mxu0
      %v2442 = vadd.f32 0.0, %v2441
      %v2443 = vpop.f32.mrb[0].mxu0
      %2444 = vmatprep.mubr.f32.mxu0 0.0
      %2445 = vmatmul.mubr.f32.gmra.mrb[0].mxu0 %v2327
      %v2446 = vpop.f32.mrb[0].mxu0
      %v2447 = vadd.f32 0.0, %v2446
      %v2448 = vpop.f32.mrb[0].mxu0
      %2449 = vmatprep.mubr.f32.mxu0 0.0
      %2450 = vmatmul.mubr.f32.gmra.mrb[0].mxu0 %v2330
      %v2451 = vpop.f32.mrb[0].mxu0
      %v2452 = vadd.f32 0.0, %v2451
      %v2453 = vpop.f32.mrb[0].mxu0
      %2454 = vmatprep.mubr.f32.mxu0 0.0
      %2455 = vmatmul.mubr.f32.gmra.mrb[0].mxu0 %v2333
      %v2456 = vpop.f32.mrb[0].mxu0
      %v2457 = vadd.f32 0.0, %v2456
      %v2458 = vpop.f32.mrb[0].mxu0
      %2459 = vmatprep.mubr.f32.mxu0 0.0
      %2460 = vmatmul.mubr.f32.gmra.mrb[0].mxu0 %v2336
      %v2461 = vpop.f32.mrb[0].mxu0
      %v2462 = vadd.f32 0.0, %v2461
      %v2463 = vpop.f32.mrb[0].mxu0
      %2464 = vmatprep.mubr.f32.mxu0 0.0
      %2465 = vmatmul.mubr.f32.gmra.mrb[0].mxu0 %v2339
      %v2466 = vpop.f32.mrb[0].mxu0
      %v2467 = vadd.f32 0.0, %v2466
      %v2468 = vpop.f32.mrb[0].mxu0
      %2469 = vmatprep.mubr.f32.mxu0 0.0
      %2470 = vmatmul.mubr.f32.gmra.mrb[0].mxu0 %v2342
      %v2471 = vpop.f32.mrb[0].mxu0
      %v2472 = vadd.f32 0.0, %v2471
      %v2473 = vpop.f32.mrb[0].mxu0
      %2474 = vmatprep.mubr.f32.mxu0 0.0
      %2475 = vmatmul.mubr.f32.gmra.mrb[0].mxu0 %v2345
      %v2476 = vpop.f32.mrb[0].mxu0
      %v2477 = vadd.f32 0.0, %v2476
      %v2478 = vpop.f32.mrb[0].mxu0
      %2479 = vmatprep.mubr.f32.mxu0 0.0
      %2480 = vmatmul.mubr.f32.gmra.mrb[0].mxu0 %v2348
      %v2481 = vpop.f32.mrb[0].mxu0
      %v2482 = vadd.f32 0.0, %v2481
      %v2483 = vpop.f32.mrb[0].mxu0
      %2484 = vmatprep.mubr.f32.mxu0 0.0
      %2485 = vmatmul.mubr.f32.gmra.mrb[0].mxu0 %v2351
      %v2486 = vpop.f32.mrb[0].mxu0
      %v2487 = vadd.f32 0.0, %v2486
      %v2488 = vpop.f32.mrb[0].mxu0
      %2489 = vmatprep.mubr.f32.mxu0 0.0
      %2490 = vmatmul.mubr.f32.gmra.mrb[0].mxu0 %v2354
      %v2491 = vpop.f32.mrb[0].mxu0
      %v2492 = vadd.f32 0.0, %v2491
      %v2493 = vpop.f32.mrb[0].mxu0
      %2494 = vmatprep.mubr.f32.mxu0 0.0
      %2495 = vmatmul.mubr.f32.gmra.mrb[0].mxu0 %v2357
      %v2496 = vpop.f32.mrb[0].mxu0
      %v2497 = vadd.f32 0.0, %v2496
      %v2498 = vpop.f32.mrb[0].mxu0
      %2499 = vmatprep.mubr.f32.mxu0 0.0
      %2500 = vmatmul.mubr.f32.gmra.mrb[0].mxu0 %v2360
      %v2501 = vpop.f32.mrb[0].mxu0
      %v2502 = vadd.f32 0.0, %v2501
      %v2503 = vpop.f32.mrb[0].mxu0
      %2504 = vmatprep.mubr.f32.mxu0 0.0
      %2505 = vmatmul.mubr.f32.gmra.mrb[0].mxu0 %v2363
      %v2506 = vpop.f32.mrb[0].mxu0
      %v2507 = vadd.f32 0.0, %v2506
      %v2508 = vpop.f32.mrb[0].mxu0
      %2509 = vdwg.mxu0
      %v2511 = vsel %vm1096, %v1581, 0
      %v2514 = vsel %vm1096, %v1586, 0
      %v2517 = vsel %vm1096, %v1591, 0
      %v2520 = vsel %vm1096, %v1596, 0
      %v2523 = vsel %vm1096, %v1601, 0
      %v2526 = vsel %vm1096, %v1606, 0
      %v2529 = vsel %vm1096, %v1611, 0
      %v2532 = vsel %vm1096, %v1616, 0
      %v2535 = vsel %vm1096, %v1621, 0
      %v2538 = vsel %vm1096, %v1626, 0
      %v2541 = vsel %vm1096, %v1631, 0
      %v2544 = vsel %vm1096, %v1636, 0
      %v2547 = vsel %vm1096, %v1641, 0
      %v2550 = vsel %vm1096, %v1646, 0
      %v2553 = vsel %vm1096, %v1651, 0
      %v2556 = vsel %vm1096, %v1656, 0
      %2558 = vmatprep.subr.mxu0 0.0
      %2559 = vmatpush1.msra.mxu0 %v391
      %2560 = vmatprep.subr.mxu0 0.0
      %2561 = vmatpush1.msra.mxu0 0.0
      %2562 = vmatprep.subr.mxu0 0.0
      %2563 = vmatpush1.msra.mxu0 0.0
      %2564 = vmatprep.subr.mxu0 0.0
      %2565 = vmatpush1.msra.mxu0 0.0
      %2566 = vmatprep.subr.mxu0 0.0
      %2567 = vmatpush1.msra.mxu0 0.0
      %2568 = vmatprep.subr.mxu0 0.0
      %2569 = vmatpush1.msra.mxu0 0.0
      %2570 = vmatprep.subr.mxu0 0.0
      %2571 = vmatpush1.msra.mxu0 0.0
      %2572 = vmatprep.subr.mxu0 0.0
      %2573 = vmatpush1.msra.mxu0 0.0
      %2574 = vmatprep.subr.mxu0 0.0
      %2575 = vmatpush1.msra.mxu0 0.0
      %2576 = vmatprep.subr.mxu0 0.0
      %2577 = vmatpush1.msra.mxu0 0.0
      %2578 = vmatprep.subr.mxu0 0.0
      %2579 = vmatpush1.msra.mxu0 0.0
      %2580 = vmatprep.subr.mxu0 0.0
      %2581 = vmatpush1.msra.mxu0 0.0
      %2582 = vmatprep.subr.mxu0 0.0
      %2583 = vmatpush1.msra.mxu0 0.0
      %2584 = vmatprep.subr.mxu0 0.0
      %2585 = vmatpush1.msra.mxu0 0.0
      %2586 = vmatprep.subr.mxu0 0.0
      %2587 = vmatpush1.msra.mxu0 0.0
      %2588 = vmatprep.subr.mxu0 0.0
      %2589 = vmatpush1.msra.mxu0 0.0
      %2590 = vmatprep.subr.mxu0 0.0
      %2591 = vmatpush1.msra.mxu0 0.0
      %2592 = vmatprep.subr.mxu0 0.0
      %2593 = vmatpush1.msra.mxu0 0.0
      %2594 = vmatprep.subr.mxu0 0.0
      %2595 = vmatpush1.msra.mxu0 0.0
      %2596 = vmatprep.subr.mxu0 0.0
      %2597 = vmatpush1.msra.mxu0 0.0
      %2598 = vmatprep.subr.mxu0 0.0
      %2599 = vmatpush1.msra.mxu0 0.0
      %2600 = vmatprep.subr.mxu0 0.0
      %2601 = vmatpush1.msra.mxu0 0.0
      %2602 = vmatprep.subr.mxu0 0.0
      %2603 = vmatpush1.msra.mxu0 0.0
      %2604 = vmatprep.subr.mxu0 0.0
      %2605 = vmatpush1.msra.mxu0 0.0
      %2606 = vmatprep.subr.mxu0 0.0
      %2607 = vmatpush1.msra.mxu0 0.0
      %2608 = vmatprep.subr.mxu0 0.0
      %2609 = vmatpush1.msra.mxu0 0.0
      %2610 = vmatprep.subr.mxu0 0.0
      %2611 = vmatpush1.msra.mxu0 0.0
      %2612 = vmatprep.subr.mxu0 0.0
      %2613 = vmatpush1.msra.mxu0 0.0
      %2614 = vmatprep.subr.mxu0 0.0
      %2615 = vmatpush1.msra.mxu0 0.0
      %2616 = vmatprep.subr.mxu0 0.0
      %2617 = vmatpush1.msra.mxu0 0.0
      %2618 = vmatprep.subr.mxu0 0.0
      %2619 = vmatpush1.msra.mxu0 0.0
      %2620 = vmatprep.subr.mxu0 0.0
      %2621 = vmatpush1.msra.mxu0 0.0
      %2622 = vmatprep.mubr.f32.mxu0 0.0
      %2623 = vmatmul.mubr.f32.gmra.mrb[0].mxu0 %v2511
      %v2624 = vpop.f32.mrb[0].mxu0
      %v2625 = vadd.f32 %v2432, %v2624
      %v2626 = vpop.f32.mrb[0].mxu0
      %2627 = vmatprep.mubr.f32.mxu0 0.0
      %2628 = vmatmul.mubr.f32.gmra.mrb[0].mxu0 %v2514
      %v2629 = vpop.f32.mrb[0].mxu0
      %v2630 = vadd.f32 %v2437, %v2629
      %v2631 = vpop.f32.mrb[0].mxu0
      %2632 = vmatprep.mubr.f32.mxu0 0.0
      %2633 = vmatmul.mubr.f32.gmra.mrb[0].mxu0 %v2517
      %v2634 = vpop.f32.mrb[0].mxu0
      %v2635 = vadd.f32 %v2442, %v2634
      %v2636 = vpop.f32.mrb[0].mxu0
      %2637 = vmatprep.mubr.f32.mxu0 0.0
      %2638 = vmatmul.mubr.f32.gmra.mrb[0].mxu0 %v2520
      %v2639 = vpop.f32.mrb[0].mxu0
      %v2640 = vadd.f32 %v2447, %v2639
      %v2641 = vpop.f32.mrb[0].mxu0
      %2642 = vmatprep.mubr.f32.mxu0 0.0
      %2643 = vmatmul.mubr.f32.gmra.mrb[0].mxu0 %v2523
      %v2644 = vpop.f32.mrb[0].mxu0
      %v2645 = vadd.f32 %v2452, %v2644
      %v2646 = vpop.f32.mrb[0].mxu0
      %2647 = vmatprep.mubr.f32.mxu0 0.0
      %2648 = vmatmul.mubr.f32.gmra.mrb[0].mxu0 %v2526
      %v2649 = vpop.f32.mrb[0].mxu0
      %v2650 = vadd.f32 %v2457, %v2649
      %v2651 = vpop.f32.mrb[0].mxu0
      %2652 = vmatprep.mubr.f32.mxu0 0.0
      %2653 = vmatmul.mubr.f32.gmra.mrb[0].mxu0 %v2529
      %v2654 = vpop.f32.mrb[0].mxu0
      %v2655 = vadd.f32 %v2462, %v2654
      %v2656 = vpop.f32.mrb[0].mxu0
      %2657 = vmatprep.mubr.f32.mxu0 0.0
      %2658 = vmatmul.mubr.f32.gmra.mrb[0].mxu0 %v2532
      %v2659 = vpop.f32.mrb[0].mxu0
      %v2660 = vadd.f32 %v2467, %v2659
      %v2661 = vpop.f32.mrb[0].mxu0
      %2662 = vmatprep.mubr.f32.mxu0 0.0
      %2663 = vmatmul.mubr.f32.gmra.mrb[0].mxu0 %v2535
      %v2664 = vpop.f32.mrb[0].mxu0
      %v2665 = vadd.f32 %v2472, %v2664
      %v2666 = vpop.f32.mrb[0].mxu0
      %2667 = vmatprep.mubr.f32.mxu0 0.0
      %2668 = vmatmul.mubr.f32.gmra.mrb[0].mxu0 %v2538
      %v2669 = vpop.f32.mrb[0].mxu0
      %v2670 = vadd.f32 %v2477, %v2669
      %v2671 = vpop.f32.mrb[0].mxu0
      %2672 = vmatprep.mubr.f32.mxu0 0.0
      %2673 = vmatmul.mubr.f32.gmra.mrb[0].mxu0 %v2541
      %v2674 = vpop.f32.mrb[0].mxu0
      %v2675 = vadd.f32 %v2482, %v2674
      %v2676 = vpop.f32.mrb[0].mxu0
      %2677 = vmatprep.mubr.f32.mxu0 0.0
      %2678 = vmatmul.mubr.f32.gmra.mrb[0].mxu0 %v2544
      %v2679 = vpop.f32.mrb[0].mxu0
      %v2680 = vadd.f32 %v2487, %v2679
      %v2681 = vpop.f32.mrb[0].mxu0
      %2682 = vmatprep.mubr.f32.mxu0 0.0
      %2683 = vmatmul.mubr.f32.gmra.mrb[0].mxu0 %v2547
      %v2684 = vpop.f32.mrb[0].mxu0
      %v2685 = vadd.f32 %v2492, %v2684
      %v2686 = vpop.f32.mrb[0].mxu0
      %2687 = vmatprep.mubr.f32.mxu0 0.0
      %2688 = vmatmul.mubr.f32.gmra.mrb[0].mxu0 %v2550
      %v2689 = vpop.f32.mrb[0].mxu0
      %v2690 = vadd.f32 %v2497, %v2689
      %v2691 = vpop.f32.mrb[0].mxu0
      %2692 = vmatprep.mubr.f32.mxu0 0.0
      %2693 = vmatmul.mubr.f32.gmra.mrb[0].mxu0 %v2553
      %v2694 = vpop.f32.mrb[0].mxu0
      %v2695 = vadd.f32 %v2502, %v2694
      %v2696 = vpop.f32.mrb[0].mxu0
      %2697 = vmatprep.mubr.f32.mxu0 0.0
      %2698 = vmatmul.mubr.f32.gmra.mrb[0].mxu0 %v2556
      %v2699 = vpop.f32.mrb[0].mxu0
      %v2700 = vadd.f32 %v2507, %v2699
      %v2701 = vpop.f32.mrb[0].mxu0
      %2702 = vdwg.mxu0
      %2703 = vrot.lane.b32.xlu0 %v650, 112
      %v2704 = vpop.permute.xlu0 %2703
      %2705 = vrot.lane.b32.xlu0 %v651, 112
      %v2706 = vpop.permute.xlu0 %2705
      %2707 = vrot.lane.b32.xlu0 %v652, 112
      %v2708 = vpop.permute.xlu0 %2707
      %2709 = vrot.lane.b32.xlu0 %v653, 112
      %v2710 = vpop.permute.xlu0 %2709
      %2711 = vrot.lane.b32.xlu0 %v654, 112
      %v2712 = vpop.permute.xlu0 %2711
      %2713 = vrot.lane.b32.xlu0 %v655, 112
      %v2714 = vpop.permute.xlu0 %2713
      %2715 = vrot.lane.b32.xlu0 %v656, 112
      %v2716 = vpop.permute.xlu0 %2715
      %2717 = vrot.lane.b32.xlu0 %v657, 112
      %v2718 = vpop.permute.xlu0 %2717
      %2719 = vrot.lane.b32.xlu0 %v658, 112
      %v2720 = vpop.permute.xlu0 %2719
      %2721 = vrot.lane.b32.xlu0 %v659, 112
      %v2722 = vpop.permute.xlu0 %2721
      %2723 = vrot.lane.b32.xlu0 %v660, 112
      %v2724 = vpop.permute.xlu0 %2723
      %2725 = vrot.lane.b32.xlu0 %v661, 112
      %v2726 = vpop.permute.xlu0 %2725
      %2727 = vrot.lane.b32.xlu0 %v662, 112
      %v2728 = vpop.permute.xlu0 %2727
      %2729 = vrot.lane.b32.xlu0 %v663, 112
      %v2730 = vpop.permute.xlu0 %2729
      %2731 = vrot.lane.b32.xlu0 %v664, 112
      %v2732 = vpop.permute.xlu0 %2731
      %2733 = vrot.lane.b32.xlu0 %v665, 112
      %v2734 = vpop.permute.xlu0 %2733
      %2735 = vrot.lane.b32.xlu0 %v787, 112
      %v2736 = vpop.permute.xlu0 %2735
      %2737 = vrot.lane.b32.xlu0 %v792, 112
      %v2738 = vpop.permute.xlu0 %2737
      %2739 = vrot.lane.b32.xlu0 %v797, 112
      %v2740 = vpop.permute.xlu0 %2739
      %2741 = vrot.lane.b32.xlu0 %v802, 112
      %v2742 = vpop.permute.xlu0 %2741
      %2743 = vrot.lane.b32.xlu0 %v807, 112
      %v2744 = vpop.permute.xlu0 %2743
      %2745 = vrot.lane.b32.xlu0 %v812, 112
      %v2746 = vpop.permute.xlu0 %2745
      %2747 = vrot.lane.b32.xlu0 %v817, 112
      %v2748 = vpop.permute.xlu0 %2747
      %2749 = vrot.lane.b32.xlu0 %v822, 112
      %v2750 = vpop.permute.xlu0 %2749
      %2751 = vrot.lane.b32.xlu0 %v827, 112
      %v2752 = vpop.permute.xlu0 %2751
      %2753 = vrot.lane.b32.xlu0 %v832, 112
      %v2754 = vpop.permute.xlu0 %2753
      %2755 = vrot.lane.b32.xlu0 %v837, 112
      %v2756 = vpop.permute.xlu0 %2755
      %2757 = vrot.lane.b32.xlu0 %v842, 112
      %v2758 = vpop.permute.xlu0 %2757
      %2759 = vrot.lane.b32.xlu0 %v847, 112
      %v2760 = vpop.permute.xlu0 %2759
      %2761 = vrot.lane.b32.xlu0 %v852, 112
      %v2762 = vpop.permute.xlu0 %2761
      %2763 = vrot.lane.b32.xlu0 %v857, 112
      %v2764 = vpop.permute.xlu0 %2763
      %2765 = vrot.lane.b32.xlu0 %v862, 112
      %v2766 = vpop.permute.xlu0 %2765
      %v2767 = vsel %vm1096, %v2704, 0
      %v2769 = vsel %vm1096, %v2706, 0
      %v2771 = vsel %vm1096, %v2708, 0
      %v2773 = vsel %vm1096, %v2710, 0
      %v2775 = vsel %vm1096, %v2712, 0
      %v2777 = vsel %vm1096, %v2714, 0
      %v2779 = vsel %vm1096, %v2716, 0
      %v2781 = vsel %vm1096, %v2718, 0
      %v2783 = vsel %vm1096, %v2720, 0
      %v2785 = vsel %vm1096, %v2722, 0
      %v2787 = vsel %vm1096, %v2724, 0
      %v2789 = vsel %vm1096, %v2726, 0
      %v2791 = vsel %vm1096, %v2728, 0
      %v2793 = vsel %vm1096, %v2730, 0
      %v2795 = vsel %vm1096, %v2732, 0
      %v2797 = vsel %vm1096, %v2734, 0
      %v2799 = vsel %vm1096, %v2736, 0
      %v2801 = vsel %vm1096, %v2738, 0
      %v2803 = vsel %vm1096, %v2740, 0
      %v2805 = vsel %vm1096, %v2742, 0
      %v2807 = vsel %vm1096, %v2744, 0
      %v2809 = vsel %vm1096, %v2746, 0
      %v2811 = vsel %vm1096, %v2748, 0
      %v2813 = vsel %vm1096, %v2750, 0
      %v2815 = vsel %vm1096, %v2752, 0
      %v2817 = vsel %vm1096, %v2754, 0
      %v2819 = vsel %vm1096, %v2756, 0
      %v2821 = vsel %vm1096, %v2758, 0
      %v2823 = vsel %vm1096, %v2760, 0
      %v2825 = vsel %vm1096, %v2762, 0
      %v2827 = vsel %vm1096, %v2764, 0
      %v2829 = vsel %vm1096, %v2766, 0
      %2831 = vmatprep.subr.mxu0 0.0
      %2832 = vmatpush1.xpose.msra.mxu0 %v2799
      %2833 = vmatprep.subr.mxu0 0.0
      %2834 = vmatpush1.xpose.msra.mxu0 %v2801
      %2835 = vmatprep.subr.mxu0 0.0
      %2836 = vmatpush1.xpose.msra.mxu0 %v2803
      %2837 = vmatprep.subr.mxu0 0.0
      %2838 = vmatpush1.xpose.msra.mxu0 %v2805
      %2839 = vmatprep.subr.mxu0 0.0
      %2840 = vmatpush1.xpose.msra.mxu0 %v2807
      %2841 = vmatprep.subr.mxu0 0.0
      %2842 = vmatpush1.xpose.msra.mxu0 %v2809
      %2843 = vmatprep.subr.mxu0 0.0
      %2844 = vmatpush1.xpose.msra.mxu0 %v2811
      %2845 = vmatprep.subr.mxu0 0.0
      %2846 = vmatpush1.xpose.msra.mxu0 %v2813
      %2847 = vmatprep.subr.mxu0 0.0
      %2848 = vmatpush1.xpose.msra.mxu0 %v2815
      %2849 = vmatprep.subr.mxu0 0.0
      %2850 = vmatpush1.xpose.msra.mxu0 %v2817
      %2851 = vmatprep.subr.mxu0 0.0
      %2852 = vmatpush1.xpose.msra.mxu0 %v2819
      %2853 = vmatprep.subr.mxu0 0.0
      %2854 = vmatpush1.xpose.msra.mxu0 %v2821
      %2855 = vmatprep.subr.mxu0 0.0
      %2856 = vmatpush1.xpose.msra.mxu0 %v2823
      %2857 = vmatprep.subr.mxu0 0.0
      %2858 = vmatpush1.xpose.msra.mxu0 %v2825
      %2859 = vmatprep.subr.mxu0 0.0
      %2860 = vmatpush1.xpose.msra.mxu0 %v2827
      %2861 = vmatprep.subr.mxu0 0.0
      %2862 = vmatpush1.xpose.msra.mxu0 %v2829
      %2863 = vmatprep.subr.mxu0 0.0
      %2864 = vmatpush1.xpose.msra.mxu0 0.0
      %2865 = vmatprep.subr.mxu0 0.0
      %2866 = vmatpush1.xpose.msra.mxu0 0.0
      %2867 = vmatprep.subr.mxu0 0.0
      %2868 = vmatpush1.xpose.msra.mxu0 0.0
      %2869 = vmatprep.subr.mxu0 0.0
      %2870 = vmatpush1.xpose.msra.mxu0 0.0
      %2871 = vmatprep.subr.mxu0 0.0
      %2872 = vmatpush1.xpose.msra.mxu0 0.0
      %2873 = vmatprep.subr.mxu0 0.0
      %2874 = vmatpush1.xpose.msra.mxu0 0.0
      %2875 = vmatprep.subr.mxu0 0.0
      %2876 = vmatpush1.xpose.msra.mxu0 0.0
      %2877 = vmatprep.subr.mxu0 0.0
      %2878 = vmatpush1.xpose.msra.mxu0 0.0
      %2879 = vmatprep.subr.mxu0 0.0
      %2880 = vmatpush1.xpose.msra.mxu0 0.0
      %2881 = vmatprep.subr.mxu0 0.0
      %2882 = vmatpush1.xpose.msra.mxu0 0.0
      %2883 = vmatprep.subr.mxu0 0.0
      %2884 = vmatpush1.xpose.msra.mxu0 0.0
      %2885 = vmatprep.subr.mxu0 0.0
      %2886 = vmatpush1.xpose.msra.mxu0 0.0
      %2887 = vmatprep.subr.mxu0 0.0
      %2888 = vmatpush1.xpose.msra.mxu0 0.0
      %2889 = vmatprep.subr.mxu0 0.0
      %2890 = vmatpush1.xpose.msra.mxu0 0.0
      %2891 = vmatprep.subr.mxu0 0.0
      %2892 = vmatpush1.xpose.msra.mxu0 0.0
      %2893 = vmatprep.subr.mxu0 0.0
      %2894 = vmatpush1.xpose.msra.mxu0 0.0
      %2895 = vmatprep.mubr.f32.mxu0 0.0
      %2896 = vmatmul.mubr.f32.gmra.mrb[0].mxu0 %v2767
      %v2897 = vpop.f32.mrb[0].mxu0
      %v2898 = vadd.f32 %v1064, %v2897
      %v2899 = vpop.f32.mrb[0].mxu0
      %2900 = vmatprep.mubr.f32.mxu0 0.0
      %2901 = vmatmul.mubr.f32.gmra.mrb[0].mxu0 %v2769
      %v2902 = vpop.f32.mrb[0].mxu0
      %v2903 = vadd.f32 %v1065, %v2902
      %v2904 = vpop.f32.mrb[0].mxu0
      %2905 = vmatprep.mubr.f32.mxu0 0.0
      %2906 = vmatmul.mubr.f32.gmra.mrb[0].mxu0 %v2771
      %v2907 = vpop.f32.mrb[0].mxu0
      %v2908 = vadd.f32 %v1066, %v2907
      %v2909 = vpop.f32.mrb[0].mxu0
      %2910 = vmatprep.mubr.f32.mxu0 0.0
      %2911 = vmatmul.mubr.f32.gmra.mrb[0].mxu0 %v2773
      %v2912 = vpop.f32.mrb[0].mxu0
      %v2913 = vadd.f32 %v1067, %v2912
      %v2914 = vpop.f32.mrb[0].mxu0
      %2915 = vmatprep.mubr.f32.mxu0 0.0
      %2916 = vmatmul.mubr.f32.gmra.mrb[0].mxu0 %v2775
      %v2917 = vpop.f32.mrb[0].mxu0
      %v2918 = vadd.f32 %v1068, %v2917
      %v2919 = vpop.f32.mrb[0].mxu0
      %2920 = vmatprep.mubr.f32.mxu0 0.0
      %2921 = vmatmul.mubr.f32.gmra.mrb[0].mxu0 %v2777
      %v2922 = vpop.f32.mrb[0].mxu0
      %v2923 = vadd.f32 %v1069, %v2922
      %v2924 = vpop.f32.mrb[0].mxu0
      %2925 = vmatprep.mubr.f32.mxu0 0.0
      %2926 = vmatmul.mubr.f32.gmra.mrb[0].mxu0 %v2779
      %v2927 = vpop.f32.mrb[0].mxu0
      %v2928 = vadd.f32 %v1070, %v2927
      %v2929 = vpop.f32.mrb[0].mxu0
      %2930 = vmatprep.mubr.f32.mxu0 0.0
      %2931 = vmatmul.mubr.f32.gmra.mrb[0].mxu0 %v2781
      %v2932 = vpop.f32.mrb[0].mxu0
      %v2933 = vadd.f32 %v1071, %v2932
      %v2934 = vpop.f32.mrb[0].mxu0
      %2935 = vmatprep.mubr.f32.mxu0 0.0
      %2936 = vmatmul.mubr.f32.gmra.mrb[0].mxu0 %v2783
      %v2937 = vpop.f32.mrb[0].mxu0
      %v2938 = vadd.f32 %v1072, %v2937
      %v2939 = vpop.f32.mrb[0].mxu0
      %2940 = vmatprep.mubr.f32.mxu0 0.0
      %2941 = vmatmul.mubr.f32.gmra.mrb[0].mxu0 %v2785
      %v2942 = vpop.f32.mrb[0].mxu0
      %v2943 = vadd.f32 %v1073, %v2942
      %v2944 = vpop.f32.mrb[0].mxu0
      %2945 = vmatprep.mubr.f32.mxu0 0.0
      %2946 = vmatmul.mubr.f32.gmra.mrb[0].mxu0 %v2787
      %v2947 = vpop.f32.mrb[0].mxu0
      %v2948 = vadd.f32 %v1074, %v2947
      %v2949 = vpop.f32.mrb[0].mxu0
      %2950 = vmatprep.mubr.f32.mxu0 0.0
      %2951 = vmatmul.mubr.f32.gmra.mrb[0].mxu0 %v2789
      %v2952 = vpop.f32.mrb[0].mxu0
      %v2953 = vadd.f32 %v1075, %v2952
      %v2954 = vpop.f32.mrb[0].mxu0
      %2955 = vmatprep.mubr.f32.mxu0 0.0
      %2956 = vmatmul.mubr.f32.gmra.mrb[0].mxu0 %v2791
      %v2957 = vpop.f32.mrb[0].mxu0
      %v2958 = vadd.f32 %v1076, %v2957
      %v2959 = vpop.f32.mrb[0].mxu0
      %2960 = vmatprep.mubr.f32.mxu0 0.0
      %2961 = vmatmul.mubr.f32.gmra.mrb[0].mxu0 %v2793
      %v2962 = vpop.f32.mrb[0].mxu0
      %v2963 = vadd.f32 %v1077, %v2962
      %v2964 = vpop.f32.mrb[0].mxu0
      %2965 = vmatprep.mubr.f32.mxu0 0.0
      %2966 = vmatmul.mubr.f32.gmra.mrb[0].mxu0 %v2795
      %v2967 = vpop.f32.mrb[0].mxu0
      %v2968 = vadd.f32 %v1078, %v2967
      %v2969 = vpop.f32.mrb[0].mxu0
      %2970 = vmatprep.mubr.f32.mxu0 0.0
      %2971 = vmatmul.mubr.f32.gmra.mrb[0].mxu0 %v2797
      %v2972 = vpop.f32.mrb[0].mxu0
      %v2973 = vadd.f32 %v1079, %v2972
      %v2974 = vpop.f32.mrb[0].mxu0
      %2975 = vdwg.mxu0
      %2976 = vmax.xlane.f32.xlu0 %v2898
      %v2977 = vpop.xlane.xlu0 %2976
      %2978 = vmax.xlane.f32.xlu0 %v2903
      %v2979 = vpop.xlane.xlu0 %2978
      %2980 = vmax.xlane.f32.xlu0 %v2908
      %v2981 = vpop.xlane.xlu0 %2980
      %2982 = vmax.xlane.f32.xlu0 %v2913
      %v2983 = vpop.xlane.xlu0 %2982
      %2984 = vmax.xlane.f32.xlu0 %v2918
      %v2985 = vpop.xlane.xlu0 %2984
      %2986 = vmax.xlane.f32.xlu0 %v2923
      %v2987 = vpop.xlane.xlu0 %2986
      %2988 = vmax.xlane.f32.xlu0 %v2928
      %v2989 = vpop.xlane.xlu0 %2988
      %2990 = vmax.xlane.f32.xlu0 %v2933
      %v2991 = vpop.xlane.xlu0 %2990
      %2992 = vmax.xlane.f32.xlu0 %v2938
      %v2993 = vpop.xlane.xlu0 %2992
      %2994 = vmax.xlane.f32.xlu0 %v2943
      %v2995 = vpop.xlane.xlu0 %2994
      %2996 = vmax.xlane.f32.xlu0 %v2948
      %v2997 = vpop.xlane.xlu0 %2996
      %2998 = vmax.xlane.f32.xlu0 %v2953
      %v2999 = vpop.xlane.xlu0 %2998
      %3000 = vmax.xlane.f32.xlu0 %v2958
      %v3001 = vpop.xlane.xlu0 %3000
      %3002 = vmax.xlane.f32.xlu0 %v2963
      %v3003 = vpop.xlane.xlu0 %3002
      %3004 = vmax.xlane.f32.xlu0 %v2968
      %v3005 = vpop.xlane.xlu0 %3004
      %3006 = vmax.xlane.f32.xlu0 %v2973
      %v3007 = vpop.xlane.xlu0 %3006
      %v3008 = vsub.f32 %v2898, %v2977
      %v3009 = vsub.f32 %v2903, %v2979
      %v3010 = vsub.f32 %v2908, %v2981
      %v3011 = vsub.f32 %v2913, %v2983
      %v3012 = vsub.f32 %v2918, %v2985
      %v3013 = vsub.f32 %v2923, %v2987
      %v3014 = vsub.f32 %v2928, %v2989
      %v3015 = vsub.f32 %v2933, %v2991
      %v3016 = vsub.f32 %v2938, %v2993
      %v3017 = vsub.f32 %v2943, %v2995
      %v3018 = vsub.f32 %v2948, %v2997
      %v3019 = vsub.f32 %v2953, %v2999
      %v3020 = vsub.f32 %v2958, %v3001
      %v3021 = vsub.f32 %v2963, %v3003
      %v3022 = vsub.f32 %v2968, %v3005
      %v3023 = vsub.f32 %v2973, %v3007
      %v3024 = vmul.f32 %v3008, 1.442695
      %v3025 = vpow.pop %v3024
      %v3026 = vmul.f32 %v3009, 1.442695
      %v3027 = vpow.pop %v3026
      %v3028 = vmul.f32 %v3010, 1.442695
      %v3029 = vpow.pop %v3028
      %v3030 = vmul.f32 %v3011, 1.442695
      %v3031 = vpow.pop %v3030
      %v3032 = vmul.f32 %v3012, 1.442695
      %v3033 = vpow.pop %v3032
      %v3034 = vmul.f32 %v3013, 1.442695
      %v3035 = vpow.pop %v3034
      %v3036 = vmul.f32 %v3014, 1.442695
      %v3037 = vpow.pop %v3036
      %v3038 = vmul.f32 %v3015, 1.442695
      %v3039 = vpow.pop %v3038
      %v3040 = vmul.f32 %v3016, 1.442695
      %v3041 = vpow.pop %v3040
      %v3042 = vmul.f32 %v3017, 1.442695
      %v3043 = vpow.pop %v3042
      %v3044 = vmul.f32 %v3018, 1.442695
      %v3045 = vpow.pop %v3044
      %v3046 = vmul.f32 %v3019, 1.442695
      %v3047 = vpow.pop %v3046
      %v3048 = vmul.f32 %v3020, 1.442695
      %v3049 = vpow.pop %v3048
      %v3050 = vmul.f32 %v3021, 1.442695
      %v3051 = vpow.pop %v3050
      %v3052 = vmul.f32 %v3022, 1.442695
      %v3053 = vpow.pop %v3052
      %v3054 = vmul.f32 %v3023, 1.442695
      %v3055 = vpow.pop %v3054
      %3056 = vadd.xlane.f32.xlu0 %v3025
      %v3057 = vpop.xlane.xlu0 %3056
      %3058 = vadd.xlane.f32.xlu0 %v3027
      %v3059 = vpop.xlane.xlu0 %3058
      %3060 = vadd.xlane.f32.xlu0 %v3029
      %v3061 = vpop.xlane.xlu0 %3060
      %3062 = vadd.xlane.f32.xlu0 %v3031
      %v3063 = vpop.xlane.xlu0 %3062
      %3064 = vadd.xlane.f32.xlu0 %v3033
      %v3065 = vpop.xlane.xlu0 %3064
      %3066 = vadd.xlane.f32.xlu0 %v3035
      %v3067 = vpop.xlane.xlu0 %3066
      %3068 = vadd.xlane.f32.xlu0 %v3037
      %v3069 = vpop.xlane.xlu0 %3068
      %3070 = vadd.xlane.f32.xlu0 %v3039
      %v3071 = vpop.xlane.xlu0 %3070
      %3072 = vadd.xlane.f32.xlu0 %v3041
      %v3073 = vpop.xlane.xlu0 %3072
      %3074 = vadd.xlane.f32.xlu0 %v3043
      %v3075 = vpop.xlane.xlu0 %3074
      %3076 = vadd.xlane.f32.xlu0 %v3045
      %v3077 = vpop.xlane.xlu0 %3076
      %3078 = vadd.xlane.f32.xlu0 %v3047
      %v3079 = vpop.xlane.xlu0 %3078
      %3080 = vadd.xlane.f32.xlu0 %v3049
      %v3081 = vpop.xlane.xlu0 %3080
      %3082 = vadd.xlane.f32.xlu0 %v3051
      %v3083 = vpop.xlane.xlu0 %3082
      %3084 = vadd.xlane.f32.xlu0 %v3053
      %v3085 = vpop.xlane.xlu0 %3084
      %3086 = vadd.xlane.f32.xlu0 %v3055
      %v3087 = vpop.xlane.xlu0 %3086
      %v3088 = vrcp.pop %v3057
      %v3089 = vrcp.pop %v3059
      %v3090 = vrcp.pop %v3061
      %v3091 = vrcp.pop %v3063
      %v3092 = vrcp.pop %v3065
      %v3093 = vrcp.pop %v3067
      %v3094 = vrcp.pop %v3069
      %v3095 = vrcp.pop %v3071
      %v3096 = vrcp.pop %v3073
      %v3097 = vrcp.pop %v3075
      %v3098 = vrcp.pop %v3077
      %v3099 = vrcp.pop %v3079
      %v3100 = vrcp.pop %v3081
      %v3101 = vrcp.pop %v3083
      %v3102 = vrcp.pop %v3085
      %v3103 = vrcp.pop %v3087
      %v3104 = vmul.f32 %v3088, 0.5
      %v3105 = vmul.f32 %v3089, 0.5
      %v3106 = vmul.f32 %v3090, 0.5
      %v3107 = vmul.f32 %v3091, 0.5
      %v3108 = vmul.f32 %v3092, 0.5
      %v3109 = vmul.f32 %v3093, 0.5
      %v3110 = vmul.f32 %v3094, 0.5
      %v3111 = vmul.f32 %v3095, 0.5
      %v3112 = vmul.f32 %v3096, 0.5
      %v3113 = vmul.f32 %v3097, 0.5
      %v3114 = vmul.f32 %v3098, 0.5
      %v3115 = vmul.f32 %v3099, 0.5
      %v3116 = vmul.f32 %v3100, 0.5
      %v3117 = vmul.f32 %v3101, 0.5
      %v3118 = vmul.f32 %v3102, 0.5
      %v3119 = vmul.f32 %v3103, 0.5
      %v3120 = vmul.f32 %v3025, %v3104
      %v3121 = vmul.f32 %v3027, %v3105
      %v3122 = vmul.f32 %v3029, %v3106
      %v3123 = vmul.f32 %v3031, %v3107
      %v3124 = vmul.f32 %v3033, %v3108
      %v3125 = vmul.f32 %v3035, %v3109
      %v3126 = vmul.f32 %v3037, %v3110
      %v3127 = vmul.f32 %v3039, %v3111
      %v3128 = vmul.f32 %v3041, %v3112
      %v3129 = vmul.f32 %v3043, %v3113
      %v3130 = vmul.f32 %v3045, %v3114
      %v3131 = vmul.f32 %v3047, %v3115
      %v3132 = vmul.f32 %v3049, %v3116
      %v3133 = vmul.f32 %v3051, %v3117
      %v3134 = vmul.f32 %v3053, %v3118
      %v3135 = vmul.f32 %v3055, %v3119
      %v3136 = vadd.f32 %v3120, %v1080
      %v3137 = vadd.f32 %v3121, %v1081
      %v3138 = vadd.f32 %v3122, %v1082
      %v3139 = vadd.f32 %v3123, %v1083
      %v3140 = vadd.f32 %v3124, %v1084
      %v3141 = vadd.f32 %v3125, %v1085
      %v3142 = vadd.f32 %v3126, %v1086
      %v3143 = vadd.f32 %v3127, %v1087
      %v3144 = vadd.f32 %v3128, %v1088
      %v3145 = vadd.f32 %v3129, %v1089
      %v3146 = vadd.f32 %v3130, %v1090
      %v3147 = vadd.f32 %v3131, %v1091
      %v3148 = vadd.f32 %v3132, %v1092
      %v3149 = vadd.f32 %v3133, %v1093
      %v3150 = vadd.f32 %v3134, %v1094
      %v3151 = vadd.f32 %v3135, %v1095
      %3152 = vrot.lane.b32.xlu0 %v986, 112
      %v3153 = vpop.permute.xlu0 %3152
      %3154 = vrot.lane.b32.xlu0 %v991, 112
      %v3155 = vpop.permute.xlu0 %3154
      %3156 = vrot.lane.b32.xlu0 %v996, 112
      %v3157 = vpop.permute.xlu0 %3156
      %3158 = vrot.lane.b32.xlu0 %v1001, 112
      %v3159 = vpop.permute.xlu0 %3158
      %3160 = vrot.lane.b32.xlu0 %v1006, 112
      %v3161 = vpop.permute.xlu0 %3160
      %3162 = vrot.lane.b32.xlu0 %v1011, 112
      %v3163 = vpop.permute.xlu0 %3162
      %3164 = vrot.lane.b32.xlu0 %v1016, 112
      %v3165 = vpop.permute.xlu0 %3164
      %3166 = vrot.lane.b32.xlu0 %v1021, 112
      %v3167 = vpop.permute.xlu0 %3166
      %3168 = vrot.lane.b32.xlu0 %v1026, 112
      %v3169 = vpop.permute.xlu0 %3168
      %3170 = vrot.lane.b32.xlu0 %v1031, 112
      %v3171 = vpop.permute.xlu0 %3170
      %3172 = vrot.lane.b32.xlu0 %v1036, 112
      %v3173 = vpop.permute.xlu0 %3172
      %3174 = vrot.lane.b32.xlu0 %v1041, 112
      %v3175 = vpop.permute.xlu0 %3174
      %3176 = vrot.lane.b32.xlu0 %v1046, 112
      %v3177 = vpop.permute.xlu0 %3176
      %3178 = vrot.lane.b32.xlu0 %v1051, 112
      %v3179 = vpop.permute.xlu0 %3178
      %3180 = vrot.lane.b32.xlu0 %v1056, 112
      %v3181 = vpop.permute.xlu0 %3180
      %3182 = vrot.lane.b32.xlu0 %v1061, 112
      %v3183 = vpop.permute.xlu0 %3182
      %3200 = vmatprep.subr.mxu0 0.0
      %3201 = vmatpush1.msra.mxu0 %v3153
      %3202 = vmatprep.subr.mxu0 0.0
      %3203 = vmatpush1.msra.mxu0 %v3155
      %3204 = vmatprep.subr.mxu0 0.0
      %3205 = vmatpush1.msra.mxu0 %v3157
      %3206 = vmatprep.subr.mxu0 0.0
      %3207 = vmatpush1.msra.mxu0 %v3159
      %3208 = vmatprep.subr.mxu0 0.0
      %3209 = vmatpush1.msra.mxu0 %v3161
      %3210 = vmatprep.subr.mxu0 0.0
      %3211 = vmatpush1.msra.mxu0 %v3163
      %3212 = vmatprep.subr.mxu0 0.0
      %3213 = vmatpush1.msra.mxu0 %v3165
      %3214 = vmatprep.subr.mxu0 0.0
      %3215 = vmatpush1.msra.mxu0 %v3167
      %3216 = vmatprep.subr.mxu0 0.0
      %3217 = vmatpush1.msra.mxu0 %v3169
      %3218 = vmatprep.subr.mxu0 0.0
      %3219 = vmatpush1.msra.mxu0 %v3171
      %3220 = vmatprep.subr.mxu0 0.0
      %3221 = vmatpush1.msra.mxu0 %v3173
      %3222 = vmatprep.subr.mxu0 0.0
      %3223 = vmatpush1.msra.mxu0 %v3175
      %3224 = vmatprep.subr.mxu0 0.0
      %3225 = vmatpush1.msra.mxu0 %v3177
      %3226 = vmatprep.subr.mxu0 0.0
      %3227 = vmatpush1.msra.mxu0 %v3179
      %3228 = vmatprep.subr.mxu0 0.0
      %3229 = vmatpush1.msra.mxu0 %v3181
      %3230 = vmatprep.subr.mxu0 0.0
      %3231 = vmatpush1.msra.mxu0 %v3183
      %3232 = vmatprep.subr.mxu0 0.0
      %3233 = vmatpush1.msra.mxu0 0.0
      %3234 = vmatprep.subr.mxu0 0.0
      %3235 = vmatpush1.msra.mxu0 0.0
      %3236 = vmatprep.subr.mxu0 0.0
      %3237 = vmatpush1.msra.mxu0 0.0
      %3238 = vmatprep.subr.mxu0 0.0
      %3239 = vmatpush1.msra.mxu0 0.0
      %3240 = vmatprep.subr.mxu0 0.0
      %3241 = vmatpush1.msra.mxu0 0.0
      %3242 = vmatprep.subr.mxu0 0.0
      %3243 = vmatpush1.msra.mxu0 0.0
      %3244 = vmatprep.subr.mxu0 0.0
      %3245 = vmatpush1.msra.mxu0 0.0
      %3246 = vmatprep.subr.mxu0 0.0
      %3247 = vmatpush1.msra.mxu0 0.0
      %3248 = vmatprep.subr.mxu0 0.0
      %3249 = vmatpush1.msra.mxu0 0.0
      %3250 = vmatprep.subr.mxu0 0.0
      %3251 = vmatpush1.msra.mxu0 0.0
      %3252 = vmatprep.subr.mxu0 0.0
      %3253 = vmatpush1.msra.mxu0 0.0
      %3254 = vmatprep.subr.mxu0 0.0
      %3255 = vmatpush1.msra.mxu0 0.0
      %3256 = vmatprep.subr.mxu0 0.0
      %3257 = vmatpush1.msra.mxu0 0.0
      %3258 = vmatprep.subr.mxu0 0.0
      %3259 = vmatpush1.msra.mxu0 0.0
      %3260 = vmatprep.subr.mxu0 0.0
      %3261 = vmatpush1.msra.mxu0 0.0
      %3262 = vmatprep.subr.mxu0 0.0
      %3263 = vmatpush1.msra.mxu0 0.0
      %3264 = vmatprep.mubr.f32.mxu0 0.0
      %3265 = vmatmul.mubr.f32.gmra.mrb[0].mxu0 %v3136
      %v3266 = vpop.f32.mrb[0].mxu0
      %v3267 = vadd.f32 0.0, %v3266
      %v3268 = vpop.f32.mrb[0].mxu0
      %3269 = vmatprep.mubr.f32.mxu0 0.0
      %3270 = vmatmul.mubr.f32.gmra.mrb[0].mxu0 %v3137
      %v3271 = vpop.f32.mrb[0].mxu0
      %v3272 = vadd.f32 0.0, %v3271
      %v3273 = vpop.f32.mrb[0].mxu0
      %3274 = vmatprep.mubr.f32.mxu0 0.0
      %3275 = vmatmul.mubr.f32.gmra.mrb[0].mxu0 %v3138
      %v3276 = vpop.f32.mrb[0].mxu0
      %v3277 = vadd.f32 0.0, %v3276
      %v3278 = vpop.f32.mrb[0].mxu0
      %3279 = vmatprep.mubr.f32.mxu0 0.0
      %3280 = vmatmul.mubr.f32.gmra.mrb[0].mxu0 %v3139
      %v3281 = vpop.f32.mrb[0].mxu0
      %v3282 = vadd.f32 0.0, %v3281
      %v3283 = vpop.f32.mrb[0].mxu0
      %3284 = vmatprep.mubr.f32.mxu0 0.0
      %3285 = vmatmul.mubr.f32.gmra.mrb[0].mxu0 %v3140
      %v3286 = vpop.f32.mrb[0].mxu0
      %v3287 = vadd.f32 0.0, %v3286
      %v3288 = vpop.f32.mrb[0].mxu0
      %3289 = vmatprep.mubr.f32.mxu0 0.0
      %3290 = vmatmul.mubr.f32.gmra.mrb[0].mxu0 %v3141
      %v3291 = vpop.f32.mrb[0].mxu0
      %v3292 = vadd.f32 0.0, %v3291
      %v3293 = vpop.f32.mrb[0].mxu0
      %3294 = vmatprep.mubr.f32.mxu0 0.0
      %3295 = vmatmul.mubr.f32.gmra.mrb[0].mxu0 %v3142
      %v3296 = vpop.f32.mrb[0].mxu0
      %v3297 = vadd.f32 0.0, %v3296
      %v3298 = vpop.f32.mrb[0].mxu0
      %3299 = vmatprep.mubr.f32.mxu0 0.0
      %3300 = vmatmul.mubr.f32.gmra.mrb[0].mxu0 %v3143
      %v3301 = vpop.f32.mrb[0].mxu0
      %v3302 = vadd.f32 0.0, %v3301
      %v3303 = vpop.f32.mrb[0].mxu0
      %3304 = vmatprep.mubr.f32.mxu0 0.0
      %3305 = vmatmul.mubr.f32.gmra.mrb[0].mxu0 %v3144
      %v3306 = vpop.f32.mrb[0].mxu0
      %v3307 = vadd.f32 0.0, %v3306
      %v3308 = vpop.f32.mrb[0].mxu0
      %3309 = vmatprep.mubr.f32.mxu0 0.0
      %3310 = vmatmul.mubr.f32.gmra.mrb[0].mxu0 %v3145
      %v3311 = vpop.f32.mrb[0].mxu0
      %v3312 = vadd.f32 0.0, %v3311
      %v3313 = vpop.f32.mrb[0].mxu0
      %3314 = vmatprep.mubr.f32.mxu0 0.0
      %3315 = vmatmul.mubr.f32.gmra.mrb[0].mxu0 %v3146
      %v3316 = vpop.f32.mrb[0].mxu0
      %v3317 = vadd.f32 0.0, %v3316
      %v3318 = vpop.f32.mrb[0].mxu0
      %3319 = vmatprep.mubr.f32.mxu0 0.0
      %3320 = vmatmul.mubr.f32.gmra.mrb[0].mxu0 %v3147
      %v3321 = vpop.f32.mrb[0].mxu0
      %v3322 = vadd.f32 0.0, %v3321
      %v3323 = vpop.f32.mrb[0].mxu0
      %3324 = vmatprep.mubr.f32.mxu0 0.0
      %3325 = vmatmul.mubr.f32.gmra.mrb[0].mxu0 %v3148
      %v3326 = vpop.f32.mrb[0].mxu0
      %v3327 = vadd.f32 0.0, %v3326
      %v3328 = vpop.f32.mrb[0].mxu0
      %3329 = vmatprep.mubr.f32.mxu0 0.0
      %3330 = vmatmul.mubr.f32.gmra.mrb[0].mxu0 %v3149
      %v3331 = vpop.f32.mrb[0].mxu0
      %v3332 = vadd.f32 0.0, %v3331
      %v3333 = vpop.f32.mrb[0].mxu0
      %3334 = vmatprep.mubr.f32.mxu0 0.0
      %3335 = vmatmul.mubr.f32.gmra.mrb[0].mxu0 %v3150
      %v3336 = vpop.f32.mrb[0].mxu0
      %v3337 = vadd.f32 0.0, %v3336
      %v3338 = vpop.f32.mrb[0].mxu0
      %3339 = vmatprep.mubr.f32.mxu0 0.0
      %3340 = vmatmul.mubr.f32.gmra.mrb[0].mxu0 %v3151
      %v3341 = vpop.f32.mrb[0].mxu0
      %v3342 = vadd.f32 0.0, %v3341
      %v3343 = vpop.f32.mrb[0].mxu0
      %3344 = vdwg.mxu0
      %v3346 = vsel %vm1096, %v3267, 0
      %v3349 = vsel %vm1096, %v3272, 0
      %v3352 = vsel %vm1096, %v3277, 0
      %v3355 = vsel %vm1096, %v3282, 0
      %v3358 = vsel %vm1096, %v3287, 0
      %v3361 = vsel %vm1096, %v3292, 0
      %v3364 = vsel %vm1096, %v3297, 0
      %v3367 = vsel %vm1096, %v3302, 0
      %v3370 = vsel %vm1096, %v3307, 0
      %v3373 = vsel %vm1096, %v3312, 0
      %v3376 = vsel %vm1096, %v3317, 0
      %v3379 = vsel %vm1096, %v3322, 0
      %v3382 = vsel %vm1096, %v3327, 0
      %v3385 = vsel %vm1096, %v3332, 0
      %v3388 = vsel %vm1096, %v3337, 0
      %v3391 = vsel %vm1096, %v3342, 0
      %3393 = vmatprep.subr.mxu0 0.0
      %3394 = vmatpush1.msra.mxu0 %v393
      %3395 = vmatprep.subr.mxu0 0.0
      %3396 = vmatpush1.msra.mxu0 0.0
      %3397 = vmatprep.subr.mxu0 0.0
      %3398 = vmatpush1.msra.mxu0 0.0
      %3399 = vmatprep.subr.mxu0 0.0
      %3400 = vmatpush1.msra.mxu0 0.0
      %3401 = vmatprep.subr.mxu0 0.0
      %3402 = vmatpush1.msra.mxu0 0.0
      %3403 = vmatprep.subr.mxu0 0.0
      %3404 = vmatpush1.msra.mxu0 0.0
      %3405 = vmatprep.subr.mxu0 0.0
      %3406 = vmatpush1.msra.mxu0 0.0
      %3407 = vmatprep.subr.mxu0 0.0
      %3408 = vmatpush1.msra.mxu0 0.0
      %3409 = vmatprep.subr.mxu0 0.0
      %3410 = vmatpush1.msra.mxu0 0.0
      %3411 = vmatprep.subr.mxu0 0.0
      %3412 = vmatpush1.msra.mxu0 0.0
      %3413 = vmatprep.subr.mxu0 0.0
      %3414 = vmatpush1.msra.mxu0 0.0
      %3415 = vmatprep.subr.mxu0 0.0
      %3416 = vmatpush1.msra.mxu0 0.0
      %3417 = vmatprep.subr.mxu0 0.0
      %3418 = vmatpush1.msra.mxu0 0.0
      %3419 = vmatprep.subr.mxu0 0.0
      %3420 = vmatpush1.msra.mxu0 0.0
      %3421 = vmatprep.subr.mxu0 0.0
      %3422 = vmatpush1.msra.mxu0 0.0
      %3423 = vmatprep.subr.mxu0 0.0
      %3424 = vmatpush1.msra.mxu0 0.0
      %3425 = vmatprep.subr.mxu0 0.0
      %3426 = vmatpush1.msra.mxu0 0.0
      %3427 = vmatprep.subr.mxu0 0.0
      %3428 = vmatpush1.msra.mxu0 0.0
      %3429 = vmatprep.subr.mxu0 0.0
      %3430 = vmatpush1.msra.mxu0 0.0
      %3431 = vmatprep.subr.mxu0 0.0
      %3432 = vmatpush1.msra.mxu0 0.0
      %3433 = vmatprep.subr.mxu0 0.0
      %3434 = vmatpush1.msra.mxu0 0.0
      %3435 = vmatprep.subr.mxu0 0.0
      %3436 = vmatpush1.msra.mxu0 0.0
      %3437 = vmatprep.subr.mxu0 0.0
      %3438 = vmatpush1.msra.mxu0 0.0
      %3439 = vmatprep.subr.mxu0 0.0
      %3440 = vmatpush1.msra.mxu0 0.0
      %3441 = vmatprep.subr.mxu0 0.0
      %3442 = vmatpush1.msra.mxu0 0.0
      %3443 = vmatprep.subr.mxu0 0.0
      %3444 = vmatpush1.msra.mxu0 0.0
      %3445 = vmatprep.subr.mxu0 0.0
      %3446 = vmatpush1.msra.mxu0 0.0
      %3447 = vmatprep.subr.mxu0 0.0
      %3448 = vmatpush1.msra.mxu0 0.0
      %3449 = vmatprep.subr.mxu0 0.0
      %3450 = vmatpush1.msra.mxu0 0.0
      %3451 = vmatprep.subr.mxu0 0.0
      %3452 = vmatpush1.msra.mxu0 0.0
      %3453 = vmatprep.subr.mxu0 0.0
      %3454 = vmatpush1.msra.mxu0 0.0
      %3455 = vmatprep.subr.mxu0 0.0
      %3456 = vmatpush1.msra.mxu0 0.0
      %3457 = vmatprep.mubr.f32.mxu0 0.0
      %3458 = vmatmul.mubr.f32.gmra.mrb[0].mxu0 %v3346
      %v3459 = vpop.f32.mrb[0].mxu0
      %v3460 = vadd.f32 0.0, %v3459
      %v3461 = vpop.f32.mrb[0].mxu0
      %3462 = vmatprep.mubr.f32.mxu0 0.0
      %3463 = vmatmul.mubr.f32.gmra.mrb[0].mxu0 %v3349
      %v3464 = vpop.f32.mrb[0].mxu0
      %v3465 = vadd.f32 0.0, %v3464
      %v3466 = vpop.f32.mrb[0].mxu0
      %3467 = vmatprep.mubr.f32.mxu0 0.0
      %3468 = vmatmul.mubr.f32.gmra.mrb[0].mxu0 %v3352
      %v3469 = vpop.f32.mrb[0].mxu0
      %v3470 = vadd.f32 0.0, %v3469
      %v3471 = vpop.f32.mrb[0].mxu0
      %3472 = vmatprep.mubr.f32.mxu0 0.0
      %3473 = vmatmul.mubr.f32.gmra.mrb[0].mxu0 %v3355
      %v3474 = vpop.f32.mrb[0].mxu0
      %v3475 = vadd.f32 0.0, %v3474
      %v3476 = vpop.f32.mrb[0].mxu0
      %3477 = vmatprep.mubr.f32.mxu0 0.0
      %3478 = vmatmul.mubr.f32.gmra.mrb[0].mxu0 %v3358
      %v3479 = vpop.f32.mrb[0].mxu0
      %v3480 = vadd.f32 0.0, %v3479
      %v3481 = vpop.f32.mrb[0].mxu0
      %3482 = vmatprep.mubr.f32.mxu0 0.0
      %3483 = vmatmul.mubr.f32.gmra.mrb[0].mxu0 %v3361
      %v3484 = vpop.f32.mrb[0].mxu0
      %v3485 = vadd.f32 0.0, %v3484
      %v3486 = vpop.f32.mrb[0].mxu0
      %3487 = vmatprep.mubr.f32.mxu0 0.0
      %3488 = vmatmul.mubr.f32.gmra.mrb[0].mxu0 %v3364
      %v3489 = vpop.f32.mrb[0].mxu0
      %v3490 = vadd.f32 0.0, %v3489
      %v3491 = vpop.f32.mrb[0].mxu0
      %3492 = vmatprep.mubr.f32.mxu0 0.0
      %3493 = vmatmul.mubr.f32.gmra.mrb[0].mxu0 %v3367
      %v3494 = vpop.f32.mrb[0].mxu0
      %v3495 = vadd.f32 0.0, %v3494
      %v3496 = vpop.f32.mrb[0].mxu0
      %3497 = vmatprep.mubr.f32.mxu0 0.0
      %3498 = vmatmul.mubr.f32.gmra.mrb[0].mxu0 %v3370
      %v3499 = vpop.f32.mrb[0].mxu0
      %v3500 = vadd.f32 0.0, %v3499
      %v3501 = vpop.f32.mrb[0].mxu0
      %3502 = vmatprep.mubr.f32.mxu0 0.0
      %3503 = vmatmul.mubr.f32.gmra.mrb[0].mxu0 %v3373
      %v3504 = vpop.f32.mrb[0].mxu0
      %v3505 = vadd.f32 0.0, %v3504
      %v3506 = vpop.f32.mrb[0].mxu0
      %3507 = vmatprep.mubr.f32.mxu0 0.0
      %3508 = vmatmul.mubr.f32.gmra.mrb[0].mxu0 %v3376
      %v3509 = vpop.f32.mrb[0].mxu0
      %v3510 = vadd.f32 0.0, %v3509
      %v3511 = vpop.f32.mrb[0].mxu0
      %3512 = vmatprep.mubr.f32.mxu0 0.0
      %3513 = vmatmul.mubr.f32.gmra.mrb[0].mxu0 %v3379
      %v3514 = vpop.f32.mrb[0].mxu0
      %v3515 = vadd.f32 0.0, %v3514
      %v3516 = vpop.f32.mrb[0].mxu0
      %3517 = vmatprep.mubr.f32.mxu0 0.0
      %3518 = vmatmul.mubr.f32.gmra.mrb[0].mxu0 %v3382
      %v3519 = vpop.f32.mrb[0].mxu0
      %v3520 = vadd.f32 0.0, %v3519
      %v3521 = vpop.f32.mrb[0].mxu0
      %3522 = vmatprep.mubr.f32.mxu0 0.0
      %3523 = vmatmul.mubr.f32.gmra.mrb[0].mxu0 %v3385
      %v3524 = vpop.f32.mrb[0].mxu0
      %v3525 = vadd.f32 0.0, %v3524
      %v3526 = vpop.f32.mrb[0].mxu0
      %3527 = vmatprep.mubr.f32.mxu0 0.0
      %3528 = vmatmul.mubr.f32.gmra.mrb[0].mxu0 %v3388
      %v3529 = vpop.f32.mrb[0].mxu0
      %v3530 = vadd.f32 0.0, %v3529
      %v3531 = vpop.f32.mrb[0].mxu0
      %3532 = vmatprep.mubr.f32.mxu0 0.0
      %3533 = vmatmul.mubr.f32.gmra.mrb[0].mxu0 %v3391
      %v3534 = vpop.f32.mrb[0].mxu0
      %v3535 = vadd.f32 0.0, %v3534
      %v3536 = vpop.f32.mrb[0].mxu0
      %3537 = vdwg.mxu0
      %v3538 = vadd.f32 %v2625, %v3460
      %v3539 = vadd.f32 %v2630, %v3465
      %v3540 = vadd.f32 %v2635, %v3470
      %v3541 = vadd.f32 %v2640, %v3475
      %v3542 = vadd.f32 %v2645, %v3480
      %v3543 = vadd.f32 %v2650, %v3485
      %v3544 = vadd.f32 %v2655, %v3490
      %v3545 = vadd.f32 %v2660, %v3495
      %v3546 = vadd.f32 %v2665, %v3500
      %v3547 = vadd.f32 %v2670, %v3505
      %v3548 = vadd.f32 %v2675, %v3510
      %v3549 = vadd.f32 %v2680, %v3515
      %v3550 = vadd.f32 %v2685, %v3520
      %v3551 = vadd.f32 %v2690, %v3525
      %v3552 = vadd.f32 %v2695, %v3530
      %v3553 = vadd.f32 %v2700, %v3535
      %3554 = vrot.lane.b32.xlu0 %v650, 104
      %v3555 = vpop.permute.xlu0 %3554
      %3556 = vrot.lane.b32.xlu0 %v651, 104
      %v3557 = vpop.permute.xlu0 %3556
      %3558 = vrot.lane.b32.xlu0 %v652, 104
      %v3559 = vpop.permute.xlu0 %3558
      %3560 = vrot.lane.b32.xlu0 %v653, 104
      %v3561 = vpop.permute.xlu0 %3560
      %3562 = vrot.lane.b32.xlu0 %v654, 104
      %v3563 = vpop.permute.xlu0 %3562
      %3564 = vrot.lane.b32.xlu0 %v655, 104
      %v3565 = vpop.permute.xlu0 %3564
      %3566 = vrot.lane.b32.xlu0 %v656, 104
      %v3567 = vpop.permute.xlu0 %3566
      %3568 = vrot.lane.b32.xlu0 %v657, 104
      %v3569 = vpop.permute.xlu0 %3568
      %3570 = vrot.lane.b32.xlu0 %v658, 104
      %v3571 = vpop.permute.xlu0 %3570
      %3572 = vrot.lane.b32.xlu0 %v659, 104
      %v3573 = vpop.permute.xlu0 %3572
      %3574 = vrot.lane.b32.xlu0 %v660, 104
      %v3575 = vpop.permute.xlu0 %3574
      %3576 = vrot.lane.b32.xlu0 %v661, 104
      %v3577 = vpop.permute.xlu0 %3576
      %3578 = vrot.lane.b32.xlu0 %v662, 104
      %v3579 = vpop.permute.xlu0 %3578
      %3580 = vrot.lane.b32.xlu0 %v663, 104
      %v3581 = vpop.permute.xlu0 %3580
      %3582 = vrot.lane.b32.xlu0 %v664, 104
      %v3583 = vpop.permute.xlu0 %3582
      %3584 = vrot.lane.b32.xlu0 %v665, 104
      %v3585 = vpop.permute.xlu0 %3584
      %3586 = vrot.lane.b32.xlu0 %v787, 104
      %v3587 = vpop.permute.xlu0 %3586
      %3588 = vrot.lane.b32.xlu0 %v792, 104
      %v3589 = vpop.permute.xlu0 %3588
      %3590 = vrot.lane.b32.xlu0 %v797, 104
      %v3591 = vpop.permute.xlu0 %3590
      %3592 = vrot.lane.b32.xlu0 %v802, 104
      %v3593 = vpop.permute.xlu0 %3592
      %3594 = vrot.lane.b32.xlu0 %v807, 104
      %v3595 = vpop.permute.xlu0 %3594
      %3596 = vrot.lane.b32.xlu0 %v812, 104
      %v3597 = vpop.permute.xlu0 %3596
      %3598 = vrot.lane.b32.xlu0 %v817, 104
      %v3599 = vpop.permute.xlu0 %3598
      %3600 = vrot.lane.b32.xlu0 %v822, 104
      %v3601 = vpop.permute.xlu0 %3600
      %3602 = vrot.lane.b32.xlu0 %v827, 104
      %v3603 = vpop.permute.xlu0 %3602
      %3604 = vrot.lane.b32.xlu0 %v832, 104
      %v3605 = vpop.permute.xlu0 %3604
      %3606 = vrot.lane.b32.xlu0 %v837, 104
      %v3607 = vpop.permute.xlu0 %3606
      %3608 = vrot.lane.b32.xlu0 %v842, 104
      %v3609 = vpop.permute.xlu0 %3608
      %3610 = vrot.lane.b32.xlu0 %v847, 104
      %v3611 = vpop.permute.xlu0 %3610
      %3612 = vrot.lane.b32.xlu0 %v852, 104
      %v3613 = vpop.permute.xlu0 %3612
      %3614 = vrot.lane.b32.xlu0 %v857, 104
      %v3615 = vpop.permute.xlu0 %3614
      %3616 = vrot.lane.b32.xlu0 %v862, 104
      %v3617 = vpop.permute.xlu0 %3616
      %v3618 = vsel %vm1096, %v3555, 0
      %v3620 = vsel %vm1096, %v3557, 0
      %v3622 = vsel %vm1096, %v3559, 0
      %v3624 = vsel %vm1096, %v3561, 0
      %v3626 = vsel %vm1096, %v3563, 0
      %v3628 = vsel %vm1096, %v3565, 0
      %v3630 = vsel %vm1096, %v3567, 0
      %v3632 = vsel %vm1096, %v3569, 0
      %v3634 = vsel %vm1096, %v3571, 0
      %v3636 = vsel %vm1096, %v3573, 0
      %v3638 = vsel %vm1096, %v3575, 0
      %v3640 = vsel %vm1096, %v3577, 0
      %v3642 = vsel %vm1096, %v3579, 0
      %v3644 = vsel %vm1096, %v3581, 0
      %v3646 = vsel %vm1096, %v3583, 0
      %v3648 = vsel %vm1096, %v3585, 0
      %v3650 = vsel %vm1096, %v3587, 0
      %v3652 = vsel %vm1096, %v3589, 0
      %v3654 = vsel %vm1096, %v3591, 0
      %v3656 = vsel %vm1096, %v3593, 0
      %v3658 = vsel %vm1096, %v3595, 0
      %v3660 = vsel %vm1096, %v3597, 0
      %v3662 = vsel %vm1096, %v3599, 0
      %v3664 = vsel %vm1096, %v3601, 0
      %v3666 = vsel %vm1096, %v3603, 0
      %v3668 = vsel %vm1096, %v3605, 0
      %v3670 = vsel %vm1096, %v3607, 0
      %v3672 = vsel %vm1096, %v3609, 0
      %v3674 = vsel %vm1096, %v3611, 0
      %v3676 = vsel %vm1096, %v3613, 0
      %v3678 = vsel %vm1096, %v3615, 0
      %v3680 = vsel %vm1096, %v3617, 0
      %3682 = vmatprep.subr.mxu0 0.0
      %3683 = vmatpush1.xpose.msra.mxu0 %v3650
      %3684 = vmatprep.subr.mxu0 0.0
      %3685 = vmatpush1.xpose.msra.mxu0 %v3652
      %3686 = vmatprep.subr.mxu0 0.0
      %3687 = vmatpush1.xpose.msra.mxu0 %v3654
      %3688 = vmatprep.subr.mxu0 0.0
      %3689 = vmatpush1.xpose.msra.mxu0 %v3656
      %3690 = vmatprep.subr.mxu0 0.0
      %3691 = vmatpush1.xpose.msra.mxu0 %v3658
      %3692 = vmatprep.subr.mxu0 0.0
      %3693 = vmatpush1.xpose.msra.mxu0 %v3660
      %3694 = vmatprep.subr.mxu0 0.0
      %3695 = vmatpush1.xpose.msra.mxu0 %v3662
      %3696 = vmatprep.subr.mxu0 0.0
      %3697 = vmatpush1.xpose.msra.mxu0 %v3664
      %3698 = vmatprep.subr.mxu0 0.0
      %3699 = vmatpush1.xpose.msra.mxu0 %v3666
      %3700 = vmatprep.subr.mxu0 0.0
      %3701 = vmatpush1.xpose.msra.mxu0 %v3668
      %3702 = vmatprep.subr.mxu0 0.0
      %3703 = vmatpush1.xpose.msra.mxu0 %v3670
      %3704 = vmatprep.subr.mxu0 0.0
      %3705 = vmatpush1.xpose.msra.mxu0 %v3672
      %3706 = vmatprep.subr.mxu0 0.0
      %3707 = vmatpush1.xpose.msra.mxu0 %v3674
      %3708 = vmatprep.subr.mxu0 0.0
      %3709 = vmatpush1.xpose.msra.mxu0 %v3676
      %3710 = vmatprep.subr.mxu0 0.0
      %3711 = vmatpush1.xpose.msra.mxu0 %v3678
      %3712 = vmatprep.subr.mxu0 0.0
      %3713 = vmatpush1.xpose.msra.mxu0 %v3680
      %3714 = vmatprep.subr.mxu0 0.0
      %3715 = vmatpush1.xpose.msra.mxu0 0.0
      %3716 = vmatprep.subr.mxu0 0.0
      %3717 = vmatpush1.xpose.msra.mxu0 0.0
      %3718 = vmatprep.subr.mxu0 0.0
      %3719 = vmatpush1.xpose.msra.mxu0 0.0
      %3720 = vmatprep.subr.mxu0 0.0
      %3721 = vmatpush1.xpose.msra.mxu0 0.0
      %3722 = vmatprep.subr.mxu0 0.0
      %3723 = vmatpush1.xpose.msra.mxu0 0.0
      %3724 = vmatprep.subr.mxu0 0.0
      %3725 = vmatpush1.xpose.msra.mxu0 0.0
      %3726 = vmatprep.subr.mxu0 0.0
      %3727 = vmatpush1.xpose.msra.mxu0 0.0
      %3728 = vmatprep.subr.mxu0 0.0
      %3729 = vmatpush1.xpose.msra.mxu0 0.0
      %3730 = vmatprep.subr.mxu0 0.0
      %3731 = vmatpush1.xpose.msra.mxu0 0.0
      %3732 = vmatprep.subr.mxu0 0.0
      %3733 = vmatpush1.xpose.msra.mxu0 0.0
      %3734 = vmatprep.subr.mxu0 0.0
      %3735 = vmatpush1.xpose.msra.mxu0 0.0
      %3736 = vmatprep.subr.mxu0 0.0
      %3737 = vmatpush1.xpose.msra.mxu0 0.0
      %3738 = vmatprep.subr.mxu0 0.0
      %3739 = vmatpush1.xpose.msra.mxu0 0.0
      %3740 = vmatprep.subr.mxu0 0.0
      %3741 = vmatpush1.xpose.msra.mxu0 0.0
      %3742 = vmatprep.subr.mxu0 0.0
      %3743 = vmatpush1.xpose.msra.mxu0 0.0
      %3744 = vmatprep.subr.mxu0 0.0
      %3745 = vmatpush1.xpose.msra.mxu0 0.0
      %3746 = vmatprep.mubr.f32.mxu0 0.0
      %3747 = vmatmul.mubr.f32.gmra.mrb[0].mxu0 %v3618
      %v3748 = vpop.f32.mrb[0].mxu0
      %v3749 = vadd.f32 %v1064, %v3748
      %v3750 = vpop.f32.mrb[0].mxu0
      %3751 = vmatprep.mubr.f32.mxu0 0.0
      %3752 = vmatmul.mubr.f32.gmra.mrb[0].mxu0 %v3620
      %v3753 = vpop.f32.mrb[0].mxu0
      %v3754 = vadd.f32 %v1065, %v3753
      %v3755 = vpop.f32.mrb[0].mxu0
      %3756 = vmatprep.mubr.f32.mxu0 0.0
      %3757 = vmatmul.mubr.f32.gmra.mrb[0].mxu0 %v3622
      %v3758 = vpop.f32.mrb[0].mxu0
      %v3759 = vadd.f32 %v1066, %v3758
      %v3760 = vpop.f32.mrb[0].mxu0
      %3761 = vmatprep.mubr.f32.mxu0 0.0
      %3762 = vmatmul.mubr.f32.gmra.mrb[0].mxu0 %v3624
      %v3763 = vpop.f32.mrb[0].mxu0
      %v3764 = vadd.f32 %v1067, %v3763
      %v3765 = vpop.f32.mrb[0].mxu0
      %3766 = vmatprep.mubr.f32.mxu0 0.0
      %3767 = vmatmul.mubr.f32.gmra.mrb[0].mxu0 %v3626
      %v3768 = vpop.f32.mrb[0].mxu0
      %v3769 = vadd.f32 %v1068, %v3768
      %v3770 = vpop.f32.mrb[0].mxu0
      %3771 = vmatprep.mubr.f32.mxu0 0.0
      %3772 = vmatmul.mubr.f32.gmra.mrb[0].mxu0 %v3628
      %v3773 = vpop.f32.mrb[0].mxu0
      %v3774 = vadd.f32 %v1069, %v3773
      %v3775 = vpop.f32.mrb[0].mxu0
      %3776 = vmatprep.mubr.f32.mxu0 0.0
      %3777 = vmatmul.mubr.f32.gmra.mrb[0].mxu0 %v3630
      %v3778 = vpop.f32.mrb[0].mxu0
      %v3779 = vadd.f32 %v1070, %v3778
      %v3780 = vpop.f32.mrb[0].mxu0
      %3781 = vmatprep.mubr.f32.mxu0 0.0
      %3782 = vmatmul.mubr.f32.gmra.mrb[0].mxu0 %v3632
      %v3783 = vpop.f32.mrb[0].mxu0
      %v3784 = vadd.f32 %v1071, %v3783
      %v3785 = vpop.f32.mrb[0].mxu0
      %3786 = vmatprep.mubr.f32.mxu0 0.0
      %3787 = vmatmul.mubr.f32.gmra.mrb[0].mxu0 %v3634
      %v3788 = vpop.f32.mrb[0].mxu0
      %v3789 = vadd.f32 %v1072, %v3788
      %v3790 = vpop.f32.mrb[0].mxu0
      %3791 = vmatprep.mubr.f32.mxu0 0.0
      %3792 = vmatmul.mubr.f32.gmra.mrb[0].mxu0 %v3636
      %v3793 = vpop.f32.mrb[0].mxu0
      %v3794 = vadd.f32 %v1073, %v3793
      %v3795 = vpop.f32.mrb[0].mxu0
      %3796 = vmatprep.mubr.f32.mxu0 0.0
      %3797 = vmatmul.mubr.f32.gmra.mrb[0].mxu0 %v3638
      %v3798 = vpop.f32.mrb[0].mxu0
      %v3799 = vadd.f32 %v1074, %v3798
      %v3800 = vpop.f32.mrb[0].mxu0
      %3801 = vmatprep.mubr.f32.mxu0 0.0
      %3802 = vmatmul.mubr.f32.gmra.mrb[0].mxu0 %v3640
      %v3803 = vpop.f32.mrb[0].mxu0
      %v3804 = vadd.f32 %v1075, %v3803
      %v3805 = vpop.f32.mrb[0].mxu0
      %3806 = vmatprep.mubr.f32.mxu0 0.0
      %3807 = vmatmul.mubr.f32.gmra.mrb[0].mxu0 %v3642
      %v3808 = vpop.f32.mrb[0].mxu0
      %v3809 = vadd.f32 %v1076, %v3808
      %v3810 = vpop.f32.mrb[0].mxu0
      %3811 = vmatprep.mubr.f32.mxu0 0.0
      %3812 = vmatmul.mubr.f32.gmra.mrb[0].mxu0 %v3644
      %v3813 = vpop.f32.mrb[0].mxu0
      %v3814 = vadd.f32 %v1077, %v3813
      %v3815 = vpop.f32.mrb[0].mxu0
      %3816 = vmatprep.mubr.f32.mxu0 0.0
      %3817 = vmatmul.mubr.f32.gmra.mrb[0].mxu0 %v3646
      %v3818 = vpop.f32.mrb[0].mxu0
      %v3819 = vadd.f32 %v1078, %v3818
      %v3820 = vpop.f32.mrb[0].mxu0
      %3821 = vmatprep.mubr.f32.mxu0 0.0
      %3822 = vmatmul.mubr.f32.gmra.mrb[0].mxu0 %v3648
      %v3823 = vpop.f32.mrb[0].mxu0
      %v3824 = vadd.f32 %v1079, %v3823
      %v3825 = vpop.f32.mrb[0].mxu0
      %3826 = vdwg.mxu0
      %3827 = vmax.xlane.f32.xlu0 %v3749
      %v3828 = vpop.xlane.xlu0 %3827
      %3829 = vmax.xlane.f32.xlu0 %v3754
      %v3830 = vpop.xlane.xlu0 %3829
      %3831 = vmax.xlane.f32.xlu0 %v3759
      %v3832 = vpop.xlane.xlu0 %3831
      %3833 = vmax.xlane.f32.xlu0 %v3764
      %v3834 = vpop.xlane.xlu0 %3833
      %3835 = vmax.xlane.f32.xlu0 %v3769
      %v3836 = vpop.xlane.xlu0 %3835
      %3837 = vmax.xlane.f32.xlu0 %v3774
      %v3838 = vpop.xlane.xlu0 %3837
      %3839 = vmax.xlane.f32.xlu0 %v3779
      %v3840 = vpop.xlane.xlu0 %3839
      %3841 = vmax.xlane.f32.xlu0 %v3784
      %v3842 = vpop.xlane.xlu0 %3841
      %3843 = vmax.xlane.f32.xlu0 %v3789
      %v3844 = vpop.xlane.xlu0 %3843
      %3845 = vmax.xlane.f32.xlu0 %v3794
      %v3846 = vpop.xlane.xlu0 %3845
      %3847 = vmax.xlane.f32.xlu0 %v3799
      %v3848 = vpop.xlane.xlu0 %3847
      %3849 = vmax.xlane.f32.xlu0 %v3804
      %v3850 = vpop.xlane.xlu0 %3849
      %3851 = vmax.xlane.f32.xlu0 %v3809
      %v3852 = vpop.xlane.xlu0 %3851
      %3853 = vmax.xlane.f32.xlu0 %v3814
      %v3854 = vpop.xlane.xlu0 %3853
      %3855 = vmax.xlane.f32.xlu0 %v3819
      %v3856 = vpop.xlane.xlu0 %3855
      %3857 = vmax.xlane.f32.xlu0 %v3824
      %v3858 = vpop.xlane.xlu0 %3857
      %v3859 = vsub.f32 %v3749, %v3828
      %v3860 = vsub.f32 %v3754, %v3830
      %v3861 = vsub.f32 %v3759, %v3832
      %v3862 = vsub.f32 %v3764, %v3834
      %v3863 = vsub.f32 %v3769, %v3836
      %v3864 = vsub.f32 %v3774, %v3838
      %v3865 = vsub.f32 %v3779, %v3840
      %v3866 = vsub.f32 %v3784, %v3842
      %v3867 = vsub.f32 %v3789, %v3844
      %v3868 = vsub.f32 %v3794, %v3846
      %v3869 = vsub.f32 %v3799, %v3848
      %v3870 = vsub.f32 %v3804, %v3850
      %v3871 = vsub.f32 %v3809, %v3852
      %v3872 = vsub.f32 %v3814, %v3854
      %v3873 = vsub.f32 %v3819, %v3856
      %v3874 = vsub.f32 %v3824, %v3858
      %v3875 = vmul.f32 %v3859, 1.442695
      %v3876 = vpow.pop %v3875
      %v3877 = vmul.f32 %v3860, 1.442695
      %v3878 = vpow.pop %v3877
      %v3879 = vmul.f32 %v3861, 1.442695
      %v3880 = vpow.pop %v3879
      %v3881 = vmul.f32 %v3862, 1.442695
      %v3882 = vpow.pop %v3881
      %v3883 = vmul.f32 %v3863, 1.442695
      %v3884 = vpow.pop %v3883
      %v3885 = vmul.f32 %v3864, 1.442695
      %v3886 = vpow.pop %v3885
      %v3887 = vmul.f32 %v3865, 1.442695
      %v3888 = vpow.pop %v3887
      %v3889 = vmul.f32 %v3866, 1.442695
      %v3890 = vpow.pop %v3889
      %v3891 = vmul.f32 %v3867, 1.442695
      %v3892 = vpow.pop %v3891
      %v3893 = vmul.f32 %v3868, 1.442695
      %v3894 = vpow.pop %v3893
      %v3895 = vmul.f32 %v3869, 1.442695
      %v3896 = vpow.pop %v3895
      %v3897 = vmul.f32 %v3870, 1.442695
      %v3898 = vpow.pop %v3897
      %v3899 = vmul.f32 %v3871, 1.442695
      %v3900 = vpow.pop %v3899
      %v3901 = vmul.f32 %v3872, 1.442695
      %v3902 = vpow.pop %v3901
      %v3903 = vmul.f32 %v3873, 1.442695
      %v3904 = vpow.pop %v3903
      %v3905 = vmul.f32 %v3874, 1.442695
      %v3906 = vpow.pop %v3905
      %3907 = vadd.xlane.f32.xlu0 %v3876
      %v3908 = vpop.xlane.xlu0 %3907
      %3909 = vadd.xlane.f32.xlu0 %v3878
      %v3910 = vpop.xlane.xlu0 %3909
      %3911 = vadd.xlane.f32.xlu0 %v3880
      %v3912 = vpop.xlane.xlu0 %3911
      %3913 = vadd.xlane.f32.xlu0 %v3882
      %v3914 = vpop.xlane.xlu0 %3913
      %3915 = vadd.xlane.f32.xlu0 %v3884
      %v3916 = vpop.xlane.xlu0 %3915
      %3917 = vadd.xlane.f32.xlu0 %v3886
      %v3918 = vpop.xlane.xlu0 %3917
      %3919 = vadd.xlane.f32.xlu0 %v3888
      %v3920 = vpop.xlane.xlu0 %3919
      %3921 = vadd.xlane.f32.xlu0 %v3890
      %v3922 = vpop.xlane.xlu0 %3921
      %3923 = vadd.xlane.f32.xlu0 %v3892
      %v3924 = vpop.xlane.xlu0 %3923
      %3925 = vadd.xlane.f32.xlu0 %v3894
      %v3926 = vpop.xlane.xlu0 %3925
      %3927 = vadd.xlane.f32.xlu0 %v3896
      %v3928 = vpop.xlane.xlu0 %3927
      %3929 = vadd.xlane.f32.xlu0 %v3898
      %v3930 = vpop.xlane.xlu0 %3929
      %3931 = vadd.xlane.f32.xlu0 %v3900
      %v3932 = vpop.xlane.xlu0 %3931
      %3933 = vadd.xlane.f32.xlu0 %v3902
      %v3934 = vpop.xlane.xlu0 %3933
      %3935 = vadd.xlane.f32.xlu0 %v3904
      %v3936 = vpop.xlane.xlu0 %3935
      %3937 = vadd.xlane.f32.xlu0 %v3906
      %v3938 = vpop.xlane.xlu0 %3937
      %v3939 = vrcp.pop %v3908
      %v3940 = vrcp.pop %v3910
      %v3941 = vrcp.pop %v3912
      %v3942 = vrcp.pop %v3914
      %v3943 = vrcp.pop %v3916
      %v3944 = vrcp.pop %v3918
      %v3945 = vrcp.pop %v3920
      %v3946 = vrcp.pop %v3922
      %v3947 = vrcp.pop %v3924
      %v3948 = vrcp.pop %v3926
      %v3949 = vrcp.pop %v3928
      %v3950 = vrcp.pop %v3930
      %v3951 = vrcp.pop %v3932
      %v3952 = vrcp.pop %v3934
      %v3953 = vrcp.pop %v3936
      %v3954 = vrcp.pop %v3938
      %v3955 = vmul.f32 %v3939, 0.5
      %v3956 = vmul.f32 %v3940, 0.5
      %v3957 = vmul.f32 %v3941, 0.5
      %v3958 = vmul.f32 %v3942, 0.5
      %v3959 = vmul.f32 %v3943, 0.5
      %v3960 = vmul.f32 %v3944, 0.5
      %v3961 = vmul.f32 %v3945, 0.5
      %v3962 = vmul.f32 %v3946, 0.5
      %v3963 = vmul.f32 %v3947, 0.5
      %v3964 = vmul.f32 %v3948, 0.5
      %v3965 = vmul.f32 %v3949, 0.5
      %v3966 = vmul.f32 %v3950, 0.5
      %v3967 = vmul.f32 %v3951, 0.5
      %v3968 = vmul.f32 %v3952, 0.5
      %v3969 = vmul.f32 %v3953, 0.5
      %v3970 = vmul.f32 %v3954, 0.5
      %v3971 = vmul.f32 %v3876, %v3955
      %v3972 = vmul.f32 %v3878, %v3956
      %v3973 = vmul.f32 %v3880, %v3957
      %v3974 = vmul.f32 %v3882, %v3958
      %v3975 = vmul.f32 %v3884, %v3959
      %v3976 = vmul.f32 %v3886, %v3960
      %v3977 = vmul.f32 %v3888, %v3961
      %v3978 = vmul.f32 %v3890, %v3962
      %v3979 = vmul.f32 %v3892, %v3963
      %v3980 = vmul.f32 %v3894, %v3964
      %v3981 = vmul.f32 %v3896, %v3965
      %v3982 = vmul.f32 %v3898, %v3966
      %v3983 = vmul.f32 %v3900, %v3967
      %v3984 = vmul.f32 %v3902, %v3968
      %v3985 = vmul.f32 %v3904, %v3969
      %v3986 = vmul.f32 %v3906, %v3970
      %v3987 = vadd.f32 %v3971, %v1080
      %v3988 = vadd.f32 %v3972, %v1081
      %v3989 = vadd.f32 %v3973, %v1082
      %v3990 = vadd.f32 %v3974, %v1083
      %v3991 = vadd.f32 %v3975, %v1084
      %v3992 = vadd.f32 %v3976, %v1085
      %v3993 = vadd.f32 %v3977, %v1086
      %v3994 = vadd.f32 %v3978, %v1087
      %v3995 = vadd.f32 %v3979, %v1088
      %v3996 = vadd.f32 %v3980, %v1089
      %v3997 = vadd.f32 %v3981, %v1090
      %v3998 = vadd.f32 %v3982, %v1091
      %v3999 = vadd.f32 %v3983, %v1092
      %v4000 = vadd.f32 %v3984, %v1093
      %v4001 = vadd.f32 %v3985, %v1094
      %v4002 = vadd.f32 %v3986, %v1095
      %4003 = vrot.lane.b32.xlu0 %v986, 104
      %v4004 = vpop.permute.xlu0 %4003
      %4005 = vrot.lane.b32.xlu0 %v991, 104
      %v4006 = vpop.permute.xlu0 %4005
      %4007 = vrot.lane.b32.xlu0 %v996, 104
      %v4008 = vpop.permute.xlu0 %4007
      %4009 = vrot.lane.b32.xlu0 %v1001, 104
      %v4010 = vpop.permute.xlu0 %4009
      %4011 = vrot.lane.b32.xlu0 %v1006, 104
      %v4012 = vpop.permute.xlu0 %4011
      %4013 = vrot.lane.b32.xlu0 %v1011, 104
      %v4014 = vpop.permute.xlu0 %4013
      %4015 = vrot.lane.b32.xlu0 %v1016, 104
      %v4016 = vpop.permute.xlu0 %4015
      %4017 = vrot.lane.b32.xlu0 %v1021, 104
      %v4018 = vpop.permute.xlu0 %4017
      %4019 = vrot.lane.b32.xlu0 %v1026, 104
      %v4020 = vpop.permute.xlu0 %4019
      %4021 = vrot.lane.b32.xlu0 %v1031, 104
      %v4022 = vpop.permute.xlu0 %4021
      %4023 = vrot.lane.b32.xlu0 %v1036, 104
      %v4024 = vpop.permute.xlu0 %4023
      %4025 = vrot.lane.b32.xlu0 %v1041, 104
      %v4026 = vpop.permute.xlu0 %4025
      %4027 = vrot.lane.b32.xlu0 %v1046, 104
      %v4028 = vpop.permute.xlu0 %4027
      %4029 = vrot.lane.b32.xlu0 %v1051, 104
      %v4030 = vpop.permute.xlu0 %4029
      %4031 = vrot.lane.b32.xlu0 %v1056, 104
      %v4032 = vpop.permute.xlu0 %4031
      %4033 = vrot.lane.b32.xlu0 %v1061, 104
      %v4034 = vpop.permute.xlu0 %4033
      %4051 = vmatprep.subr.mxu0 0.0
      %4052 = vmatpush1.msra.mxu0 %v4004
      %4053 = vmatprep.subr.mxu0 0.0
      %4054 = vmatpush1.msra.mxu0 %v4006
      %4055 = vmatprep.subr.mxu0 0.0
      %4056 = vmatpush1.msra.mxu0 %v4008
      %4057 = vmatprep.subr.mxu0 0.0
      %4058 = vmatpush1.msra.mxu0 %v4010
      %4059 = vmatprep.subr.mxu0 0.0
      %4060 = vmatpush1.msra.mxu0 %v4012
      %4061 = vmatprep.subr.mxu0 0.0
      %4062 = vmatpush1.msra.mxu0 %v4014
      %4063 = vmatprep.subr.mxu0 0.0
      %4064 = vmatpush1.msra.mxu0 %v4016
      %4065 = vmatprep.subr.mxu0 0.0
      %4066 = vmatpush1.msra.mxu0 %v4018
      %4067 = vmatprep.subr.mxu0 0.0
      %4068 = vmatpush1.msra.mxu0 %v4020
      %4069 = vmatprep.subr.mxu0 0.0
      %4070 = vmatpush1.msra.mxu0 %v4022
      %4071 = vmatprep.subr.mxu0 0.0
      %4072 = vmatpush1.msra.mxu0 %v4024
      %4073 = vmatprep.subr.mxu0 0.0
      %4074 = vmatpush1.msra.mxu0 %v4026
      %4075 = vmatprep.subr.mxu0 0.0
      %4076 = vmatpush1.msra.mxu0 %v4028
      %4077 = vmatprep.subr.mxu0 0.0
      %4078 = vmatpush1.msra.mxu0 %v4030
      %4079 = vmatprep.subr.mxu0 0.0
      %4080 = vmatpush1.msra.mxu0 %v4032
      %4081 = vmatprep.subr.mxu0 0.0
      %4082 = vmatpush1.msra.mxu0 %v4034
      %4083 = vmatprep.subr.mxu0 0.0
      %4084 = vmatpush1.msra.mxu0 0.0
      %4085 = vmatprep.subr.mxu0 0.0
      %4086 = vmatpush1.msra.mxu0 0.0
      %4087 = vmatprep.subr.mxu0 0.0
      %4088 = vmatpush1.msra.mxu0 0.0
      %4089 = vmatprep.subr.mxu0 0.0
      %4090 = vmatpush1.msra.mxu0 0.0
      %4091 = vmatprep.subr.mxu0 0.0
      %4092 = vmatpush1.msra.mxu0 0.0
      %4093 = vmatprep.subr.mxu0 0.0
      %4094 = vmatpush1.msra.mxu0 0.0
      %4095 = vmatprep.subr.mxu0 0.0
      %4096 = vmatpush1.msra.mxu0 0.0
      %4097 = vmatprep.subr.mxu0 0.0
      %4098 = vmatpush1.msra.mxu0 0.0
      %4099 = vmatprep.subr.mxu0 0.0
      %4100 = vmatpush1.msra.mxu0 0.0
      %4101 = vmatprep.subr.mxu0 0.0
      %4102 = vmatpush1.msra.mxu0 0.0
      %4103 = vmatprep.subr.mxu0 0.0
      %4104 = vmatpush1.msra.mxu0 0.0
      %4105 = vmatprep.subr.mxu0 0.0
      %4106 = vmatpush1.msra.mxu0 0.0
      %4107 = vmatprep.subr.mxu0 0.0
      %4108 = vmatpush1.msra.mxu0 0.0
      %4109 = vmatprep.subr.mxu0 0.0
      %4110 = vmatpush1.msra.mxu0 0.0
      %4111 = vmatprep.subr.mxu0 0.0
      %4112 = vmatpush1.msra.mxu0 0.0
      %4113 = vmatprep.subr.mxu0 0.0
      %4114 = vmatpush1.msra.mxu0 0.0
      %4115 = vmatprep.mubr.f32.mxu0 0.0
      %4116 = vmatmul.mubr.f32.gmra.mrb[0].mxu0 %v3987
      %v4117 = vpop.f32.mrb[0].mxu0
      %v4118 = vadd.f32 0.0, %v4117
      %v4119 = vpop.f32.mrb[0].mxu0
      %4120 = vmatprep.mubr.f32.mxu0 0.0
      %4121 = vmatmul.mubr.f32.gmra.mrb[0].mxu0 %v3988
      %v4122 = vpop.f32.mrb[0].mxu0
      %v4123 = vadd.f32 0.0, %v4122
      %v4124 = vpop.f32.mrb[0].mxu0
      %4125 = vmatprep.mubr.f32.mxu0 0.0
      %4126 = vmatmul.mubr.f32.gmra.mrb[0].mxu0 %v3989
      %v4127 = vpop.f32.mrb[0].mxu0
      %v4128 = vadd.f32 0.0, %v4127
      %v4129 = vpop.f32.mrb[0].mxu0
      %4130 = vmatprep.mubr.f32.mxu0 0.0
      %4131 = vmatmul.mubr.f32.gmra.mrb[0].mxu0 %v3990
      %v4132 = vpop.f32.mrb[0].mxu0
      %v4133 = vadd.f32 0.0, %v4132
      %v4134 = vpop.f32.mrb[0].mxu0
      %4135 = vmatprep.mubr.f32.mxu0 0.0
      %4136 = vmatmul.mubr.f32.gmra.mrb[0].mxu0 %v3991
      %v4137 = vpop.f32.mrb[0].mxu0
      %v4138 = vadd.f32 0.0, %v4137
      %v4139 = vpop.f32.mrb[0].mxu0
      %4140 = vmatprep.mubr.f32.mxu0 0.0
      %4141 = vmatmul.mubr.f32.gmra.mrb[0].mxu0 %v3992
      %v4142 = vpop.f32.mrb[0].mxu0
      %v4143 = vadd.f32 0.0, %v4142
      %v4144 = vpop.f32.mrb[0].mxu0
      %4145 = vmatprep.mubr.f32.mxu0 0.0
      %4146 = vmatmul.mubr.f32.gmra.mrb[0].mxu0 %v3993
      %v4147 = vpop.f32.mrb[0].mxu0
      %v4148 = vadd.f32 0.0, %v4147
      %v4149 = vpop.f32.mrb[0].mxu0
      %4150 = vmatprep.mubr.f32.mxu0 0.0
      %4151 = vmatmul.mubr.f32.gmra.mrb[0].mxu0 %v3994
      %v4152 = vpop.f32.mrb[0].mxu0
      %v4153 = vadd.f32 0.0, %v4152
      %v4154 = vpop.f32.mrb[0].mxu0
      %4155 = vmatprep.mubr.f32.mxu0 0.0
      %4156 = vmatmul.mubr.f32.gmra.mrb[0].mxu0 %v3995
      %v4157 = vpop.f32.mrb[0].mxu0
      %v4158 = vadd.f32 0.0, %v4157
      %v4159 = vpop.f32.mrb[0].mxu0
      %4160 = vmatprep.mubr.f32.mxu0 0.0
      %4161 = vmatmul.mubr.f32.gmra.mrb[0].mxu0 %v3996
      %v4162 = vpop.f32.mrb[0].mxu0
      %v4163 = vadd.f32 0.0, %v4162
      %v4164 = vpop.f32.mrb[0].mxu0
      %4165 = vmatprep.mubr.f32.mxu0 0.0
      %4166 = vmatmul.mubr.f32.gmra.mrb[0].mxu0 %v3997
      %v4167 = vpop.f32.mrb[0].mxu0
      %v4168 = vadd.f32 0.0, %v4167
      %v4169 = vpop.f32.mrb[0].mxu0
      %4170 = vmatprep.mubr.f32.mxu0 0.0
      %4171 = vmatmul.mubr.f32.gmra.mrb[0].mxu0 %v3998
      %v4172 = vpop.f32.mrb[0].mxu0
      %v4173 = vadd.f32 0.0, %v4172
      %v4174 = vpop.f32.mrb[0].mxu0
      %4175 = vmatprep.mubr.f32.mxu0 0.0
      %4176 = vmatmul.mubr.f32.gmra.mrb[0].mxu0 %v3999
      %v4177 = vpop.f32.mrb[0].mxu0
      %v4178 = vadd.f32 0.0, %v4177
      %v4179 = vpop.f32.mrb[0].mxu0
      %4180 = vmatprep.mubr.f32.mxu0 0.0
      %4181 = vmatmul.mubr.f32.gmra.mrb[0].mxu0 %v4000
      %v4182 = vpop.f32.mrb[0].mxu0
      %v4183 = vadd.f32 0.0, %v4182
      %v4184 = vpop.f32.mrb[0].mxu0
      %4185 = vmatprep.mubr.f32.mxu0 0.0
      %4186 = vmatmul.mubr.f32.gmra.mrb[0].mxu0 %v4001
      %v4187 = vpop.f32.mrb[0].mxu0
      %v4188 = vadd.f32 0.0, %v4187
      %v4189 = vpop.f32.mrb[0].mxu0
      %4190 = vmatprep.mubr.f32.mxu0 0.0
      %4191 = vmatmul.mubr.f32.gmra.mrb[0].mxu0 %v4002
      %v4192 = vpop.f32.mrb[0].mxu0
      %v4193 = vadd.f32 0.0, %v4192
      %v4194 = vpop.f32.mrb[0].mxu0
      %4195 = vdwg.mxu0
      %v4197 = vsel %vm1096, %v4118, 0
      %v4200 = vsel %vm1096, %v4123, 0
      %v4203 = vsel %vm1096, %v4128, 0
      %v4206 = vsel %vm1096, %v4133, 0
      %v4209 = vsel %vm1096, %v4138, 0
      %v4212 = vsel %vm1096, %v4143, 0
      %v4215 = vsel %vm1096, %v4148, 0
      %v4218 = vsel %vm1096, %v4153, 0
      %v4221 = vsel %vm1096, %v4158, 0
      %v4224 = vsel %vm1096, %v4163, 0
      %v4227 = vsel %vm1096, %v4168, 0
      %v4230 = vsel %vm1096, %v4173, 0
      %v4233 = vsel %vm1096, %v4178, 0
      %v4236 = vsel %vm1096, %v4183, 0
      %v4239 = vsel %vm1096, %v4188, 0
      %v4242 = vsel %vm1096, %v4193, 0
      %4244 = vmatprep.subr.mxu0 0.0
      %4245 = vmatpush1.msra.mxu0 %v394
      %4246 = vmatprep.subr.mxu0 0.0
      %4247 = vmatpush1.msra.mxu0 0.0
      %4248 = vmatprep.subr.mxu0 0.0
      %4249 = vmatpush1.msra.mxu0 0.0
      %4250 = vmatprep.subr.mxu0 0.0
      %4251 = vmatpush1.msra.mxu0 0.0
      %4252 = vmatprep.subr.mxu0 0.0
      %4253 = vmatpush1.msra.mxu0 0.0
      %4254 = vmatprep.subr.mxu0 0.0
      %4255 = vmatpush1.msra.mxu0 0.0
      %4256 = vmatprep.subr.mxu0 0.0
      %4257 = vmatpush1.msra.mxu0 0.0
      %4258 = vmatprep.subr.mxu0 0.0
      %4259 = vmatpush1.msra.mxu0 0.0
      %4260 = vmatprep.subr.mxu0 0.0
      %4261 = vmatpush1.msra.mxu0 0.0
      %4262 = vmatprep.subr.mxu0 0.0
      %4263 = vmatpush1.msra.mxu0 0.0
      %4264 = vmatprep.subr.mxu0 0.0
      %4265 = vmatpush1.msra.mxu0 0.0
      %4266 = vmatprep.subr.mxu0 0.0
      %4267 = vmatpush1.msra.mxu0 0.0
      %4268 = vmatprep.subr.mxu0 0.0
      %4269 = vmatpush1.msra.mxu0 0.0
      %4270 = vmatprep.subr.mxu0 0.0
      %4271 = vmatpush1.msra.mxu0 0.0
      %4272 = vmatprep.subr.mxu0 0.0
      %4273 = vmatpush1.msra.mxu0 0.0
      %4274 = vmatprep.subr.mxu0 0.0
      %4275 = vmatpush1.msra.mxu0 0.0
      %4276 = vmatprep.subr.mxu0 0.0
      %4277 = vmatpush1.msra.mxu0 0.0
      %4278 = vmatprep.subr.mxu0 0.0
      %4279 = vmatpush1.msra.mxu0 0.0
      %4280 = vmatprep.subr.mxu0 0.0
      %4281 = vmatpush1.msra.mxu0 0.0
      %4282 = vmatprep.subr.mxu0 0.0
      %4283 = vmatpush1.msra.mxu0 0.0
      %4284 = vmatprep.subr.mxu0 0.0
      %4285 = vmatpush1.msra.mxu0 0.0
      %4286 = vmatprep.subr.mxu0 0.0
      %4287 = vmatpush1.msra.mxu0 0.0
      %4288 = vmatprep.subr.mxu0 0.0
      %4289 = vmatpush1.msra.mxu0 0.0
      %4290 = vmatprep.subr.mxu0 0.0
      %4291 = vmatpush1.msra.mxu0 0.0
      %4292 = vmatprep.subr.mxu0 0.0
      %4293 = vmatpush1.msra.mxu0 0.0
      %4294 = vmatprep.subr.mxu0 0.0
      %4295 = vmatpush1.msra.mxu0 0.0
      %4296 = vmatprep.subr.mxu0 0.0
      %4297 = vmatpush1.msra.mxu0 0.0
      %4298 = vmatprep.subr.mxu0 0.0
      %4299 = vmatpush1.msra.mxu0 0.0
      %4300 = vmatprep.subr.mxu0 0.0
      %4301 = vmatpush1.msra.mxu0 0.0
      %4302 = vmatprep.subr.mxu0 0.0
      %4303 = vmatpush1.msra.mxu0 0.0
      %4304 = vmatprep.subr.mxu0 0.0
      %4305 = vmatpush1.msra.mxu0 0.0
      %4306 = vmatprep.subr.mxu0 0.0
      %4307 = vmatpush1.msra.mxu0 0.0
      %4308 = vmatprep.mubr.f32.mxu0 0.0
      %4309 = vmatmul.mubr.f32.gmra.mrb[0].mxu0 %v4197
      %v4310 = vpop.f32.mrb[0].mxu0
      %v4311 = vadd.f32 0.0, %v4310
      %v4312 = vpop.f32.mrb[0].mxu0
      %4313 = vmatprep.mubr.f32.mxu0 0.0
      %4314 = vmatmul.mubr.f32.gmra.mrb[0].mxu0 %v4200
      %v4315 = vpop.f32.mrb[0].mxu0
      %v4316 = vadd.f32 0.0, %v4315
      %v4317 = vpop.f32.mrb[0].mxu0
      %4318 = vmatprep.mubr.f32.mxu0 0.0
      %4319 = vmatmul.mubr.f32.gmra.mrb[0].mxu0 %v4203
      %v4320 = vpop.f32.mrb[0].mxu0
      %v4321 = vadd.f32 0.0, %v4320
      %v4322 = vpop.f32.mrb[0].mxu0
      %4323 = vmatprep.mubr.f32.mxu0 0.0
      %4324 = vmatmul.mubr.f32.gmra.mrb[0].mxu0 %v4206
      %v4325 = vpop.f32.mrb[0].mxu0
      %v4326 = vadd.f32 0.0, %v4325
      %v4327 = vpop.f32.mrb[0].mxu0
      %4328 = vmatprep.mubr.f32.mxu0 0.0
      %4329 = vmatmul.mubr.f32.gmra.mrb[0].mxu0 %v4209
      %v4330 = vpop.f32.mrb[0].mxu0
      %v4331 = vadd.f32 0.0, %v4330
      %v4332 = vpop.f32.mrb[0].mxu0
      %4333 = vmatprep.mubr.f32.mxu0 0.0
      %4334 = vmatmul.mubr.f32.gmra.mrb[0].mxu0 %v4212
      %v4335 = vpop.f32.mrb[0].mxu0
      %v4336 = vadd.f32 0.0, %v4335
      %v4337 = vpop.f32.mrb[0].mxu0
      %4338 = vmatprep.mubr.f32.mxu0 0.0
      %4339 = vmatmul.mubr.f32.gmra.mrb[0].mxu0 %v4215
      %v4340 = vpop.f32.mrb[0].mxu0
      %v4341 = vadd.f32 0.0, %v4340
      %v4342 = vpop.f32.mrb[0].mxu0
      %4343 = vmatprep.mubr.f32.mxu0 0.0
      %4344 = vmatmul.mubr.f32.gmra.mrb[0].mxu0 %v4218
      %v4345 = vpop.f32.mrb[0].mxu0
      %v4346 = vadd.f32 0.0, %v4345
      %v4347 = vpop.f32.mrb[0].mxu0
      %4348 = vmatprep.mubr.f32.mxu0 0.0
      %4349 = vmatmul.mubr.f32.gmra.mrb[0].mxu0 %v4221
      %v4350 = vpop.f32.mrb[0].mxu0
      %v4351 = vadd.f32 0.0, %v4350
      %v4352 = vpop.f32.mrb[0].mxu0
      %4353 = vmatprep.mubr.f32.mxu0 0.0
      %4354 = vmatmul.mubr.f32.gmra.mrb[0].mxu0 %v4224
      %v4355 = vpop.f32.mrb[0].mxu0
      %v4356 = vadd.f32 0.0, %v4355
      %v4357 = vpop.f32.mrb[0].mxu0
      %4358 = vmatprep.mubr.f32.mxu0 0.0
      %4359 = vmatmul.mubr.f32.gmra.mrb[0].mxu0 %v4227
      %v4360 = vpop.f32.mrb[0].mxu0
      %v4361 = vadd.f32 0.0, %v4360
      %v4362 = vpop.f32.mrb[0].mxu0
      %4363 = vmatprep.mubr.f32.mxu0 0.0
      %4364 = vmatmul.mubr.f32.gmra.mrb[0].mxu0 %v4230
      %v4365 = vpop.f32.mrb[0].mxu0
      %v4366 = vadd.f32 0.0, %v4365
      %v4367 = vpop.f32.mrb[0].mxu0
      %4368 = vmatprep.mubr.f32.mxu0 0.0
      %4369 = vmatmul.mubr.f32.gmra.mrb[0].mxu0 %v4233
      %v4370 = vpop.f32.mrb[0].mxu0
      %v4371 = vadd.f32 0.0, %v4370
      %v4372 = vpop.f32.mrb[0].mxu0
      %4373 = vmatprep.mubr.f32.mxu0 0.0
      %4374 = vmatmul.mubr.f32.gmra.mrb[0].mxu0 %v4236
      %v4375 = vpop.f32.mrb[0].mxu0
      %v4376 = vadd.f32 0.0, %v4375
      %v4377 = vpop.f32.mrb[0].mxu0
      %4378 = vmatprep.mubr.f32.mxu0 0.0
      %4379 = vmatmul.mubr.f32.gmra.mrb[0].mxu0 %v4239
      %v4380 = vpop.f32.mrb[0].mxu0
      %v4381 = vadd.f32 0.0, %v4380
      %v4382 = vpop.f32.mrb[0].mxu0
      %4383 = vmatprep.mubr.f32.mxu0 0.0
      %4384 = vmatmul.mubr.f32.gmra.mrb[0].mxu0 %v4242
      %v4385 = vpop.f32.mrb[0].mxu0
      %v4386 = vadd.f32 0.0, %v4385
      %v4387 = vpop.f32.mrb[0].mxu0
      %4388 = vdwg.mxu0
      %v4389 = vadd.f32 %v3538, %v4311
      %v4390 = vadd.f32 %v3539, %v4316
      %v4391 = vadd.f32 %v3540, %v4321
      %v4392 = vadd.f32 %v3541, %v4326
      %v4393 = vadd.f32 %v3542, %v4331
      %v4394 = vadd.f32 %v3543, %v4336
      %v4395 = vadd.f32 %v3544, %v4341
      %v4396 = vadd.f32 %v3545, %v4346
      %v4397 = vadd.f32 %v3546, %v4351
      %v4398 = vadd.f32 %v3547, %v4356
      %v4399 = vadd.f32 %v3548, %v4361
      %v4400 = vadd.f32 %v3549, %v4366
      %v4401 = vadd.f32 %v3550, %v4371
      %v4402 = vadd.f32 %v3551, %v4376
      %v4403 = vadd.f32 %v3552, %v4381
      %v4404 = vadd.f32 %v3553, %v4386
      %v4406 = vlaneseq
      %v4407 = vshrl.u32 %v4406, 7
      %v4408 = vsub.s32 0, %v4407
      %v4409 = vrot.slane %v401, %v4408
      %v4411 = vadd.f32 %v4389, %v4409
      %v4412 = vadd.f32 %v4390, %v4409
      %v4413 = vadd.f32 %v4391, %v4409
      %v4414 = vadd.f32 %v4392, %v4409
      %v4415 = vadd.f32 %v4393, %v4409
      %v4416 = vadd.f32 %v4394, %v4409
      %v4417 = vadd.f32 %v4395, %v4409
      %v4418 = vadd.f32 %v4396, %v4409
      %v4419 = vadd.f32 %v4397, %v4409
      %v4420 = vadd.f32 %v4398, %v4409
      %v4421 = vadd.f32 %v4399, %v4409
      %v4422 = vadd.f32 %v4400, %v4409
      %v4423 = vadd.f32 %v4401, %v4409
      %v4424 = vadd.f32 %v4402, %v4409
      %v4425 = vadd.f32 %v4403, %v4409
      %v4426 = vadd.f32 %v4404, %v4409
      %4427 = vst.msk [vmem:[%s374] sm:$0xff] %vm456, %v4411
      %4428 = vst.msk [vmem:[%s374 + $0x8] sm:$0xff] %vm456, %v4412
      %4429 = vst.msk [vmem:[%s374 + $0x10] sm:$0xff] %vm456, %v4413
      %4430 = vst.msk [vmem:[%s374 + $0x18] sm:$0xff] %vm456, %v4414
      %4431 = vst.msk [vmem:[%s374 + $0x20] sm:$0xff] %vm456, %v4415
      %4432 = vst.msk [vmem:[%s374 + $0x28] sm:$0xff] %vm456, %v4416
      %4433 = vst.msk [vmem:[%s374 + $0x30] sm:$0xff] %vm456, %v4417
      %4434 = vst.msk [vmem:[%s374 + $0x38] sm:$0xff] %vm456, %v4418
      %4435 = vst.msk [vmem:[%s374 + $0x40] sm:$0xff] %vm456, %v4419
      %4436 = vst.msk [vmem:[%s374 + $0x48] sm:$0xff] %vm456, %v4420
      %4437 = vst.msk [vmem:[%s374 + $0x50] sm:$0xff] %vm456, %v4421
      %4438 = vst.msk [vmem:[%s374 + $0x58] sm:$0xff] %vm456, %v4422
      %4439 = vst.msk [vmem:[%s374 + $0x60] sm:$0xff] %vm456, %v4423
      %4440 = vst.msk [vmem:[%s374 + $0x68] sm:$0xff] %vm456, %v4424
      %4441 = vst.msk [vmem:[%s374 + $0x70] sm:$0xff] %vm456, %v4425
      %4442 = vst.msk [vmem:[%s374 + $0x78] sm:$0xff] %vm456, %v4426
      %v4443 = vld [vmem:[%s342 + $0x80] sm:$0xff]
      %v4444 = vld [vmem:[%s342 + $0x88] sm:$0xff]
      %v4445 = vld [vmem:[%s342 + $0x90] sm:$0xff]
      %v4446 = vld [vmem:[%s342 + $0x98] sm:$0xff]
      %v4447 = vld [vmem:[%s342 + $0xa0] sm:$0xff]
      %v4448 = vld [vmem:[%s342 + $0xa8] sm:$0xff]
      %v4449 = vld [vmem:[%s342 + $0xb0] sm:$0xff]
      %v4450 = vld [vmem:[%s342 + $0xb8] sm:$0xff]
      %v4451 = vld [vmem:[%s342 + $0xc0] sm:$0xff]
      %v4452 = vld [vmem:[%s342 + $0xc8] sm:$0xff]
      %v4453 = vld [vmem:[%s342 + $0xd0] sm:$0xff]
      %v4454 = vld [vmem:[%s342 + $0xd8] sm:$0xff]
      %v4455 = vld [vmem:[%s342 + $0xe0] sm:$0xff]
      %v4456 = vld [vmem:[%s342 + $0xe8] sm:$0xff]
      %v4457 = vld [vmem:[%s342 + $0xf0] sm:$0xff]
      %v4458 = vld [vmem:[%s342 + $0xf8] sm:$0xff]
      %v4459 = vld [vmem:[%s348 + $0x80] sm:$0xff]
      %v4460 = vld [vmem:[%s348 + $0x88] sm:$0xff]
      %v4461 = vld [vmem:[%s348 + $0x90] sm:$0xff]
      %v4462 = vld [vmem:[%s348 + $0x98] sm:$0xff]
      %v4463 = vld [vmem:[%s348 + $0xa0] sm:$0xff]
      %v4464 = vld [vmem:[%s348 + $0xa8] sm:$0xff]
      %v4465 = vld [vmem:[%s348 + $0xb0] sm:$0xff]
      %v4466 = vld [vmem:[%s348 + $0xb8] sm:$0xff]
      %v4467 = vld [vmem:[%s348 + $0xc0] sm:$0xff]
      %v4468 = vld [vmem:[%s348 + $0xc8] sm:$0xff]
      %v4469 = vld [vmem:[%s348 + $0xd0] sm:$0xff]
      %v4470 = vld [vmem:[%s348 + $0xd8] sm:$0xff]
      %v4471 = vld [vmem:[%s348 + $0xe0] sm:$0xff]
      %v4472 = vld [vmem:[%s348 + $0xe8] sm:$0xff]
      %v4473 = vld [vmem:[%s348 + $0xf0] sm:$0xff]
      %v4474 = vld [vmem:[%s348 + $0xf8] sm:$0xff]
      %v4475 = vld [vmem:[%s354 + $0x80] sm:$0xff]
      %v4476 = vld [vmem:[%s354 + $0x88] sm:$0xff]
      %v4477 = vld [vmem:[%s354 + $0x90] sm:$0xff]
      %v4478 = vld [vmem:[%s354 + $0x98] sm:$0xff]
      %v4479 = vld [vmem:[%s354 + $0xa0] sm:$0xff]
      %v4480 = vld [vmem:[%s354 + $0xa8] sm:$0xff]
      %v4481 = vld [vmem:[%s354 + $0xb0] sm:$0xff]
      %v4482 = vld [vmem:[%s354 + $0xb8] sm:$0xff]
      %v4483 = vld [vmem:[%s354 + $0xc0] sm:$0xff]
      %v4484 = vld [vmem:[%s354 + $0xc8] sm:$0xff]
      %v4485 = vld [vmem:[%s354 + $0xd0] sm:$0xff]
      %v4486 = vld [vmem:[%s354 + $0xd8] sm:$0xff]
      %v4487 = vld [vmem:[%s354 + $0xe0] sm:$0xff]
      %v4488 = vld [vmem:[%s354 + $0xe8] sm:$0xff]
      %v4489 = vld [vmem:[%s354 + $0xf0] sm:$0xff]
      %v4490 = vld [vmem:[%s354 + $0xf8] sm:$0xff]
      %v4492 = vsel %vm456, %v4443, 0
      %v4495 = vsel %vm456, %v4444, 0
      %v4498 = vsel %vm456, %v4445, 0
      %v4501 = vsel %vm456, %v4446, 0
      %v4504 = vsel %vm456, %v4447, 0
      %v4507 = vsel %vm456, %v4448, 0
      %v4510 = vsel %vm456, %v4449, 0
      %v4513 = vsel %vm456, %v4450, 0
      %v4516 = vsel %vm456, %v4451, 0
      %v4519 = vsel %vm456, %v4452, 0
      %v4522 = vsel %vm456, %v4453, 0
      %v4525 = vsel %vm456, %v4454, 0
      %v4528 = vsel %vm456, %v4455, 0
      %v4531 = vsel %vm456, %v4456, 0
      %v4534 = vsel %vm456, %v4457, 0
      %v4537 = vsel %vm456, %v4458, 0
      %4539 = vmatprep.subr.mxu0 0.0
      %4540 = vmatpush1.msra.mxu0 %v376
      %4541 = vmatprep.subr.mxu0 0.0
      %4542 = vmatpush1.msra.mxu0 %v377
      %4543 = vmatprep.subr.mxu0 0.0
      %4544 = vmatpush1.msra.mxu0 %v378
      %4545 = vmatprep.subr.mxu0 0.0
      %4546 = vmatpush1.msra.mxu0 %v379
      %4547 = vmatprep.subr.mxu0 0.0
      %4548 = vmatpush1.msra.mxu0 0.0
      %4549 = vmatprep.subr.mxu0 0.0
      %4550 = vmatpush1.msra.mxu0 0.0
      %4551 = vmatprep.subr.mxu0 0.0
      %4552 = vmatpush1.msra.mxu0 0.0
      %4553 = vmatprep.subr.mxu0 0.0
      %4554 = vmatpush1.msra.mxu0 0.0
      %4555 = vmatprep.subr.mxu0 0.0
      %4556 = vmatpush1.msra.mxu0 0.0
      %4557 = vmatprep.subr.mxu0 0.0
      %4558 = vmatpush1.msra.mxu0 0.0
      %4559 = vmatprep.subr.mxu0 0.0
      %4560 = vmatpush1.msra.mxu0 0.0
      %4561 = vmatprep.subr.mxu0 0.0
      %4562 = vmatpush1.msra.mxu0 0.0
      %4563 = vmatprep.subr.mxu0 0.0
      %4564 = vmatpush1.msra.mxu0 0.0
      %4565 = vmatprep.subr.mxu0 0.0
      %4566 = vmatpush1.msra.mxu0 0.0
      %4567 = vmatprep.subr.mxu0 0.0
      %4568 = vmatpush1.msra.mxu0 0.0
      %4569 = vmatprep.subr.mxu0 0.0
      %4570 = vmatpush1.msra.mxu0 0.0
      %4571 = vmatprep.subr.mxu0 0.0
      %4572 = vmatpush1.msra.mxu0 0.0
      %4573 = vmatprep.subr.mxu0 0.0
      %4574 = vmatpush1.msra.mxu0 0.0
      %4575 = vmatprep.subr.mxu0 0.0
      %4576 = vmatpush1.msra.mxu0 0.0
      %4577 = vmatprep.subr.mxu0 0.0
      %4578 = vmatpush1.msra.mxu0 0.0
      %4579 = vmatprep.subr.mxu0 0.0
      %4580 = vmatpush1.msra.mxu0 0.0
      %4581 = vmatprep.subr.mxu0 0.0
      %4582 = vmatpush1.msra.mxu0 0.0
      %4583 = vmatprep.subr.mxu0 0.0
      %4584 = vmatpush1.msra.mxu0 0.0
      %4585 = vmatprep.subr.mxu0 0.0
      %4586 = vmatpush1.msra.mxu0 0.0
      %4587 = vmatprep.subr.mxu0 0.0
      %4588 = vmatpush1.msra.mxu0 0.0
      %4589 = vmatprep.subr.mxu0 0.0
      %4590 = vmatpush1.msra.mxu0 0.0
      %4591 = vmatprep.subr.mxu0 0.0
      %4592 = vmatpush1.msra.mxu0 0.0
      %4593 = vmatprep.subr.mxu0 0.0
      %4594 = vmatpush1.msra.mxu0 0.0
      %4595 = vmatprep.subr.mxu0 0.0
      %4596 = vmatpush1.msra.mxu0 0.0
      %4597 = vmatprep.subr.mxu0 0.0
      %4598 = vmatpush1.msra.mxu0 0.0
      %4599 = vmatprep.subr.mxu0 0.0
      %4600 = vmatpush1.msra.mxu0 0.0
      %4601 = vmatprep.subr.mxu0 0.0
      %4602 = vmatpush1.msra.mxu0 0.0
      %4603 = vmatprep.mubr.f32.mxu0 0.0
      %4604 = vmatmul.mubr.f32.gmra.mrb[0].mxu0 %v4492
      %v4605 = vpop.f32.mrb[0].mxu0
      %v4606 = vadd.f32 %v454, %v4605
      %v4607 = vpop.f32.mrb[0].mxu0
      %4608 = vmatprep.mubr.f32.mxu0 0.0
      %4609 = vmatmul.mubr.f32.gmra.mrb[0].mxu0 %v4495
      %v4610 = vpop.f32.mrb[0].mxu0
      %v4611 = vadd.f32 %v454, %v4610
      %v4612 = vpop.f32.mrb[0].mxu0
      %4613 = vmatprep.mubr.f32.mxu0 0.0
      %4614 = vmatmul.mubr.f32.gmra.mrb[0].mxu0 %v4498
      %v4615 = vpop.f32.mrb[0].mxu0
      %v4616 = vadd.f32 %v454, %v4615
      %v4617 = vpop.f32.mrb[0].mxu0
      %4618 = vmatprep.mubr.f32.mxu0 0.0
      %4619 = vmatmul.mubr.f32.gmra.mrb[0].mxu0 %v4501
      %v4620 = vpop.f32.mrb[0].mxu0
      %v4621 = vadd.f32 %v454, %v4620
      %v4622 = vpop.f32.mrb[0].mxu0
      %4623 = vmatprep.mubr.f32.mxu0 0.0
      %4624 = vmatmul.mubr.f32.gmra.mrb[0].mxu0 %v4504
      %v4625 = vpop.f32.mrb[0].mxu0
      %v4626 = vadd.f32 %v454, %v4625
      %v4627 = vpop.f32.mrb[0].mxu0
      %4628 = vmatprep.mubr.f32.mxu0 0.0
      %4629 = vmatmul.mubr.f32.gmra.mrb[0].mxu0 %v4507
      %v4630 = vpop.f32.mrb[0].mxu0
      %v4631 = vadd.f32 %v454, %v4630
      %v4632 = vpop.f32.mrb[0].mxu0
      %4633 = vmatprep.mubr.f32.mxu0 0.0
      %4634 = vmatmul.mubr.f32.gmra.mrb[0].mxu0 %v4510
      %v4635 = vpop.f32.mrb[0].mxu0
      %v4636 = vadd.f32 %v454, %v4635
      %v4637 = vpop.f32.mrb[0].mxu0
      %4638 = vmatprep.mubr.f32.mxu0 0.0
      %4639 = vmatmul.mubr.f32.gmra.mrb[0].mxu0 %v4513
      %v4640 = vpop.f32.mrb[0].mxu0
      %v4641 = vadd.f32 %v454, %v4640
      %v4642 = vpop.f32.mrb[0].mxu0
      %4643 = vmatprep.mubr.f32.mxu0 0.0
      %4644 = vmatmul.mubr.f32.gmra.mrb[0].mxu0 %v4516
      %v4645 = vpop.f32.mrb[0].mxu0
      %v4646 = vadd.f32 %v454, %v4645
      %v4647 = vpop.f32.mrb[0].mxu0
      %4648 = vmatprep.mubr.f32.mxu0 0.0
      %4649 = vmatmul.mubr.f32.gmra.mrb[0].mxu0 %v4519
      %v4650 = vpop.f32.mrb[0].mxu0
      %v4651 = vadd.f32 %v454, %v4650
      %v4652 = vpop.f32.mrb[0].mxu0
      %4653 = vmatprep.mubr.f32.mxu0 0.0
      %4654 = vmatmul.mubr.f32.gmra.mrb[0].mxu0 %v4522
      %v4655 = vpop.f32.mrb[0].mxu0
      %v4656 = vadd.f32 %v454, %v4655
      %v4657 = vpop.f32.mrb[0].mxu0
      %4658 = vmatprep.mubr.f32.mxu0 0.0
      %4659 = vmatmul.mubr.f32.gmra.mrb[0].mxu0 %v4525
      %v4660 = vpop.f32.mrb[0].mxu0
      %v4661 = vadd.f32 %v454, %v4660
      %v4662 = vpop.f32.mrb[0].mxu0
      %4663 = vmatprep.mubr.f32.mxu0 0.0
      %4664 = vmatmul.mubr.f32.gmra.mrb[0].mxu0 %v4528
      %v4665 = vpop.f32.mrb[0].mxu0
      %v4666 = vadd.f32 %v454, %v4665
      %v4667 = vpop.f32.mrb[0].mxu0
      %4668 = vmatprep.mubr.f32.mxu0 0.0
      %4669 = vmatmul.mubr.f32.gmra.mrb[0].mxu0 %v4531
      %v4670 = vpop.f32.mrb[0].mxu0
      %v4671 = vadd.f32 %v454, %v4670
      %v4672 = vpop.f32.mrb[0].mxu0
      %4673 = vmatprep.mubr.f32.mxu0 0.0
      %4674 = vmatmul.mubr.f32.gmra.mrb[0].mxu0 %v4534
      %v4675 = vpop.f32.mrb[0].mxu0
      %v4676 = vadd.f32 %v454, %v4675
      %v4677 = vpop.f32.mrb[0].mxu0
      %4678 = vmatprep.mubr.f32.mxu0 0.0
      %4679 = vmatmul.mubr.f32.gmra.mrb[0].mxu0 %v4537
      %v4680 = vpop.f32.mrb[0].mxu0
      %v4681 = vadd.f32 %v454, %v4680
      %v4682 = vpop.f32.mrb[0].mxu0
      %4683 = vdwg.mxu0
      %v4684 = vmul.f32 %v4606, 0.35355338
      %v4685 = vmul.f32 %v4611, 0.35355338
      %v4686 = vmul.f32 %v4616, 0.35355338
      %v4687 = vmul.f32 %v4621, 0.35355338
      %v4688 = vmul.f32 %v4626, 0.35355338
      %v4689 = vmul.f32 %v4631, 0.35355338
      %v4690 = vmul.f32 %v4636, 0.35355338
      %v4691 = vmul.f32 %v4641, 0.35355338
      %v4692 = vmul.f32 %v4646, 0.35355338
      %v4693 = vmul.f32 %v4651, 0.35355338
      %v4694 = vmul.f32 %v4656, 0.35355338
      %v4695 = vmul.f32 %v4661, 0.35355338
      %v4696 = vmul.f32 %v4666, 0.35355338
      %v4697 = vmul.f32 %v4671, 0.35355338
      %v4698 = vmul.f32 %v4676, 0.35355338
      %v4699 = vmul.f32 %v4681, 0.35355338
      %v4701 = vsel %vm456, %v4459, 0
      %v4704 = vsel %vm456, %v4460, 0
      %v4707 = vsel %vm456, %v4461, 0
      %v4710 = vsel %vm456, %v4462, 0
      %v4713 = vsel %vm456, %v4463, 0
      %v4716 = vsel %vm456, %v4464, 0
      %v4719 = vsel %vm456, %v4465, 0
      %v4722 = vsel %vm456, %v4466, 0
      %v4725 = vsel %vm456, %v4467, 0
      %v4728 = vsel %vm456, %v4468, 0
      %v4731 = vsel %vm456, %v4469, 0
      %v4734 = vsel %vm456, %v4470, 0
      %v4737 = vsel %vm456, %v4471, 0
      %v4740 = vsel %vm456, %v4472, 0
      %v4743 = vsel %vm456, %v4473, 0
      %v4746 = vsel %vm456, %v4474, 0
      %4748 = vmatprep.subr.mxu0 0.0
      %4749 = vmatpush1.msra.mxu0 %v381
      %4750 = vmatprep.subr.mxu0 0.0
      %4751 = vmatpush1.msra.mxu0 %v382
      %4752 = vmatprep.subr.mxu0 0.0
      %4753 = vmatpush1.msra.mxu0 %v383
      %4754 = vmatprep.subr.mxu0 0.0
      %4755 = vmatpush1.msra.mxu0 %v384
      %4756 = vmatprep.subr.mxu0 0.0
      %4757 = vmatpush1.msra.mxu0 0.0
      %4758 = vmatprep.subr.mxu0 0.0
      %4759 = vmatpush1.msra.mxu0 0.0
      %4760 = vmatprep.subr.mxu0 0.0
      %4761 = vmatpush1.msra.mxu0 0.0
      %4762 = vmatprep.subr.mxu0 0.0
      %4763 = vmatpush1.msra.mxu0 0.0
      %4764 = vmatprep.subr.mxu0 0.0
      %4765 = vmatpush1.msra.mxu0 0.0
      %4766 = vmatprep.subr.mxu0 0.0
      %4767 = vmatpush1.msra.mxu0 0.0
      %4768 = vmatprep.subr.mxu0 0.0
      %4769 = vmatpush1.msra.mxu0 0.0
      %4770 = vmatprep.subr.mxu0 0.0
      %4771 = vmatpush1.msra.mxu0 0.0
      %4772 = vmatprep.subr.mxu0 0.0
      %4773 = vmatpush1.msra.mxu0 0.0
      %4774 = vmatprep.subr.mxu0 0.0
      %4775 = vmatpush1.msra.mxu0 0.0
      %4776 = vmatprep.subr.mxu0 0.0
      %4777 = vmatpush1.msra.mxu0 0.0
      %4778 = vmatprep.subr.mxu0 0.0
      %4779 = vmatpush1.msra.mxu0 0.0
      %4780 = vmatprep.subr.mxu0 0.0
      %4781 = vmatpush1.msra.mxu0 0.0
      %4782 = vmatprep.subr.mxu0 0.0
      %4783 = vmatpush1.msra.mxu0 0.0
      %4784 = vmatprep.subr.mxu0 0.0
      %4785 = vmatpush1.msra.mxu0 0.0
      %4786 = vmatprep.subr.mxu0 0.0
      %4787 = vmatpush1.msra.mxu0 0.0
      %4788 = vmatprep.subr.mxu0 0.0
      %4789 = vmatpush1.msra.mxu0 0.0
      %4790 = vmatprep.subr.mxu0 0.0
      %4791 = vmatpush1.msra.mxu0 0.0
      %4792 = vmatprep.subr.mxu0 0.0
      %4793 = vmatpush1.msra.mxu0 0.0
      %4794 = vmatprep.subr.mxu0 0.0
      %4795 = vmatpush1.msra.mxu0 0.0
      %4796 = vmatprep.subr.mxu0 0.0
      %4797 = vmatpush1.msra.mxu0 0.0
      %4798 = vmatprep.subr.mxu0 0.0
      %4799 = vmatpush1.msra.mxu0 0.0
      %4800 = vmatprep.subr.mxu0 0.0
      %4801 = vmatpush1.msra.mxu0 0.0
      %4802 = vmatprep.subr.mxu0 0.0
      %4803 = vmatpush1.msra.mxu0 0.0
      %4804 = vmatprep.subr.mxu0 0.0
      %4805 = vmatpush1.msra.mxu0 0.0
      %4806 = vmatprep.subr.mxu0 0.0
      %4807 = vmatpush1.msra.mxu0 0.0
      %4808 = vmatprep.subr.mxu0 0.0
      %4809 = vmatpush1.msra.mxu0 0.0
      %4810 = vmatprep.subr.mxu0 0.0
      %4811 = vmatpush1.msra.mxu0 0.0
      %4812 = vmatprep.mubr.f32.mxu0 0.0
      %4813 = vmatmul.mubr.f32.gmra.mrb[0].mxu0 %v4701
      %v4814 = vpop.f32.mrb[0].mxu0
      %v4815 = vadd.f32 %v670, %v4814
      %v4816 = vpop.f32.mrb[0].mxu0
      %4817 = vmatprep.mubr.f32.mxu0 0.0
      %4818 = vmatmul.mubr.f32.gmra.mrb[0].mxu0 %v4704
      %v4819 = vpop.f32.mrb[0].mxu0
      %v4820 = vadd.f32 %v670, %v4819
      %v4821 = vpop.f32.mrb[0].mxu0
      %4822 = vmatprep.mubr.f32.mxu0 0.0
      %4823 = vmatmul.mubr.f32.gmra.mrb[0].mxu0 %v4707
      %v4824 = vpop.f32.mrb[0].mxu0
      %v4825 = vadd.f32 %v670, %v4824
      %v4826 = vpop.f32.mrb[0].mxu0
      %4827 = vmatprep.mubr.f32.mxu0 0.0
      %4828 = vmatmul.mubr.f32.gmra.mrb[0].mxu0 %v4710
      %v4829 = vpop.f32.mrb[0].mxu0
      %v4830 = vadd.f32 %v670, %v4829
      %v4831 = vpop.f32.mrb[0].mxu0
      %4832 = vmatprep.mubr.f32.mxu0 0.0
      %4833 = vmatmul.mubr.f32.gmra.mrb[0].mxu0 %v4713
      %v4834 = vpop.f32.mrb[0].mxu0
      %v4835 = vadd.f32 %v670, %v4834
      %v4836 = vpop.f32.mrb[0].mxu0
      %4837 = vmatprep.mubr.f32.mxu0 0.0
      %4838 = vmatmul.mubr.f32.gmra.mrb[0].mxu0 %v4716
      %v4839 = vpop.f32.mrb[0].mxu0
      %v4840 = vadd.f32 %v670, %v4839
      %v4841 = vpop.f32.mrb[0].mxu0
      %4842 = vmatprep.mubr.f32.mxu0 0.0
      %4843 = vmatmul.mubr.f32.gmra.mrb[0].mxu0 %v4719
      %v4844 = vpop.f32.mrb[0].mxu0
      %v4845 = vadd.f32 %v670, %v4844
      %v4846 = vpop.f32.mrb[0].mxu0
      %4847 = vmatprep.mubr.f32.mxu0 0.0
      %4848 = vmatmul.mubr.f32.gmra.mrb[0].mxu0 %v4722
      %v4849 = vpop.f32.mrb[0].mxu0
      %v4850 = vadd.f32 %v670, %v4849
      %v4851 = vpop.f32.mrb[0].mxu0
      %4852 = vmatprep.mubr.f32.mxu0 0.0
      %4853 = vmatmul.mubr.f32.gmra.mrb[0].mxu0 %v4725
      %v4854 = vpop.f32.mrb[0].mxu0
      %v4855 = vadd.f32 %v670, %v4854
      %v4856 = vpop.f32.mrb[0].mxu0
      %4857 = vmatprep.mubr.f32.mxu0 0.0
      %4858 = vmatmul.mubr.f32.gmra.mrb[0].mxu0 %v4728
      %v4859 = vpop.f32.mrb[0].mxu0
      %v4860 = vadd.f32 %v670, %v4859
      %v4861 = vpop.f32.mrb[0].mxu0
      %4862 = vmatprep.mubr.f32.mxu0 0.0
      %4863 = vmatmul.mubr.f32.gmra.mrb[0].mxu0 %v4731
      %v4864 = vpop.f32.mrb[0].mxu0
      %v4865 = vadd.f32 %v670, %v4864
      %v4866 = vpop.f32.mrb[0].mxu0
      %4867 = vmatprep.mubr.f32.mxu0 0.0
      %4868 = vmatmul.mubr.f32.gmra.mrb[0].mxu0 %v4734
      %v4869 = vpop.f32.mrb[0].mxu0
      %v4870 = vadd.f32 %v670, %v4869
      %v4871 = vpop.f32.mrb[0].mxu0
      %4872 = vmatprep.mubr.f32.mxu0 0.0
      %4873 = vmatmul.mubr.f32.gmra.mrb[0].mxu0 %v4737
      %v4874 = vpop.f32.mrb[0].mxu0
      %v4875 = vadd.f32 %v670, %v4874
      %v4876 = vpop.f32.mrb[0].mxu0
      %4877 = vmatprep.mubr.f32.mxu0 0.0
      %4878 = vmatmul.mubr.f32.gmra.mrb[0].mxu0 %v4740
      %v4879 = vpop.f32.mrb[0].mxu0
      %v4880 = vadd.f32 %v670, %v4879
      %v4881 = vpop.f32.mrb[0].mxu0
      %4882 = vmatprep.mubr.f32.mxu0 0.0
      %4883 = vmatmul.mubr.f32.gmra.mrb[0].mxu0 %v4743
      %v4884 = vpop.f32.mrb[0].mxu0
      %v4885 = vadd.f32 %v670, %v4884
      %v4886 = vpop.f32.mrb[0].mxu0
      %4887 = vmatprep.mubr.f32.mxu0 0.0
      %4888 = vmatmul.mubr.f32.gmra.mrb[0].mxu0 %v4746
      %v4889 = vpop.f32.mrb[0].mxu0
      %v4890 = vadd.f32 %v670, %v4889
      %v4891 = vpop.f32.mrb[0].mxu0
      %4892 = vdwg.mxu0
      %v4894 = vsel %vm456, %v4475, 0
      %v4897 = vsel %vm456, %v4476, 0
      %v4900 = vsel %vm456, %v4477, 0
      %v4903 = vsel %vm456, %v4478, 0
      %v4906 = vsel %vm456, %v4479, 0
      %v4909 = vsel %vm456, %v4480, 0
      %v4912 = vsel %vm456, %v4481, 0
      %v4915 = vsel %vm456, %v4482, 0
      %v4918 = vsel %vm456, %v4483, 0
      %v4921 = vsel %vm456, %v4484, 0
      %v4924 = vsel %vm456, %v4485, 0
      %v4927 = vsel %vm456, %v4486, 0
      %v4930 = vsel %vm456, %v4487, 0
      %v4933 = vsel %vm456, %v4488, 0
      %v4936 = vsel %vm456, %v4489, 0
      %v4939 = vsel %vm456, %v4490, 0
      %4941 = vmatprep.subr.mxu0 0.0
      %4942 = vmatpush1.msra.mxu0 %v386
      %4943 = vmatprep.subr.mxu0 0.0
      %4944 = vmatpush1.msra.mxu0 %v387
      %4945 = vmatprep.subr.mxu0 0.0
      %4946 = vmatpush1.msra.mxu0 %v388
      %4947 = vmatprep.subr.mxu0 0.0
      %4948 = vmatpush1.msra.mxu0 %v389
      %4949 = vmatprep.subr.mxu0 0.0
      %4950 = vmatpush1.msra.mxu0 0.0
      %4951 = vmatprep.subr.mxu0 0.0
      %4952 = vmatpush1.msra.mxu0 0.0
      %4953 = vmatprep.subr.mxu0 0.0
      %4954 = vmatpush1.msra.mxu0 0.0
      %4955 = vmatprep.subr.mxu0 0.0
      %4956 = vmatpush1.msra.mxu0 0.0
      %4957 = vmatprep.subr.mxu0 0.0
      %4958 = vmatpush1.msra.mxu0 0.0
      %4959 = vmatprep.subr.mxu0 0.0
      %4960 = vmatpush1.msra.mxu0 0.0
      %4961 = vmatprep.subr.mxu0 0.0
      %4962 = vmatpush1.msra.mxu0 0.0
      %4963 = vmatprep.subr.mxu0 0.0
      %4964 = vmatpush1.msra.mxu0 0.0
      %4965 = vmatprep.subr.mxu0 0.0
      %4966 = vmatpush1.msra.mxu0 0.0
      %4967 = vmatprep.subr.mxu0 0.0
      %4968 = vmatpush1.msra.mxu0 0.0
      %4969 = vmatprep.subr.mxu0 0.0
      %4970 = vmatpush1.msra.mxu0 0.0
      %4971 = vmatprep.subr.mxu0 0.0
      %4972 = vmatpush1.msra.mxu0 0.0
      %4973 = vmatprep.subr.mxu0 0.0
      %4974 = vmatpush1.msra.mxu0 0.0
      %4975 = vmatprep.subr.mxu0 0.0
      %4976 = vmatpush1.msra.mxu0 0.0
      %4977 = vmatprep.subr.mxu0 0.0
      %4978 = vmatpush1.msra.mxu0 0.0
      %4979 = vmatprep.subr.mxu0 0.0
      %4980 = vmatpush1.msra.mxu0 0.0
      %4981 = vmatprep.subr.mxu0 0.0
      %4982 = vmatpush1.msra.mxu0 0.0
      %4983 = vmatprep.subr.mxu0 0.0
      %4984 = vmatpush1.msra.mxu0 0.0
      %4985 = vmatprep.subr.mxu0 0.0
      %4986 = vmatpush1.msra.mxu0 0.0
      %4987 = vmatprep.subr.mxu0 0.0
      %4988 = vmatpush1.msra.mxu0 0.0
      %4989 = vmatprep.subr.mxu0 0.0
      %4990 = vmatpush1.msra.mxu0 0.0
      %4991 = vmatprep.subr.mxu0 0.0
      %4992 = vmatpush1.msra.mxu0 0.0
      %4993 = vmatprep.subr.mxu0 0.0
      %4994 = vmatpush1.msra.mxu0 0.0
      %4995 = vmatprep.subr.mxu0 0.0
      %4996 = vmatpush1.msra.mxu0 0.0
      %4997 = vmatprep.subr.mxu0 0.0
      %4998 = vmatpush1.msra.mxu0 0.0
      %4999 = vmatprep.subr.mxu0 0.0
      %5000 = vmatpush1.msra.mxu0 0.0
      %5001 = vmatprep.subr.mxu0 0.0
      %5002 = vmatpush1.msra.mxu0 0.0
      %5003 = vmatprep.subr.mxu0 0.0
      %5004 = vmatpush1.msra.mxu0 0.0
      %5005 = vmatprep.mubr.f32.mxu0 0.0
      %5006 = vmatmul.mubr.f32.gmra.mrb[0].mxu0 %v4894
      %v5007 = vpop.f32.mrb[0].mxu0
      %v5008 = vadd.f32 %v869, %v5007
      %v5009 = vpop.f32.mrb[0].mxu0
      %5010 = vmatprep.mubr.f32.mxu0 0.0
      %5011 = vmatmul.mubr.f32.gmra.mrb[0].mxu0 %v4897
      %v5012 = vpop.f32.mrb[0].mxu0
      %v5013 = vadd.f32 %v869, %v5012
      %v5014 = vpop.f32.mrb[0].mxu0
      %5015 = vmatprep.mubr.f32.mxu0 0.0
      %5016 = vmatmul.mubr.f32.gmra.mrb[0].mxu0 %v4900
      %v5017 = vpop.f32.mrb[0].mxu0
      %v5018 = vadd.f32 %v869, %v5017
      %v5019 = vpop.f32.mrb[0].mxu0
      %5020 = vmatprep.mubr.f32.mxu0 0.0
      %5021 = vmatmul.mubr.f32.gmra.mrb[0].mxu0 %v4903
      %v5022 = vpop.f32.mrb[0].mxu0
      %v5023 = vadd.f32 %v869, %v5022
      %v5024 = vpop.f32.mrb[0].mxu0
      %5025 = vmatprep.mubr.f32.mxu0 0.0
      %5026 = vmatmul.mubr.f32.gmra.mrb[0].mxu0 %v4906
      %v5027 = vpop.f32.mrb[0].mxu0
      %v5028 = vadd.f32 %v869, %v5027
      %v5029 = vpop.f32.mrb[0].mxu0
      %5030 = vmatprep.mubr.f32.mxu0 0.0
      %5031 = vmatmul.mubr.f32.gmra.mrb[0].mxu0 %v4909
      %v5032 = vpop.f32.mrb[0].mxu0
      %v5033 = vadd.f32 %v869, %v5032
      %v5034 = vpop.f32.mrb[0].mxu0
      %5035 = vmatprep.mubr.f32.mxu0 0.0
      %5036 = vmatmul.mubr.f32.gmra.mrb[0].mxu0 %v4912
      %v5037 = vpop.f32.mrb[0].mxu0
      %v5038 = vadd.f32 %v869, %v5037
      %v5039 = vpop.f32.mrb[0].mxu0
      %5040 = vmatprep.mubr.f32.mxu0 0.0
      %5041 = vmatmul.mubr.f32.gmra.mrb[0].mxu0 %v4915
      %v5042 = vpop.f32.mrb[0].mxu0
      %v5043 = vadd.f32 %v869, %v5042
      %v5044 = vpop.f32.mrb[0].mxu0
      %5045 = vmatprep.mubr.f32.mxu0 0.0
      %5046 = vmatmul.mubr.f32.gmra.mrb[0].mxu0 %v4918
      %v5047 = vpop.f32.mrb[0].mxu0
      %v5048 = vadd.f32 %v869, %v5047
      %v5049 = vpop.f32.mrb[0].mxu0
      %5050 = vmatprep.mubr.f32.mxu0 0.0
      %5051 = vmatmul.mubr.f32.gmra.mrb[0].mxu0 %v4921
      %v5052 = vpop.f32.mrb[0].mxu0
      %v5053 = vadd.f32 %v869, %v5052
      %v5054 = vpop.f32.mrb[0].mxu0
      %5055 = vmatprep.mubr.f32.mxu0 0.0
      %5056 = vmatmul.mubr.f32.gmra.mrb[0].mxu0 %v4924
      %v5057 = vpop.f32.mrb[0].mxu0
      %v5058 = vadd.f32 %v869, %v5057
      %v5059 = vpop.f32.mrb[0].mxu0
      %5060 = vmatprep.mubr.f32.mxu0 0.0
      %5061 = vmatmul.mubr.f32.gmra.mrb[0].mxu0 %v4927
      %v5062 = vpop.f32.mrb[0].mxu0
      %v5063 = vadd.f32 %v869, %v5062
      %v5064 = vpop.f32.mrb[0].mxu0
      %5065 = vmatprep.mubr.f32.mxu0 0.0
      %5066 = vmatmul.mubr.f32.gmra.mrb[0].mxu0 %v4930
      %v5067 = vpop.f32.mrb[0].mxu0
      %v5068 = vadd.f32 %v869, %v5067
      %v5069 = vpop.f32.mrb[0].mxu0
      %5070 = vmatprep.mubr.f32.mxu0 0.0
      %5071 = vmatmul.mubr.f32.gmra.mrb[0].mxu0 %v4933
      %v5072 = vpop.f32.mrb[0].mxu0
      %v5073 = vadd.f32 %v869, %v5072
      %v5074 = vpop.f32.mrb[0].mxu0
      %5075 = vmatprep.mubr.f32.mxu0 0.0
      %5076 = vmatmul.mubr.f32.gmra.mrb[0].mxu0 %v4936
      %v5077 = vpop.f32.mrb[0].mxu0
      %v5078 = vadd.f32 %v869, %v5077
      %v5079 = vpop.f32.mrb[0].mxu0
      %5080 = vmatprep.mubr.f32.mxu0 0.0
      %5081 = vmatmul.mubr.f32.gmra.mrb[0].mxu0 %v4939
      %v5082 = vpop.f32.mrb[0].mxu0
      %v5083 = vadd.f32 %v869, %v5082
      %v5084 = vpop.f32.mrb[0].mxu0
      %5085 = vdwg.mxu0
      %s5086 = scalar_lea.vmem %s361, 128
      %v5087 = vld [vmem:[%s5086] sm:$0xff]
      %v5088 = vld [vmem:[%s5086 + $0x8] sm:$0xff]
      %v5089 = vld [vmem:[%s5086 + $0x10] sm:$0xff]
      %v5090 = vld [vmem:[%s5086 + $0x18] sm:$0xff]
      %v5091 = vld [vmem:[%s5086 + $0x20] sm:$0xff]
      %v5092 = vld [vmem:[%s5086 + $0x28] sm:$0xff]
      %v5093 = vld [vmem:[%s5086 + $0x30] sm:$0xff]
      %v5094 = vld [vmem:[%s5086 + $0x38] sm:$0xff]
      %v5095 = vld [vmem:[%s5086 + $0x40] sm:$0xff]
      %v5096 = vld [vmem:[%s5086 + $0x48] sm:$0xff]
      %v5097 = vld [vmem:[%s5086 + $0x50] sm:$0xff]
      %v5098 = vld [vmem:[%s5086 + $0x58] sm:$0xff]
      %v5099 = vld [vmem:[%s5086 + $0x60] sm:$0xff]
      %v5100 = vld [vmem:[%s5086 + $0x68] sm:$0xff]
      %v5101 = vld [vmem:[%s5086 + $0x70] sm:$0xff]
      %v5102 = vld [vmem:[%s5086 + $0x78] sm:$0xff]
      %s5103 = scalar_lea.vmem %s368, 128
      %v5104 = vld [vmem:[%s5103] sm:$0xff]
      %v5105 = vld [vmem:[%s5103 + $0x8] sm:$0xff]
      %v5106 = vld [vmem:[%s5103 + $0x10] sm:$0xff]
      %v5107 = vld [vmem:[%s5103 + $0x18] sm:$0xff]
      %v5108 = vld [vmem:[%s5103 + $0x20] sm:$0xff]
      %v5109 = vld [vmem:[%s5103 + $0x28] sm:$0xff]
      %v5110 = vld [vmem:[%s5103 + $0x30] sm:$0xff]
      %v5111 = vld [vmem:[%s5103 + $0x38] sm:$0xff]
      %v5112 = vld [vmem:[%s5103 + $0x40] sm:$0xff]
      %v5113 = vld [vmem:[%s5103 + $0x48] sm:$0xff]
      %v5114 = vld [vmem:[%s5103 + $0x50] sm:$0xff]
      %v5115 = vld [vmem:[%s5103 + $0x58] sm:$0xff]
      %v5116 = vld [vmem:[%s5103 + $0x60] sm:$0xff]
      %v5117 = vld [vmem:[%s5103 + $0x68] sm:$0xff]
      %v5118 = vld [vmem:[%s5103 + $0x70] sm:$0xff]
      %v5119 = vld [vmem:[%s5103 + $0x78] sm:$0xff]
      %v5121 = vsel %vm1096, %v4684, 0
      %v5124 = vsel %vm1096, %v4685, 0
      %v5127 = vsel %vm1096, %v4686, 0
      %v5130 = vsel %vm1096, %v4687, 0
      %v5133 = vsel %vm1096, %v4688, 0
      %v5136 = vsel %vm1096, %v4689, 0
      %v5139 = vsel %vm1096, %v4690, 0
      %v5142 = vsel %vm1096, %v4691, 0
      %v5145 = vsel %vm1096, %v4692, 0
      %v5148 = vsel %vm1096, %v4693, 0
      %v5151 = vsel %vm1096, %v4694, 0
      %v5154 = vsel %vm1096, %v4695, 0
      %v5157 = vsel %vm1096, %v4696, 0
      %v5160 = vsel %vm1096, %v4697, 0
      %v5163 = vsel %vm1096, %v4698, 0
      %v5166 = vsel %vm1096, %v4699, 0
      %v5169 = vsel %vm1096, %v4815, 0
      %v5172 = vsel %vm1096, %v4820, 0
      %v5175 = vsel %vm1096, %v4825, 0
      %v5178 = vsel %vm1096, %v4830, 0
      %v5181 = vsel %vm1096, %v4835, 0
      %v5184 = vsel %vm1096, %v4840, 0
      %v5187 = vsel %vm1096, %v4845, 0
      %v5190 = vsel %vm1096, %v4850, 0
      %v5193 = vsel %vm1096, %v4855, 0
      %v5196 = vsel %vm1096, %v4860, 0
      %v5199 = vsel %vm1096, %v4865, 0
      %v5202 = vsel %vm1096, %v4870, 0
      %v5205 = vsel %vm1096, %v4875, 0
      %v5208 = vsel %vm1096, %v4880, 0
      %v5211 = vsel %vm1096, %v4885, 0
      %v5214 = vsel %vm1096, %v4890, 0
      %5216 = vmatprep.subr.mxu0 0.0
      %5217 = vmatpush1.xpose.msra.mxu0 %v5169
      %5218 = vmatprep.subr.mxu0 0.0
      %5219 = vmatpush1.xpose.msra.mxu0 %v5172
      %5220 = vmatprep.subr.mxu0 0.0
      %5221 = vmatpush1.xpose.msra.mxu0 %v5175
      %5222 = vmatprep.subr.mxu0 0.0
      %5223 = vmatpush1.xpose.msra.mxu0 %v5178
      %5224 = vmatprep.subr.mxu0 0.0
      %5225 = vmatpush1.xpose.msra.mxu0 %v5181
      %5226 = vmatprep.subr.mxu0 0.0
      %5227 = vmatpush1.xpose.msra.mxu0 %v5184
      %5228 = vmatprep.subr.mxu0 0.0
      %5229 = vmatpush1.xpose.msra.mxu0 %v5187
      %5230 = vmatprep.subr.mxu0 0.0
      %5231 = vmatpush1.xpose.msra.mxu0 %v5190
      %5232 = vmatprep.subr.mxu0 0.0
      %5233 = vmatpush1.xpose.msra.mxu0 %v5193
      %5234 = vmatprep.subr.mxu0 0.0
      %5235 = vmatpush1.xpose.msra.mxu0 %v5196
      %5236 = vmatprep.subr.mxu0 0.0
      %5237 = vmatpush1.xpose.msra.mxu0 %v5199
      %5238 = vmatprep.subr.mxu0 0.0
      %5239 = vmatpush1.xpose.msra.mxu0 %v5202
      %5240 = vmatprep.subr.mxu0 0.0
      %5241 = vmatpush1.xpose.msra.mxu0 %v5205
      %5242 = vmatprep.subr.mxu0 0.0
      %5243 = vmatpush1.xpose.msra.mxu0 %v5208
      %5244 = vmatprep.subr.mxu0 0.0
      %5245 = vmatpush1.xpose.msra.mxu0 %v5211
      %5246 = vmatprep.subr.mxu0 0.0
      %5247 = vmatpush1.xpose.msra.mxu0 %v5214
      %5248 = vmatprep.subr.mxu0 0.0
      %5249 = vmatpush1.xpose.msra.mxu0 0.0
      %5250 = vmatprep.subr.mxu0 0.0
      %5251 = vmatpush1.xpose.msra.mxu0 0.0
      %5252 = vmatprep.subr.mxu0 0.0
      %5253 = vmatpush1.xpose.msra.mxu0 0.0
      %5254 = vmatprep.subr.mxu0 0.0
      %5255 = vmatpush1.xpose.msra.mxu0 0.0
      %5256 = vmatprep.subr.mxu0 0.0
      %5257 = vmatpush1.xpose.msra.mxu0 0.0
      %5258 = vmatprep.subr.mxu0 0.0
      %5259 = vmatpush1.xpose.msra.mxu0 0.0
      %5260 = vmatprep.subr.mxu0 0.0
      %5261 = vmatpush1.xpose.msra.mxu0 0.0
      %5262 = vmatprep.subr.mxu0 0.0
      %5263 = vmatpush1.xpose.msra.mxu0 0.0
      %5264 = vmatprep.subr.mxu0 0.0
      %5265 = vmatpush1.xpose.msra.mxu0 0.0
      %5266 = vmatprep.subr.mxu0 0.0
      %5267 = vmatpush1.xpose.msra.mxu0 0.0
      %5268 = vmatprep.subr.mxu0 0.0
      %5269 = vmatpush1.xpose.msra.mxu0 0.0
      %5270 = vmatprep.subr.mxu0 0.0
      %5271 = vmatpush1.xpose.msra.mxu0 0.0
      %5272 = vmatprep.subr.mxu0 0.0
      %5273 = vmatpush1.xpose.msra.mxu0 0.0
      %5274 = vmatprep.subr.mxu0 0.0
      %5275 = vmatpush1.xpose.msra.mxu0 0.0
      %5276 = vmatprep.subr.mxu0 0.0
      %5277 = vmatpush1.xpose.msra.mxu0 0.0
      %5278 = vmatprep.subr.mxu0 0.0
      %5279 = vmatpush1.xpose.msra.mxu0 0.0
      %5280 = vmatprep.mubr.f32.mxu0 0.0
      %5281 = vmatmul.mubr.f32.gmra.mrb[0].mxu0 %v5121
      %v5282 = vpop.f32.mrb[0].mxu0
      %v5283 = vadd.f32 %v5087, %v5282
      %v5284 = vpop.f32.mrb[0].mxu0
      %5285 = vmatprep.mubr.f32.mxu0 0.0
      %5286 = vmatmul.mubr.f32.gmra.mrb[0].mxu0 %v5124
      %v5287 = vpop.f32.mrb[0].mxu0
      %v5288 = vadd.f32 %v5088, %v5287
      %v5289 = vpop.f32.mrb[0].mxu0
      %5290 = vmatprep.mubr.f32.mxu0 0.0
      %5291 = vmatmul.mubr.f32.gmra.mrb[0].mxu0 %v5127
      %v5292 = vpop.f32.mrb[0].mxu0
      %v5293 = vadd.f32 %v5089, %v5292
      %v5294 = vpop.f32.mrb[0].mxu0
      %5295 = vmatprep.mubr.f32.mxu0 0.0
      %5296 = vmatmul.mubr.f32.gmra.mrb[0].mxu0 %v5130
      %v5297 = vpop.f32.mrb[0].mxu0
      %v5298 = vadd.f32 %v5090, %v5297
      %v5299 = vpop.f32.mrb[0].mxu0
      %5300 = vmatprep.mubr.f32.mxu0 0.0
      %5301 = vmatmul.mubr.f32.gmra.mrb[0].mxu0 %v5133
      %v5302 = vpop.f32.mrb[0].mxu0
      %v5303 = vadd.f32 %v5091, %v5302
      %v5304 = vpop.f32.mrb[0].mxu0
      %5305 = vmatprep.mubr.f32.mxu0 0.0
      %5306 = vmatmul.mubr.f32.gmra.mrb[0].mxu0 %v5136
      %v5307 = vpop.f32.mrb[0].mxu0
      %v5308 = vadd.f32 %v5092, %v5307
      %v5309 = vpop.f32.mrb[0].mxu0
      %5310 = vmatprep.mubr.f32.mxu0 0.0
      %5311 = vmatmul.mubr.f32.gmra.mrb[0].mxu0 %v5139
      %v5312 = vpop.f32.mrb[0].mxu0
      %v5313 = vadd.f32 %v5093, %v5312
      %v5314 = vpop.f32.mrb[0].mxu0
      %5315 = vmatprep.mubr.f32.mxu0 0.0
      %5316 = vmatmul.mubr.f32.gmra.mrb[0].mxu0 %v5142
      %v5317 = vpop.f32.mrb[0].mxu0
      %v5318 = vadd.f32 %v5094, %v5317
      %v5319 = vpop.f32.mrb[0].mxu0
      %5320 = vmatprep.mubr.f32.mxu0 0.0
      %5321 = vmatmul.mubr.f32.gmra.mrb[0].mxu0 %v5145
      %v5322 = vpop.f32.mrb[0].mxu0
      %v5323 = vadd.f32 %v5095, %v5322
      %v5324 = vpop.f32.mrb[0].mxu0
      %5325 = vmatprep.mubr.f32.mxu0 0.0
      %5326 = vmatmul.mubr.f32.gmra.mrb[0].mxu0 %v5148
      %v5327 = vpop.f32.mrb[0].mxu0
      %v5328 = vadd.f32 %v5096, %v5327
      %v5329 = vpop.f32.mrb[0].mxu0
      %5330 = vmatprep.mubr.f32.mxu0 0.0
      %5331 = vmatmul.mubr.f32.gmra.mrb[0].mxu0 %v5151
      %v5332 = vpop.f32.mrb[0].mxu0
      %v5333 = vadd.f32 %v5097, %v5332
      %v5334 = vpop.f32.mrb[0].mxu0
      %5335 = vmatprep.mubr.f32.mxu0 0.0
      %5336 = vmatmul.mubr.f32.gmra.mrb[0].mxu0 %v5154
      %v5337 = vpop.f32.mrb[0].mxu0
      %v5338 = vadd.f32 %v5098, %v5337
      %v5339 = vpop.f32.mrb[0].mxu0
      %5340 = vmatprep.mubr.f32.mxu0 0.0
      %5341 = vmatmul.mubr.f32.gmra.mrb[0].mxu0 %v5157
      %v5342 = vpop.f32.mrb[0].mxu0
      %v5343 = vadd.f32 %v5099, %v5342
      %v5344 = vpop.f32.mrb[0].mxu0
      %5345 = vmatprep.mubr.f32.mxu0 0.0
      %5346 = vmatmul.mubr.f32.gmra.mrb[0].mxu0 %v5160
      %v5347 = vpop.f32.mrb[0].mxu0
      %v5348 = vadd.f32 %v5100, %v5347
      %v5349 = vpop.f32.mrb[0].mxu0
      %5350 = vmatprep.mubr.f32.mxu0 0.0
      %5351 = vmatmul.mubr.f32.gmra.mrb[0].mxu0 %v5163
      %v5352 = vpop.f32.mrb[0].mxu0
      %v5353 = vadd.f32 %v5101, %v5352
      %v5354 = vpop.f32.mrb[0].mxu0
      %5355 = vmatprep.mubr.f32.mxu0 0.0
      %5356 = vmatmul.mubr.f32.gmra.mrb[0].mxu0 %v5166
      %v5357 = vpop.f32.mrb[0].mxu0
      %v5358 = vadd.f32 %v5102, %v5357
      %v5359 = vpop.f32.mrb[0].mxu0
      %5360 = vdwg.mxu0
      %5361 = vmax.xlane.f32.xlu0 %v5283
      %v5362 = vpop.xlane.xlu0 %5361
      %5363 = vmax.xlane.f32.xlu0 %v5288
      %v5364 = vpop.xlane.xlu0 %5363
      %5365 = vmax.xlane.f32.xlu0 %v5293
      %v5366 = vpop.xlane.xlu0 %5365
      %5367 = vmax.xlane.f32.xlu0 %v5298
      %v5368 = vpop.xlane.xlu0 %5367
      %5369 = vmax.xlane.f32.xlu0 %v5303
      %v5370 = vpop.xlane.xlu0 %5369
      %5371 = vmax.xlane.f32.xlu0 %v5308
      %v5372 = vpop.xlane.xlu0 %5371
      %5373 = vmax.xlane.f32.xlu0 %v5313
      %v5374 = vpop.xlane.xlu0 %5373
      %5375 = vmax.xlane.f32.xlu0 %v5318
      %v5376 = vpop.xlane.xlu0 %5375
      %5377 = vmax.xlane.f32.xlu0 %v5323
      %v5378 = vpop.xlane.xlu0 %5377
      %5379 = vmax.xlane.f32.xlu0 %v5328
      %v5380 = vpop.xlane.xlu0 %5379
      %5381 = vmax.xlane.f32.xlu0 %v5333
      %v5382 = vpop.xlane.xlu0 %5381
      %5383 = vmax.xlane.f32.xlu0 %v5338
      %v5384 = vpop.xlane.xlu0 %5383
      %5385 = vmax.xlane.f32.xlu0 %v5343
      %v5386 = vpop.xlane.xlu0 %5385
      %5387 = vmax.xlane.f32.xlu0 %v5348
      %v5388 = vpop.xlane.xlu0 %5387
      %5389 = vmax.xlane.f32.xlu0 %v5353
      %v5390 = vpop.xlane.xlu0 %5389
      %5391 = vmax.xlane.f32.xlu0 %v5358
      %v5392 = vpop.xlane.xlu0 %5391
      %v5393 = vsub.f32 %v5283, %v5362
      %v5394 = vsub.f32 %v5288, %v5364
      %v5395 = vsub.f32 %v5293, %v5366
      %v5396 = vsub.f32 %v5298, %v5368
      %v5397 = vsub.f32 %v5303, %v5370
      %v5398 = vsub.f32 %v5308, %v5372
      %v5399 = vsub.f32 %v5313, %v5374
      %v5400 = vsub.f32 %v5318, %v5376
      %v5401 = vsub.f32 %v5323, %v5378
      %v5402 = vsub.f32 %v5328, %v5380
      %v5403 = vsub.f32 %v5333, %v5382
      %v5404 = vsub.f32 %v5338, %v5384
      %v5405 = vsub.f32 %v5343, %v5386
      %v5406 = vsub.f32 %v5348, %v5388
      %v5407 = vsub.f32 %v5353, %v5390
      %v5408 = vsub.f32 %v5358, %v5392
      %v5409 = vmul.f32 %v5393, 1.442695
      %v5410 = vpow.pop %v5409
      %v5411 = vmul.f32 %v5394, 1.442695
      %v5412 = vpow.pop %v5411
      %v5413 = vmul.f32 %v5395, 1.442695
      %v5414 = vpow.pop %v5413
      %v5415 = vmul.f32 %v5396, 1.442695
      %v5416 = vpow.pop %v5415
      %v5417 = vmul.f32 %v5397, 1.442695
      %v5418 = vpow.pop %v5417
      %v5419 = vmul.f32 %v5398, 1.442695
      %v5420 = vpow.pop %v5419
      %v5421 = vmul.f32 %v5399, 1.442695
      %v5422 = vpow.pop %v5421
      %v5423 = vmul.f32 %v5400, 1.442695
      %v5424 = vpow.pop %v5423
      %v5425 = vmul.f32 %v5401, 1.442695
      %v5426 = vpow.pop %v5425
      %v5427 = vmul.f32 %v5402, 1.442695
      %v5428 = vpow.pop %v5427
      %v5429 = vmul.f32 %v5403, 1.442695
      %v5430 = vpow.pop %v5429
      %v5431 = vmul.f32 %v5404, 1.442695
      %v5432 = vpow.pop %v5431
      %v5433 = vmul.f32 %v5405, 1.442695
      %v5434 = vpow.pop %v5433
      %v5435 = vmul.f32 %v5406, 1.442695
      %v5436 = vpow.pop %v5435
      %v5437 = vmul.f32 %v5407, 1.442695
      %v5438 = vpow.pop %v5437
      %v5439 = vmul.f32 %v5408, 1.442695
      %v5440 = vpow.pop %v5439
      %5441 = vadd.xlane.f32.xlu0 %v5410
      %v5442 = vpop.xlane.xlu0 %5441
      %5443 = vadd.xlane.f32.xlu0 %v5412
      %v5444 = vpop.xlane.xlu0 %5443
      %5445 = vadd.xlane.f32.xlu0 %v5414
      %v5446 = vpop.xlane.xlu0 %5445
      %5447 = vadd.xlane.f32.xlu0 %v5416
      %v5448 = vpop.xlane.xlu0 %5447
      %5449 = vadd.xlane.f32.xlu0 %v5418
      %v5450 = vpop.xlane.xlu0 %5449
      %5451 = vadd.xlane.f32.xlu0 %v5420
      %v5452 = vpop.xlane.xlu0 %5451
      %5453 = vadd.xlane.f32.xlu0 %v5422
      %v5454 = vpop.xlane.xlu0 %5453
      %5455 = vadd.xlane.f32.xlu0 %v5424
      %v5456 = vpop.xlane.xlu0 %5455
      %5457 = vadd.xlane.f32.xlu0 %v5426
      %v5458 = vpop.xlane.xlu0 %5457
      %5459 = vadd.xlane.f32.xlu0 %v5428
      %v5460 = vpop.xlane.xlu0 %5459
      %5461 = vadd.xlane.f32.xlu0 %v5430
      %v5462 = vpop.xlane.xlu0 %5461
      %5463 = vadd.xlane.f32.xlu0 %v5432
      %v5464 = vpop.xlane.xlu0 %5463
      %5465 = vadd.xlane.f32.xlu0 %v5434
      %v5466 = vpop.xlane.xlu0 %5465
      %5467 = vadd.xlane.f32.xlu0 %v5436
      %v5468 = vpop.xlane.xlu0 %5467
      %5469 = vadd.xlane.f32.xlu0 %v5438
      %v5470 = vpop.xlane.xlu0 %5469
      %5471 = vadd.xlane.f32.xlu0 %v5440
      %v5472 = vpop.xlane.xlu0 %5471
      %v5473 = vrcp.pop %v5442
      %v5474 = vrcp.pop %v5444
      %v5475 = vrcp.pop %v5446
      %v5476 = vrcp.pop %v5448
      %v5477 = vrcp.pop %v5450
      %v5478 = vrcp.pop %v5452
      %v5479 = vrcp.pop %v5454
      %v5480 = vrcp.pop %v5456
      %v5481 = vrcp.pop %v5458
      %v5482 = vrcp.pop %v5460
      %v5483 = vrcp.pop %v5462
      %v5484 = vrcp.pop %v5464
      %v5485 = vrcp.pop %v5466
      %v5486 = vrcp.pop %v5468
      %v5487 = vrcp.pop %v5470
      %v5488 = vrcp.pop %v5472
      %v5489 = vmul.f32 %v5473, 0.5
      %v5490 = vmul.f32 %v5474, 0.5
      %v5491 = vmul.f32 %v5475, 0.5
      %v5492 = vmul.f32 %v5476, 0.5
      %v5493 = vmul.f32 %v5477, 0.5
      %v5494 = vmul.f32 %v5478, 0.5
      %v5495 = vmul.f32 %v5479, 0.5
      %v5496 = vmul.f32 %v5480, 0.5
      %v5497 = vmul.f32 %v5481, 0.5
      %v5498 = vmul.f32 %v5482, 0.5
      %v5499 = vmul.f32 %v5483, 0.5
      %v5500 = vmul.f32 %v5484, 0.5
      %v5501 = vmul.f32 %v5485, 0.5
      %v5502 = vmul.f32 %v5486, 0.5
      %v5503 = vmul.f32 %v5487, 0.5
      %v5504 = vmul.f32 %v5488, 0.5
      %v5505 = vmul.f32 %v5410, %v5489
      %v5506 = vmul.f32 %v5412, %v5490
      %v5507 = vmul.f32 %v5414, %v5491
      %v5508 = vmul.f32 %v5416, %v5492
      %v5509 = vmul.f32 %v5418, %v5493
      %v5510 = vmul.f32 %v5420, %v5494
      %v5511 = vmul.f32 %v5422, %v5495
      %v5512 = vmul.f32 %v5424, %v5496
      %v5513 = vmul.f32 %v5426, %v5497
      %v5514 = vmul.f32 %v5428, %v5498
      %v5515 = vmul.f32 %v5430, %v5499
      %v5516 = vmul.f32 %v5432, %v5500
      %v5517 = vmul.f32 %v5434, %v5501
      %v5518 = vmul.f32 %v5436, %v5502
      %v5519 = vmul.f32 %v5438, %v5503
      %v5520 = vmul.f32 %v5440, %v5504
      %v5521 = vadd.f32 %v5505, %v5104
      %v5522 = vadd.f32 %v5506, %v5105
      %v5523 = vadd.f32 %v5507, %v5106
      %v5524 = vadd.f32 %v5508, %v5107
      %v5525 = vadd.f32 %v5509, %v5108
      %v5526 = vadd.f32 %v5510, %v5109
      %v5527 = vadd.f32 %v5511, %v5110
      %v5528 = vadd.f32 %v5512, %v5111
      %v5529 = vadd.f32 %v5513, %v5112
      %v5530 = vadd.f32 %v5514, %v5113
      %v5531 = vadd.f32 %v5515, %v5114
      %v5532 = vadd.f32 %v5516, %v5115
      %v5533 = vadd.f32 %v5517, %v5116
      %v5534 = vadd.f32 %v5518, %v5117
      %v5535 = vadd.f32 %v5519, %v5118
      %v5536 = vadd.f32 %v5520, %v5119
      %5537 = vmatprep.subr.mxu0 0.0
      %5538 = vmatpush1.msra.mxu0 %v5008
      %5539 = vmatprep.subr.mxu0 0.0
      %5540 = vmatpush1.msra.mxu0 %v5013
      %5541 = vmatprep.subr.mxu0 0.0
      %5542 = vmatpush1.msra.mxu0 %v5018
      %5543 = vmatprep.subr.mxu0 0.0
      %5544 = vmatpush1.msra.mxu0 %v5023
      %5545 = vmatprep.subr.mxu0 0.0
      %5546 = vmatpush1.msra.mxu0 %v5028
      %5547 = vmatprep.subr.mxu0 0.0
      %5548 = vmatpush1.msra.mxu0 %v5033
      %5549 = vmatprep.subr.mxu0 0.0
      %5550 = vmatpush1.msra.mxu0 %v5038
      %5551 = vmatprep.subr.mxu0 0.0
      %5552 = vmatpush1.msra.mxu0 %v5043
      %5553 = vmatprep.subr.mxu0 0.0
      %5554 = vmatpush1.msra.mxu0 %v5048
      %5555 = vmatprep.subr.mxu0 0.0
      %5556 = vmatpush1.msra.mxu0 %v5053
      %5557 = vmatprep.subr.mxu0 0.0
      %5558 = vmatpush1.msra.mxu0 %v5058
      %5559 = vmatprep.subr.mxu0 0.0
      %5560 = vmatpush1.msra.mxu0 %v5063
      %5561 = vmatprep.subr.mxu0 0.0
      %5562 = vmatpush1.msra.mxu0 %v5068
      %5563 = vmatprep.subr.mxu0 0.0
      %5564 = vmatpush1.msra.mxu0 %v5073
      %5565 = vmatprep.subr.mxu0 0.0
      %5566 = vmatpush1.msra.mxu0 %v5078
      %5567 = vmatprep.subr.mxu0 0.0
      %5568 = vmatpush1.msra.mxu0 %v5083
      %5569 = vmatprep.subr.mxu0 0.0
      %5570 = vmatpush1.msra.mxu0 0.0
      %5571 = vmatprep.subr.mxu0 0.0
      %5572 = vmatpush1.msra.mxu0 0.0
      %5573 = vmatprep.subr.mxu0 0.0
      %5574 = vmatpush1.msra.mxu0 0.0
      %5575 = vmatprep.subr.mxu0 0.0
      %5576 = vmatpush1.msra.mxu0 0.0
      %5577 = vmatprep.subr.mxu0 0.0
      %5578 = vmatpush1.msra.mxu0 0.0
      %5579 = vmatprep.subr.mxu0 0.0
      %5580 = vmatpush1.msra.mxu0 0.0
      %5581 = vmatprep.subr.mxu0 0.0
      %5582 = vmatpush1.msra.mxu0 0.0
      %5583 = vmatprep.subr.mxu0 0.0
      %5584 = vmatpush1.msra.mxu0 0.0
      %5585 = vmatprep.subr.mxu0 0.0
      %5586 = vmatpush1.msra.mxu0 0.0
      %5587 = vmatprep.subr.mxu0 0.0
      %5588 = vmatpush1.msra.mxu0 0.0
      %5589 = vmatprep.subr.mxu0 0.0
      %5590 = vmatpush1.msra.mxu0 0.0
      %5591 = vmatprep.subr.mxu0 0.0
      %5592 = vmatpush1.msra.mxu0 0.0
      %5593 = vmatprep.subr.mxu0 0.0
      %5594 = vmatpush1.msra.mxu0 0.0
      %5595 = vmatprep.subr.mxu0 0.0
      %5596 = vmatpush1.msra.mxu0 0.0
      %5597 = vmatprep.subr.mxu0 0.0
      %5598 = vmatpush1.msra.mxu0 0.0
      %5599 = vmatprep.subr.mxu0 0.0
      %5600 = vmatpush1.msra.mxu0 0.0
      %5601 = vmatprep.mubr.f32.mxu0 0.0
      %5602 = vmatmul.mubr.f32.gmra.mrb[0].mxu0 %v5521
      %v5603 = vpop.f32.mrb[0].mxu0
      %v5604 = vadd.f32 0.0, %v5603
      %v5605 = vpop.f32.mrb[0].mxu0
      %5606 = vmatprep.mubr.f32.mxu0 0.0
      %5607 = vmatmul.mubr.f32.gmra.mrb[0].mxu0 %v5522
      %v5608 = vpop.f32.mrb[0].mxu0
      %v5609 = vadd.f32 0.0, %v5608
      %v5610 = vpop.f32.mrb[0].mxu0
      %5611 = vmatprep.mubr.f32.mxu0 0.0
      %5612 = vmatmul.mubr.f32.gmra.mrb[0].mxu0 %v5523
      %v5613 = vpop.f32.mrb[0].mxu0
      %v5614 = vadd.f32 0.0, %v5613
      %v5615 = vpop.f32.mrb[0].mxu0
      %5616 = vmatprep.mubr.f32.mxu0 0.0
      %5617 = vmatmul.mubr.f32.gmra.mrb[0].mxu0 %v5524
      %v5618 = vpop.f32.mrb[0].mxu0
      %v5619 = vadd.f32 0.0, %v5618
      %v5620 = vpop.f32.mrb[0].mxu0
      %5621 = vmatprep.mubr.f32.mxu0 0.0
      %5622 = vmatmul.mubr.f32.gmra.mrb[0].mxu0 %v5525
      %v5623 = vpop.f32.mrb[0].mxu0
      %v5624 = vadd.f32 0.0, %v5623
      %v5625 = vpop.f32.mrb[0].mxu0
      %5626 = vmatprep.mubr.f32.mxu0 0.0
      %5627 = vmatmul.mubr.f32.gmra.mrb[0].mxu0 %v5526
      %v5628 = vpop.f32.mrb[0].mxu0
      %v5629 = vadd.f32 0.0, %v5628
      %v5630 = vpop.f32.mrb[0].mxu0
      %5631 = vmatprep.mubr.f32.mxu0 0.0
      %5632 = vmatmul.mubr.f32.gmra.mrb[0].mxu0 %v5527
      %v5633 = vpop.f32.mrb[0].mxu0
      %v5634 = vadd.f32 0.0, %v5633
      %v5635 = vpop.f32.mrb[0].mxu0
      %5636 = vmatprep.mubr.f32.mxu0 0.0
      %5637 = vmatmul.mubr.f32.gmra.mrb[0].mxu0 %v5528
      %v5638 = vpop.f32.mrb[0].mxu0
      %v5639 = vadd.f32 0.0, %v5638
      %v5640 = vpop.f32.mrb[0].mxu0
      %5641 = vmatprep.mubr.f32.mxu0 0.0
      %5642 = vmatmul.mubr.f32.gmra.mrb[0].mxu0 %v5529
      %v5643 = vpop.f32.mrb[0].mxu0
      %v5644 = vadd.f32 0.0, %v5643
      %v5645 = vpop.f32.mrb[0].mxu0
      %5646 = vmatprep.mubr.f32.mxu0 0.0
      %5647 = vmatmul.mubr.f32.gmra.mrb[0].mxu0 %v5530
      %v5648 = vpop.f32.mrb[0].mxu0
      %v5649 = vadd.f32 0.0, %v5648
      %v5650 = vpop.f32.mrb[0].mxu0
      %5651 = vmatprep.mubr.f32.mxu0 0.0
      %5652 = vmatmul.mubr.f32.gmra.mrb[0].mxu0 %v5531
      %v5653 = vpop.f32.mrb[0].mxu0
      %v5654 = vadd.f32 0.0, %v5653
      %v5655 = vpop.f32.mrb[0].mxu0
      %5656 = vmatprep.mubr.f32.mxu0 0.0
      %5657 = vmatmul.mubr.f32.gmra.mrb[0].mxu0 %v5532
      %v5658 = vpop.f32.mrb[0].mxu0
      %v5659 = vadd.f32 0.0, %v5658
      %v5660 = vpop.f32.mrb[0].mxu0
      %5661 = vmatprep.mubr.f32.mxu0 0.0
      %5662 = vmatmul.mubr.f32.gmra.mrb[0].mxu0 %v5533
      %v5663 = vpop.f32.mrb[0].mxu0
      %v5664 = vadd.f32 0.0, %v5663
      %v5665 = vpop.f32.mrb[0].mxu0
      %5666 = vmatprep.mubr.f32.mxu0 0.0
      %5667 = vmatmul.mubr.f32.gmra.mrb[0].mxu0 %v5534
      %v5668 = vpop.f32.mrb[0].mxu0
      %v5669 = vadd.f32 0.0, %v5668
      %v5670 = vpop.f32.mrb[0].mxu0
      %5671 = vmatprep.mubr.f32.mxu0 0.0
      %5672 = vmatmul.mubr.f32.gmra.mrb[0].mxu0 %v5535
      %v5673 = vpop.f32.mrb[0].mxu0
      %v5674 = vadd.f32 0.0, %v5673
      %v5675 = vpop.f32.mrb[0].mxu0
      %5676 = vmatprep.mubr.f32.mxu0 0.0
      %5677 = vmatmul.mubr.f32.gmra.mrb[0].mxu0 %v5536
      %v5678 = vpop.f32.mrb[0].mxu0
      %v5679 = vadd.f32 0.0, %v5678
      %v5680 = vpop.f32.mrb[0].mxu0
      %5681 = vdwg.mxu0
      %5682 = vrot.lane.b32.xlu0 %v4684, 120
      %v5683 = vpop.permute.xlu0 %5682
      %5684 = vrot.lane.b32.xlu0 %v4685, 120
      %v5685 = vpop.permute.xlu0 %5684
      %5686 = vrot.lane.b32.xlu0 %v4686, 120
      %v5687 = vpop.permute.xlu0 %5686
      %5688 = vrot.lane.b32.xlu0 %v4687, 120
      %v5689 = vpop.permute.xlu0 %5688
      %5690 = vrot.lane.b32.xlu0 %v4688, 120
      %v5691 = vpop.permute.xlu0 %5690
      %5692 = vrot.lane.b32.xlu0 %v4689, 120
      %v5693 = vpop.permute.xlu0 %5692
      %5694 = vrot.lane.b32.xlu0 %v4690, 120
      %v5695 = vpop.permute.xlu0 %5694
      %5696 = vrot.lane.b32.xlu0 %v4691, 120
      %v5697 = vpop.permute.xlu0 %5696
      %5698 = vrot.lane.b32.xlu0 %v4692, 120
      %v5699 = vpop.permute.xlu0 %5698
      %5700 = vrot.lane.b32.xlu0 %v4693, 120
      %v5701 = vpop.permute.xlu0 %5700
      %5702 = vrot.lane.b32.xlu0 %v4694, 120
      %v5703 = vpop.permute.xlu0 %5702
      %5704 = vrot.lane.b32.xlu0 %v4695, 120
      %v5705 = vpop.permute.xlu0 %5704
      %5706 = vrot.lane.b32.xlu0 %v4696, 120
      %v5707 = vpop.permute.xlu0 %5706
      %5708 = vrot.lane.b32.xlu0 %v4697, 120
      %v5709 = vpop.permute.xlu0 %5708
      %5710 = vrot.lane.b32.xlu0 %v4698, 120
      %v5711 = vpop.permute.xlu0 %5710
      %5712 = vrot.lane.b32.xlu0 %v4699, 120
      %v5713 = vpop.permute.xlu0 %5712
      %5714 = vrot.lane.b32.xlu0 %v4815, 120
      %v5715 = vpop.permute.xlu0 %5714
      %5716 = vrot.lane.b32.xlu0 %v4820, 120
      %v5717 = vpop.permute.xlu0 %5716
      %5718 = vrot.lane.b32.xlu0 %v4825, 120
      %v5719 = vpop.permute.xlu0 %5718
      %5720 = vrot.lane.b32.xlu0 %v4830, 120
      %v5721 = vpop.permute.xlu0 %5720
      %5722 = vrot.lane.b32.xlu0 %v4835, 120
      %v5723 = vpop.permute.xlu0 %5722
      %5724 = vrot.lane.b32.xlu0 %v4840, 120
      %v5725 = vpop.permute.xlu0 %5724
      %5726 = vrot.lane.b32.xlu0 %v4845, 120
      %v5727 = vpop.permute.xlu0 %5726
      %5728 = vrot.lane.b32.xlu0 %v4850, 120
      %v5729 = vpop.permute.xlu0 %5728
      %5730 = vrot.lane.b32.xlu0 %v4855, 120
      %v5731 = vpop.permute.xlu0 %5730
      %5732 = vrot.lane.b32.xlu0 %v4860, 120
      %v5733 = vpop.permute.xlu0 %5732
      %5734 = vrot.lane.b32.xlu0 %v4865, 120
      %v5735 = vpop.permute.xlu0 %5734
      %5736 = vrot.lane.b32.xlu0 %v4870, 120
      %v5737 = vpop.permute.xlu0 %5736
      %5738 = vrot.lane.b32.xlu0 %v4875, 120
      %v5739 = vpop.permute.xlu0 %5738
      %5740 = vrot.lane.b32.xlu0 %v4880, 120
      %v5741 = vpop.permute.xlu0 %5740
      %5742 = vrot.lane.b32.xlu0 %v4885, 120
      %v5743 = vpop.permute.xlu0 %5742
      %5744 = vrot.lane.b32.xlu0 %v4890, 120
      %v5745 = vpop.permute.xlu0 %5744
      %v5746 = vsel %vm1096, %v5683, 0
      %v5748 = vsel %vm1096, %v5685, 0
      %v5750 = vsel %vm1096, %v5687, 0
      %v5752 = vsel %vm1096, %v5689, 0
      %v5754 = vsel %vm1096, %v5691, 0
      %v5756 = vsel %vm1096, %v5693, 0
      %v5758 = vsel %vm1096, %v5695, 0
      %v5760 = vsel %vm1096, %v5697, 0
      %v5762 = vsel %vm1096, %v5699, 0
      %v5764 = vsel %vm1096, %v5701, 0
      %v5766 = vsel %vm1096, %v5703, 0
      %v5768 = vsel %vm1096, %v5705, 0
      %v5770 = vsel %vm1096, %v5707, 0
      %v5772 = vsel %vm1096, %v5709, 0
      %v5774 = vsel %vm1096, %v5711, 0
      %v5776 = vsel %vm1096, %v5713, 0
      %v5778 = vsel %vm1096, %v5715, 0
      %v5780 = vsel %vm1096, %v5717, 0
      %v5782 = vsel %vm1096, %v5719, 0
      %v5784 = vsel %vm1096, %v5721, 0
      %v5786 = vsel %vm1096, %v5723, 0
      %v5788 = vsel %vm1096, %v5725, 0
      %v5790 = vsel %vm1096, %v5727, 0
      %v5792 = vsel %vm1096, %v5729, 0
      %v5794 = vsel %vm1096, %v5731, 0
      %v5796 = vsel %vm1096, %v5733, 0
      %v5798 = vsel %vm1096, %v5735, 0
      %v5800 = vsel %vm1096, %v5737, 0
      %v5802 = vsel %vm1096, %v5739, 0
      %v5804 = vsel %vm1096, %v5741, 0
      %v5806 = vsel %vm1096, %v5743, 0
      %v5808 = vsel %vm1096, %v5745, 0
      %5810 = vmatprep.subr.mxu0 0.0
      %5811 = vmatpush1.xpose.msra.mxu0 %v5778
      %5812 = vmatprep.subr.mxu0 0.0
      %5813 = vmatpush1.xpose.msra.mxu0 %v5780
      %5814 = vmatprep.subr.mxu0 0.0
      %5815 = vmatpush1.xpose.msra.mxu0 %v5782
      %5816 = vmatprep.subr.mxu0 0.0
      %5817 = vmatpush1.xpose.msra.mxu0 %v5784
      %5818 = vmatprep.subr.mxu0 0.0
      %5819 = vmatpush1.xpose.msra.mxu0 %v5786
      %5820 = vmatprep.subr.mxu0 0.0
      %5821 = vmatpush1.xpose.msra.mxu0 %v5788
      %5822 = vmatprep.subr.mxu0 0.0
      %5823 = vmatpush1.xpose.msra.mxu0 %v5790
      %5824 = vmatprep.subr.mxu0 0.0
      %5825 = vmatpush1.xpose.msra.mxu0 %v5792
      %5826 = vmatprep.subr.mxu0 0.0
      %5827 = vmatpush1.xpose.msra.mxu0 %v5794
      %5828 = vmatprep.subr.mxu0 0.0
      %5829 = vmatpush1.xpose.msra.mxu0 %v5796
      %5830 = vmatprep.subr.mxu0 0.0
      %5831 = vmatpush1.xpose.msra.mxu0 %v5798
      %5832 = vmatprep.subr.mxu0 0.0
      %5833 = vmatpush1.xpose.msra.mxu0 %v5800
      %5834 = vmatprep.subr.mxu0 0.0
      %5835 = vmatpush1.xpose.msra.mxu0 %v5802
      %5836 = vmatprep.subr.mxu0 0.0
      %5837 = vmatpush1.xpose.msra.mxu0 %v5804
      %5838 = vmatprep.subr.mxu0 0.0
      %5839 = vmatpush1.xpose.msra.mxu0 %v5806
      %5840 = vmatprep.subr.mxu0 0.0
      %5841 = vmatpush1.xpose.msra.mxu0 %v5808
      %5842 = vmatprep.subr.mxu0 0.0
      %5843 = vmatpush1.xpose.msra.mxu0 0.0
      %5844 = vmatprep.subr.mxu0 0.0
      %5845 = vmatpush1.xpose.msra.mxu0 0.0
      %5846 = vmatprep.subr.mxu0 0.0
      %5847 = vmatpush1.xpose.msra.mxu0 0.0
      %5848 = vmatprep.subr.mxu0 0.0
      %5849 = vmatpush1.xpose.msra.mxu0 0.0
      %5850 = vmatprep.subr.mxu0 0.0
      %5851 = vmatpush1.xpose.msra.mxu0 0.0
      %5852 = vmatprep.subr.mxu0 0.0
      %5853 = vmatpush1.xpose.msra.mxu0 0.0
      %5854 = vmatprep.subr.mxu0 0.0
      %5855 = vmatpush1.xpose.msra.mxu0 0.0
      %5856 = vmatprep.subr.mxu0 0.0
      %5857 = vmatpush1.xpose.msra.mxu0 0.0
      %5858 = vmatprep.subr.mxu0 0.0
      %5859 = vmatpush1.xpose.msra.mxu0 0.0
      %5860 = vmatprep.subr.mxu0 0.0
      %5861 = vmatpush1.xpose.msra.mxu0 0.0
      %5862 = vmatprep.subr.mxu0 0.0
      %5863 = vmatpush1.xpose.msra.mxu0 0.0
      %5864 = vmatprep.subr.mxu0 0.0
      %5865 = vmatpush1.xpose.msra.mxu0 0.0
      %5866 = vmatprep.subr.mxu0 0.0
      %5867 = vmatpush1.xpose.msra.mxu0 0.0
      %5868 = vmatprep.subr.mxu0 0.0
      %5869 = vmatpush1.xpose.msra.mxu0 0.0
      %5870 = vmatprep.subr.mxu0 0.0
      %5871 = vmatpush1.xpose.msra.mxu0 0.0
      %5872 = vmatprep.subr.mxu0 0.0
      %5873 = vmatpush1.xpose.msra.mxu0 0.0
      %5874 = vmatprep.mubr.f32.mxu0 0.0
      %5875 = vmatmul.mubr.f32.gmra.mrb[0].mxu0 %v5746
      %v5876 = vpop.f32.mrb[0].mxu0
      %v5877 = vadd.f32 %v5087, %v5876
      %v5878 = vpop.f32.mrb[0].mxu0
      %5879 = vmatprep.mubr.f32.mxu0 0.0
      %5880 = vmatmul.mubr.f32.gmra.mrb[0].mxu0 %v5748
      %v5881 = vpop.f32.mrb[0].mxu0
      %v5882 = vadd.f32 %v5088, %v5881
      %v5883 = vpop.f32.mrb[0].mxu0
      %5884 = vmatprep.mubr.f32.mxu0 0.0
      %5885 = vmatmul.mubr.f32.gmra.mrb[0].mxu0 %v5750
      %v5886 = vpop.f32.mrb[0].mxu0
      %v5887 = vadd.f32 %v5089, %v5886
      %v5888 = vpop.f32.mrb[0].mxu0
      %5889 = vmatprep.mubr.f32.mxu0 0.0
      %5890 = vmatmul.mubr.f32.gmra.mrb[0].mxu0 %v5752
      %v5891 = vpop.f32.mrb[0].mxu0
      %v5892 = vadd.f32 %v5090, %v5891
      %v5893 = vpop.f32.mrb[0].mxu0
      %5894 = vmatprep.mubr.f32.mxu0 0.0
      %5895 = vmatmul.mubr.f32.gmra.mrb[0].mxu0 %v5754
      %v5896 = vpop.f32.mrb[0].mxu0
      %v5897 = vadd.f32 %v5091, %v5896
      %v5898 = vpop.f32.mrb[0].mxu0
      %5899 = vmatprep.mubr.f32.mxu0 0.0
      %5900 = vmatmul.mubr.f32.gmra.mrb[0].mxu0 %v5756
      %v5901 = vpop.f32.mrb[0].mxu0
      %v5902 = vadd.f32 %v5092, %v5901
      %v5903 = vpop.f32.mrb[0].mxu0
      %5904 = vmatprep.mubr.f32.mxu0 0.0
      %5905 = vmatmul.mubr.f32.gmra.mrb[0].mxu0 %v5758
      %v5906 = vpop.f32.mrb[0].mxu0
      %v5907 = vadd.f32 %v5093, %v5906
      %v5908 = vpop.f32.mrb[0].mxu0
      %5909 = vmatprep.mubr.f32.mxu0 0.0
      %5910 = vmatmul.mubr.f32.gmra.mrb[0].mxu0 %v5760
      %v5911 = vpop.f32.mrb[0].mxu0
      %v5912 = vadd.f32 %v5094, %v5911
      %v5913 = vpop.f32.mrb[0].mxu0
      %5914 = vmatprep.mubr.f32.mxu0 0.0
      %5915 = vmatmul.mubr.f32.gmra.mrb[0].mxu0 %v5762
      %v5916 = vpop.f32.mrb[0].mxu0
      %v5917 = vadd.f32 %v5095, %v5916
      %v5918 = vpop.f32.mrb[0].mxu0
      %5919 = vmatprep.mubr.f32.mxu0 0.0
      %5920 = vmatmul.mubr.f32.gmra.mrb[0].mxu0 %v5764
      %v5921 = vpop.f32.mrb[0].mxu0
      %v5922 = vadd.f32 %v5096, %v5921
      %v5923 = vpop.f32.mrb[0].mxu0
      %5924 = vmatprep.mubr.f32.mxu0 0.0
      %5925 = vmatmul.mubr.f32.gmra.mrb[0].mxu0 %v5766
      %v5926 = vpop.f32.mrb[0].mxu0
      %v5927 = vadd.f32 %v5097, %v5926
      %v5928 = vpop.f32.mrb[0].mxu0
      %5929 = vmatprep.mubr.f32.mxu0 0.0
      %5930 = vmatmul.mubr.f32.gmra.mrb[0].mxu0 %v5768
      %v5931 = vpop.f32.mrb[0].mxu0
      %v5932 = vadd.f32 %v5098, %v5931
      %v5933 = vpop.f32.mrb[0].mxu0
      %5934 = vmatprep.mubr.f32.mxu0 0.0
      %5935 = vmatmul.mubr.f32.gmra.mrb[0].mxu0 %v5770
      %v5936 = vpop.f32.mrb[0].mxu0
      %v5937 = vadd.f32 %v5099, %v5936
      %v5938 = vpop.f32.mrb[0].mxu0
      %5939 = vmatprep.mubr.f32.mxu0 0.0
      %5940 = vmatmul.mubr.f32.gmra.mrb[0].mxu0 %v5772
      %v5941 = vpop.f32.mrb[0].mxu0
      %v5942 = vadd.f32 %v5100, %v5941
      %v5943 = vpop.f32.mrb[0].mxu0
      %5944 = vmatprep.mubr.f32.mxu0 0.0
      %5945 = vmatmul.mubr.f32.gmra.mrb[0].mxu0 %v5774
      %v5946 = vpop.f32.mrb[0].mxu0
      %v5947 = vadd.f32 %v5101, %v5946
      %v5948 = vpop.f32.mrb[0].mxu0
      %5949 = vmatprep.mubr.f32.mxu0 0.0
      %5950 = vmatmul.mubr.f32.gmra.mrb[0].mxu0 %v5776
      %v5951 = vpop.f32.mrb[0].mxu0
      %v5952 = vadd.f32 %v5102, %v5951
      %v5953 = vpop.f32.mrb[0].mxu0
      %5954 = vdwg.mxu0
      %5955 = vmax.xlane.f32.xlu0 %v5877
      %v5956 = vpop.xlane.xlu0 %5955
      %5957 = vmax.xlane.f32.xlu0 %v5882
      %v5958 = vpop.xlane.xlu0 %5957
      %5959 = vmax.xlane.f32.xlu0 %v5887
      %v5960 = vpop.xlane.xlu0 %5959
      %5961 = vmax.xlane.f32.xlu0 %v5892
      %v5962 = vpop.xlane.xlu0 %5961
      %5963 = vmax.xlane.f32.xlu0 %v5897
      %v5964 = vpop.xlane.xlu0 %5963
      %5965 = vmax.xlane.f32.xlu0 %v5902
      %v5966 = vpop.xlane.xlu0 %5965
      %5967 = vmax.xlane.f32.xlu0 %v5907
      %v5968 = vpop.xlane.xlu0 %5967
      %5969 = vmax.xlane.f32.xlu0 %v5912
      %v5970 = vpop.xlane.xlu0 %5969
      %5971 = vmax.xlane.f32.xlu0 %v5917
      %v5972 = vpop.xlane.xlu0 %5971
      %5973 = vmax.xlane.f32.xlu0 %v5922
      %v5974 = vpop.xlane.xlu0 %5973
      %5975 = vmax.xlane.f32.xlu0 %v5927
      %v5976 = vpop.xlane.xlu0 %5975
      %5977 = vmax.xlane.f32.xlu0 %v5932
      %v5978 = vpop.xlane.xlu0 %5977
      %5979 = vmax.xlane.f32.xlu0 %v5937
      %v5980 = vpop.xlane.xlu0 %5979
      %5981 = vmax.xlane.f32.xlu0 %v5942
      %v5982 = vpop.xlane.xlu0 %5981
      %5983 = vmax.xlane.f32.xlu0 %v5947
      %v5984 = vpop.xlane.xlu0 %5983
      %5985 = vmax.xlane.f32.xlu0 %v5952
      %v5986 = vpop.xlane.xlu0 %5985
      %v5987 = vsub.f32 %v5877, %v5956
      %v5988 = vsub.f32 %v5882, %v5958
      %v5989 = vsub.f32 %v5887, %v5960
      %v5990 = vsub.f32 %v5892, %v5962
      %v5991 = vsub.f32 %v5897, %v5964
      %v5992 = vsub.f32 %v5902, %v5966
      %v5993 = vsub.f32 %v5907, %v5968
      %v5994 = vsub.f32 %v5912, %v5970
      %v5995 = vsub.f32 %v5917, %v5972
      %v5996 = vsub.f32 %v5922, %v5974
      %v5997 = vsub.f32 %v5927, %v5976
      %v5998 = vsub.f32 %v5932, %v5978
      %v5999 = vsub.f32 %v5937, %v5980
      %v6000 = vsub.f32 %v5942, %v5982
      %v6001 = vsub.f32 %v5947, %v5984
      %v6002 = vsub.f32 %v5952, %v5986
      %v6003 = vmul.f32 %v5987, 1.442695
      %v6004 = vpow.pop %v6003
      %v6005 = vmul.f32 %v5988, 1.442695
      %v6006 = vpow.pop %v6005
      %v6007 = vmul.f32 %v5989, 1.442695
      %v6008 = vpow.pop %v6007
      %v6009 = vmul.f32 %v5990, 1.442695
      %v6010 = vpow.pop %v6009
      %v6011 = vmul.f32 %v5991, 1.442695
      %v6012 = vpow.pop %v6011
      %v6013 = vmul.f32 %v5992, 1.442695
      %v6014 = vpow.pop %v6013
      %v6015 = vmul.f32 %v5993, 1.442695
      %v6016 = vpow.pop %v6015
      %v6017 = vmul.f32 %v5994, 1.442695
      %v6018 = vpow.pop %v6017
      %v6019 = vmul.f32 %v5995, 1.442695
      %v6020 = vpow.pop %v6019
      %v6021 = vmul.f32 %v5996, 1.442695
      %v6022 = vpow.pop %v6021
      %v6023 = vmul.f32 %v5997, 1.442695
      %v6024 = vpow.pop %v6023
      %v6025 = vmul.f32 %v5998, 1.442695
      %v6026 = vpow.pop %v6025
      %v6027 = vmul.f32 %v5999, 1.442695
      %v6028 = vpow.pop %v6027
      %v6029 = vmul.f32 %v6000, 1.442695
      %v6030 = vpow.pop %v6029
      %v6031 = vmul.f32 %v6001, 1.442695
      %v6032 = vpow.pop %v6031
      %v6033 = vmul.f32 %v6002, 1.442695
      %v6034 = vpow.pop %v6033
      %6035 = vadd.xlane.f32.xlu0 %v6004
      %v6036 = vpop.xlane.xlu0 %6035
      %6037 = vadd.xlane.f32.xlu0 %v6006
      %v6038 = vpop.xlane.xlu0 %6037
      %6039 = vadd.xlane.f32.xlu0 %v6008
      %v6040 = vpop.xlane.xlu0 %6039
      %6041 = vadd.xlane.f32.xlu0 %v6010
      %v6042 = vpop.xlane.xlu0 %6041
      %6043 = vadd.xlane.f32.xlu0 %v6012
      %v6044 = vpop.xlane.xlu0 %6043
      %6045 = vadd.xlane.f32.xlu0 %v6014
      %v6046 = vpop.xlane.xlu0 %6045
      %6047 = vadd.xlane.f32.xlu0 %v6016
      %v6048 = vpop.xlane.xlu0 %6047
      %6049 = vadd.xlane.f32.xlu0 %v6018
      %v6050 = vpop.xlane.xlu0 %6049
      %6051 = vadd.xlane.f32.xlu0 %v6020
      %v6052 = vpop.xlane.xlu0 %6051
      %6053 = vadd.xlane.f32.xlu0 %v6022
      %v6054 = vpop.xlane.xlu0 %6053
      %6055 = vadd.xlane.f32.xlu0 %v6024
      %v6056 = vpop.xlane.xlu0 %6055
      %6057 = vadd.xlane.f32.xlu0 %v6026
      %v6058 = vpop.xlane.xlu0 %6057
      %6059 = vadd.xlane.f32.xlu0 %v6028
      %v6060 = vpop.xlane.xlu0 %6059
      %6061 = vadd.xlane.f32.xlu0 %v6030
      %v6062 = vpop.xlane.xlu0 %6061
      %6063 = vadd.xlane.f32.xlu0 %v6032
      %v6064 = vpop.xlane.xlu0 %6063
      %6065 = vadd.xlane.f32.xlu0 %v6034
      %v6066 = vpop.xlane.xlu0 %6065
      %v6067 = vrcp.pop %v6036
      %v6068 = vrcp.pop %v6038
      %v6069 = vrcp.pop %v6040
      %v6070 = vrcp.pop %v6042
      %v6071 = vrcp.pop %v6044
      %v6072 = vrcp.pop %v6046
      %v6073 = vrcp.pop %v6048
      %v6074 = vrcp.pop %v6050
      %v6075 = vrcp.pop %v6052
      %v6076 = vrcp.pop %v6054
      %v6077 = vrcp.pop %v6056
      %v6078 = vrcp.pop %v6058
      %v6079 = vrcp.pop %v6060
      %v6080 = vrcp.pop %v6062
      %v6081 = vrcp.pop %v6064
      %v6082 = vrcp.pop %v6066
      %v6083 = vmul.f32 %v6067, 0.5
      %v6084 = vmul.f32 %v6068, 0.5
      %v6085 = vmul.f32 %v6069, 0.5
      %v6086 = vmul.f32 %v6070, 0.5
      %v6087 = vmul.f32 %v6071, 0.5
      %v6088 = vmul.f32 %v6072, 0.5
      %v6089 = vmul.f32 %v6073, 0.5
      %v6090 = vmul.f32 %v6074, 0.5
      %v6091 = vmul.f32 %v6075, 0.5
      %v6092 = vmul.f32 %v6076, 0.5
      %v6093 = vmul.f32 %v6077, 0.5
      %v6094 = vmul.f32 %v6078, 0.5
      %v6095 = vmul.f32 %v6079, 0.5
      %v6096 = vmul.f32 %v6080, 0.5
      %v6097 = vmul.f32 %v6081, 0.5
      %v6098 = vmul.f32 %v6082, 0.5
      %v6099 = vmul.f32 %v6004, %v6083
      %v6100 = vmul.f32 %v6006, %v6084
      %v6101 = vmul.f32 %v6008, %v6085
      %v6102 = vmul.f32 %v6010, %v6086
      %v6103 = vmul.f32 %v6012, %v6087
      %v6104 = vmul.f32 %v6014, %v6088
      %v6105 = vmul.f32 %v6016, %v6089
      %v6106 = vmul.f32 %v6018, %v6090
      %v6107 = vmul.f32 %v6020, %v6091
      %v6108 = vmul.f32 %v6022, %v6092
      %v6109 = vmul.f32 %v6024, %v6093
      %v6110 = vmul.f32 %v6026, %v6094
      %v6111 = vmul.f32 %v6028, %v6095
      %v6112 = vmul.f32 %v6030, %v6096
      %v6113 = vmul.f32 %v6032, %v6097
      %v6114 = vmul.f32 %v6034, %v6098
      %v6115 = vadd.f32 %v6099, %v5104
      %v6116 = vadd.f32 %v6100, %v5105
      %v6117 = vadd.f32 %v6101, %v5106
      %v6118 = vadd.f32 %v6102, %v5107
      %v6119 = vadd.f32 %v6103, %v5108
      %v6120 = vadd.f32 %v6104, %v5109
      %v6121 = vadd.f32 %v6105, %v5110
      %v6122 = vadd.f32 %v6106, %v5111
      %v6123 = vadd.f32 %v6107, %v5112
      %v6124 = vadd.f32 %v6108, %v5113
      %v6125 = vadd.f32 %v6109, %v5114
      %v6126 = vadd.f32 %v6110, %v5115
      %v6127 = vadd.f32 %v6111, %v5116
      %v6128 = vadd.f32 %v6112, %v5117
      %v6129 = vadd.f32 %v6113, %v5118
      %v6130 = vadd.f32 %v6114, %v5119
      %6147 = vrot.lane.b32.xlu0 %v5008, 120
      %v6148 = vpop.permute.xlu0 %6147
      %6149 = vrot.lane.b32.xlu0 %v5013, 120
      %v6150 = vpop.permute.xlu0 %6149
      %6151 = vrot.lane.b32.xlu0 %v5018, 120
      %v6152 = vpop.permute.xlu0 %6151
      %6153 = vrot.lane.b32.xlu0 %v5023, 120
      %v6154 = vpop.permute.xlu0 %6153
      %6155 = vrot.lane.b32.xlu0 %v5028, 120
      %v6156 = vpop.permute.xlu0 %6155
      %6157 = vrot.lane.b32.xlu0 %v5033, 120
      %v6158 = vpop.permute.xlu0 %6157
      %6159 = vrot.lane.b32.xlu0 %v5038, 120
      %v6160 = vpop.permute.xlu0 %6159
      %6161 = vrot.lane.b32.xlu0 %v5043, 120
      %v6162 = vpop.permute.xlu0 %6161
      %6163 = vrot.lane.b32.xlu0 %v5048, 120
      %v6164 = vpop.permute.xlu0 %6163
      %6165 = vrot.lane.b32.xlu0 %v5053, 120
      %v6166 = vpop.permute.xlu0 %6165
      %6167 = vrot.lane.b32.xlu0 %v5058, 120
      %v6168 = vpop.permute.xlu0 %6167
      %6169 = vrot.lane.b32.xlu0 %v5063, 120
      %v6170 = vpop.permute.xlu0 %6169
      %6171 = vrot.lane.b32.xlu0 %v5068, 120
      %v6172 = vpop.permute.xlu0 %6171
      %6173 = vrot.lane.b32.xlu0 %v5073, 120
      %v6174 = vpop.permute.xlu0 %6173
      %6175 = vrot.lane.b32.xlu0 %v5078, 120
      %v6176 = vpop.permute.xlu0 %6175
      %6177 = vrot.lane.b32.xlu0 %v5083, 120
      %v6178 = vpop.permute.xlu0 %6177
      %6195 = vmatprep.subr.mxu0 0.0
      %6196 = vmatpush1.msra.mxu0 %v6148
      %6197 = vmatprep.subr.mxu0 0.0
      %6198 = vmatpush1.msra.mxu0 %v6150
      %6199 = vmatprep.subr.mxu0 0.0
      %6200 = vmatpush1.msra.mxu0 %v6152
      %6201 = vmatprep.subr.mxu0 0.0
      %6202 = vmatpush1.msra.mxu0 %v6154
      %6203 = vmatprep.subr.mxu0 0.0
      %6204 = vmatpush1.msra.mxu0 %v6156
      %6205 = vmatprep.subr.mxu0 0.0
      %6206 = vmatpush1.msra.mxu0 %v6158
      %6207 = vmatprep.subr.mxu0 0.0
      %6208 = vmatpush1.msra.mxu0 %v6160
      %6209 = vmatprep.subr.mxu0 0.0
      %6210 = vmatpush1.msra.mxu0 %v6162
      %6211 = vmatprep.subr.mxu0 0.0
      %6212 = vmatpush1.msra.mxu0 %v6164
      %6213 = vmatprep.subr.mxu0 0.0
      %6214 = vmatpush1.msra.mxu0 %v6166
      %6215 = vmatprep.subr.mxu0 0.0
      %6216 = vmatpush1.msra.mxu0 %v6168
      %6217 = vmatprep.subr.mxu0 0.0
      %6218 = vmatpush1.msra.mxu0 %v6170
      %6219 = vmatprep.subr.mxu0 0.0
      %6220 = vmatpush1.msra.mxu0 %v6172
      %6221 = vmatprep.subr.mxu0 0.0
      %6222 = vmatpush1.msra.mxu0 %v6174
      %6223 = vmatprep.subr.mxu0 0.0
      %6224 = vmatpush1.msra.mxu0 %v6176
      %6225 = vmatprep.subr.mxu0 0.0
      %6226 = vmatpush1.msra.mxu0 %v6178
      %6227 = vmatprep.subr.mxu0 0.0
      %6228 = vmatpush1.msra.mxu0 0.0
      %6229 = vmatprep.subr.mxu0 0.0
      %6230 = vmatpush1.msra.mxu0 0.0
      %6231 = vmatprep.subr.mxu0 0.0
      %6232 = vmatpush1.msra.mxu0 0.0
      %6233 = vmatprep.subr.mxu0 0.0
      %6234 = vmatpush1.msra.mxu0 0.0
      %6235 = vmatprep.subr.mxu0 0.0
      %6236 = vmatpush1.msra.mxu0 0.0
      %6237 = vmatprep.subr.mxu0 0.0
      %6238 = vmatpush1.msra.mxu0 0.0
      %6239 = vmatprep.subr.mxu0 0.0
      %6240 = vmatpush1.msra.mxu0 0.0
      %6241 = vmatprep.subr.mxu0 0.0
      %6242 = vmatpush1.msra.mxu0 0.0
      %6243 = vmatprep.subr.mxu0 0.0
      %6244 = vmatpush1.msra.mxu0 0.0
      %6245 = vmatprep.subr.mxu0 0.0
      %6246 = vmatpush1.msra.mxu0 0.0
      %6247 = vmatprep.subr.mxu0 0.0
      %6248 = vmatpush1.msra.mxu0 0.0
      %6249 = vmatprep.subr.mxu0 0.0
      %6250 = vmatpush1.msra.mxu0 0.0
      %6251 = vmatprep.subr.mxu0 0.0
      %6252 = vmatpush1.msra.mxu0 0.0
      %6253 = vmatprep.subr.mxu0 0.0
      %6254 = vmatpush1.msra.mxu0 0.0
      %6255 = vmatprep.subr.mxu0 0.0
      %6256 = vmatpush1.msra.mxu0 0.0
      %6257 = vmatprep.subr.mxu0 0.0
      %6258 = vmatpush1.msra.mxu0 0.0
      %6259 = vmatprep.mubr.f32.mxu0 0.0
      %6260 = vmatmul.mubr.f32.gmra.mrb[0].mxu0 %v6115
      %v6261 = vpop.f32.mrb[0].mxu0
      %v6262 = vadd.f32 0.0, %v6261
      %v6263 = vpop.f32.mrb[0].mxu0
      %6264 = vmatprep.mubr.f32.mxu0 0.0
      %6265 = vmatmul.mubr.f32.gmra.mrb[0].mxu0 %v6116
      %v6266 = vpop.f32.mrb[0].mxu0
      %v6267 = vadd.f32 0.0, %v6266
      %v6268 = vpop.f32.mrb[0].mxu0
      %6269 = vmatprep.mubr.f32.mxu0 0.0
      %6270 = vmatmul.mubr.f32.gmra.mrb[0].mxu0 %v6117
      %v6271 = vpop.f32.mrb[0].mxu0
      %v6272 = vadd.f32 0.0, %v6271
      %v6273 = vpop.f32.mrb[0].mxu0
      %6274 = vmatprep.mubr.f32.mxu0 0.0
      %6275 = vmatmul.mubr.f32.gmra.mrb[0].mxu0 %v6118
      %v6276 = vpop.f32.mrb[0].mxu0
      %v6277 = vadd.f32 0.0, %v6276
      %v6278 = vpop.f32.mrb[0].mxu0
      %6279 = vmatprep.mubr.f32.mxu0 0.0
      %6280 = vmatmul.mubr.f32.gmra.mrb[0].mxu0 %v6119
      %v6281 = vpop.f32.mrb[0].mxu0
      %v6282 = vadd.f32 0.0, %v6281
      %v6283 = vpop.f32.mrb[0].mxu0
      %6284 = vmatprep.mubr.f32.mxu0 0.0
      %6285 = vmatmul.mubr.f32.gmra.mrb[0].mxu0 %v6120
      %v6286 = vpop.f32.mrb[0].mxu0
      %v6287 = vadd.f32 0.0, %v6286
      %v6288 = vpop.f32.mrb[0].mxu0
      %6289 = vmatprep.mubr.f32.mxu0 0.0
      %6290 = vmatmul.mubr.f32.gmra.mrb[0].mxu0 %v6121
      %v6291 = vpop.f32.mrb[0].mxu0
      %v6292 = vadd.f32 0.0, %v6291
      %v6293 = vpop.f32.mrb[0].mxu0
      %6294 = vmatprep.mubr.f32.mxu0 0.0
      %6295 = vmatmul.mubr.f32.gmra.mrb[0].mxu0 %v6122
      %v6296 = vpop.f32.mrb[0].mxu0
      %v6297 = vadd.f32 0.0, %v6296
      %v6298 = vpop.f32.mrb[0].mxu0
      %6299 = vmatprep.mubr.f32.mxu0 0.0
      %6300 = vmatmul.mubr.f32.gmra.mrb[0].mxu0 %v6123
      %v6301 = vpop.f32.mrb[0].mxu0
      %v6302 = vadd.f32 0.0, %v6301
      %v6303 = vpop.f32.mrb[0].mxu0
      %6304 = vmatprep.mubr.f32.mxu0 0.0
      %6305 = vmatmul.mubr.f32.gmra.mrb[0].mxu0 %v6124
      %v6306 = vpop.f32.mrb[0].mxu0
      %v6307 = vadd.f32 0.0, %v6306
      %v6308 = vpop.f32.mrb[0].mxu0
      %6309 = vmatprep.mubr.f32.mxu0 0.0
      %6310 = vmatmul.mubr.f32.gmra.mrb[0].mxu0 %v6125
      %v6311 = vpop.f32.mrb[0].mxu0
      %v6312 = vadd.f32 0.0, %v6311
      %v6313 = vpop.f32.mrb[0].mxu0
      %6314 = vmatprep.mubr.f32.mxu0 0.0
      %6315 = vmatmul.mubr.f32.gmra.mrb[0].mxu0 %v6126
      %v6316 = vpop.f32.mrb[0].mxu0
      %v6317 = vadd.f32 0.0, %v6316
      %v6318 = vpop.f32.mrb[0].mxu0
      %6319 = vmatprep.mubr.f32.mxu0 0.0
      %6320 = vmatmul.mubr.f32.gmra.mrb[0].mxu0 %v6127
      %v6321 = vpop.f32.mrb[0].mxu0
      %v6322 = vadd.f32 0.0, %v6321
      %v6323 = vpop.f32.mrb[0].mxu0
      %6324 = vmatprep.mubr.f32.mxu0 0.0
      %6325 = vmatmul.mubr.f32.gmra.mrb[0].mxu0 %v6128
      %v6326 = vpop.f32.mrb[0].mxu0
      %v6327 = vadd.f32 0.0, %v6326
      %v6328 = vpop.f32.mrb[0].mxu0
      %6329 = vmatprep.mubr.f32.mxu0 0.0
      %6330 = vmatmul.mubr.f32.gmra.mrb[0].mxu0 %v6129
      %v6331 = vpop.f32.mrb[0].mxu0
      %v6332 = vadd.f32 0.0, %v6331
      %v6333 = vpop.f32.mrb[0].mxu0
      %6334 = vmatprep.mubr.f32.mxu0 0.0
      %6335 = vmatmul.mubr.f32.gmra.mrb[0].mxu0 %v6130
      %v6336 = vpop.f32.mrb[0].mxu0
      %v6337 = vadd.f32 0.0, %v6336
      %v6338 = vpop.f32.mrb[0].mxu0
      %6339 = vdwg.mxu0
      %v6341 = vsel %vm1096, %v6262, 0
      %v6344 = vsel %vm1096, %v6267, 0
      %v6347 = vsel %vm1096, %v6272, 0
      %v6350 = vsel %vm1096, %v6277, 0
      %v6353 = vsel %vm1096, %v6282, 0
      %v6356 = vsel %vm1096, %v6287, 0
      %v6359 = vsel %vm1096, %v6292, 0
      %v6362 = vsel %vm1096, %v6297, 0
      %v6365 = vsel %vm1096, %v6302, 0
      %v6368 = vsel %vm1096, %v6307, 0
      %v6371 = vsel %vm1096, %v6312, 0
      %v6374 = vsel %vm1096, %v6317, 0
      %v6377 = vsel %vm1096, %v6322, 0
      %v6380 = vsel %vm1096, %v6327, 0
      %v6383 = vsel %vm1096, %v6332, 0
      %v6386 = vsel %vm1096, %v6337, 0
      %6388 = vmatprep.subr.mxu0 0.0
      %6389 = vmatpush1.msra.mxu0 %v392
      %6390 = vmatprep.subr.mxu0 0.0
      %6391 = vmatpush1.msra.mxu0 0.0
      %6392 = vmatprep.subr.mxu0 0.0
      %6393 = vmatpush1.msra.mxu0 0.0
      %6394 = vmatprep.subr.mxu0 0.0
      %6395 = vmatpush1.msra.mxu0 0.0
      %6396 = vmatprep.subr.mxu0 0.0
      %6397 = vmatpush1.msra.mxu0 0.0
      %6398 = vmatprep.subr.mxu0 0.0
      %6399 = vmatpush1.msra.mxu0 0.0
      %6400 = vmatprep.subr.mxu0 0.0
      %6401 = vmatpush1.msra.mxu0 0.0
      %6402 = vmatprep.subr.mxu0 0.0
      %6403 = vmatpush1.msra.mxu0 0.0
      %6404 = vmatprep.subr.mxu0 0.0
      %6405 = vmatpush1.msra.mxu0 0.0
      %6406 = vmatprep.subr.mxu0 0.0
      %6407 = vmatpush1.msra.mxu0 0.0
      %6408 = vmatprep.subr.mxu0 0.0
      %6409 = vmatpush1.msra.mxu0 0.0
      %6410 = vmatprep.subr.mxu0 0.0
      %6411 = vmatpush1.msra.mxu0 0.0
      %6412 = vmatprep.subr.mxu0 0.0
      %6413 = vmatpush1.msra.mxu0 0.0
      %6414 = vmatprep.subr.mxu0 0.0
      %6415 = vmatpush1.msra.mxu0 0.0
      %6416 = vmatprep.subr.mxu0 0.0
      %6417 = vmatpush1.msra.mxu0 0.0
      %6418 = vmatprep.subr.mxu0 0.0
      %6419 = vmatpush1.msra.mxu0 0.0
      %6420 = vmatprep.subr.mxu0 0.0
      %6421 = vmatpush1.msra.mxu0 0.0
      %6422 = vmatprep.subr.mxu0 0.0
      %6423 = vmatpush1.msra.mxu0 0.0
      %6424 = vmatprep.subr.mxu0 0.0
      %6425 = vmatpush1.msra.mxu0 0.0
      %6426 = vmatprep.subr.mxu0 0.0
      %6427 = vmatpush1.msra.mxu0 0.0
      %6428 = vmatprep.subr.mxu0 0.0
      %6429 = vmatpush1.msra.mxu0 0.0
      %6430 = vmatprep.subr.mxu0 0.0
      %6431 = vmatpush1.msra.mxu0 0.0
      %6432 = vmatprep.subr.mxu0 0.0
      %6433 = vmatpush1.msra.mxu0 0.0
      %6434 = vmatprep.subr.mxu0 0.0
      %6435 = vmatpush1.msra.mxu0 0.0
      %6436 = vmatprep.subr.mxu0 0.0
      %6437 = vmatpush1.msra.mxu0 0.0
      %6438 = vmatprep.subr.mxu0 0.0
      %6439 = vmatpush1.msra.mxu0 0.0
      %6440 = vmatprep.subr.mxu0 0.0
      %6441 = vmatpush1.msra.mxu0 0.0
      %6442 = vmatprep.subr.mxu0 0.0
      %6443 = vmatpush1.msra.mxu0 0.0
      %6444 = vmatprep.subr.mxu0 0.0
      %6445 = vmatpush1.msra.mxu0 0.0
      %6446 = vmatprep.subr.mxu0 0.0
      %6447 = vmatpush1.msra.mxu0 0.0
      %6448 = vmatprep.subr.mxu0 0.0
      %6449 = vmatpush1.msra.mxu0 0.0
      %6450 = vmatprep.subr.mxu0 0.0
      %6451 = vmatpush1.msra.mxu0 0.0
      %6452 = vmatprep.mubr.f32.mxu0 0.0
      %6453 = vmatmul.mubr.f32.gmra.mrb[0].mxu0 %v6341
      %v6454 = vpop.f32.mrb[0].mxu0
      %v6455 = vadd.f32 0.0, %v6454
      %v6456 = vpop.f32.mrb[0].mxu0
      %6457 = vmatprep.mubr.f32.mxu0 0.0
      %6458 = vmatmul.mubr.f32.gmra.mrb[0].mxu0 %v6344
      %v6459 = vpop.f32.mrb[0].mxu0
      %v6460 = vadd.f32 0.0, %v6459
      %v6461 = vpop.f32.mrb[0].mxu0
      %6462 = vmatprep.mubr.f32.mxu0 0.0
      %6463 = vmatmul.mubr.f32.gmra.mrb[0].mxu0 %v6347
      %v6464 = vpop.f32.mrb[0].mxu0
      %v6465 = vadd.f32 0.0, %v6464
      %v6466 = vpop.f32.mrb[0].mxu0
      %6467 = vmatprep.mubr.f32.mxu0 0.0
      %6468 = vmatmul.mubr.f32.gmra.mrb[0].mxu0 %v6350
      %v6469 = vpop.f32.mrb[0].mxu0
      %v6470 = vadd.f32 0.0, %v6469
      %v6471 = vpop.f32.mrb[0].mxu0
      %6472 = vmatprep.mubr.f32.mxu0 0.0
      %6473 = vmatmul.mubr.f32.gmra.mrb[0].mxu0 %v6353
      %v6474 = vpop.f32.mrb[0].mxu0
      %v6475 = vadd.f32 0.0, %v6474
      %v6476 = vpop.f32.mrb[0].mxu0
      %6477 = vmatprep.mubr.f32.mxu0 0.0
      %6478 = vmatmul.mubr.f32.gmra.mrb[0].mxu0 %v6356
      %v6479 = vpop.f32.mrb[0].mxu0
      %v6480 = vadd.f32 0.0, %v6479
      %v6481 = vpop.f32.mrb[0].mxu0
      %6482 = vmatprep.mubr.f32.mxu0 0.0
      %6483 = vmatmul.mubr.f32.gmra.mrb[0].mxu0 %v6359
      %v6484 = vpop.f32.mrb[0].mxu0
      %v6485 = vadd.f32 0.0, %v6484
      %v6486 = vpop.f32.mrb[0].mxu0
      %6487 = vmatprep.mubr.f32.mxu0 0.0
      %6488 = vmatmul.mubr.f32.gmra.mrb[0].mxu0 %v6362
      %v6489 = vpop.f32.mrb[0].mxu0
      %v6490 = vadd.f32 0.0, %v6489
      %v6491 = vpop.f32.mrb[0].mxu0
      %6492 = vmatprep.mubr.f32.mxu0 0.0
      %6493 = vmatmul.mubr.f32.gmra.mrb[0].mxu0 %v6365
      %v6494 = vpop.f32.mrb[0].mxu0
      %v6495 = vadd.f32 0.0, %v6494
      %v6496 = vpop.f32.mrb[0].mxu0
      %6497 = vmatprep.mubr.f32.mxu0 0.0
      %6498 = vmatmul.mubr.f32.gmra.mrb[0].mxu0 %v6368
      %v6499 = vpop.f32.mrb[0].mxu0
      %v6500 = vadd.f32 0.0, %v6499
      %v6501 = vpop.f32.mrb[0].mxu0
      %6502 = vmatprep.mubr.f32.mxu0 0.0
      %6503 = vmatmul.mubr.f32.gmra.mrb[0].mxu0 %v6371
      %v6504 = vpop.f32.mrb[0].mxu0
      %v6505 = vadd.f32 0.0, %v6504
      %v6506 = vpop.f32.mrb[0].mxu0
      %6507 = vmatprep.mubr.f32.mxu0 0.0
      %6508 = vmatmul.mubr.f32.gmra.mrb[0].mxu0 %v6374
      %v6509 = vpop.f32.mrb[0].mxu0
      %v6510 = vadd.f32 0.0, %v6509
      %v6511 = vpop.f32.mrb[0].mxu0
      %6512 = vmatprep.mubr.f32.mxu0 0.0
      %6513 = vmatmul.mubr.f32.gmra.mrb[0].mxu0 %v6377
      %v6514 = vpop.f32.mrb[0].mxu0
      %v6515 = vadd.f32 0.0, %v6514
      %v6516 = vpop.f32.mrb[0].mxu0
      %6517 = vmatprep.mubr.f32.mxu0 0.0
      %6518 = vmatmul.mubr.f32.gmra.mrb[0].mxu0 %v6380
      %v6519 = vpop.f32.mrb[0].mxu0
      %v6520 = vadd.f32 0.0, %v6519
      %v6521 = vpop.f32.mrb[0].mxu0
      %6522 = vmatprep.mubr.f32.mxu0 0.0
      %6523 = vmatmul.mubr.f32.gmra.mrb[0].mxu0 %v6383
      %v6524 = vpop.f32.mrb[0].mxu0
      %v6525 = vadd.f32 0.0, %v6524
      %v6526 = vpop.f32.mrb[0].mxu0
      %6527 = vmatprep.mubr.f32.mxu0 0.0
      %6528 = vmatmul.mubr.f32.gmra.mrb[0].mxu0 %v6386
      %v6529 = vpop.f32.mrb[0].mxu0
      %v6530 = vadd.f32 0.0, %v6529
      %v6531 = vpop.f32.mrb[0].mxu0
      %6532 = vdwg.mxu0
      %v6534 = vsel %vm1096, %v5604, 0
      %v6537 = vsel %vm1096, %v5609, 0
      %v6540 = vsel %vm1096, %v5614, 0
      %v6543 = vsel %vm1096, %v5619, 0
      %v6546 = vsel %vm1096, %v5624, 0
      %v6549 = vsel %vm1096, %v5629, 0
      %v6552 = vsel %vm1096, %v5634, 0
      %v6555 = vsel %vm1096, %v5639, 0
      %v6558 = vsel %vm1096, %v5644, 0
      %v6561 = vsel %vm1096, %v5649, 0
      %v6564 = vsel %vm1096, %v5654, 0
      %v6567 = vsel %vm1096, %v5659, 0
      %v6570 = vsel %vm1096, %v5664, 0
      %v6573 = vsel %vm1096, %v5669, 0
      %v6576 = vsel %vm1096, %v5674, 0
      %v6579 = vsel %vm1096, %v5679, 0
      %6581 = vmatprep.subr.mxu0 0.0
      %6582 = vmatpush1.msra.mxu0 %v391
      %6583 = vmatprep.subr.mxu0 0.0
      %6584 = vmatpush1.msra.mxu0 0.0
      %6585 = vmatprep.subr.mxu0 0.0
      %6586 = vmatpush1.msra.mxu0 0.0
      %6587 = vmatprep.subr.mxu0 0.0
      %6588 = vmatpush1.msra.mxu0 0.0
      %6589 = vmatprep.subr.mxu0 0.0
      %6590 = vmatpush1.msra.mxu0 0.0
      %6591 = vmatprep.subr.mxu0 0.0
      %6592 = vmatpush1.msra.mxu0 0.0
      %6593 = vmatprep.subr.mxu0 0.0
      %6594 = vmatpush1.msra.mxu0 0.0
      %6595 = vmatprep.subr.mxu0 0.0
      %6596 = vmatpush1.msra.mxu0 0.0
      %6597 = vmatprep.subr.mxu0 0.0
      %6598 = vmatpush1.msra.mxu0 0.0
      %6599 = vmatprep.subr.mxu0 0.0
      %6600 = vmatpush1.msra.mxu0 0.0
      %6601 = vmatprep.subr.mxu0 0.0
      %6602 = vmatpush1.msra.mxu0 0.0
      %6603 = vmatprep.subr.mxu0 0.0
      %6604 = vmatpush1.msra.mxu0 0.0
      %6605 = vmatprep.subr.mxu0 0.0
      %6606 = vmatpush1.msra.mxu0 0.0
      %6607 = vmatprep.subr.mxu0 0.0
      %6608 = vmatpush1.msra.mxu0 0.0
      %6609 = vmatprep.subr.mxu0 0.0
      %6610 = vmatpush1.msra.mxu0 0.0
      %6611 = vmatprep.subr.mxu0 0.0
      %6612 = vmatpush1.msra.mxu0 0.0
      %6613 = vmatprep.subr.mxu0 0.0
      %6614 = vmatpush1.msra.mxu0 0.0
      %6615 = vmatprep.subr.mxu0 0.0
      %6616 = vmatpush1.msra.mxu0 0.0
      %6617 = vmatprep.subr.mxu0 0.0
      %6618 = vmatpush1.msra.mxu0 0.0
      %6619 = vmatprep.subr.mxu0 0.0
      %6620 = vmatpush1.msra.mxu0 0.0
      %6621 = vmatprep.subr.mxu0 0.0
      %6622 = vmatpush1.msra.mxu0 0.0
      %6623 = vmatprep.subr.mxu0 0.0
      %6624 = vmatpush1.msra.mxu0 0.0
      %6625 = vmatprep.subr.mxu0 0.0
      %6626 = vmatpush1.msra.mxu0 0.0
      %6627 = vmatprep.subr.mxu0 0.0
      %6628 = vmatpush1.msra.mxu0 0.0
      %6629 = vmatprep.subr.mxu0 0.0
      %6630 = vmatpush1.msra.mxu0 0.0
      %6631 = vmatprep.subr.mxu0 0.0
      %6632 = vmatpush1.msra.mxu0 0.0
      %6633 = vmatprep.subr.mxu0 0.0
      %6634 = vmatpush1.msra.mxu0 0.0
      %6635 = vmatprep.subr.mxu0 0.0
      %6636 = vmatpush1.msra.mxu0 0.0
      %6637 = vmatprep.subr.mxu0 0.0
      %6638 = vmatpush1.msra.mxu0 0.0
      %6639 = vmatprep.subr.mxu0 0.0
      %6640 = vmatpush1.msra.mxu0 0.0
      %6641 = vmatprep.subr.mxu0 0.0
      %6642 = vmatpush1.msra.mxu0 0.0
      %6643 = vmatprep.subr.mxu0 0.0
      %6644 = vmatpush1.msra.mxu0 0.0
      %6645 = vmatprep.mubr.f32.mxu0 0.0
      %6646 = vmatmul.mubr.f32.gmra.mrb[0].mxu0 %v6534
      %v6647 = vpop.f32.mrb[0].mxu0
      %v6648 = vadd.f32 %v6455, %v6647
      %v6649 = vpop.f32.mrb[0].mxu0
      %6650 = vmatprep.mubr.f32.mxu0 0.0
      %6651 = vmatmul.mubr.f32.gmra.mrb[0].mxu0 %v6537
      %v6652 = vpop.f32.mrb[0].mxu0
      %v6653 = vadd.f32 %v6460, %v6652
      %v6654 = vpop.f32.mrb[0].mxu0
      %6655 = vmatprep.mubr.f32.mxu0 0.0
      %6656 = vmatmul.mubr.f32.gmra.mrb[0].mxu0 %v6540
      %v6657 = vpop.f32.mrb[0].mxu0
      %v6658 = vadd.f32 %v6465, %v6657
      %v6659 = vpop.f32.mrb[0].mxu0
      %6660 = vmatprep.mubr.f32.mxu0 0.0
      %6661 = vmatmul.mubr.f32.gmra.mrb[0].mxu0 %v6543
      %v6662 = vpop.f32.mrb[0].mxu0
      %v6663 = vadd.f32 %v6470, %v6662
      %v6664 = vpop.f32.mrb[0].mxu0
      %6665 = vmatprep.mubr.f32.mxu0 0.0
      %6666 = vmatmul.mubr.f32.gmra.mrb[0].mxu0 %v6546
      %v6667 = vpop.f32.mrb[0].mxu0
      %v6668 = vadd.f32 %v6475, %v6667
      %v6669 = vpop.f32.mrb[0].mxu0
      %6670 = vmatprep.mubr.f32.mxu0 0.0
      %6671 = vmatmul.mubr.f32.gmra.mrb[0].mxu0 %v6549
      %v6672 = vpop.f32.mrb[0].mxu0
      %v6673 = vadd.f32 %v6480, %v6672
      %v6674 = vpop.f32.mrb[0].mxu0
      %6675 = vmatprep.mubr.f32.mxu0 0.0
      %6676 = vmatmul.mubr.f32.gmra.mrb[0].mxu0 %v6552
      %v6677 = vpop.f32.mrb[0].mxu0
      %v6678 = vadd.f32 %v6485, %v6677
      %v6679 = vpop.f32.mrb[0].mxu0
      %6680 = vmatprep.mubr.f32.mxu0 0.0
      %6681 = vmatmul.mubr.f32.gmra.mrb[0].mxu0 %v6555
      %v6682 = vpop.f32.mrb[0].mxu0
      %v6683 = vadd.f32 %v6490, %v6682
      %v6684 = vpop.f32.mrb[0].mxu0
      %6685 = vmatprep.mubr.f32.mxu0 0.0
      %6686 = vmatmul.mubr.f32.gmra.mrb[0].mxu0 %v6558
      %v6687 = vpop.f32.mrb[0].mxu0
      %v6688 = vadd.f32 %v6495, %v6687
      %v6689 = vpop.f32.mrb[0].mxu0
      %6690 = vmatprep.mubr.f32.mxu0 0.0
      %6691 = vmatmul.mubr.f32.gmra.mrb[0].mxu0 %v6561
      %v6692 = vpop.f32.mrb[0].mxu0
      %v6693 = vadd.f32 %v6500, %v6692
      %v6694 = vpop.f32.mrb[0].mxu0
      %6695 = vmatprep.mubr.f32.mxu0 0.0
      %6696 = vmatmul.mubr.f32.gmra.mrb[0].mxu0 %v6564
      %v6697 = vpop.f32.mrb[0].mxu0
      %v6698 = vadd.f32 %v6505, %v6697
      %v6699 = vpop.f32.mrb[0].mxu0
      %6700 = vmatprep.mubr.f32.mxu0 0.0
      %6701 = vmatmul.mubr.f32.gmra.mrb[0].mxu0 %v6567
      %v6702 = vpop.f32.mrb[0].mxu0
      %v6703 = vadd.f32 %v6510, %v6702
      %v6704 = vpop.f32.mrb[0].mxu0
      %6705 = vmatprep.mubr.f32.mxu0 0.0
      %6706 = vmatmul.mubr.f32.gmra.mrb[0].mxu0 %v6570
      %v6707 = vpop.f32.mrb[0].mxu0
      %v6708 = vadd.f32 %v6515, %v6707
      %v6709 = vpop.f32.mrb[0].mxu0
      %6710 = vmatprep.mubr.f32.mxu0 0.0
      %6711 = vmatmul.mubr.f32.gmra.mrb[0].mxu0 %v6573
      %v6712 = vpop.f32.mrb[0].mxu0
      %v6713 = vadd.f32 %v6520, %v6712
      %v6714 = vpop.f32.mrb[0].mxu0
      %6715 = vmatprep.mubr.f32.mxu0 0.0
      %6716 = vmatmul.mubr.f32.gmra.mrb[0].mxu0 %v6576
      %v6717 = vpop.f32.mrb[0].mxu0
      %v6718 = vadd.f32 %v6525, %v6717
      %v6719 = vpop.f32.mrb[0].mxu0
      %6720 = vmatprep.mubr.f32.mxu0 0.0
      %6721 = vmatmul.mubr.f32.gmra.mrb[0].mxu0 %v6579
      %v6722 = vpop.f32.mrb[0].mxu0
      %v6723 = vadd.f32 %v6530, %v6722
      %v6724 = vpop.f32.mrb[0].mxu0
      %6725 = vdwg.mxu0
      %6726 = vrot.lane.b32.xlu0 %v4684, 112
      %v6727 = vpop.permute.xlu0 %6726
      %6728 = vrot.lane.b32.xlu0 %v4685, 112
      %v6729 = vpop.permute.xlu0 %6728
      %6730 = vrot.lane.b32.xlu0 %v4686, 112
      %v6731 = vpop.permute.xlu0 %6730
      %6732 = vrot.lane.b32.xlu0 %v4687, 112
      %v6733 = vpop.permute.xlu0 %6732
      %6734 = vrot.lane.b32.xlu0 %v4688, 112
      %v6735 = vpop.permute.xlu0 %6734
      %6736 = vrot.lane.b32.xlu0 %v4689, 112
      %v6737 = vpop.permute.xlu0 %6736
      %6738 = vrot.lane.b32.xlu0 %v4690, 112
      %v6739 = vpop.permute.xlu0 %6738
      %6740 = vrot.lane.b32.xlu0 %v4691, 112
      %v6741 = vpop.permute.xlu0 %6740
      %6742 = vrot.lane.b32.xlu0 %v4692, 112
      %v6743 = vpop.permute.xlu0 %6742
      %6744 = vrot.lane.b32.xlu0 %v4693, 112
      %v6745 = vpop.permute.xlu0 %6744
      %6746 = vrot.lane.b32.xlu0 %v4694, 112
      %v6747 = vpop.permute.xlu0 %6746
      %6748 = vrot.lane.b32.xlu0 %v4695, 112
      %v6749 = vpop.permute.xlu0 %6748
      %6750 = vrot.lane.b32.xlu0 %v4696, 112
      %v6751 = vpop.permute.xlu0 %6750
      %6752 = vrot.lane.b32.xlu0 %v4697, 112
      %v6753 = vpop.permute.xlu0 %6752
      %6754 = vrot.lane.b32.xlu0 %v4698, 112
      %v6755 = vpop.permute.xlu0 %6754
      %6756 = vrot.lane.b32.xlu0 %v4699, 112
      %v6757 = vpop.permute.xlu0 %6756
      %6758 = vrot.lane.b32.xlu0 %v4815, 112
      %v6759 = vpop.permute.xlu0 %6758
      %6760 = vrot.lane.b32.xlu0 %v4820, 112
      %v6761 = vpop.permute.xlu0 %6760
      %6762 = vrot.lane.b32.xlu0 %v4825, 112
      %v6763 = vpop.permute.xlu0 %6762
      %6764 = vrot.lane.b32.xlu0 %v4830, 112
      %v6765 = vpop.permute.xlu0 %6764
      %6766 = vrot.lane.b32.xlu0 %v4835, 112
      %v6767 = vpop.permute.xlu0 %6766
      %6768 = vrot.lane.b32.xlu0 %v4840, 112
      %v6769 = vpop.permute.xlu0 %6768
      %6770 = vrot.lane.b32.xlu0 %v4845, 112
      %v6771 = vpop.permute.xlu0 %6770
      %6772 = vrot.lane.b32.xlu0 %v4850, 112
      %v6773 = vpop.permute.xlu0 %6772
      %6774 = vrot.lane.b32.xlu0 %v4855, 112
      %v6775 = vpop.permute.xlu0 %6774
      %6776 = vrot.lane.b32.xlu0 %v4860, 112
      %v6777 = vpop.permute.xlu0 %6776
      %6778 = vrot.lane.b32.xlu0 %v4865, 112
      %v6779 = vpop.permute.xlu0 %6778
      %6780 = vrot.lane.b32.xlu0 %v4870, 112
      %v6781 = vpop.permute.xlu0 %6780
      %6782 = vrot.lane.b32.xlu0 %v4875, 112
      %v6783 = vpop.permute.xlu0 %6782
      %6784 = vrot.lane.b32.xlu0 %v4880, 112
      %v6785 = vpop.permute.xlu0 %6784
      %6786 = vrot.lane.b32.xlu0 %v4885, 112
      %v6787 = vpop.permute.xlu0 %6786
      %6788 = vrot.lane.b32.xlu0 %v4890, 112
      %v6789 = vpop.permute.xlu0 %6788
      %v6790 = vsel %vm1096, %v6727, 0
      %v6792 = vsel %vm1096, %v6729, 0
      %v6794 = vsel %vm1096, %v6731, 0
      %v6796 = vsel %vm1096, %v6733, 0
      %v6798 = vsel %vm1096, %v6735, 0
      %v6800 = vsel %vm1096, %v6737, 0
      %v6802 = vsel %vm1096, %v6739, 0
      %v6804 = vsel %vm1096, %v6741, 0
      %v6806 = vsel %vm1096, %v6743, 0
      %v6808 = vsel %vm1096, %v6745, 0
      %v6810 = vsel %vm1096, %v6747, 0
      %v6812 = vsel %vm1096, %v6749, 0
      %v6814 = vsel %vm1096, %v6751, 0
      %v6816 = vsel %vm1096, %v6753, 0
      %v6818 = vsel %vm1096, %v6755, 0
      %v6820 = vsel %vm1096, %v6757, 0
      %v6822 = vsel %vm1096, %v6759, 0
      %v6824 = vsel %vm1096, %v6761, 0
      %v6826 = vsel %vm1096, %v6763, 0
      %v6828 = vsel %vm1096, %v6765, 0
      %v6830 = vsel %vm1096, %v6767, 0
      %v6832 = vsel %vm1096, %v6769, 0
      %v6834 = vsel %vm1096, %v6771, 0
      %v6836 = vsel %vm1096, %v6773, 0
      %v6838 = vsel %vm1096, %v6775, 0
      %v6840 = vsel %vm1096, %v6777, 0
      %v6842 = vsel %vm1096, %v6779, 0
      %v6844 = vsel %vm1096, %v6781, 0
      %v6846 = vsel %vm1096, %v6783, 0
      %v6848 = vsel %vm1096, %v6785, 0
      %v6850 = vsel %vm1096, %v6787, 0
      %v6852 = vsel %vm1096, %v6789, 0
      %6854 = vmatprep.subr.mxu0 0.0
      %6855 = vmatpush1.xpose.msra.mxu0 %v6822
      %6856 = vmatprep.subr.mxu0 0.0
      %6857 = vmatpush1.xpose.msra.mxu0 %v6824
      %6858 = vmatprep.subr.mxu0 0.0
      %6859 = vmatpush1.xpose.msra.mxu0 %v6826
      %6860 = vmatprep.subr.mxu0 0.0
      %6861 = vmatpush1.xpose.msra.mxu0 %v6828
      %6862 = vmatprep.subr.mxu0 0.0
      %6863 = vmatpush1.xpose.msra.mxu0 %v6830
      %6864 = vmatprep.subr.mxu0 0.0
      %6865 = vmatpush1.xpose.msra.mxu0 %v6832
      %6866 = vmatprep.subr.mxu0 0.0
      %6867 = vmatpush1.xpose.msra.mxu0 %v6834
      %6868 = vmatprep.subr.mxu0 0.0
      %6869 = vmatpush1.xpose.msra.mxu0 %v6836
      %6870 = vmatprep.subr.mxu0 0.0
      %6871 = vmatpush1.xpose.msra.mxu0 %v6838
      %6872 = vmatprep.subr.mxu0 0.0
      %6873 = vmatpush1.xpose.msra.mxu0 %v6840
      %6874 = vmatprep.subr.mxu0 0.0
      %6875 = vmatpush1.xpose.msra.mxu0 %v6842
      %6876 = vmatprep.subr.mxu0 0.0
      %6877 = vmatpush1.xpose.msra.mxu0 %v6844
      %6878 = vmatprep.subr.mxu0 0.0
      %6879 = vmatpush1.xpose.msra.mxu0 %v6846
      %6880 = vmatprep.subr.mxu0 0.0
      %6881 = vmatpush1.xpose.msra.mxu0 %v6848
      %6882 = vmatprep.subr.mxu0 0.0
      %6883 = vmatpush1.xpose.msra.mxu0 %v6850
      %6884 = vmatprep.subr.mxu0 0.0
      %6885 = vmatpush1.xpose.msra.mxu0 %v6852
      %6886 = vmatprep.subr.mxu0 0.0
      %6887 = vmatpush1.xpose.msra.mxu0 0.0
      %6888 = vmatprep.subr.mxu0 0.0
      %6889 = vmatpush1.xpose.msra.mxu0 0.0
      %6890 = vmatprep.subr.mxu0 0.0
      %6891 = vmatpush1.xpose.msra.mxu0 0.0
      %6892 = vmatprep.subr.mxu0 0.0
      %6893 = vmatpush1.xpose.msra.mxu0 0.0
      %6894 = vmatprep.subr.mxu0 0.0
      %6895 = vmatpush1.xpose.msra.mxu0 0.0
      %6896 = vmatprep.subr.mxu0 0.0
      %6897 = vmatpush1.xpose.msra.mxu0 0.0
      %6898 = vmatprep.subr.mxu0 0.0
      %6899 = vmatpush1.xpose.msra.mxu0 0.0
      %6900 = vmatprep.subr.mxu0 0.0
      %6901 = vmatpush1.xpose.msra.mxu0 0.0
      %6902 = vmatprep.subr.mxu0 0.0
      %6903 = vmatpush1.xpose.msra.mxu0 0.0
      %6904 = vmatprep.subr.mxu0 0.0
      %6905 = vmatpush1.xpose.msra.mxu0 0.0
      %6906 = vmatprep.subr.mxu0 0.0
      %6907 = vmatpush1.xpose.msra.mxu0 0.0
      %6908 = vmatprep.subr.mxu0 0.0
      %6909 = vmatpush1.xpose.msra.mxu0 0.0
      %6910 = vmatprep.subr.mxu0 0.0
      %6911 = vmatpush1.xpose.msra.mxu0 0.0
      %6912 = vmatprep.subr.mxu0 0.0
      %6913 = vmatpush1.xpose.msra.mxu0 0.0
      %6914 = vmatprep.subr.mxu0 0.0
      %6915 = vmatpush1.xpose.msra.mxu0 0.0
      %6916 = vmatprep.subr.mxu0 0.0
      %6917 = vmatpush1.xpose.msra.mxu0 0.0
      %6918 = vmatprep.mubr.f32.mxu0 0.0
      %6919 = vmatmul.mubr.f32.gmra.mrb[0].mxu0 %v6790
      %v6920 = vpop.f32.mrb[0].mxu0
      %v6921 = vadd.f32 %v5087, %v6920
      %v6922 = vpop.f32.mrb[0].mxu0
      %6923 = vmatprep.mubr.f32.mxu0 0.0
      %6924 = vmatmul.mubr.f32.gmra.mrb[0].mxu0 %v6792
      %v6925 = vpop.f32.mrb[0].mxu0
      %v6926 = vadd.f32 %v5088, %v6925
      %v6927 = vpop.f32.mrb[0].mxu0
      %6928 = vmatprep.mubr.f32.mxu0 0.0
      %6929 = vmatmul.mubr.f32.gmra.mrb[0].mxu0 %v6794
      %v6930 = vpop.f32.mrb[0].mxu0
      %v6931 = vadd.f32 %v5089, %v6930
      %v6932 = vpop.f32.mrb[0].mxu0
      %6933 = vmatprep.mubr.f32.mxu0 0.0
      %6934 = vmatmul.mubr.f32.gmra.mrb[0].mxu0 %v6796
      %v6935 = vpop.f32.mrb[0].mxu0
      %v6936 = vadd.f32 %v5090, %v6935
      %v6937 = vpop.f32.mrb[0].mxu0
      %6938 = vmatprep.mubr.f32.mxu0 0.0
      %6939 = vmatmul.mubr.f32.gmra.mrb[0].mxu0 %v6798
      %v6940 = vpop.f32.mrb[0].mxu0
      %v6941 = vadd.f32 %v5091, %v6940
      %v6942 = vpop.f32.mrb[0].mxu0
      %6943 = vmatprep.mubr.f32.mxu0 0.0
      %6944 = vmatmul.mubr.f32.gmra.mrb[0].mxu0 %v6800
      %v6945 = vpop.f32.mrb[0].mxu0
      %v6946 = vadd.f32 %v5092, %v6945
      %v6947 = vpop.f32.mrb[0].mxu0
      %6948 = vmatprep.mubr.f32.mxu0 0.0
      %6949 = vmatmul.mubr.f32.gmra.mrb[0].mxu0 %v6802
      %v6950 = vpop.f32.mrb[0].mxu0
      %v6951 = vadd.f32 %v5093, %v6950
      %v6952 = vpop.f32.mrb[0].mxu0
      %6953 = vmatprep.mubr.f32.mxu0 0.0
      %6954 = vmatmul.mubr.f32.gmra.mrb[0].mxu0 %v6804
      %v6955 = vpop.f32.mrb[0].mxu0
      %v6956 = vadd.f32 %v5094, %v6955
      %v6957 = vpop.f32.mrb[0].mxu0
      %6958 = vmatprep.mubr.f32.mxu0 0.0
      %6959 = vmatmul.mubr.f32.gmra.mrb[0].mxu0 %v6806
      %v6960 = vpop.f32.mrb[0].mxu0
      %v6961 = vadd.f32 %v5095, %v6960
      %v6962 = vpop.f32.mrb[0].mxu0
      %6963 = vmatprep.mubr.f32.mxu0 0.0
      %6964 = vmatmul.mubr.f32.gmra.mrb[0].mxu0 %v6808
      %v6965 = vpop.f32.mrb[0].mxu0
      %v6966 = vadd.f32 %v5096, %v6965
      %v6967 = vpop.f32.mrb[0].mxu0
      %6968 = vmatprep.mubr.f32.mxu0 0.0
      %6969 = vmatmul.mubr.f32.gmra.mrb[0].mxu0 %v6810
      %v6970 = vpop.f32.mrb[0].mxu0
      %v6971 = vadd.f32 %v5097, %v6970
      %v6972 = vpop.f32.mrb[0].mxu0
      %6973 = vmatprep.mubr.f32.mxu0 0.0
      %6974 = vmatmul.mubr.f32.gmra.mrb[0].mxu0 %v6812
      %v6975 = vpop.f32.mrb[0].mxu0
      %v6976 = vadd.f32 %v5098, %v6975
      %v6977 = vpop.f32.mrb[0].mxu0
      %6978 = vmatprep.mubr.f32.mxu0 0.0
      %6979 = vmatmul.mubr.f32.gmra.mrb[0].mxu0 %v6814
      %v6980 = vpop.f32.mrb[0].mxu0
      %v6981 = vadd.f32 %v5099, %v6980
      %v6982 = vpop.f32.mrb[0].mxu0
      %6983 = vmatprep.mubr.f32.mxu0 0.0
      %6984 = vmatmul.mubr.f32.gmra.mrb[0].mxu0 %v6816
      %v6985 = vpop.f32.mrb[0].mxu0
      %v6986 = vadd.f32 %v5100, %v6985
      %v6987 = vpop.f32.mrb[0].mxu0
      %6988 = vmatprep.mubr.f32.mxu0 0.0
      %6989 = vmatmul.mubr.f32.gmra.mrb[0].mxu0 %v6818
      %v6990 = vpop.f32.mrb[0].mxu0
      %v6991 = vadd.f32 %v5101, %v6990
      %v6992 = vpop.f32.mrb[0].mxu0
      %6993 = vmatprep.mubr.f32.mxu0 0.0
      %6994 = vmatmul.mubr.f32.gmra.mrb[0].mxu0 %v6820
      %v6995 = vpop.f32.mrb[0].mxu0
      %v6996 = vadd.f32 %v5102, %v6995
      %v6997 = vpop.f32.mrb[0].mxu0
      %6998 = vdwg.mxu0
      %6999 = vmax.xlane.f32.xlu0 %v6921
      %v7000 = vpop.xlane.xlu0 %6999
      %7001 = vmax.xlane.f32.xlu0 %v6926
      %v7002 = vpop.xlane.xlu0 %7001
      %7003 = vmax.xlane.f32.xlu0 %v6931
      %v7004 = vpop.xlane.xlu0 %7003
      %7005 = vmax.xlane.f32.xlu0 %v6936
      %v7006 = vpop.xlane.xlu0 %7005
      %7007 = vmax.xlane.f32.xlu0 %v6941
      %v7008 = vpop.xlane.xlu0 %7007
      %7009 = vmax.xlane.f32.xlu0 %v6946
      %v7010 = vpop.xlane.xlu0 %7009
      %7011 = vmax.xlane.f32.xlu0 %v6951
      %v7012 = vpop.xlane.xlu0 %7011
      %7013 = vmax.xlane.f32.xlu0 %v6956
      %v7014 = vpop.xlane.xlu0 %7013
      %7015 = vmax.xlane.f32.xlu0 %v6961
      %v7016 = vpop.xlane.xlu0 %7015
      %7017 = vmax.xlane.f32.xlu0 %v6966
      %v7018 = vpop.xlane.xlu0 %7017
      %7019 = vmax.xlane.f32.xlu0 %v6971
      %v7020 = vpop.xlane.xlu0 %7019
      %7021 = vmax.xlane.f32.xlu0 %v6976
      %v7022 = vpop.xlane.xlu0 %7021
      %7023 = vmax.xlane.f32.xlu0 %v6981
      %v7024 = vpop.xlane.xlu0 %7023
      %7025 = vmax.xlane.f32.xlu0 %v6986
      %v7026 = vpop.xlane.xlu0 %7025
      %7027 = vmax.xlane.f32.xlu0 %v6991
      %v7028 = vpop.xlane.xlu0 %7027
      %7029 = vmax.xlane.f32.xlu0 %v6996
      %v7030 = vpop.xlane.xlu0 %7029
      %v7031 = vsub.f32 %v6921, %v7000
      %v7032 = vsub.f32 %v6926, %v7002
      %v7033 = vsub.f32 %v6931, %v7004
      %v7034 = vsub.f32 %v6936, %v7006
      %v7035 = vsub.f32 %v6941, %v7008
      %v7036 = vsub.f32 %v6946, %v7010
      %v7037 = vsub.f32 %v6951, %v7012
      %v7038 = vsub.f32 %v6956, %v7014
      %v7039 = vsub.f32 %v6961, %v7016
      %v7040 = vsub.f32 %v6966, %v7018
      %v7041 = vsub.f32 %v6971, %v7020
      %v7042 = vsub.f32 %v6976, %v7022
      %v7043 = vsub.f32 %v6981, %v7024
      %v7044 = vsub.f32 %v6986, %v7026
      %v7045 = vsub.f32 %v6991, %v7028
      %v7046 = vsub.f32 %v6996, %v7030
      %v7047 = vmul.f32 %v7031, 1.442695
      %v7048 = vpow.pop %v7047
      %v7049 = vmul.f32 %v7032, 1.442695
      %v7050 = vpow.pop %v7049
      %v7051 = vmul.f32 %v7033, 1.442695
      %v7052 = vpow.pop %v7051
      %v7053 = vmul.f32 %v7034, 1.442695
      %v7054 = vpow.pop %v7053
      %v7055 = vmul.f32 %v7035, 1.442695
      %v7056 = vpow.pop %v7055
      %v7057 = vmul.f32 %v7036, 1.442695
      %v7058 = vpow.pop %v7057
      %v7059 = vmul.f32 %v7037, 1.442695
      %v7060 = vpow.pop %v7059
      %v7061 = vmul.f32 %v7038, 1.442695
      %v7062 = vpow.pop %v7061
      %v7063 = vmul.f32 %v7039, 1.442695
      %v7064 = vpow.pop %v7063
      %v7065 = vmul.f32 %v7040, 1.442695
      %v7066 = vpow.pop %v7065
      %v7067 = vmul.f32 %v7041, 1.442695
      %v7068 = vpow.pop %v7067
      %v7069 = vmul.f32 %v7042, 1.442695
      %v7070 = vpow.pop %v7069
      %v7071 = vmul.f32 %v7043, 1.442695
      %v7072 = vpow.pop %v7071
      %v7073 = vmul.f32 %v7044, 1.442695
      %v7074 = vpow.pop %v7073
      %v7075 = vmul.f32 %v7045, 1.442695
      %v7076 = vpow.pop %v7075
      %v7077 = vmul.f32 %v7046, 1.442695
      %v7078 = vpow.pop %v7077
      %7079 = vadd.xlane.f32.xlu0 %v7048
      %v7080 = vpop.xlane.xlu0 %7079
      %7081 = vadd.xlane.f32.xlu0 %v7050
      %v7082 = vpop.xlane.xlu0 %7081
      %7083 = vadd.xlane.f32.xlu0 %v7052
      %v7084 = vpop.xlane.xlu0 %7083
      %7085 = vadd.xlane.f32.xlu0 %v7054
      %v7086 = vpop.xlane.xlu0 %7085
      %7087 = vadd.xlane.f32.xlu0 %v7056
      %v7088 = vpop.xlane.xlu0 %7087
      %7089 = vadd.xlane.f32.xlu0 %v7058
      %v7090 = vpop.xlane.xlu0 %7089
      %7091 = vadd.xlane.f32.xlu0 %v7060
      %v7092 = vpop.xlane.xlu0 %7091
      %7093 = vadd.xlane.f32.xlu0 %v7062
      %v7094 = vpop.xlane.xlu0 %7093
      %7095 = vadd.xlane.f32.xlu0 %v7064
      %v7096 = vpop.xlane.xlu0 %7095
      %7097 = vadd.xlane.f32.xlu0 %v7066
      %v7098 = vpop.xlane.xlu0 %7097
      %7099 = vadd.xlane.f32.xlu0 %v7068
      %v7100 = vpop.xlane.xlu0 %7099
      %7101 = vadd.xlane.f32.xlu0 %v7070
      %v7102 = vpop.xlane.xlu0 %7101
      %7103 = vadd.xlane.f32.xlu0 %v7072
      %v7104 = vpop.xlane.xlu0 %7103
      %7105 = vadd.xlane.f32.xlu0 %v7074
      %v7106 = vpop.xlane.xlu0 %7105
      %7107 = vadd.xlane.f32.xlu0 %v7076
      %v7108 = vpop.xlane.xlu0 %7107
      %7109 = vadd.xlane.f32.xlu0 %v7078
      %v7110 = vpop.xlane.xlu0 %7109
      %v7111 = vrcp.pop %v7080
      %v7112 = vrcp.pop %v7082
      %v7113 = vrcp.pop %v7084
      %v7114 = vrcp.pop %v7086
      %v7115 = vrcp.pop %v7088
      %v7116 = vrcp.pop %v7090
      %v7117 = vrcp.pop %v7092
      %v7118 = vrcp.pop %v7094
      %v7119 = vrcp.pop %v7096
      %v7120 = vrcp.pop %v7098
      %v7121 = vrcp.pop %v7100
      %v7122 = vrcp.pop %v7102
      %v7123 = vrcp.pop %v7104
      %v7124 = vrcp.pop %v7106
      %v7125 = vrcp.pop %v7108
      %v7126 = vrcp.pop %v7110
      %v7127 = vmul.f32 %v7111, 0.5
      %v7128 = vmul.f32 %v7112, 0.5
      %v7129 = vmul.f32 %v7113, 0.5
      %v7130 = vmul.f32 %v7114, 0.5
      %v7131 = vmul.f32 %v7115, 0.5
      %v7132 = vmul.f32 %v7116, 0.5
      %v7133 = vmul.f32 %v7117, 0.5
      %v7134 = vmul.f32 %v7118, 0.5
      %v7135 = vmul.f32 %v7119, 0.5
      %v7136 = vmul.f32 %v7120, 0.5
      %v7137 = vmul.f32 %v7121, 0.5
      %v7138 = vmul.f32 %v7122, 0.5
      %v7139 = vmul.f32 %v7123, 0.5
      %v7140 = vmul.f32 %v7124, 0.5
      %v7141 = vmul.f32 %v7125, 0.5
      %v7142 = vmul.f32 %v7126, 0.5
      %v7143 = vmul.f32 %v7048, %v7127
      %v7144 = vmul.f32 %v7050, %v7128
      %v7145 = vmul.f32 %v7052, %v7129
      %v7146 = vmul.f32 %v7054, %v7130
      %v7147 = vmul.f32 %v7056, %v7131
      %v7148 = vmul.f32 %v7058, %v7132
      %v7149 = vmul.f32 %v7060, %v7133
      %v7150 = vmul.f32 %v7062, %v7134
      %v7151 = vmul.f32 %v7064, %v7135
      %v7152 = vmul.f32 %v7066, %v7136
      %v7153 = vmul.f32 %v7068, %v7137
      %v7154 = vmul.f32 %v7070, %v7138
      %v7155 = vmul.f32 %v7072, %v7139
      %v7156 = vmul.f32 %v7074, %v7140
      %v7157 = vmul.f32 %v7076, %v7141
      %v7158 = vmul.f32 %v7078, %v7142
      %v7159 = vadd.f32 %v7143, %v5104
      %v7160 = vadd.f32 %v7144, %v5105
      %v7161 = vadd.f32 %v7145, %v5106
      %v7162 = vadd.f32 %v7146, %v5107
      %v7163 = vadd.f32 %v7147, %v5108
      %v7164 = vadd.f32 %v7148, %v5109
      %v7165 = vadd.f32 %v7149, %v5110
      %v7166 = vadd.f32 %v7150, %v5111
      %v7167 = vadd.f32 %v7151, %v5112
      %v7168 = vadd.f32 %v7152, %v5113
      %v7169 = vadd.f32 %v7153, %v5114
      %v7170 = vadd.f32 %v7154, %v5115
      %v7171 = vadd.f32 %v7155, %v5116
      %v7172 = vadd.f32 %v7156, %v5117
      %v7173 = vadd.f32 %v7157, %v5118
      %v7174 = vadd.f32 %v7158, %v5119
      %7175 = vrot.lane.b32.xlu0 %v5008, 112
      %v7176 = vpop.permute.xlu0 %7175
      %7177 = vrot.lane.b32.xlu0 %v5013, 112
      %v7178 = vpop.permute.xlu0 %7177
      %7179 = vrot.lane.b32.xlu0 %v5018, 112
      %v7180 = vpop.permute.xlu0 %7179
      %7181 = vrot.lane.b32.xlu0 %v5023, 112
      %v7182 = vpop.permute.xlu0 %7181
      %7183 = vrot.lane.b32.xlu0 %v5028, 112
      %v7184 = vpop.permute.xlu0 %7183
      %7185 = vrot.lane.b32.xlu0 %v5033, 112
      %v7186 = vpop.permute.xlu0 %7185
      %7187 = vrot.lane.b32.xlu0 %v5038, 112
      %v7188 = vpop.permute.xlu0 %7187
      %7189 = vrot.lane.b32.xlu0 %v5043, 112
      %v7190 = vpop.permute.xlu0 %7189
      %7191 = vrot.lane.b32.xlu0 %v5048, 112
      %v7192 = vpop.permute.xlu0 %7191
      %7193 = vrot.lane.b32.xlu0 %v5053, 112
      %v7194 = vpop.permute.xlu0 %7193
      %7195 = vrot.lane.b32.xlu0 %v5058, 112
      %v7196 = vpop.permute.xlu0 %7195
      %7197 = vrot.lane.b32.xlu0 %v5063, 112
      %v7198 = vpop.permute.xlu0 %7197
      %7199 = vrot.lane.b32.xlu0 %v5068, 112
      %v7200 = vpop.permute.xlu0 %7199
      %7201 = vrot.lane.b32.xlu0 %v5073, 112
      %v7202 = vpop.permute.xlu0 %7201
      %7203 = vrot.lane.b32.xlu0 %v5078, 112
      %v7204 = vpop.permute.xlu0 %7203
      %7205 = vrot.lane.b32.xlu0 %v5083, 112
      %v7206 = vpop.permute.xlu0 %7205
      %7223 = vmatprep.subr.mxu0 0.0
      %7224 = vmatpush1.msra.mxu0 %v7176
      %7225 = vmatprep.subr.mxu0 0.0
      %7226 = vmatpush1.msra.mxu0 %v7178
      %7227 = vmatprep.subr.mxu0 0.0
      %7228 = vmatpush1.msra.mxu0 %v7180
      %7229 = vmatprep.subr.mxu0 0.0
      %7230 = vmatpush1.msra.mxu0 %v7182
      %7231 = vmatprep.subr.mxu0 0.0
      %7232 = vmatpush1.msra.mxu0 %v7184
      %7233 = vmatprep.subr.mxu0 0.0
      %7234 = vmatpush1.msra.mxu0 %v7186
      %7235 = vmatprep.subr.mxu0 0.0
      %7236 = vmatpush1.msra.mxu0 %v7188
      %7237 = vmatprep.subr.mxu0 0.0
      %7238 = vmatpush1.msra.mxu0 %v7190
      %7239 = vmatprep.subr.mxu0 0.0
      %7240 = vmatpush1.msra.mxu0 %v7192
      %7241 = vmatprep.subr.mxu0 0.0
      %7242 = vmatpush1.msra.mxu0 %v7194
      %7243 = vmatprep.subr.mxu0 0.0
      %7244 = vmatpush1.msra.mxu0 %v7196
      %7245 = vmatprep.subr.mxu0 0.0
      %7246 = vmatpush1.msra.mxu0 %v7198
      %7247 = vmatprep.subr.mxu0 0.0
      %7248 = vmatpush1.msra.mxu0 %v7200
      %7249 = vmatprep.subr.mxu0 0.0
      %7250 = vmatpush1.msra.mxu0 %v7202
      %7251 = vmatprep.subr.mxu0 0.0
      %7252 = vmatpush1.msra.mxu0 %v7204
      %7253 = vmatprep.subr.mxu0 0.0
      %7254 = vmatpush1.msra.mxu0 %v7206
      %7255 = vmatprep.subr.mxu0 0.0
      %7256 = vmatpush1.msra.mxu0 0.0
      %7257 = vmatprep.subr.mxu0 0.0
      %7258 = vmatpush1.msra.mxu0 0.0
      %7259 = vmatprep.subr.mxu0 0.0
      %7260 = vmatpush1.msra.mxu0 0.0
      %7261 = vmatprep.subr.mxu0 0.0
      %7262 = vmatpush1.msra.mxu0 0.0
      %7263 = vmatprep.subr.mxu0 0.0
      %7264 = vmatpush1.msra.mxu0 0.0
      %7265 = vmatprep.subr.mxu0 0.0
      %7266 = vmatpush1.msra.mxu0 0.0
      %7267 = vmatprep.subr.mxu0 0.0
      %7268 = vmatpush1.msra.mxu0 0.0
      %7269 = vmatprep.subr.mxu0 0.0
      %7270 = vmatpush1.msra.mxu0 0.0
      %7271 = vmatprep.subr.mxu0 0.0
      %7272 = vmatpush1.msra.mxu0 0.0
      %7273 = vmatprep.subr.mxu0 0.0
      %7274 = vmatpush1.msra.mxu0 0.0
      %7275 = vmatprep.subr.mxu0 0.0
      %7276 = vmatpush1.msra.mxu0 0.0
      %7277 = vmatprep.subr.mxu0 0.0
      %7278 = vmatpush1.msra.mxu0 0.0
      %7279 = vmatprep.subr.mxu0 0.0
      %7280 = vmatpush1.msra.mxu0 0.0
      %7281 = vmatprep.subr.mxu0 0.0
      %7282 = vmatpush1.msra.mxu0 0.0
      %7283 = vmatprep.subr.mxu0 0.0
      %7284 = vmatpush1.msra.mxu0 0.0
      %7285 = vmatprep.subr.mxu0 0.0
      %7286 = vmatpush1.msra.mxu0 0.0
      %7287 = vmatprep.mubr.f32.mxu0 0.0
      %7288 = vmatmul.mubr.f32.gmra.mrb[0].mxu0 %v7159
      %v7289 = vpop.f32.mrb[0].mxu0
      %v7290 = vadd.f32 0.0, %v7289
      %v7291 = vpop.f32.mrb[0].mxu0
      %7292 = vmatprep.mubr.f32.mxu0 0.0
      %7293 = vmatmul.mubr.f32.gmra.mrb[0].mxu0 %v7160
      %v7294 = vpop.f32.mrb[0].mxu0
      %v7295 = vadd.f32 0.0, %v7294
      %v7296 = vpop.f32.mrb[0].mxu0
      %7297 = vmatprep.mubr.f32.mxu0 0.0
      %7298 = vmatmul.mubr.f32.gmra.mrb[0].mxu0 %v7161
      %v7299 = vpop.f32.mrb[0].mxu0
      %v7300 = vadd.f32 0.0, %v7299
      %v7301 = vpop.f32.mrb[0].mxu0
      %7302 = vmatprep.mubr.f32.mxu0 0.0
      %7303 = vmatmul.mubr.f32.gmra.mrb[0].mxu0 %v7162
      %v7304 = vpop.f32.mrb[0].mxu0
      %v7305 = vadd.f32 0.0, %v7304
      %v7306 = vpop.f32.mrb[0].mxu0
      %7307 = vmatprep.mubr.f32.mxu0 0.0
      %7308 = vmatmul.mubr.f32.gmra.mrb[0].mxu0 %v7163
      %v7309 = vpop.f32.mrb[0].mxu0
      %v7310 = vadd.f32 0.0, %v7309
      %v7311 = vpop.f32.mrb[0].mxu0
      %7312 = vmatprep.mubr.f32.mxu0 0.0
      %7313 = vmatmul.mubr.f32.gmra.mrb[0].mxu0 %v7164
      %v7314 = vpop.f32.mrb[0].mxu0
      %v7315 = vadd.f32 0.0, %v7314
      %v7316 = vpop.f32.mrb[0].mxu0
      %7317 = vmatprep.mubr.f32.mxu0 0.0
      %7318 = vmatmul.mubr.f32.gmra.mrb[0].mxu0 %v7165
      %v7319 = vpop.f32.mrb[0].mxu0
      %v7320 = vadd.f32 0.0, %v7319
      %v7321 = vpop.f32.mrb[0].mxu0
      %7322 = vmatprep.mubr.f32.mxu0 0.0
      %7323 = vmatmul.mubr.f32.gmra.mrb[0].mxu0 %v7166
      %v7324 = vpop.f32.mrb[0].mxu0
      %v7325 = vadd.f32 0.0, %v7324
      %v7326 = vpop.f32.mrb[0].mxu0
      %7327 = vmatprep.mubr.f32.mxu0 0.0
      %7328 = vmatmul.mubr.f32.gmra.mrb[0].mxu0 %v7167
      %v7329 = vpop.f32.mrb[0].mxu0
      %v7330 = vadd.f32 0.0, %v7329
      %v7331 = vpop.f32.mrb[0].mxu0
      %7332 = vmatprep.mubr.f32.mxu0 0.0
      %7333 = vmatmul.mubr.f32.gmra.mrb[0].mxu0 %v7168
      %v7334 = vpop.f32.mrb[0].mxu0
      %v7335 = vadd.f32 0.0, %v7334
      %v7336 = vpop.f32.mrb[0].mxu0
      %7337 = vmatprep.mubr.f32.mxu0 0.0
      %7338 = vmatmul.mubr.f32.gmra.mrb[0].mxu0 %v7169
      %v7339 = vpop.f32.mrb[0].mxu0
      %v7340 = vadd.f32 0.0, %v7339
      %v7341 = vpop.f32.mrb[0].mxu0
      %7342 = vmatprep.mubr.f32.mxu0 0.0
      %7343 = vmatmul.mubr.f32.gmra.mrb[0].mxu0 %v7170
      %v7344 = vpop.f32.mrb[0].mxu0
      %v7345 = vadd.f32 0.0, %v7344
      %v7346 = vpop.f32.mrb[0].mxu0
      %7347 = vmatprep.mubr.f32.mxu0 0.0
      %7348 = vmatmul.mubr.f32.gmra.mrb[0].mxu0 %v7171
      %v7349 = vpop.f32.mrb[0].mxu0
      %v7350 = vadd.f32 0.0, %v7349
      %v7351 = vpop.f32.mrb[0].mxu0
      %7352 = vmatprep.mubr.f32.mxu0 0.0
      %7353 = vmatmul.mubr.f32.gmra.mrb[0].mxu0 %v7172
      %v7354 = vpop.f32.mrb[0].mxu0
      %v7355 = vadd.f32 0.0, %v7354
      %v7356 = vpop.f32.mrb[0].mxu0
      %7357 = vmatprep.mubr.f32.mxu0 0.0
      %7358 = vmatmul.mubr.f32.gmra.mrb[0].mxu0 %v7173
      %v7359 = vpop.f32.mrb[0].mxu0
      %v7360 = vadd.f32 0.0, %v7359
      %v7361 = vpop.f32.mrb[0].mxu0
      %7362 = vmatprep.mubr.f32.mxu0 0.0
      %7363 = vmatmul.mubr.f32.gmra.mrb[0].mxu0 %v7174
      %v7364 = vpop.f32.mrb[0].mxu0
      %v7365 = vadd.f32 0.0, %v7364
      %v7366 = vpop.f32.mrb[0].mxu0
      %7367 = vdwg.mxu0
      %v7369 = vsel %vm1096, %v7290, 0
      %v7372 = vsel %vm1096, %v7295, 0
      %v7375 = vsel %vm1096, %v7300, 0
      %v7378 = vsel %vm1096, %v7305, 0
      %v7381 = vsel %vm1096, %v7310, 0
      %v7384 = vsel %vm1096, %v7315, 0
      %v7387 = vsel %vm1096, %v7320, 0
      %v7390 = vsel %vm1096, %v7325, 0
      %v7393 = vsel %vm1096, %v7330, 0
      %v7396 = vsel %vm1096, %v7335, 0
      %v7399 = vsel %vm1096, %v7340, 0
      %v7402 = vsel %vm1096, %v7345, 0
      %v7405 = vsel %vm1096, %v7350, 0
      %v7408 = vsel %vm1096, %v7355, 0
      %v7411 = vsel %vm1096, %v7360, 0
      %v7414 = vsel %vm1096, %v7365, 0
      %7416 = vmatprep.subr.mxu0 0.0
      %7417 = vmatpush1.msra.mxu0 %v393
      %7418 = vmatprep.subr.mxu0 0.0
      %7419 = vmatpush1.msra.mxu0 0.0
      %7420 = vmatprep.subr.mxu0 0.0
      %7421 = vmatpush1.msra.mxu0 0.0
      %7422 = vmatprep.subr.mxu0 0.0
      %7423 = vmatpush1.msra.mxu0 0.0
      %7424 = vmatprep.subr.mxu0 0.0
      %7425 = vmatpush1.msra.mxu0 0.0
      %7426 = vmatprep.subr.mxu0 0.0
      %7427 = vmatpush1.msra.mxu0 0.0
      %7428 = vmatprep.subr.mxu0 0.0
      %7429 = vmatpush1.msra.mxu0 0.0
      %7430 = vmatprep.subr.mxu0 0.0
      %7431 = vmatpush1.msra.mxu0 0.0
      %7432 = vmatprep.subr.mxu0 0.0
      %7433 = vmatpush1.msra.mxu0 0.0
      %7434 = vmatprep.subr.mxu0 0.0
      %7435 = vmatpush1.msra.mxu0 0.0
      %7436 = vmatprep.subr.mxu0 0.0
      %7437 = vmatpush1.msra.mxu0 0.0
      %7438 = vmatprep.subr.mxu0 0.0
      %7439 = vmatpush1.msra.mxu0 0.0
      %7440 = vmatprep.subr.mxu0 0.0
      %7441 = vmatpush1.msra.mxu0 0.0
      %7442 = vmatprep.subr.mxu0 0.0
      %7443 = vmatpush1.msra.mxu0 0.0
      %7444 = vmatprep.subr.mxu0 0.0
      %7445 = vmatpush1.msra.mxu0 0.0
      %7446 = vmatprep.subr.mxu0 0.0
      %7447 = vmatpush1.msra.mxu0 0.0
      %7448 = vmatprep.subr.mxu0 0.0
      %7449 = vmatpush1.msra.mxu0 0.0
      %7450 = vmatprep.subr.mxu0 0.0
      %7451 = vmatpush1.msra.mxu0 0.0
      %7452 = vmatprep.subr.mxu0 0.0
      %7453 = vmatpush1.msra.mxu0 0.0
      %7454 = vmatprep.subr.mxu0 0.0
      %7455 = vmatpush1.msra.mxu0 0.0
      %7456 = vmatprep.subr.mxu0 0.0
      %7457 = vmatpush1.msra.mxu0 0.0
      %7458 = vmatprep.subr.mxu0 0.0
      %7459 = vmatpush1.msra.mxu0 0.0
      %7460 = vmatprep.subr.mxu0 0.0
      %7461 = vmatpush1.msra.mxu0 0.0
      %7462 = vmatprep.subr.mxu0 0.0
      %7463 = vmatpush1.msra.mxu0 0.0
      %7464 = vmatprep.subr.mxu0 0.0
      %7465 = vmatpush1.msra.mxu0 0.0
      %7466 = vmatprep.subr.mxu0 0.0
      %7467 = vmatpush1.msra.mxu0 0.0
      %7468 = vmatprep.subr.mxu0 0.0
      %7469 = vmatpush1.msra.mxu0 0.0
      %7470 = vmatprep.subr.mxu0 0.0
      %7471 = vmatpush1.msra.mxu0 0.0
      %7472 = vmatprep.subr.mxu0 0.0
      %7473 = vmatpush1.msra.mxu0 0.0
      %7474 = vmatprep.subr.mxu0 0.0
      %7475 = vmatpush1.msra.mxu0 0.0
      %7476 = vmatprep.subr.mxu0 0.0
      %7477 = vmatpush1.msra.mxu0 0.0
      %7478 = vmatprep.subr.mxu0 0.0
      %7479 = vmatpush1.msra.mxu0 0.0
      %7480 = vmatprep.mubr.f32.mxu0 0.0
      %7481 = vmatmul.mubr.f32.gmra.mrb[0].mxu0 %v7369
      %v7482 = vpop.f32.mrb[0].mxu0
      %v7483 = vadd.f32 0.0, %v7482
      %v7484 = vpop.f32.mrb[0].mxu0
      %7485 = vmatprep.mubr.f32.mxu0 0.0
      %7486 = vmatmul.mubr.f32.gmra.mrb[0].mxu0 %v7372
      %v7487 = vpop.f32.mrb[0].mxu0
      %v7488 = vadd.f32 0.0, %v7487
      %v7489 = vpop.f32.mrb[0].mxu0
      %7490 = vmatprep.mubr.f32.mxu0 0.0
      %7491 = vmatmul.mubr.f32.gmra.mrb[0].mxu0 %v7375
      %v7492 = vpop.f32.mrb[0].mxu0
      %v7493 = vadd.f32 0.0, %v7492
      %v7494 = vpop.f32.mrb[0].mxu0
      %7495 = vmatprep.mubr.f32.mxu0 0.0
      %7496 = vmatmul.mubr.f32.gmra.mrb[0].mxu0 %v7378
      %v7497 = vpop.f32.mrb[0].mxu0
      %v7498 = vadd.f32 0.0, %v7497
      %v7499 = vpop.f32.mrb[0].mxu0
      %7500 = vmatprep.mubr.f32.mxu0 0.0
      %7501 = vmatmul.mubr.f32.gmra.mrb[0].mxu0 %v7381
      %v7502 = vpop.f32.mrb[0].mxu0
      %v7503 = vadd.f32 0.0, %v7502
      %v7504 = vpop.f32.mrb[0].mxu0
      %7505 = vmatprep.mubr.f32.mxu0 0.0
      %7506 = vmatmul.mubr.f32.gmra.mrb[0].mxu0 %v7384
      %v7507 = vpop.f32.mrb[0].mxu0
      %v7508 = vadd.f32 0.0, %v7507
      %v7509 = vpop.f32.mrb[0].mxu0
      %7510 = vmatprep.mubr.f32.mxu0 0.0
      %7511 = vmatmul.mubr.f32.gmra.mrb[0].mxu0 %v7387
      %v7512 = vpop.f32.mrb[0].mxu0
      %v7513 = vadd.f32 0.0, %v7512
      %v7514 = vpop.f32.mrb[0].mxu0
      %7515 = vmatprep.mubr.f32.mxu0 0.0
      %7516 = vmatmul.mubr.f32.gmra.mrb[0].mxu0 %v7390
      %v7517 = vpop.f32.mrb[0].mxu0
      %v7518 = vadd.f32 0.0, %v7517
      %v7519 = vpop.f32.mrb[0].mxu0
      %7520 = vmatprep.mubr.f32.mxu0 0.0
      %7521 = vmatmul.mubr.f32.gmra.mrb[0].mxu0 %v7393
      %v7522 = vpop.f32.mrb[0].mxu0
      %v7523 = vadd.f32 0.0, %v7522
      %v7524 = vpop.f32.mrb[0].mxu0
      %7525 = vmatprep.mubr.f32.mxu0 0.0
      %7526 = vmatmul.mubr.f32.gmra.mrb[0].mxu0 %v7396
      %v7527 = vpop.f32.mrb[0].mxu0
      %v7528 = vadd.f32 0.0, %v7527
      %v7529 = vpop.f32.mrb[0].mxu0
      %7530 = vmatprep.mubr.f32.mxu0 0.0
      %7531 = vmatmul.mubr.f32.gmra.mrb[0].mxu0 %v7399
      %v7532 = vpop.f32.mrb[0].mxu0
      %v7533 = vadd.f32 0.0, %v7532
      %v7534 = vpop.f32.mrb[0].mxu0
      %7535 = vmatprep.mubr.f32.mxu0 0.0
      %7536 = vmatmul.mubr.f32.gmra.mrb[0].mxu0 %v7402
      %v7537 = vpop.f32.mrb[0].mxu0
      %v7538 = vadd.f32 0.0, %v7537
      %v7539 = vpop.f32.mrb[0].mxu0
      %7540 = vmatprep.mubr.f32.mxu0 0.0
      %7541 = vmatmul.mubr.f32.gmra.mrb[0].mxu0 %v7405
      %v7542 = vpop.f32.mrb[0].mxu0
      %v7543 = vadd.f32 0.0, %v7542
      %v7544 = vpop.f32.mrb[0].mxu0
      %7545 = vmatprep.mubr.f32.mxu0 0.0
      %7546 = vmatmul.mubr.f32.gmra.mrb[0].mxu0 %v7408
      %v7547 = vpop.f32.mrb[0].mxu0
      %v7548 = vadd.f32 0.0, %v7547
      %v7549 = vpop.f32.mrb[0].mxu0
      %7550 = vmatprep.mubr.f32.mxu0 0.0
      %7551 = vmatmul.mubr.f32.gmra.mrb[0].mxu0 %v7411
      %v7552 = vpop.f32.mrb[0].mxu0
      %v7553 = vadd.f32 0.0, %v7552
      %v7554 = vpop.f32.mrb[0].mxu0
      %7555 = vmatprep.mubr.f32.mxu0 0.0
      %7556 = vmatmul.mubr.f32.gmra.mrb[0].mxu0 %v7414
      %v7557 = vpop.f32.mrb[0].mxu0
      %v7558 = vadd.f32 0.0, %v7557
      %v7559 = vpop.f32.mrb[0].mxu0
      %7560 = vdwg.mxu0
      %v7561 = vadd.f32 %v6648, %v7483
      %v7562 = vadd.f32 %v6653, %v7488
      %v7563 = vadd.f32 %v6658, %v7493
      %v7564 = vadd.f32 %v6663, %v7498
      %v7565 = vadd.f32 %v6668, %v7503
      %v7566 = vadd.f32 %v6673, %v7508
      %v7567 = vadd.f32 %v6678, %v7513
      %v7568 = vadd.f32 %v6683, %v7518
      %v7569 = vadd.f32 %v6688, %v7523
      %v7570 = vadd.f32 %v6693, %v7528
      %v7571 = vadd.f32 %v6698, %v7533
      %v7572 = vadd.f32 %v6703, %v7538
      %v7573 = vadd.f32 %v6708, %v7543
      %v7574 = vadd.f32 %v6713, %v7548
      %v7575 = vadd.f32 %v6718, %v7553
      %v7576 = vadd.f32 %v6723, %v7558
      %7577 = vrot.lane.b32.xlu0 %v4684, 104
      %v7578 = vpop.permute.xlu0 %7577
      %7579 = vrot.lane.b32.xlu0 %v4685, 104
      %v7580 = vpop.permute.xlu0 %7579
      %7581 = vrot.lane.b32.xlu0 %v4686, 104
      %v7582 = vpop.permute.xlu0 %7581
      %7583 = vrot.lane.b32.xlu0 %v4687, 104
      %v7584 = vpop.permute.xlu0 %7583
      %7585 = vrot.lane.b32.xlu0 %v4688, 104
      %v7586 = vpop.permute.xlu0 %7585
      %7587 = vrot.lane.b32.xlu0 %v4689, 104
      %v7588 = vpop.permute.xlu0 %7587
      %7589 = vrot.lane.b32.xlu0 %v4690, 104
      %v7590 = vpop.permute.xlu0 %7589
      %7591 = vrot.lane.b32.xlu0 %v4691, 104
      %v7592 = vpop.permute.xlu0 %7591
      %7593 = vrot.lane.b32.xlu0 %v4692, 104
      %v7594 = vpop.permute.xlu0 %7593
      %7595 = vrot.lane.b32.xlu0 %v4693, 104
      %v7596 = vpop.permute.xlu0 %7595
      %7597 = vrot.lane.b32.xlu0 %v4694, 104
      %v7598 = vpop.permute.xlu0 %7597
      %7599 = vrot.lane.b32.xlu0 %v4695, 104
      %v7600 = vpop.permute.xlu0 %7599
      %7601 = vrot.lane.b32.xlu0 %v4696, 104
      %v7602 = vpop.permute.xlu0 %7601
      %7603 = vrot.lane.b32.xlu0 %v4697, 104
      %v7604 = vpop.permute.xlu0 %7603
      %7605 = vrot.lane.b32.xlu0 %v4698, 104
      %v7606 = vpop.permute.xlu0 %7605
      %7607 = vrot.lane.b32.xlu0 %v4699, 104
      %v7608 = vpop.permute.xlu0 %7607
      %7609 = vrot.lane.b32.xlu0 %v4815, 104
      %v7610 = vpop.permute.xlu0 %7609
      %7611 = vrot.lane.b32.xlu0 %v4820, 104
      %v7612 = vpop.permute.xlu0 %7611
      %7613 = vrot.lane.b32.xlu0 %v4825, 104
      %v7614 = vpop.permute.xlu0 %7613
      %7615 = vrot.lane.b32.xlu0 %v4830, 104
      %v7616 = vpop.permute.xlu0 %7615
      %7617 = vrot.lane.b32.xlu0 %v4835, 104
      %v7618 = vpop.permute.xlu0 %7617
      %7619 = vrot.lane.b32.xlu0 %v4840, 104
      %v7620 = vpop.permute.xlu0 %7619
      %7621 = vrot.lane.b32.xlu0 %v4845, 104
      %v7622 = vpop.permute.xlu0 %7621
      %7623 = vrot.lane.b32.xlu0 %v4850, 104
      %v7624 = vpop.permute.xlu0 %7623
      %7625 = vrot.lane.b32.xlu0 %v4855, 104
      %v7626 = vpop.permute.xlu0 %7625
      %7627 = vrot.lane.b32.xlu0 %v4860, 104
      %v7628 = vpop.permute.xlu0 %7627
      %7629 = vrot.lane.b32.xlu0 %v4865, 104
      %v7630 = vpop.permute.xlu0 %7629
      %7631 = vrot.lane.b32.xlu0 %v4870, 104
      %v7632 = vpop.permute.xlu0 %7631
      %7633 = vrot.lane.b32.xlu0 %v4875, 104
      %v7634 = vpop.permute.xlu0 %7633
      %7635 = vrot.lane.b32.xlu0 %v4880, 104
      %v7636 = vpop.permute.xlu0 %7635
      %7637 = vrot.lane.b32.xlu0 %v4885, 104
      %v7638 = vpop.permute.xlu0 %7637
      %7639 = vrot.lane.b32.xlu0 %v4890, 104
      %v7640 = vpop.permute.xlu0 %7639
      %v7641 = vsel %vm1096, %v7578, 0
      %v7643 = vsel %vm1096, %v7580, 0
      %v7645 = vsel %vm1096, %v7582, 0
      %v7647 = vsel %vm1096, %v7584, 0
      %v7649 = vsel %vm1096, %v7586, 0
      %v7651 = vsel %vm1096, %v7588, 0
      %v7653 = vsel %vm1096, %v7590, 0
      %v7655 = vsel %vm1096, %v7592, 0
      %v7657 = vsel %vm1096, %v7594, 0
      %v7659 = vsel %vm1096, %v7596, 0
      %v7661 = vsel %vm1096, %v7598, 0
      %v7663 = vsel %vm1096, %v7600, 0
      %v7665 = vsel %vm1096, %v7602, 0
      %v7667 = vsel %vm1096, %v7604, 0
      %v7669 = vsel %vm1096, %v7606, 0
      %v7671 = vsel %vm1096, %v7608, 0
      %v7673 = vsel %vm1096, %v7610, 0
      %v7675 = vsel %vm1096, %v7612, 0
      %v7677 = vsel %vm1096, %v7614, 0
      %v7679 = vsel %vm1096, %v7616, 0
      %v7681 = vsel %vm1096, %v7618, 0
      %v7683 = vsel %vm1096, %v7620, 0
      %v7685 = vsel %vm1096, %v7622, 0
      %v7687 = vsel %vm1096, %v7624, 0
      %v7689 = vsel %vm1096, %v7626, 0
      %v7691 = vsel %vm1096, %v7628, 0
      %v7693 = vsel %vm1096, %v7630, 0
      %v7695 = vsel %vm1096, %v7632, 0
      %v7697 = vsel %vm1096, %v7634, 0
      %v7699 = vsel %vm1096, %v7636, 0
      %v7701 = vsel %vm1096, %v7638, 0
      %v7703 = vsel %vm1096, %v7640, 0
      %7705 = vmatprep.subr.mxu0 0.0
      %7706 = vmatpush1.xpose.msra.mxu0 %v7673
      %7707 = vmatprep.subr.mxu0 0.0
      %7708 = vmatpush1.xpose.msra.mxu0 %v7675
      %7709 = vmatprep.subr.mxu0 0.0
      %7710 = vmatpush1.xpose.msra.mxu0 %v7677
      %7711 = vmatprep.subr.mxu0 0.0
      %7712 = vmatpush1.xpose.msra.mxu0 %v7679
      %7713 = vmatprep.subr.mxu0 0.0
      %7714 = vmatpush1.xpose.msra.mxu0 %v7681
      %7715 = vmatprep.subr.mxu0 0.0
      %7716 = vmatpush1.xpose.msra.mxu0 %v7683
      %7717 = vmatprep.subr.mxu0 0.0
      %7718 = vmatpush1.xpose.msra.mxu0 %v7685
      %7719 = vmatprep.subr.mxu0 0.0
      %7720 = vmatpush1.xpose.msra.mxu0 %v7687
      %7721 = vmatprep.subr.mxu0 0.0
      %7722 = vmatpush1.xpose.msra.mxu0 %v7689
      %7723 = vmatprep.subr.mxu0 0.0
      %7724 = vmatpush1.xpose.msra.mxu0 %v7691
      %7725 = vmatprep.subr.mxu0 0.0
      %7726 = vmatpush1.xpose.msra.mxu0 %v7693
      %7727 = vmatprep.subr.mxu0 0.0
      %7728 = vmatpush1.xpose.msra.mxu0 %v7695
      %7729 = vmatprep.subr.mxu0 0.0
      %7730 = vmatpush1.xpose.msra.mxu0 %v7697
      %7731 = vmatprep.subr.mxu0 0.0
      %7732 = vmatpush1.xpose.msra.mxu0 %v7699
      %7733 = vmatprep.subr.mxu0 0.0
      %7734 = vmatpush1.xpose.msra.mxu0 %v7701
      %7735 = vmatprep.subr.mxu0 0.0
      %7736 = vmatpush1.xpose.msra.mxu0 %v7703
      %7737 = vmatprep.subr.mxu0 0.0
      %7738 = vmatpush1.xpose.msra.mxu0 0.0
      %7739 = vmatprep.subr.mxu0 0.0
      %7740 = vmatpush1.xpose.msra.mxu0 0.0
      %7741 = vmatprep.subr.mxu0 0.0
      %7742 = vmatpush1.xpose.msra.mxu0 0.0
      %7743 = vmatprep.subr.mxu0 0.0
      %7744 = vmatpush1.xpose.msra.mxu0 0.0
      %7745 = vmatprep.subr.mxu0 0.0
      %7746 = vmatpush1.xpose.msra.mxu0 0.0
      %7747 = vmatprep.subr.mxu0 0.0
      %7748 = vmatpush1.xpose.msra.mxu0 0.0
      %7749 = vmatprep.subr.mxu0 0.0
      %7750 = vmatpush1.xpose.msra.mxu0 0.0
      %7751 = vmatprep.subr.mxu0 0.0
      %7752 = vmatpush1.xpose.msra.mxu0 0.0
      %7753 = vmatprep.subr.mxu0 0.0
      %7754 = vmatpush1.xpose.msra.mxu0 0.0
      %7755 = vmatprep.subr.mxu0 0.0
      %7756 = vmatpush1.xpose.msra.mxu0 0.0
      %7757 = vmatprep.subr.mxu0 0.0
      %7758 = vmatpush1.xpose.msra.mxu0 0.0
      %7759 = vmatprep.subr.mxu0 0.0
      %7760 = vmatpush1.xpose.msra.mxu0 0.0
      %7761 = vmatprep.subr.mxu0 0.0
      %7762 = vmatpush1.xpose.msra.mxu0 0.0
      %7763 = vmatprep.subr.mxu0 0.0
      %7764 = vmatpush1.xpose.msra.mxu0 0.0
      %7765 = vmatprep.subr.mxu0 0.0
      %7766 = vmatpush1.xpose.msra.mxu0 0.0
      %7767 = vmatprep.subr.mxu0 0.0
      %7768 = vmatpush1.xpose.msra.mxu0 0.0
      %7769 = vmatprep.mubr.f32.mxu0 0.0
      %7770 = vmatmul.mubr.f32.gmra.mrb[0].mxu0 %v7641
      %v7771 = vpop.f32.mrb[0].mxu0
      %v7772 = vadd.f32 %v5087, %v7771
      %v7773 = vpop.f32.mrb[0].mxu0
      %7774 = vmatprep.mubr.f32.mxu0 0.0
      %7775 = vmatmul.mubr.f32.gmra.mrb[0].mxu0 %v7643
      %v7776 = vpop.f32.mrb[0].mxu0
      %v7777 = vadd.f32 %v5088, %v7776
      %v7778 = vpop.f32.mrb[0].mxu0
      %7779 = vmatprep.mubr.f32.mxu0 0.0
      %7780 = vmatmul.mubr.f32.gmra.mrb[0].mxu0 %v7645
      %v7781 = vpop.f32.mrb[0].mxu0
      %v7782 = vadd.f32 %v5089, %v7781
      %v7783 = vpop.f32.mrb[0].mxu0
      %7784 = vmatprep.mubr.f32.mxu0 0.0
      %7785 = vmatmul.mubr.f32.gmra.mrb[0].mxu0 %v7647
      %v7786 = vpop.f32.mrb[0].mxu0
      %v7787 = vadd.f32 %v5090, %v7786
      %v7788 = vpop.f32.mrb[0].mxu0
      %7789 = vmatprep.mubr.f32.mxu0 0.0
      %7790 = vmatmul.mubr.f32.gmra.mrb[0].mxu0 %v7649
      %v7791 = vpop.f32.mrb[0].mxu0
      %v7792 = vadd.f32 %v5091, %v7791
      %v7793 = vpop.f32.mrb[0].mxu0
      %7794 = vmatprep.mubr.f32.mxu0 0.0
      %7795 = vmatmul.mubr.f32.gmra.mrb[0].mxu0 %v7651
      %v7796 = vpop.f32.mrb[0].mxu0
      %v7797 = vadd.f32 %v5092, %v7796
      %v7798 = vpop.f32.mrb[0].mxu0
      %7799 = vmatprep.mubr.f32.mxu0 0.0
      %7800 = vmatmul.mubr.f32.gmra.mrb[0].mxu0 %v7653
      %v7801 = vpop.f32.mrb[0].mxu0
      %v7802 = vadd.f32 %v5093, %v7801
      %v7803 = vpop.f32.mrb[0].mxu0
      %7804 = vmatprep.mubr.f32.mxu0 0.0
      %7805 = vmatmul.mubr.f32.gmra.mrb[0].mxu0 %v7655
      %v7806 = vpop.f32.mrb[0].mxu0
      %v7807 = vadd.f32 %v5094, %v7806
      %v7808 = vpop.f32.mrb[0].mxu0
      %7809 = vmatprep.mubr.f32.mxu0 0.0
      %7810 = vmatmul.mubr.f32.gmra.mrb[0].mxu0 %v7657
      %v7811 = vpop.f32.mrb[0].mxu0
      %v7812 = vadd.f32 %v5095, %v7811
      %v7813 = vpop.f32.mrb[0].mxu0
      %7814 = vmatprep.mubr.f32.mxu0 0.0
      %7815 = vmatmul.mubr.f32.gmra.mrb[0].mxu0 %v7659
      %v7816 = vpop.f32.mrb[0].mxu0
      %v7817 = vadd.f32 %v5096, %v7816
      %v7818 = vpop.f32.mrb[0].mxu0
      %7819 = vmatprep.mubr.f32.mxu0 0.0
      %7820 = vmatmul.mubr.f32.gmra.mrb[0].mxu0 %v7661
      %v7821 = vpop.f32.mrb[0].mxu0
      %v7822 = vadd.f32 %v5097, %v7821
      %v7823 = vpop.f32.mrb[0].mxu0
      %7824 = vmatprep.mubr.f32.mxu0 0.0
      %7825 = vmatmul.mubr.f32.gmra.mrb[0].mxu0 %v7663
      %v7826 = vpop.f32.mrb[0].mxu0
      %v7827 = vadd.f32 %v5098, %v7826
      %v7828 = vpop.f32.mrb[0].mxu0
      %7829 = vmatprep.mubr.f32.mxu0 0.0
      %7830 = vmatmul.mubr.f32.gmra.mrb[0].mxu0 %v7665
      %v7831 = vpop.f32.mrb[0].mxu0
      %v7832 = vadd.f32 %v5099, %v7831
      %v7833 = vpop.f32.mrb[0].mxu0
      %7834 = vmatprep.mubr.f32.mxu0 0.0
      %7835 = vmatmul.mubr.f32.gmra.mrb[0].mxu0 %v7667
      %v7836 = vpop.f32.mrb[0].mxu0
      %v7837 = vadd.f32 %v5100, %v7836
      %v7838 = vpop.f32.mrb[0].mxu0
      %7839 = vmatprep.mubr.f32.mxu0 0.0
      %7840 = vmatmul.mubr.f32.gmra.mrb[0].mxu0 %v7669
      %v7841 = vpop.f32.mrb[0].mxu0
      %v7842 = vadd.f32 %v5101, %v7841
      %v7843 = vpop.f32.mrb[0].mxu0
      %7844 = vmatprep.mubr.f32.mxu0 0.0
      %7845 = vmatmul.mubr.f32.gmra.mrb[0].mxu0 %v7671
      %v7846 = vpop.f32.mrb[0].mxu0
      %v7847 = vadd.f32 %v5102, %v7846
      %v7848 = vpop.f32.mrb[0].mxu0
      %7849 = vdwg.mxu0
      %7850 = vmax.xlane.f32.xlu0 %v7772
      %v7851 = vpop.xlane.xlu0 %7850
      %7852 = vmax.xlane.f32.xlu0 %v7777
      %v7853 = vpop.xlane.xlu0 %7852
      %7854 = vmax.xlane.f32.xlu0 %v7782
      %v7855 = vpop.xlane.xlu0 %7854
      %7856 = vmax.xlane.f32.xlu0 %v7787
      %v7857 = vpop.xlane.xlu0 %7856
      %7858 = vmax.xlane.f32.xlu0 %v7792
      %v7859 = vpop.xlane.xlu0 %7858
      %7860 = vmax.xlane.f32.xlu0 %v7797
      %v7861 = vpop.xlane.xlu0 %7860
      %7862 = vmax.xlane.f32.xlu0 %v7802
      %v7863 = vpop.xlane.xlu0 %7862
      %7864 = vmax.xlane.f32.xlu0 %v7807
      %v7865 = vpop.xlane.xlu0 %7864
      %7866 = vmax.xlane.f32.xlu0 %v7812
      %v7867 = vpop.xlane.xlu0 %7866
      %7868 = vmax.xlane.f32.xlu0 %v7817
      %v7869 = vpop.xlane.xlu0 %7868
      %7870 = vmax.xlane.f32.xlu0 %v7822
      %v7871 = vpop.xlane.xlu0 %7870
      %7872 = vmax.xlane.f32.xlu0 %v7827
      %v7873 = vpop.xlane.xlu0 %7872
      %7874 = vmax.xlane.f32.xlu0 %v7832
      %v7875 = vpop.xlane.xlu0 %7874
      %7876 = vmax.xlane.f32.xlu0 %v7837
      %v7877 = vpop.xlane.xlu0 %7876
      %7878 = vmax.xlane.f32.xlu0 %v7842
      %v7879 = vpop.xlane.xlu0 %7878
      %7880 = vmax.xlane.f32.xlu0 %v7847
      %v7881 = vpop.xlane.xlu0 %7880
      %v7882 = vsub.f32 %v7772, %v7851
      %v7883 = vsub.f32 %v7777, %v7853
      %v7884 = vsub.f32 %v7782, %v7855
      %v7885 = vsub.f32 %v7787, %v7857
      %v7886 = vsub.f32 %v7792, %v7859
      %v7887 = vsub.f32 %v7797, %v7861
      %v7888 = vsub.f32 %v7802, %v7863
      %v7889 = vsub.f32 %v7807, %v7865
      %v7890 = vsub.f32 %v7812, %v7867
      %v7891 = vsub.f32 %v7817, %v7869
      %v7892 = vsub.f32 %v7822, %v7871
      %v7893 = vsub.f32 %v7827, %v7873
      %v7894 = vsub.f32 %v7832, %v7875
      %v7895 = vsub.f32 %v7837, %v7877
      %v7896 = vsub.f32 %v7842, %v7879
      %v7897 = vsub.f32 %v7847, %v7881
      %v7898 = vmul.f32 %v7882, 1.442695
      %v7899 = vpow.pop %v7898
      %v7900 = vmul.f32 %v7883, 1.442695
      %v7901 = vpow.pop %v7900
      %v7902 = vmul.f32 %v7884, 1.442695
      %v7903 = vpow.pop %v7902
      %v7904 = vmul.f32 %v7885, 1.442695
      %v7905 = vpow.pop %v7904
      %v7906 = vmul.f32 %v7886, 1.442695
      %v7907 = vpow.pop %v7906
      %v7908 = vmul.f32 %v7887, 1.442695
      %v7909 = vpow.pop %v7908
      %v7910 = vmul.f32 %v7888, 1.442695
      %v7911 = vpow.pop %v7910
      %v7912 = vmul.f32 %v7889, 1.442695
      %v7913 = vpow.pop %v7912
      %v7914 = vmul.f32 %v7890, 1.442695
      %v7915 = vpow.pop %v7914
      %v7916 = vmul.f32 %v7891, 1.442695
      %v7917 = vpow.pop %v7916
      %v7918 = vmul.f32 %v7892, 1.442695
      %v7919 = vpow.pop %v7918
      %v7920 = vmul.f32 %v7893, 1.442695
      %v7921 = vpow.pop %v7920
      %v7922 = vmul.f32 %v7894, 1.442695
      %v7923 = vpow.pop %v7922
      %v7924 = vmul.f32 %v7895, 1.442695
      %v7925 = vpow.pop %v7924
      %v7926 = vmul.f32 %v7896, 1.442695
      %v7927 = vpow.pop %v7926
      %v7928 = vmul.f32 %v7897, 1.442695
      %v7929 = vpow.pop %v7928
      %7930 = vadd.xlane.f32.xlu0 %v7899
      %v7931 = vpop.xlane.xlu0 %7930
      %7932 = vadd.xlane.f32.xlu0 %v7901
      %v7933 = vpop.xlane.xlu0 %7932
      %7934 = vadd.xlane.f32.xlu0 %v7903
      %v7935 = vpop.xlane.xlu0 %7934
      %7936 = vadd.xlane.f32.xlu0 %v7905
      %v7937 = vpop.xlane.xlu0 %7936
      %7938 = vadd.xlane.f32.xlu0 %v7907
      %v7939 = vpop.xlane.xlu0 %7938
      %7940 = vadd.xlane.f32.xlu0 %v7909
      %v7941 = vpop.xlane.xlu0 %7940
      %7942 = vadd.xlane.f32.xlu0 %v7911
      %v7943 = vpop.xlane.xlu0 %7942
      %7944 = vadd.xlane.f32.xlu0 %v7913
      %v7945 = vpop.xlane.xlu0 %7944
      %7946 = vadd.xlane.f32.xlu0 %v7915
      %v7947 = vpop.xlane.xlu0 %7946
      %7948 = vadd.xlane.f32.xlu0 %v7917
      %v7949 = vpop.xlane.xlu0 %7948
      %7950 = vadd.xlane.f32.xlu0 %v7919
      %v7951 = vpop.xlane.xlu0 %7950
      %7952 = vadd.xlane.f32.xlu0 %v7921
      %v7953 = vpop.xlane.xlu0 %7952
      %7954 = vadd.xlane.f32.xlu0 %v7923
      %v7955 = vpop.xlane.xlu0 %7954
      %7956 = vadd.xlane.f32.xlu0 %v7925
      %v7957 = vpop.xlane.xlu0 %7956
      %7958 = vadd.xlane.f32.xlu0 %v7927
      %v7959 = vpop.xlane.xlu0 %7958
      %7960 = vadd.xlane.f32.xlu0 %v7929
      %v7961 = vpop.xlane.xlu0 %7960
      %v7962 = vrcp.pop %v7931
      %v7963 = vrcp.pop %v7933
      %v7964 = vrcp.pop %v7935
      %v7965 = vrcp.pop %v7937
      %v7966 = vrcp.pop %v7939
      %v7967 = vrcp.pop %v7941
      %v7968 = vrcp.pop %v7943
      %v7969 = vrcp.pop %v7945
      %v7970 = vrcp.pop %v7947
      %v7971 = vrcp.pop %v7949
      %v7972 = vrcp.pop %v7951
      %v7973 = vrcp.pop %v7953
      %v7974 = vrcp.pop %v7955
      %v7975 = vrcp.pop %v7957
      %v7976 = vrcp.pop %v7959
      %v7977 = vrcp.pop %v7961
      %v7978 = vmul.f32 %v7962, 0.5
      %v7979 = vmul.f32 %v7963, 0.5
      %v7980 = vmul.f32 %v7964, 0.5
      %v7981 = vmul.f32 %v7965, 0.5
      %v7982 = vmul.f32 %v7966, 0.5
      %v7983 = vmul.f32 %v7967, 0.5
      %v7984 = vmul.f32 %v7968, 0.5
      %v7985 = vmul.f32 %v7969, 0.5
      %v7986 = vmul.f32 %v7970, 0.5
      %v7987 = vmul.f32 %v7971, 0.5
      %v7988 = vmul.f32 %v7972, 0.5
      %v7989 = vmul.f32 %v7973, 0.5
      %v7990 = vmul.f32 %v7974, 0.5
      %v7991 = vmul.f32 %v7975, 0.5
      %v7992 = vmul.f32 %v7976, 0.5
      %v7993 = vmul.f32 %v7977, 0.5
      %v7994 = vmul.f32 %v7899, %v7978
      %v7995 = vmul.f32 %v7901, %v7979
      %v7996 = vmul.f32 %v7903, %v7980
      %v7997 = vmul.f32 %v7905, %v7981
      %v7998 = vmul.f32 %v7907, %v7982
      %v7999 = vmul.f32 %v7909, %v7983
      %v8000 = vmul.f32 %v7911, %v7984
      %v8001 = vmul.f32 %v7913, %v7985
      %v8002 = vmul.f32 %v7915, %v7986
      %v8003 = vmul.f32 %v7917, %v7987
      %v8004 = vmul.f32 %v7919, %v7988
      %v8005 = vmul.f32 %v7921, %v7989
      %v8006 = vmul.f32 %v7923, %v7990
      %v8007 = vmul.f32 %v7925, %v7991
      %v8008 = vmul.f32 %v7927, %v7992
      %v8009 = vmul.f32 %v7929, %v7993
      %v8010 = vadd.f32 %v7994, %v5104
      %v8011 = vadd.f32 %v7995, %v5105
      %v8012 = vadd.f32 %v7996, %v5106
      %v8013 = vadd.f32 %v7997, %v5107
      %v8014 = vadd.f32 %v7998, %v5108
      %v8015 = vadd.f32 %v7999, %v5109
      %v8016 = vadd.f32 %v8000, %v5110
      %v8017 = vadd.f32 %v8001, %v5111
      %v8018 = vadd.f32 %v8002, %v5112
      %v8019 = vadd.f32 %v8003, %v5113
      %v8020 = vadd.f32 %v8004, %v5114
      %v8021 = vadd.f32 %v8005, %v5115
      %v8022 = vadd.f32 %v8006, %v5116
      %v8023 = vadd.f32 %v8007, %v5117
      %v8024 = vadd.f32 %v8008, %v5118
      %v8025 = vadd.f32 %v8009, %v5119
      %8026 = vrot.lane.b32.xlu0 %v5008, 104
      %v8027 = vpop.permute.xlu0 %8026
      %8028 = vrot.lane.b32.xlu0 %v5013, 104
      %v8029 = vpop.permute.xlu0 %8028
      %8030 = vrot.lane.b32.xlu0 %v5018, 104
      %v8031 = vpop.permute.xlu0 %8030
      %8032 = vrot.lane.b32.xlu0 %v5023, 104
      %v8033 = vpop.permute.xlu0 %8032
      %8034 = vrot.lane.b32.xlu0 %v5028, 104
      %v8035 = vpop.permute.xlu0 %8034
      %8036 = vrot.lane.b32.xlu0 %v5033, 104
      %v8037 = vpop.permute.xlu0 %8036
      %8038 = vrot.lane.b32.xlu0 %v5038, 104
      %v8039 = vpop.permute.xlu0 %8038
      %8040 = vrot.lane.b32.xlu0 %v5043, 104
      %v8041 = vpop.permute.xlu0 %8040
      %8042 = vrot.lane.b32.xlu0 %v5048, 104
      %v8043 = vpop.permute.xlu0 %8042
      %8044 = vrot.lane.b32.xlu0 %v5053, 104
      %v8045 = vpop.permute.xlu0 %8044
      %8046 = vrot.lane.b32.xlu0 %v5058, 104
      %v8047 = vpop.permute.xlu0 %8046
      %8048 = vrot.lane.b32.xlu0 %v5063, 104
      %v8049 = vpop.permute.xlu0 %8048
      %8050 = vrot.lane.b32.xlu0 %v5068, 104
      %v8051 = vpop.permute.xlu0 %8050
      %8052 = vrot.lane.b32.xlu0 %v5073, 104
      %v8053 = vpop.permute.xlu0 %8052
      %8054 = vrot.lane.b32.xlu0 %v5078, 104
      %v8055 = vpop.permute.xlu0 %8054
      %8056 = vrot.lane.b32.xlu0 %v5083, 104
      %v8057 = vpop.permute.xlu0 %8056
      %8074 = vmatprep.subr.mxu0 0.0
      %8075 = vmatpush1.msra.mxu0 %v8027
      %8076 = vmatprep.subr.mxu0 0.0
      %8077 = vmatpush1.msra.mxu0 %v8029
      %8078 = vmatprep.subr.mxu0 0.0
      %8079 = vmatpush1.msra.mxu0 %v8031
      %8080 = vmatprep.subr.mxu0 0.0
      %8081 = vmatpush1.msra.mxu0 %v8033
      %8082 = vmatprep.subr.mxu0 0.0
      %8083 = vmatpush1.msra.mxu0 %v8035
      %8084 = vmatprep.subr.mxu0 0.0
      %8085 = vmatpush1.msra.mxu0 %v8037
      %8086 = vmatprep.subr.mxu0 0.0
      %8087 = vmatpush1.msra.mxu0 %v8039
      %8088 = vmatprep.subr.mxu0 0.0
      %8089 = vmatpush1.msra.mxu0 %v8041
      %8090 = vmatprep.subr.mxu0 0.0
      %8091 = vmatpush1.msra.mxu0 %v8043
      %8092 = vmatprep.subr.mxu0 0.0
      %8093 = vmatpush1.msra.mxu0 %v8045
      %8094 = vmatprep.subr.mxu0 0.0
      %8095 = vmatpush1.msra.mxu0 %v8047
      %8096 = vmatprep.subr.mxu0 0.0
      %8097 = vmatpush1.msra.mxu0 %v8049
      %8098 = vmatprep.subr.mxu0 0.0
      %8099 = vmatpush1.msra.mxu0 %v8051
      %8100 = vmatprep.subr.mxu0 0.0
      %8101 = vmatpush1.msra.mxu0 %v8053
      %8102 = vmatprep.subr.mxu0 0.0
      %8103 = vmatpush1.msra.mxu0 %v8055
      %8104 = vmatprep.subr.mxu0 0.0
      %8105 = vmatpush1.msra.mxu0 %v8057
      %8106 = vmatprep.subr.mxu0 0.0
      %8107 = vmatpush1.msra.mxu0 0.0
      %8108 = vmatprep.subr.mxu0 0.0
      %8109 = vmatpush1.msra.mxu0 0.0
      %8110 = vmatprep.subr.mxu0 0.0
      %8111 = vmatpush1.msra.mxu0 0.0
      %8112 = vmatprep.subr.mxu0 0.0
      %8113 = vmatpush1.msra.mxu0 0.0
      %8114 = vmatprep.subr.mxu0 0.0
      %8115 = vmatpush1.msra.mxu0 0.0
      %8116 = vmatprep.subr.mxu0 0.0
      %8117 = vmatpush1.msra.mxu0 0.0
      %8118 = vmatprep.subr.mxu0 0.0
      %8119 = vmatpush1.msra.mxu0 0.0
      %8120 = vmatprep.subr.mxu0 0.0
      %8121 = vmatpush1.msra.mxu0 0.0
      %8122 = vmatprep.subr.mxu0 0.0
      %8123 = vmatpush1.msra.mxu0 0.0
      %8124 = vmatprep.subr.mxu0 0.0
      %8125 = vmatpush1.msra.mxu0 0.0
      %8126 = vmatprep.subr.mxu0 0.0
      %8127 = vmatpush1.msra.mxu0 0.0
      %8128 = vmatprep.subr.mxu0 0.0
      %8129 = vmatpush1.msra.mxu0 0.0
      %8130 = vmatprep.subr.mxu0 0.0
      %8131 = vmatpush1.msra.mxu0 0.0
      %8132 = vmatprep.subr.mxu0 0.0
      %8133 = vmatpush1.msra.mxu0 0.0
      %8134 = vmatprep.subr.mxu0 0.0
      %8135 = vmatpush1.msra.mxu0 0.0
      %8136 = vmatprep.subr.mxu0 0.0
      %8137 = vmatpush1.msra.mxu0 0.0
      %8138 = vmatprep.mubr.f32.mxu0 0.0
      %8139 = vmatmul.mubr.f32.gmra.mrb[0].mxu0 %v8010
      %v8140 = vpop.f32.mrb[0].mxu0
      %v8141 = vadd.f32 0.0, %v8140
      %v8142 = vpop.f32.mrb[0].mxu0
      %8143 = vmatprep.mubr.f32.mxu0 0.0
      %8144 = vmatmul.mubr.f32.gmra.mrb[0].mxu0 %v8011
      %v8145 = vpop.f32.mrb[0].mxu0
      %v8146 = vadd.f32 0.0, %v8145
      %v8147 = vpop.f32.mrb[0].mxu0
      %8148 = vmatprep.mubr.f32.mxu0 0.0
      %8149 = vmatmul.mubr.f32.gmra.mrb[0].mxu0 %v8012
      %v8150 = vpop.f32.mrb[0].mxu0
      %v8151 = vadd.f32 0.0, %v8150
      %v8152 = vpop.f32.mrb[0].mxu0
      %8153 = vmatprep.mubr.f32.mxu0 0.0
      %8154 = vmatmul.mubr.f32.gmra.mrb[0].mxu0 %v8013
      %v8155 = vpop.f32.mrb[0].mxu0
      %v8156 = vadd.f32 0.0, %v8155
      %v8157 = vpop.f32.mrb[0].mxu0
      %8158 = vmatprep.mubr.f32.mxu0 0.0
      %8159 = vmatmul.mubr.f32.gmra.mrb[0].mxu0 %v8014
      %v8160 = vpop.f32.mrb[0].mxu0
      %v8161 = vadd.f32 0.0, %v8160
      %v8162 = vpop.f32.mrb[0].mxu0
      %8163 = vmatprep.mubr.f32.mxu0 0.0
      %8164 = vmatmul.mubr.f32.gmra.mrb[0].mxu0 %v8015
      %v8165 = vpop.f32.mrb[0].mxu0
      %v8166 = vadd.f32 0.0, %v8165
      %v8167 = vpop.f32.mrb[0].mxu0
      %8168 = vmatprep.mubr.f32.mxu0 0.0
      %8169 = vmatmul.mubr.f32.gmra.mrb[0].mxu0 %v8016
      %v8170 = vpop.f32.mrb[0].mxu0
      %v8171 = vadd.f32 0.0, %v8170
      %v8172 = vpop.f32.mrb[0].mxu0
      %8173 = vmatprep.mubr.f32.mxu0 0.0
      %8174 = vmatmul.mubr.f32.gmra.mrb[0].mxu0 %v8017
      %v8175 = vpop.f32.mrb[0].mxu0
      %v8176 = vadd.f32 0.0, %v8175
      %v8177 = vpop.f32.mrb[0].mxu0
      %8178 = vmatprep.mubr.f32.mxu0 0.0
      %8179 = vmatmul.mubr.f32.gmra.mrb[0].mxu0 %v8018
      %v8180 = vpop.f32.mrb[0].mxu0
      %v8181 = vadd.f32 0.0, %v8180
      %v8182 = vpop.f32.mrb[0].mxu0
      %8183 = vmatprep.mubr.f32.mxu0 0.0
      %8184 = vmatmul.mubr.f32.gmra.mrb[0].mxu0 %v8019
      %v8185 = vpop.f32.mrb[0].mxu0
      %v8186 = vadd.f32 0.0, %v8185
      %v8187 = vpop.f32.mrb[0].mxu0
      %8188 = vmatprep.mubr.f32.mxu0 0.0
      %8189 = vmatmul.mubr.f32.gmra.mrb[0].mxu0 %v8020
      %v8190 = vpop.f32.mrb[0].mxu0
      %v8191 = vadd.f32 0.0, %v8190
      %v8192 = vpop.f32.mrb[0].mxu0
      %8193 = vmatprep.mubr.f32.mxu0 0.0
      %8194 = vmatmul.mubr.f32.gmra.mrb[0].mxu0 %v8021
      %v8195 = vpop.f32.mrb[0].mxu0
      %v8196 = vadd.f32 0.0, %v8195
      %v8197 = vpop.f32.mrb[0].mxu0
      %8198 = vmatprep.mubr.f32.mxu0 0.0
      %8199 = vmatmul.mubr.f32.gmra.mrb[0].mxu0 %v8022
      %v8200 = vpop.f32.mrb[0].mxu0
      %v8201 = vadd.f32 0.0, %v8200
      %v8202 = vpop.f32.mrb[0].mxu0
      %8203 = vmatprep.mubr.f32.mxu0 0.0
      %8204 = vmatmul.mubr.f32.gmra.mrb[0].mxu0 %v8023
      %v8205 = vpop.f32.mrb[0].mxu0
      %v8206 = vadd.f32 0.0, %v8205
      %v8207 = vpop.f32.mrb[0].mxu0
      %8208 = vmatprep.mubr.f32.mxu0 0.0
      %8209 = vmatmul.mubr.f32.gmra.mrb[0].mxu0 %v8024
      %v8210 = vpop.f32.mrb[0].mxu0
      %v8211 = vadd.f32 0.0, %v8210
      %v8212 = vpop.f32.mrb[0].mxu0
      %8213 = vmatprep.mubr.f32.mxu0 0.0
      %8214 = vmatmul.mubr.f32.gmra.mrb[0].mxu0 %v8025
      %v8215 = vpop.f32.mrb[0].mxu0
      %v8216 = vadd.f32 0.0, %v8215
      %v8217 = vpop.f32.mrb[0].mxu0
      %8218 = vdwg.mxu0
      %v8220 = vsel %vm1096, %v8141, 0
      %v8223 = vsel %vm1096, %v8146, 0
      %v8226 = vsel %vm1096, %v8151, 0
      %v8229 = vsel %vm1096, %v8156, 0
      %v8232 = vsel %vm1096, %v8161, 0
      %v8235 = vsel %vm1096, %v8166, 0
      %v8238 = vsel %vm1096, %v8171, 0
      %v8241 = vsel %vm1096, %v8176, 0
      %v8244 = vsel %vm1096, %v8181, 0
      %v8247 = vsel %vm1096, %v8186, 0
      %v8250 = vsel %vm1096, %v8191, 0
      %v8253 = vsel %vm1096, %v8196, 0
      %v8256 = vsel %vm1096, %v8201, 0
      %v8259 = vsel %vm1096, %v8206, 0
      %v8262 = vsel %vm1096, %v8211, 0
      %v8265 = vsel %vm1096, %v8216, 0
      %8267 = vmatprep.subr.mxu0 0.0
      %8268 = vmatpush1.msra.mxu0 %v394
      %8269 = vmatprep.subr.mxu0 0.0
      %8270 = vmatpush1.msra.mxu0 0.0
      %8271 = vmatprep.subr.mxu0 0.0
      %8272 = vmatpush1.msra.mxu0 0.0
      %8273 = vmatprep.subr.mxu0 0.0
      %8274 = vmatpush1.msra.mxu0 0.0
      %8275 = vmatprep.subr.mxu0 0.0
      %8276 = vmatpush1.msra.mxu0 0.0
      %8277 = vmatprep.subr.mxu0 0.0
      %8278 = vmatpush1.msra.mxu0 0.0
      %8279 = vmatprep.subr.mxu0 0.0
      %8280 = vmatpush1.msra.mxu0 0.0
      %8281 = vmatprep.subr.mxu0 0.0
      %8282 = vmatpush1.msra.mxu0 0.0
      %8283 = vmatprep.subr.mxu0 0.0
      %8284 = vmatpush1.msra.mxu0 0.0
      %8285 = vmatprep.subr.mxu0 0.0
      %8286 = vmatpush1.msra.mxu0 0.0
      %8287 = vmatprep.subr.mxu0 0.0
      %8288 = vmatpush1.msra.mxu0 0.0
      %8289 = vmatprep.subr.mxu0 0.0
      %8290 = vmatpush1.msra.mxu0 0.0
      %8291 = vmatprep.subr.mxu0 0.0
      %8292 = vmatpush1.msra.mxu0 0.0
      %8293 = vmatprep.subr.mxu0 0.0
      %8294 = vmatpush1.msra.mxu0 0.0
      %8295 = vmatprep.subr.mxu0 0.0
      %8296 = vmatpush1.msra.mxu0 0.0
      %8297 = vmatprep.subr.mxu0 0.0
      %8298 = vmatpush1.msra.mxu0 0.0
      %8299 = vmatprep.subr.mxu0 0.0
      %8300 = vmatpush1.msra.mxu0 0.0
      %8301 = vmatprep.subr.mxu0 0.0
      %8302 = vmatpush1.msra.mxu0 0.0
      %8303 = vmatprep.subr.mxu0 0.0
      %8304 = vmatpush1.msra.mxu0 0.0
      %8305 = vmatprep.subr.mxu0 0.0
      %8306 = vmatpush1.msra.mxu0 0.0
      %8307 = vmatprep.subr.mxu0 0.0
      %8308 = vmatpush1.msra.mxu0 0.0
      %8309 = vmatprep.subr.mxu0 0.0
      %8310 = vmatpush1.msra.mxu0 0.0
      %8311 = vmatprep.subr.mxu0 0.0
      %8312 = vmatpush1.msra.mxu0 0.0
      %8313 = vmatprep.subr.mxu0 0.0
      %8314 = vmatpush1.msra.mxu0 0.0
      %8315 = vmatprep.subr.mxu0 0.0
      %8316 = vmatpush1.msra.mxu0 0.0
      %8317 = vmatprep.subr.mxu0 0.0
      %8318 = vmatpush1.msra.mxu0 0.0
      %8319 = vmatprep.subr.mxu0 0.0
      %8320 = vmatpush1.msra.mxu0 0.0
      %8321 = vmatprep.subr.mxu0 0.0
      %8322 = vmatpush1.msra.mxu0 0.0
      %8323 = vmatprep.subr.mxu0 0.0
      %8324 = vmatpush1.msra.mxu0 0.0
      %8325 = vmatprep.subr.mxu0 0.0
      %8326 = vmatpush1.msra.mxu0 0.0
      %8327 = vmatprep.subr.mxu0 0.0
      %8328 = vmatpush1.msra.mxu0 0.0
      %8329 = vmatprep.subr.mxu0 0.0
      %8330 = vmatpush1.msra.mxu0 0.0
      %8331 = vmatprep.mubr.f32.mxu0 0.0
      %8332 = vmatmul.mubr.f32.gmra.mrb[0].mxu0 %v8220
      %v8333 = vpop.f32.mrb[0].mxu0
      %v8334 = vadd.f32 0.0, %v8333
      %v8335 = vpop.f32.mrb[0].mxu0
      %8336 = vmatprep.mubr.f32.mxu0 0.0
      %8337 = vmatmul.mubr.f32.gmra.mrb[0].mxu0 %v8223
      %v8338 = vpop.f32.mrb[0].mxu0
      %v8339 = vadd.f32 0.0, %v8338
      %v8340 = vpop.f32.mrb[0].mxu0
      %8341 = vmatprep.mubr.f32.mxu0 0.0
      %8342 = vmatmul.mubr.f32.gmra.mrb[0].mxu0 %v8226
      %v8343 = vpop.f32.mrb[0].mxu0
      %v8344 = vadd.f32 0.0, %v8343
      %v8345 = vpop.f32.mrb[0].mxu0
      %8346 = vmatprep.mubr.f32.mxu0 0.0
      %8347 = vmatmul.mubr.f32.gmra.mrb[0].mxu0 %v8229
      %v8348 = vpop.f32.mrb[0].mxu0
      %v8349 = vadd.f32 0.0, %v8348
      %v8350 = vpop.f32.mrb[0].mxu0
      %8351 = vmatprep.mubr.f32.mxu0 0.0
      %8352 = vmatmul.mubr.f32.gmra.mrb[0].mxu0 %v8232
      %v8353 = vpop.f32.mrb[0].mxu0
      %v8354 = vadd.f32 0.0, %v8353
      %v8355 = vpop.f32.mrb[0].mxu0
      %8356 = vmatprep.mubr.f32.mxu0 0.0
      %8357 = vmatmul.mubr.f32.gmra.mrb[0].mxu0 %v8235
      %v8358 = vpop.f32.mrb[0].mxu0
      %v8359 = vadd.f32 0.0, %v8358
      %v8360 = vpop.f32.mrb[0].mxu0
      %8361 = vmatprep.mubr.f32.mxu0 0.0
      %8362 = vmatmul.mubr.f32.gmra.mrb[0].mxu0 %v8238
      %v8363 = vpop.f32.mrb[0].mxu0
      %v8364 = vadd.f32 0.0, %v8363
      %v8365 = vpop.f32.mrb[0].mxu0
      %8366 = vmatprep.mubr.f32.mxu0 0.0
      %8367 = vmatmul.mubr.f32.gmra.mrb[0].mxu0 %v8241
      %v8368 = vpop.f32.mrb[0].mxu0
      %v8369 = vadd.f32 0.0, %v8368
      %v8370 = vpop.f32.mrb[0].mxu0
      %8371 = vmatprep.mubr.f32.mxu0 0.0
      %8372 = vmatmul.mubr.f32.gmra.mrb[0].mxu0 %v8244
      %v8373 = vpop.f32.mrb[0].mxu0
      %v8374 = vadd.f32 0.0, %v8373
      %v8375 = vpop.f32.mrb[0].mxu0
      %8376 = vmatprep.mubr.f32.mxu0 0.0
      %8377 = vmatmul.mubr.f32.gmra.mrb[0].mxu0 %v8247
      %v8378 = vpop.f32.mrb[0].mxu0
      %v8379 = vadd.f32 0.0, %v8378
      %v8380 = vpop.f32.mrb[0].mxu0
      %8381 = vmatprep.mubr.f32.mxu0 0.0
      %8382 = vmatmul.mubr.f32.gmra.mrb[0].mxu0 %v8250
      %v8383 = vpop.f32.mrb[0].mxu0
      %v8384 = vadd.f32 0.0, %v8383
      %v8385 = vpop.f32.mrb[0].mxu0
      %8386 = vmatprep.mubr.f32.mxu0 0.0
      %8387 = vmatmul.mubr.f32.gmra.mrb[0].mxu0 %v8253
      %v8388 = vpop.f32.mrb[0].mxu0
      %v8389 = vadd.f32 0.0, %v8388
      %v8390 = vpop.f32.mrb[0].mxu0
      %8391 = vmatprep.mubr.f32.mxu0 0.0
      %8392 = vmatmul.mubr.f32.gmra.mrb[0].mxu0 %v8256
      %v8393 = vpop.f32.mrb[0].mxu0
      %v8394 = vadd.f32 0.0, %v8393
      %v8395 = vpop.f32.mrb[0].mxu0
      %8396 = vmatprep.mubr.f32.mxu0 0.0
      %8397 = vmatmul.mubr.f32.gmra.mrb[0].mxu0 %v8259
      %v8398 = vpop.f32.mrb[0].mxu0
      %v8399 = vadd.f32 0.0, %v8398
      %v8400 = vpop.f32.mrb[0].mxu0
      %8401 = vmatprep.mubr.f32.mxu0 0.0
      %8402 = vmatmul.mubr.f32.gmra.mrb[0].mxu0 %v8262
      %v8403 = vpop.f32.mrb[0].mxu0
      %v8404 = vadd.f32 0.0, %v8403
      %v8405 = vpop.f32.mrb[0].mxu0
      %8406 = vmatprep.mubr.f32.mxu0 0.0
      %8407 = vmatmul.mubr.f32.gmra.mrb[0].mxu0 %v8265
      %v8408 = vpop.f32.mrb[0].mxu0
      %v8409 = vadd.f32 0.0, %v8408
      %v8410 = vpop.f32.mrb[0].mxu0
      %8411 = vdwg.mxu0
      %v8412 = vadd.f32 %v7561, %v8334
      %v8413 = vadd.f32 %v7562, %v8339
      %v8414 = vadd.f32 %v7563, %v8344
      %v8415 = vadd.f32 %v7564, %v8349
      %v8416 = vadd.f32 %v7565, %v8354
      %v8417 = vadd.f32 %v7566, %v8359
      %v8418 = vadd.f32 %v7567, %v8364
      %v8419 = vadd.f32 %v7568, %v8369
      %v8420 = vadd.f32 %v7569, %v8374
      %v8421 = vadd.f32 %v7570, %v8379
      %v8422 = vadd.f32 %v7571, %v8384
      %v8423 = vadd.f32 %v7572, %v8389
      %v8424 = vadd.f32 %v7573, %v8394
      %v8425 = vadd.f32 %v7574, %v8399
      %v8426 = vadd.f32 %v7575, %v8404
      %v8427 = vadd.f32 %v7576, %v8409
      %v8428 = vadd.f32 %v8412, %v4409
      %v8429 = vadd.f32 %v8413, %v4409
      %v8430 = vadd.f32 %v8414, %v4409
      %v8431 = vadd.f32 %v8415, %v4409
      %v8432 = vadd.f32 %v8416, %v4409
      %v8433 = vadd.f32 %v8417, %v4409
      %v8434 = vadd.f32 %v8418, %v4409
      %v8435 = vadd.f32 %v8419, %v4409
      %v8436 = vadd.f32 %v8420, %v4409
      %v8437 = vadd.f32 %v8421, %v4409
      %v8438 = vadd.f32 %v8422, %v4409
      %v8439 = vadd.f32 %v8423, %v4409
      %v8440 = vadd.f32 %v8424, %v4409
      %v8441 = vadd.f32 %v8425, %v4409
      %v8442 = vadd.f32 %v8426, %v4409
      %v8443 = vadd.f32 %v8427, %v4409
      %8444 = vst.msk [vmem:[%s374 + $0x80] sm:$0xff] %vm456, %v8428
      %8445 = vst.msk [vmem:[%s374 + $0x88] sm:$0xff] %vm456, %v8429
      %8446 = vst.msk [vmem:[%s374 + $0x90] sm:$0xff] %vm456, %v8430
      %8447 = vst.msk [vmem:[%s374 + $0x98] sm:$0xff] %vm456, %v8431
      %8448 = vst.msk [vmem:[%s374 + $0xa0] sm:$0xff] %vm456, %v8432
      %8449 = vst.msk [vmem:[%s374 + $0xa8] sm:$0xff] %vm456, %v8433
      %8450 = vst.msk [vmem:[%s374 + $0xb0] sm:$0xff] %vm456, %v8434
      %8451 = vst.msk [vmem:[%s374 + $0xb8] sm:$0xff] %vm456, %v8435
      %8452 = vst.msk [vmem:[%s374 + $0xc0] sm:$0xff] %vm456, %v8436
      %8453 = vst.msk [vmem:[%s374 + $0xc8] sm:$0xff] %vm456, %v8437
      %8454 = vst.msk [vmem:[%s374 + $0xd0] sm:$0xff] %vm456, %v8438
      %8455 = vst.msk [vmem:[%s374 + $0xd8] sm:$0xff] %vm456, %v8439
      %8456 = vst.msk [vmem:[%s374 + $0xe0] sm:$0xff] %vm456, %v8440
      %8457 = vst.msk [vmem:[%s374 + $0xe8] sm:$0xff] %vm456, %v8441
      %8458 = vst.msk [vmem:[%s374 + $0xf0] sm:$0xff] %vm456, %v8442
      %8459 = vst.msk [vmem:[%s374 + $0xf8] sm:$0xff] %vm456, %v8443
      %s8460 = smul.u32 32, %s18
      %p8461 = scmp.lt.s32.totalorder %s8460, 63
      %s8462 = scalar_select %p8461, %s8460, 63
      %s8463 = smul.addr %s8462, 8
      %s8464 = scalar_lea.vmem %s7, %s8463
      // Predicated region
      $region49: #{tpu_custom_call.1} parent=47 // pred_check
        %p8465 = pneg %p208
      $region50: #{tpu_custom_call.1} parent=47 // pred_check_branch
        %8467 = sbr.rel (%p8465) target = $region52
      $region51: #{tpu_custom_call.1} parent=47 // pred_region
        %s8468 = smul.u32 32, %s18
      $region52: #{tpu_custom_call.1} parent=47 // pred_fallthru
        _
    $region48: #{tpu_custom_call.1} parent=5 // pred_fallthru
      _
    %p8469 = scmp.le.s32.totalorder 2, %s13
    // Predicated region
    $region53: #{tpu_custom_call.1} parent=5 // pred_check
      %p8470 = pneg %p8469
    $region54: #{tpu_custom_call.1} parent=5 // pred_check_branch
      %8472 = sbr.rel (%p8470) target = $region56
    $region55: #{tpu_custom_call.1} parent=5 // pred_region
      %s8473 = ssub.s32 %s13, 2
      // Predicated region
      $region57: #{tpu_custom_call.1} parent=55 // pred_check
        %p8474 = pneg %p214
      $region58: #{tpu_custom_call.1} parent=55 // pred_check_branch
        %8476 = sbr.rel (%p8474) target = $region60
      $region59: #{tpu_custom_call.1} parent=55 // pred_region
        %s8477 = smul.u32 32, %s19
        %p8478 = scmp.lt.s32.totalorder %s8477, 63
        %s8479 = scalar_select %p8478, %s8477, 63
        %s8480 = smul.addr %s8479, 8
        %s8481 = scalar_lea.vmem %s7, %s8480
      $region60: #{tpu_custom_call.1} parent=55 // pred_fallthru
        _
    $region56: #{tpu_custom_call.1} parent=5 // pred_fallthru
      _
  $region6: #{tpu_custom_call.1} parent=0 // loop_footer
    %s17 = sadd.s32 1, %s13
  $region7: #{tpu_custom_call.1} parent=0 // loop_footer_branch
    %12 = sbr.rel target = $region3
  $region8: #{tpu_custom_call.1} parent=0 // loop_exit
    _

</llo_original>
